<compile_context>
chip_gen: v7x
topology: tpu7x:2x2x1
jax: 0.10.0
libtpu: 0.0.40
codegen_flags: <defaults>
</compile_context>

<pallas_src>
import functools

import jax
import jax.numpy as jnp
from jax.experimental import pallas as pl
from jax.experimental.pallas import tpu as pltpu


# ----------------------------------------------------------------------------
# small in-kernel helpers
# ----------------------------------------------------------------------------
def _widen(x):
    """Pad the time (lane) axis with a full copy-width of zeros on each side.

    The concatenation offsets are multiples of the (128-aligned) time width, so
    this lowers to a cheap aligned concat; every conv tap / pooling shift then
    becomes one static slice of this value (a single lane-shift on the XLU),
    hoisted and shared across all output channels.
    """
    z = jnp.zeros_like(x)
    return jnp.concatenate([z, x, z], axis=-1)


def _tap(xw, d, S):
    """xw = _widen(x); returns y with y[..., t] = x[..., t + d], zero outside."""
    assert -S <= d <= S
    return xw[..., S + d: 2 * S + d]


def _elu(v):
    # nn.ELU(alpha=1.0)
    return jnp.where(v > 0, v, jnp.exp(v) - 1.0)


def _bn_affine(gamma, beta, mean, var, eps=0.0):
    # The module builds nn.BatchNorm2d(C, False): the second positional arg is
    # eps, i.e. eps == 0.  Eval-mode BN is a per-channel affine transform.
    scale = gamma / jnp.sqrt(var + eps)
    return scale.astype(jnp.float32), (beta - mean * scale).astype(jnp.float32)


# ----------------------------------------------------------------------------
# the fused EEGNet kernel: one grid step == one batch element, end to end
# ----------------------------------------------------------------------------
def _eegnet_kernel(
    x_ref,                        # VMEM (1, Chans, S)
    w1_ref,                       # SMEM (F1*kL,)          block1 temporal conv
    bn1s_ref, bn1b_ref,           # SMEM (F1,)             BN1 scale / shift
    w2_ref,                       # SMEM (D*F1*Chans,)     block2 depthwise conv
    bn2s_ref, bn2b_ref,           # SMEM (D*F1,)           BN2 scale / shift
    w3d_ref,                      # VMEM (k3, F2, 1)       block3 depthwise taps
    w3p_ref,                      # SMEM (F2*F2,)          block3 pointwise conv
    b3p_ref,                      # SMEM (F2,)             pointwise bias
    bn3s_ref, bn3b_ref,           # SMEM (F2,)             BN3 scale / shift
    wl_ref,                       # VMEM (K, F2, S)        classifier (zero off pooled lanes)
    bl_ref,                       # SMEM (K,)              classifier bias
    o_ref,                        # VMEM (1, 1, S)         logits in lanes [0, K)
    *, Chans, S, kL, F1, D, F2, k3, K, pool1, pool2,
):
    DF1 = D * F1
    mult3 = F2 // DF1
    # SamePadding left pads (ZeroPad2d formula from the module)
    padL1 = kL // 2 + (kL - 2 * (kL // 2)) - 1
    padL3 = k3 // 2 + (k3 - 2 * (k3 // 2)) - 1

    x = x_ref[0]                                  # (Chans, S) f32

    # ---------------- block1: Conv2d(1, F1, (1, kL), same pad) + BN1 ----------------
    xw = _widen(x)
    taps1 = [_tap(xw, s - padL1, S) for s in range(kL)]   # hoisted, shared over F1
    y1 = []
    for f in range(F1):
        acc = taps1[0] * w1_ref[f * kL + 0]
        for s in range(1, kL):
            acc = acc + taps1[s] * w1_ref[f * kL + s]
        y1.append(acc * bn1s_ref[f] + bn1b_ref[f])        # BN1 (eval affine)

    # ------- block2: DepthwiseConv2d((Chans,1), groups=F1) + BN2 + ELU + AvgPool(1,4) -------
    out_rows = []
    for g in range(F1):
        ch_rows = [y1[g][c:c + 1, :] for c in range(Chans)]   # hoisted row views
        for di in range(D):
            o = g * D + di
            acc = ch_rows[0] * w2_ref[o * Chans + 0]
            for c in range(1, Chans):
                acc = acc + ch_rows[c] * w2_ref[o * Chans + c]
            out_rows.append(acc * bn2s_ref[o] + bn2b_ref[o])  # BN2
    y2 = _elu(jnp.concatenate(out_rows, axis=0))              # (DF1, S)

    # AvgPool2d((1, pool1)) kept lane-dense "in place": lane pool1*j holds pooled value j.
    y2w = _widen(y2)
    q = y2
    for i in range(1, pool1):
        q = q + _tap(y2w, i, S)
    q = q * (1.0 / pool1)
    # nn.Dropout: eval-mode identity.

    # ------- block3: SeparableConv2D ((1,k3) depthwise same-pad -> 1x1 pointwise)
    #                 + BN3 + ELU + AvgPool(1, pool2) -------------------------------
    if mult3 > 1:   # replicate each input channel for its depthwise multiplier outputs
        q = jnp.concatenate(
            [q[o // mult3: o // mult3 + 1, :] for o in range(F2)], axis=0)
    qw = _widen(q)
    # depthwise taps operate on the pooled (stride-pool1) lanes
    acc3 = _tap(qw, pool1 * (0 - padL3), S) * w3d_ref[0]
    for s in range(1, k3):
        acc3 = acc3 + _tap(qw, pool1 * (s - padL3), S) * w3d_ref[s]

    # 1x1 pointwise conv (with bias) + BN3, exact f32 VPU FMAs
    d_rows = [acc3[c:c + 1, :] for c in range(F2)]
    u_rows = []
    for p in range(F2):
        u = d_rows[0] * w3p_ref[p * F2 + 0]
        for c in range(1, F2):
            u = u + d_rows[c] * w3p_ref[p * F2 + c]
        u = u + b3p_ref[p]
        u_rows.append(u * bn3s_ref[p] + bn3b_ref[p])
    y3 = _elu(jnp.concatenate(u_rows, axis=0))                # (F2, S)

    # second AvgPool over the already-pooled lanes: lane pool1*pool2*m holds value m.
    y3w = _widen(y3)
    v = y3
    for r in range(1, pool2):
        v = v + _tap(y3w, pool1 * r, S)
    v = v * (1.0 / pool2)

    # ---------------- classifier: Flatten + Linear ----------------
    # wl_ref is zero everywhere except the valid pooled lanes, so a dense
    # multiply + full reduce implements the flattened Linear exactly.
    lane = jax.lax.broadcasted_iota(jnp.int32, (1, S), 1)
    logits = jnp.zeros((1, S), jnp.float32)
    for k in range(K):
        pk = wl_ref[k] * v                                        # (F2, S)
        sk = jnp.sum(jnp.sum(pk, axis=1, keepdims=True), axis=0, keepdims=True)
        sk = sk + bl_ref[k]
        logits = logits + jnp.where(lane == k, 1.0, 0.0) * sk
    o_ref[0] = logits                                             # one dense 128-lane store


# ----------------------------------------------------------------------------
# wrapper: parameter plumbing + pallas_call
# ----------------------------------------------------------------------------
def eegnet_forward(x, p):
    """Eval-mode EEGNet forward.  x: (N, Chans, Samples) float32 -> (N, nb_classes)."""
    N, Chans, S = x.shape
    w1 = jnp.asarray(p["w1"], jnp.float32)
    F1, _, _, kL = w1.shape
    w2 = jnp.asarray(p["w2"], jnp.float32)
    DF1 = w2.shape[0]
    D = DF1 // F1
    w3d = jnp.asarray(p["w3d"], jnp.float32)
    F2, _, _, k3 = w3d.shape
    w3p = jnp.asarray(p["w3p"], jnp.float32).reshape(F2, F2)
    wl = jnp.asarray(p["wl"], jnp.float32)
    K = wl.shape[0]
    pool1, pool2 = 4, 8                       # AvgPool2d((1,4)), AvgPool2d((1,8))
    T3 = S // (pool1 * pool2)

    assert S % 128 == 0, "time axis must be lane aligned (multiple of 128)"
    assert S % (pool1 * pool2) == 0
    assert DF1 % F1 == 0 and F2 % DF1 == 0
    assert wl.shape[1] == F2 * T3

    bn1s, bn1b = _bn_affine(*p["bn1"])
    bn2s, bn2b = _bn_affine(*p["bn2"])
    bn3s, bn3b = _bn_affine(*p["bn3"])

    # Host-side parameter layout only (no compute hoisting):
    w1_flat = w1.reshape(F1 * kL)                               # 1-D SMEM tables
    w2_flat = w2.reshape(DF1 * Chans)
    w3p_flat = w3p.reshape(F2 * F2)
    b3p = jnp.asarray(p["b3p"], jnp.float32).reshape(F2)
    bl = jnp.asarray(p["bl"], jnp.float32).reshape(K)
    w3d_col = jnp.transpose(w3d.reshape(F2, k3))[:, :, None]    # (k3, F2, 1) column taps
    # Classifier weight scattered onto the strided pooled-lane positions.
    wl_wide = jnp.zeros((K, F2, S), jnp.float32)
    wl_wide = wl_wide.at[:, :, :: pool1 * pool2].set(wl.reshape(K, F2, T3))

    kernel = functools.partial(
        _eegnet_kernel, Chans=Chans, S=S, kL=kL, F1=F1, D=D, F2=F2, k3=k3,
        K=K, pool1=pool1, pool2=pool2)

    smem = lambda: pl.BlockSpec(memory_space=pltpu.MemorySpace.SMEM)

    out = pl.pallas_call(
        kernel,
        out_shape=jax.ShapeDtypeStruct((N, 1, S), jnp.float32),
        grid_spec=pltpu.PrefetchScalarGridSpec(
            num_scalar_prefetch=0,
            grid=(N,),                                        # one step per batch element
            in_specs=[
                pl.BlockSpec((1, Chans, S), lambda n: (n, 0, 0)),   # x (one DMA per channel)
                smem(), smem(), smem(),                              # w1, bn1s, bn1b
                smem(), smem(), smem(),                              # w2, bn2s, bn2b
                pl.BlockSpec((k3, F2, 1), lambda n: (0, 0, 0)),      # w3d taps
                smem(), smem(), smem(), smem(),                      # w3p, b3p, bn3s, bn3b
                pl.BlockSpec((K, F2, S), lambda n: (0, 0, 0)),       # classifier weight
                smem(),                                              # classifier bias
            ],
            out_specs=pl.BlockSpec((1, 1, S), lambda n: (n, 0, 0)),  # lane-dense logits row
        ),
        compiler_params=pltpu.CompilerParams(
            dimension_semantics=("parallel",)),               # v7x: one batch per TensorCore
    )(x.astype(jnp.float32), w1_flat, bn1s, bn1b, w2_flat, bn2s, bn2b,
      w3d_col, w3p_flat, b3p, bn3s, bn3b, wl_wide, bl)

    return out[:, 0, :K]


# ----------------------------------------------------------------------------
# pure-JAX reference (eval-mode forward), for validation only
# ----------------------------------------------------------------------------
def eegnet_ref(x, p):
    N, Chans, S = x.shape
    w1 = jnp.asarray(p["w1"], jnp.float32); F1, _, _, kL = w1.shape
    w2 = jnp.asarray(p["w2"], jnp.float32); DF1 = w2.shape[0]
    w3d = jnp.asarray(p["w3d"], jnp.float32); F2, _, _, k3 = w3d.shape
    w3p = jnp.asarray(p["w3p"], jnp.float32)
    wl = jnp.asarray(p["wl"], jnp.float32)
    bn1s, bn1b = _bn_affine(*p["bn1"])
    bn2s, bn2b = _bn_affine(*p["bn2"])
    bn3s, bn3b = _bn_affine(*p["bn3"])
    dn = ("NCHW", "OIHW", "NCHW")
    hi = jax.lax.Precision.HIGHEST
    elu = lambda v: jnp.where(v > 0, v, jnp.exp(v) - 1.0)
    bn = lambda v, s, b: v * s[None, :, None, None] + b[None, :, None, None]
    same_pad = lambda k: (k // 2 + (k - 2 * (k // 2)) - 1, k // 2)

    y = x.reshape(N, 1, Chans, S).astype(jnp.float32)
    y = jax.lax.conv_general_dilated(
        y, w1, (1, 1), [(0, 0), same_pad(kL)], dimension_numbers=dn, precision=hi)
    y = bn(y, bn1s, bn1b)

    y = jax.lax.conv_general_dilated(
        y, w2, (1, 1), "VALID", dimension_numbers=dn,
        feature_group_count=F1, precision=hi)
    y = elu(bn(y, bn2s, bn2b))
    y = y.reshape(N, DF1, 1, S // 4, 4).mean(axis=-1)

    y = jax.lax.conv_general_dilated(
        y, w3d, (1, 1), [(0, 0), same_pad(k3)], dimension_numbers=dn,
        feature_group_count=DF1, precision=hi)
    y = jax.lax.conv_general_dilated(
        y, w3p, (1, 1), "VALID", dimension_numbers=dn, precision=hi)
    y = y + jnp.asarray(p["b3p"], jnp.float32)[None, :, None, None]
    y = elu(bn(y, bn3s, bn3b))
    y = y.reshape(N, F2, 1, (S // 4) // 8, 8).mean(axis=-1)

    flat = y.reshape(N, -1)
    return jnp.dot(flat, wl.T, precision=hi) + jnp.asarray(p["bl"], jnp.float32)


# ----------------------------------------------------------------------------
# self-test
# ----------------------------------------------------------------------------
if __name__ == "__main__":
    # Small EEGNet configuration (module defaults scaled down): D=2, F2=D*F1.
    nb_classes = 4
    Chans, Samples = 8, 128
    kernLength, F1, D, F2 = 16, 8, 2, 16
    N = 2
    feat = F2 * (Samples // 4 // 8)

    key = jax.random.PRNGKey(0)
    ks = list(jax.random.split(key, 12))

    def uni(k, shape, bound):
        return jax.random.uniform(k, shape, jnp.float32, -bound, bound)

    def bn_init(k, C):   # gamma, beta, running_mean, running_var (eval-mode stats)
        kg, kb, km, kv = jax.random.split(k, 4)
        return (jax.random.uniform(kg, (C,), jnp.float32, 0.8, 1.2),
                0.1 * jax.random.normal(kb, (C,), jnp.float32),
                0.1 * jax.random.normal(km, (C,), jnp.float32),
                jax.random.uniform(kv, (C,), jnp.float32, 0.5, 1.5))

    x = jax.random.normal(ks[0], (N, Chans, Samples), jnp.float32)
    params = {
        "w1":  uni(ks[1], (F1, 1, 1, kernLength), kernLength ** -0.5),
        "bn1": bn_init(ks[2], F1),
        "w2":  uni(ks[3], (D * F1, 1, Chans, 1), Chans ** -0.5),
        "bn2": bn_init(ks[4], D * F1),
        "w3d": uni(ks[5], (F2, 1, 1, 16), 16 ** -0.5),
        "w3p": uni(ks[6], (F2, F2, 1, 1), F2 ** -0.5),
        "b3p": uni(ks[7], (F2,), F2 ** -0.5),
        "bn3": bn_init(ks[8], F2),
        "wl":  uni(ks[9], (nb_classes, feat), feat ** -0.5),
        "bl":  uni(ks[10], (nb_classes,), feat ** -0.5),
    }

    out = eegnet_forward(x, params)
    jax.block_until_ready(out)

    ref = eegnet_ref(x, params)
    assert out.shape == (N, nb_classes), out.shape
    assert jnp.allclose(out, ref, atol=5e-4, rtol=5e-4), float(jnp.abs(out - ref).max())

    print("KERNEL_OK")
</pallas_src>

<mosaic_0001>
module attributes {stable_mosaic.version = 11 : i64} {
  func.func @_eegnet_kernel(%arg0: i32, %arg1: memref<1x8x128xf32, #tpu.memory_space<vmem>>, %arg2: memref<128xf32, #tpu.memory_space<smem>>, %arg3: memref<8xf32, #tpu.memory_space<smem>>, %arg4: memref<8xf32, #tpu.memory_space<smem>>, %arg5: memref<128xf32, #tpu.memory_space<smem>>, %arg6: memref<16xf32, #tpu.memory_space<smem>>, %arg7: memref<16xf32, #tpu.memory_space<smem>>, %arg8: memref<16x16x1xf32, #tpu.memory_space<vmem>>, %arg9: memref<256xf32, #tpu.memory_space<smem>>, %arg10: memref<16xf32, #tpu.memory_space<smem>>, %arg11: memref<16xf32, #tpu.memory_space<smem>>, %arg12: memref<16xf32, #tpu.memory_space<smem>>, %arg13: memref<4x16x128xf32, #tpu.memory_space<vmem>>, %arg14: memref<4xf32, #tpu.memory_space<smem>>, %arg15: memref<1x1x128xf32, #tpu.memory_space<vmem>>) attributes {dimension_semantics = [#tpu.dimension_semantics<parallel>], iteration_bounds = array<i64: 2>, scalar_prefetch = 0 : i64, scratch_operands = 0 : i64, tpu.core_type = #tpu.core_type<tc>, window_params = [{transform_indices = @transform_0, window_bounds = array<i64: 1, 8, 128>}, {transform_indices = @transform_1, window_bounds = array<i64: 128>}, {transform_indices = @transform_2, window_bounds = array<i64: 8>}, {transform_indices = @transform_3, window_bounds = array<i64: 8>}, {transform_indices = @transform_4, window_bounds = array<i64: 128>}, {transform_indices = @transform_5, window_bounds = array<i64: 16>}, {transform_indices = @transform_6, window_bounds = array<i64: 16>}, {pipeline_mode = #tpu.pipeline_mode<synchronous>, transform_indices = @transform_7, window_bounds = array<i64: 16, 16, 1>}, {transform_indices = @transform_8, window_bounds = array<i64: 256>}, {transform_indices = @transform_9, window_bounds = array<i64: 16>}, {transform_indices = @transform_10, window_bounds = array<i64: 16>}, {transform_indices = @transform_11, window_bounds = array<i64: 16>}, {pipeline_mode = #tpu.pipeline_mode<synchronous>, transform_indices = @transform_12, window_bounds = array<i64: 4, 16, 128>}, {transform_indices = @transform_13, window_bounds = array<i64: 4>}, {transform_indices = @transform_14, window_bounds = array<i64: 1, 1, 128>}]} {
    %c0 = arith.constant 0 : index
    %c0_0 = arith.constant 0 : index
    %c0_1 = arith.constant 0 : index
    %0 = vector.load %arg1[%c0, %c0_0, %c0_1] : memref<1x8x128xf32, #tpu.memory_space<vmem>>, vector<1x8x128xf32>
    %1 = vector.shape_cast %0 : vector<1x8x128xf32> to vector<8x128xf32>
    %cst = arith.constant 0.000000e+00 : f32
    %2 = vector.broadcast %cst : f32 to vector<8x128xf32>
    %3 = tpu.concatenate %2, %1, %2 in 1 : vector<8x128xf32>, vector<8x128xf32>, vector<8x128xf32> -> vector<8x384xf32>
    %4 = vector.extract_strided_slice %3 {offsets = [0, 121], sizes = [8, 128], strides = [1, 1]} : vector<8x384xf32> to vector<8x128xf32>
    %5 = vector.extract_strided_slice %3 {offsets = [0, 122], sizes = [8, 128], strides = [1, 1]} : vector<8x384xf32> to vector<8x128xf32>
    %6 = vector.extract_strided_slice %3 {offsets = [0, 123], sizes = [8, 128], strides = [1, 1]} : vector<8x384xf32> to vector<8x128xf32>
    %7 = vector.extract_strided_slice %3 {offsets = [0, 124], sizes = [8, 128], strides = [1, 1]} : vector<8x384xf32> to vector<8x128xf32>
    %8 = vector.extract_strided_slice %3 {offsets = [0, 125], sizes = [8, 128], strides = [1, 1]} : vector<8x384xf32> to vector<8x128xf32>
    %9 = vector.extract_strided_slice %3 {offsets = [0, 126], sizes = [8, 128], strides = [1, 1]} : vector<8x384xf32> to vector<8x128xf32>
    %10 = vector.extract_strided_slice %3 {offsets = [0, 127], sizes = [8, 128], strides = [1, 1]} : vector<8x384xf32> to vector<8x128xf32>
    %11 = vector.extract_strided_slice %3 {offsets = [0, 128], sizes = [8, 128], strides = [1, 1]} : vector<8x384xf32> to vector<8x128xf32>
    %12 = vector.extract_strided_slice %3 {offsets = [0, 129], sizes = [8, 128], strides = [1, 1]} : vector<8x384xf32> to vector<8x128xf32>
    %13 = vector.extract_strided_slice %3 {offsets = [0, 130], sizes = [8, 128], strides = [1, 1]} : vector<8x384xf32> to vector<8x128xf32>
    %14 = vector.extract_strided_slice %3 {offsets = [0, 131], sizes = [8, 128], strides = [1, 1]} : vector<8x384xf32> to vector<8x128xf32>
    %15 = vector.extract_strided_slice %3 {offsets = [0, 132], sizes = [8, 128], strides = [1, 1]} : vector<8x384xf32> to vector<8x128xf32>
    %16 = vector.extract_strided_slice %3 {offsets = [0, 133], sizes = [8, 128], strides = [1, 1]} : vector<8x384xf32> to vector<8x128xf32>
    %17 = vector.extract_strided_slice %3 {offsets = [0, 134], sizes = [8, 128], strides = [1, 1]} : vector<8x384xf32> to vector<8x128xf32>
    %18 = vector.extract_strided_slice %3 {offsets = [0, 135], sizes = [8, 128], strides = [1, 1]} : vector<8x384xf32> to vector<8x128xf32>
    %19 = vector.extract_strided_slice %3 {offsets = [0, 136], sizes = [8, 128], strides = [1, 1]} : vector<8x384xf32> to vector<8x128xf32>
    %c0_2 = arith.constant 0 : index
    %20 = memref.load %arg2[%c0_2] : memref<128xf32, #tpu.memory_space<smem>>
    %21 = vector.broadcast %20 : f32 to vector<8x128xf32>
    %22 = arith.mulf %4, %21 : vector<8x128xf32>
    %c1 = arith.constant 1 : index
    %23 = memref.load %arg2[%c1] : memref<128xf32, #tpu.memory_space<smem>>
    %24 = vector.broadcast %23 : f32 to vector<8x128xf32>
    %25 = arith.mulf %5, %24 : vector<8x128xf32>
    %26 = arith.addf %22, %25 : vector<8x128xf32>
    %c2 = arith.constant 2 : index
    %27 = memref.load %arg2[%c2] : memref<128xf32, #tpu.memory_space<smem>>
    %28 = vector.broadcast %27 : f32 to vector<8x128xf32>
    %29 = arith.mulf %6, %28 : vector<8x128xf32>
    %30 = arith.addf %26, %29 : vector<8x128xf32>
    %c3 = arith.constant 3 : index
    %31 = memref.load %arg2[%c3] : memref<128xf32, #tpu.memory_space<smem>>
    %32 = vector.broadcast %31 : f32 to vector<8x128xf32>
    %33 = arith.mulf %7, %32 : vector<8x128xf32>
    %34 = arith.addf %30, %33 : vector<8x128xf32>
    %c4 = arith.constant 4 : index
    %35 = memref.load %arg2[%c4] : memref<128xf32, #tpu.memory_space<smem>>
    %36 = vector.broadcast %35 : f32 to vector<8x128xf32>
    %37 = arith.mulf %8, %36 : vector<8x128xf32>
    %38 = arith.addf %34, %37 : vector<8x128xf32>
    %c5 = arith.constant 5 : index
    %39 = memref.load %arg2[%c5] : memref<128xf32, #tpu.memory_space<smem>>
    %40 = vector.broadcast %39 : f32 to vector<8x128xf32>
    %41 = arith.mulf %9, %40 : vector<8x128xf32>
    %42 = arith.addf %38, %41 : vector<8x128xf32>
    %c6 = arith.constant 6 : index
    %43 = memref.load %arg2[%c6] : memref<128xf32, #tpu.memory_space<smem>>
    %44 = vector.broadcast %43 : f32 to vector<8x128xf32>
    %45 = arith.mulf %10, %44 : vector<8x128xf32>
    %46 = arith.addf %42, %45 : vector<8x128xf32>
    %c7 = arith.constant 7 : index
    %47 = memref.load %arg2[%c7] : memref<128xf32, #tpu.memory_space<smem>>
    %48 = vector.broadcast %47 : f32 to vector<8x128xf32>
    %49 = arith.mulf %11, %48 : vector<8x128xf32>
    %50 = arith.addf %46, %49 : vector<8x128xf32>
    %c8 = arith.constant 8 : index
    %51 = memref.load %arg2[%c8] : memref<128xf32, #tpu.memory_space<smem>>
    %52 = vector.broadcast %51 : f32 to vector<8x128xf32>
    %53 = arith.mulf %12, %52 : vector<8x128xf32>
    %54 = arith.addf %50, %53 : vector<8x128xf32>
    %c9 = arith.constant 9 : index
    %55 = memref.load %arg2[%c9] : memref<128xf32, #tpu.memory_space<smem>>
    %56 = vector.broadcast %55 : f32 to vector<8x128xf32>
    %57 = arith.mulf %13, %56 : vector<8x128xf32>
    %58 = arith.addf %54, %57 : vector<8x128xf32>
    %c10 = arith.constant 10 : index
    %59 = memref.load %arg2[%c10] : memref<128xf32, #tpu.memory_space<smem>>
    %60 = vector.broadcast %59 : f32 to vector<8x128xf32>
    %61 = arith.mulf %14, %60 : vector<8x128xf32>
    %62 = arith.addf %58, %61 : vector<8x128xf32>
    %c11 = arith.constant 11 : index
    %63 = memref.load %arg2[%c11] : memref<128xf32, #tpu.memory_space<smem>>
    %64 = vector.broadcast %63 : f32 to vector<8x128xf32>
    %65 = arith.mulf %15, %64 : vector<8x128xf32>
    %66 = arith.addf %62, %65 : vector<8x128xf32>
    %c12 = arith.constant 12 : index
    %67 = memref.load %arg2[%c12] : memref<128xf32, #tpu.memory_space<smem>>
    %68 = vector.broadcast %67 : f32 to vector<8x128xf32>
    %69 = arith.mulf %16, %68 : vector<8x128xf32>
    %70 = arith.addf %66, %69 : vector<8x128xf32>
    %c13 = arith.constant 13 : index
    %71 = memref.load %arg2[%c13] : memref<128xf32, #tpu.memory_space<smem>>
    %72 = vector.broadcast %71 : f32 to vector<8x128xf32>
    %73 = arith.mulf %17, %72 : vector<8x128xf32>
    %74 = arith.addf %70, %73 : vector<8x128xf32>
    %c14 = arith.constant 14 : index
    %75 = memref.load %arg2[%c14] : memref<128xf32, #tpu.memory_space<smem>>
    %76 = vector.broadcast %75 : f32 to vector<8x128xf32>
    %77 = arith.mulf %18, %76 : vector<8x128xf32>
    %78 = arith.addf %74, %77 : vector<8x128xf32>
    %c15 = arith.constant 15 : index
    %79 = memref.load %arg2[%c15] : memref<128xf32, #tpu.memory_space<smem>>
    %80 = vector.broadcast %79 : f32 to vector<8x128xf32>
    %81 = arith.mulf %19, %80 : vector<8x128xf32>
    %82 = arith.addf %78, %81 : vector<8x128xf32>
    %c0_3 = arith.constant 0 : index
    %83 = memref.load %arg3[%c0_3] : memref<8xf32, #tpu.memory_space<smem>>
    %84 = vector.broadcast %83 : f32 to vector<8x128xf32>
    %85 = arith.mulf %82, %84 : vector<8x128xf32>
    %c0_4 = arith.constant 0 : index
    %86 = memref.load %arg4[%c0_4] : memref<8xf32, #tpu.memory_space<smem>>
    %87 = vector.broadcast %86 : f32 to vector<8x128xf32>
    %88 = arith.addf %85, %87 : vector<8x128xf32>
    %c16 = arith.constant 16 : index
    %89 = memref.load %arg2[%c16] : memref<128xf32, #tpu.memory_space<smem>>
    %90 = vector.broadcast %89 : f32 to vector<8x128xf32>
    %91 = arith.mulf %4, %90 : vector<8x128xf32>
    %c17 = arith.constant 17 : index
    %92 = memref.load %arg2[%c17] : memref<128xf32, #tpu.memory_space<smem>>
    %93 = vector.broadcast %92 : f32 to vector<8x128xf32>
    %94 = arith.mulf %5, %93 : vector<8x128xf32>
    %95 = arith.addf %91, %94 : vector<8x128xf32>
    %c18 = arith.constant 18 : index
    %96 = memref.load %arg2[%c18] : memref<128xf32, #tpu.memory_space<smem>>
    %97 = vector.broadcast %96 : f32 to vector<8x128xf32>
    %98 = arith.mulf %6, %97 : vector<8x128xf32>
    %99 = arith.addf %95, %98 : vector<8x128xf32>
    %c19 = arith.constant 19 : index
    %100 = memref.load %arg2[%c19] : memref<128xf32, #tpu.memory_space<smem>>
    %101 = vector.broadcast %100 : f32 to vector<8x128xf32>
    %102 = arith.mulf %7, %101 : vector<8x128xf32>
    %103 = arith.addf %99, %102 : vector<8x128xf32>
    %c20 = arith.constant 20 : index
    %104 = memref.load %arg2[%c20] : memref<128xf32, #tpu.memory_space<smem>>
    %105 = vector.broadcast %104 : f32 to vector<8x128xf32>
    %106 = arith.mulf %8, %105 : vector<8x128xf32>
    %107 = arith.addf %103, %106 : vector<8x128xf32>
    %c21 = arith.constant 21 : index
    %108 = memref.load %arg2[%c21] : memref<128xf32, #tpu.memory_space<smem>>
    %109 = vector.broadcast %108 : f32 to vector<8x128xf32>
    %110 = arith.mulf %9, %109 : vector<8x128xf32>
    %111 = arith.addf %107, %110 : vector<8x128xf32>
    %c22 = arith.constant 22 : index
    %112 = memref.load %arg2[%c22] : memref<128xf32, #tpu.memory_space<smem>>
    %113 = vector.broadcast %112 : f32 to vector<8x128xf32>
    %114 = arith.mulf %10, %113 : vector<8x128xf32>
    %115 = arith.addf %111, %114 : vector<8x128xf32>
    %c23 = arith.constant 23 : index
    %116 = memref.load %arg2[%c23] : memref<128xf32, #tpu.memory_space<smem>>
    %117 = vector.broadcast %116 : f32 to vector<8x128xf32>
    %118 = arith.mulf %11, %117 : vector<8x128xf32>
    %119 = arith.addf %115, %118 : vector<8x128xf32>
    %c24 = arith.constant 24 : index
    %120 = memref.load %arg2[%c24] : memref<128xf32, #tpu.memory_space<smem>>
    %121 = vector.broadcast %120 : f32 to vector<8x128xf32>
    %122 = arith.mulf %12, %121 : vector<8x128xf32>
    %123 = arith.addf %119, %122 : vector<8x128xf32>
    %c25 = arith.constant 25 : index
    %124 = memref.load %arg2[%c25] : memref<128xf32, #tpu.memory_space<smem>>
    %125 = vector.broadcast %124 : f32 to vector<8x128xf32>
    %126 = arith.mulf %13, %125 : vector<8x128xf32>
    %127 = arith.addf %123, %126 : vector<8x128xf32>
    %c26 = arith.constant 26 : index
    %128 = memref.load %arg2[%c26] : memref<128xf32, #tpu.memory_space<smem>>
    %129 = vector.broadcast %128 : f32 to vector<8x128xf32>
    %130 = arith.mulf %14, %129 : vector<8x128xf32>
    %131 = arith.addf %127, %130 : vector<8x128xf32>
    %c27 = arith.constant 27 : index
    %132 = memref.load %arg2[%c27] : memref<128xf32, #tpu.memory_space<smem>>
    %133 = vector.broadcast %132 : f32 to vector<8x128xf32>
    %134 = arith.mulf %15, %133 : vector<8x128xf32>
    %135 = arith.addf %131, %134 : vector<8x128xf32>
    %c28 = arith.constant 28 : index
    %136 = memref.load %arg2[%c28] : memref<128xf32, #tpu.memory_space<smem>>
    %137 = vector.broadcast %136 : f32 to vector<8x128xf32>
    %138 = arith.mulf %16, %137 : vector<8x128xf32>
    %139 = arith.addf %135, %138 : vector<8x128xf32>
    %c29 = arith.constant 29 : index
    %140 = memref.load %arg2[%c29] : memref<128xf32, #tpu.memory_space<smem>>
    %141 = vector.broadcast %140 : f32 to vector<8x128xf32>
    %142 = arith.mulf %17, %141 : vector<8x128xf32>
    %143 = arith.addf %139, %142 : vector<8x128xf32>
    %c30 = arith.constant 30 : index
    %144 = memref.load %arg2[%c30] : memref<128xf32, #tpu.memory_space<smem>>
    %145 = vector.broadcast %144 : f32 to vector<8x128xf32>
    %146 = arith.mulf %18, %145 : vector<8x128xf32>
    %147 = arith.addf %143, %146 : vector<8x128xf32>
    %c31 = arith.constant 31 : index
    %148 = memref.load %arg2[%c31] : memref<128xf32, #tpu.memory_space<smem>>
    %149 = vector.broadcast %148 : f32 to vector<8x128xf32>
    %150 = arith.mulf %19, %149 : vector<8x128xf32>
    %151 = arith.addf %147, %150 : vector<8x128xf32>
    %c1_5 = arith.constant 1 : index
    %152 = memref.load %arg3[%c1_5] : memref<8xf32, #tpu.memory_space<smem>>
    %153 = vector.broadcast %152 : f32 to vector<8x128xf32>
    %154 = arith.mulf %151, %153 : vector<8x128xf32>
    %c1_6 = arith.constant 1 : index
    %155 = memref.load %arg4[%c1_6] : memref<8xf32, #tpu.memory_space<smem>>
    %156 = vector.broadcast %155 : f32 to vector<8x128xf32>
    %157 = arith.addf %154, %156 : vector<8x128xf32>
    %c32 = arith.constant 32 : index
    %158 = memref.load %arg2[%c32] : memref<128xf32, #tpu.memory_space<smem>>
    %159 = vector.broadcast %158 : f32 to vector<8x128xf32>
    %160 = arith.mulf %4, %159 : vector<8x128xf32>
    %c33 = arith.constant 33 : index
    %161 = memref.load %arg2[%c33] : memref<128xf32, #tpu.memory_space<smem>>
    %162 = vector.broadcast %161 : f32 to vector<8x128xf32>
    %163 = arith.mulf %5, %162 : vector<8x128xf32>
    %164 = arith.addf %160, %163 : vector<8x128xf32>
    %c34 = arith.constant 34 : index
    %165 = memref.load %arg2[%c34] : memref<128xf32, #tpu.memory_space<smem>>
    %166 = vector.broadcast %165 : f32 to vector<8x128xf32>
    %167 = arith.mulf %6, %166 : vector<8x128xf32>
    %168 = arith.addf %164, %167 : vector<8x128xf32>
    %c35 = arith.constant 35 : index
    %169 = memref.load %arg2[%c35] : memref<128xf32, #tpu.memory_space<smem>>
    %170 = vector.broadcast %169 : f32 to vector<8x128xf32>
    %171 = arith.mulf %7, %170 : vector<8x128xf32>
    %172 = arith.addf %168, %171 : vector<8x128xf32>
    %c36 = arith.constant 36 : index
    %173 = memref.load %arg2[%c36] : memref<128xf32, #tpu.memory_space<smem>>
    %174 = vector.broadcast %173 : f32 to vector<8x128xf32>
    %175 = arith.mulf %8, %174 : vector<8x128xf32>
    %176 = arith.addf %172, %175 : vector<8x128xf32>
    %c37 = arith.constant 37 : index
    %177 = memref.load %arg2[%c37] : memref<128xf32, #tpu.memory_space<smem>>
    %178 = vector.broadcast %177 : f32 to vector<8x128xf32>
    %179 = arith.mulf %9, %178 : vector<8x128xf32>
    %180 = arith.addf %176, %179 : vector<8x128xf32>
    %c38 = arith.constant 38 : index
    %181 = memref.load %arg2[%c38] : memref<128xf32, #tpu.memory_space<smem>>
    %182 = vector.broadcast %181 : f32 to vector<8x128xf32>
    %183 = arith.mulf %10, %182 : vector<8x128xf32>
    %184 = arith.addf %180, %183 : vector<8x128xf32>
    %c39 = arith.constant 39 : index
    %185 = memref.load %arg2[%c39] : memref<128xf32, #tpu.memory_space<smem>>
    %186 = vector.broadcast %185 : f32 to vector<8x128xf32>
    %187 = arith.mulf %11, %186 : vector<8x128xf32>
    %188 = arith.addf %184, %187 : vector<8x128xf32>
    %c40 = arith.constant 40 : index
    %189 = memref.load %arg2[%c40] : memref<128xf32, #tpu.memory_space<smem>>
    %190 = vector.broadcast %189 : f32 to vector<8x128xf32>
    %191 = arith.mulf %12, %190 : vector<8x128xf32>
    %192 = arith.addf %188, %191 : vector<8x128xf32>
    %c41 = arith.constant 41 : index
    %193 = memref.load %arg2[%c41] : memref<128xf32, #tpu.memory_space<smem>>
    %194 = vector.broadcast %193 : f32 to vector<8x128xf32>
    %195 = arith.mulf %13, %194 : vector<8x128xf32>
    %196 = arith.addf %192, %195 : vector<8x128xf32>
    %c42 = arith.constant 42 : index
    %197 = memref.load %arg2[%c42] : memref<128xf32, #tpu.memory_space<smem>>
    %198 = vector.broadcast %197 : f32 to vector<8x128xf32>
    %199 = arith.mulf %14, %198 : vector<8x128xf32>
    %200 = arith.addf %196, %199 : vector<8x128xf32>
    %c43 = arith.constant 43 : index
    %201 = memref.load %arg2[%c43] : memref<128xf32, #tpu.memory_space<smem>>
    %202 = vector.broadcast %201 : f32 to vector<8x128xf32>
    %203 = arith.mulf %15, %202 : vector<8x128xf32>
    %204 = arith.addf %200, %203 : vector<8x128xf32>
    %c44 = arith.constant 44 : index
    %205 = memref.load %arg2[%c44] : memref<128xf32, #tpu.memory_space<smem>>
    %206 = vector.broadcast %205 : f32 to vector<8x128xf32>
    %207 = arith.mulf %16, %206 : vector<8x128xf32>
    %208 = arith.addf %204, %207 : vector<8x128xf32>
    %c45 = arith.constant 45 : index
    %209 = memref.load %arg2[%c45] : memref<128xf32, #tpu.memory_space<smem>>
    %210 = vector.broadcast %209 : f32 to vector<8x128xf32>
    %211 = arith.mulf %17, %210 : vector<8x128xf32>
    %212 = arith.addf %208, %211 : vector<8x128xf32>
    %c46 = arith.constant 46 : index
    %213 = memref.load %arg2[%c46] : memref<128xf32, #tpu.memory_space<smem>>
    %214 = vector.broadcast %213 : f32 to vector<8x128xf32>
    %215 = arith.mulf %18, %214 : vector<8x128xf32>
    %216 = arith.addf %212, %215 : vector<8x128xf32>
    %c47 = arith.constant 47 : index
    %217 = memref.load %arg2[%c47] : memref<128xf32, #tpu.memory_space<smem>>
    %218 = vector.broadcast %217 : f32 to vector<8x128xf32>
    %219 = arith.mulf %19, %218 : vector<8x128xf32>
    %220 = arith.addf %216, %219 : vector<8x128xf32>
    %c2_7 = arith.constant 2 : index
    %221 = memref.load %arg3[%c2_7] : memref<8xf32, #tpu.memory_space<smem>>
    %222 = vector.broadcast %221 : f32 to vector<8x128xf32>
    %223 = arith.mulf %220, %222 : vector<8x128xf32>
    %c2_8 = arith.constant 2 : index
    %224 = memref.load %arg4[%c2_8] : memref<8xf32, #tpu.memory_space<smem>>
    %225 = vector.broadcast %224 : f32 to vector<8x128xf32>
    %226 = arith.addf %223, %225 : vector<8x128xf32>
    %c48 = arith.constant 48 : index
    %227 = memref.load %arg2[%c48] : memref<128xf32, #tpu.memory_space<smem>>
    %228 = vector.broadcast %227 : f32 to vector<8x128xf32>
    %229 = arith.mulf %4, %228 : vector<8x128xf32>
    %c49 = arith.constant 49 : index
    %230 = memref.load %arg2[%c49] : memref<128xf32, #tpu.memory_space<smem>>
    %231 = vector.broadcast %230 : f32 to vector<8x128xf32>
    %232 = arith.mulf %5, %231 : vector<8x128xf32>
    %233 = arith.addf %229, %232 : vector<8x128xf32>
    %c50 = arith.constant 50 : index
    %234 = memref.load %arg2[%c50] : memref<128xf32, #tpu.memory_space<smem>>
    %235 = vector.broadcast %234 : f32 to vector<8x128xf32>
    %236 = arith.mulf %6, %235 : vector<8x128xf32>
    %237 = arith.addf %233, %236 : vector<8x128xf32>
    %c51 = arith.constant 51 : index
    %238 = memref.load %arg2[%c51] : memref<128xf32, #tpu.memory_space<smem>>
    %239 = vector.broadcast %238 : f32 to vector<8x128xf32>
    %240 = arith.mulf %7, %239 : vector<8x128xf32>
    %241 = arith.addf %237, %240 : vector<8x128xf32>
    %c52 = arith.constant 52 : index
    %242 = memref.load %arg2[%c52] : memref<128xf32, #tpu.memory_space<smem>>
    %243 = vector.broadcast %242 : f32 to vector<8x128xf32>
    %244 = arith.mulf %8, %243 : vector<8x128xf32>
    %245 = arith.addf %241, %244 : vector<8x128xf32>
    %c53 = arith.constant 53 : index
    %246 = memref.load %arg2[%c53] : memref<128xf32, #tpu.memory_space<smem>>
    %247 = vector.broadcast %246 : f32 to vector<8x128xf32>
    %248 = arith.mulf %9, %247 : vector<8x128xf32>
    %249 = arith.addf %245, %248 : vector<8x128xf32>
    %c54 = arith.constant 54 : index
    %250 = memref.load %arg2[%c54] : memref<128xf32, #tpu.memory_space<smem>>
    %251 = vector.broadcast %250 : f32 to vector<8x128xf32>
    %252 = arith.mulf %10, %251 : vector<8x128xf32>
    %253 = arith.addf %249, %252 : vector<8x128xf32>
    %c55 = arith.constant 55 : index
    %254 = memref.load %arg2[%c55] : memref<128xf32, #tpu.memory_space<smem>>
    %255 = vector.broadcast %254 : f32 to vector<8x128xf32>
    %256 = arith.mulf %11, %255 : vector<8x128xf32>
    %257 = arith.addf %253, %256 : vector<8x128xf32>
    %c56 = arith.constant 56 : index
    %258 = memref.load %arg2[%c56] : memref<128xf32, #tpu.memory_space<smem>>
    %259 = vector.broadcast %258 : f32 to vector<8x128xf32>
    %260 = arith.mulf %12, %259 : vector<8x128xf32>
    %261 = arith.addf %257, %260 : vector<8x128xf32>
    %c57 = arith.constant 57 : index
    %262 = memref.load %arg2[%c57] : memref<128xf32, #tpu.memory_space<smem>>
    %263 = vector.broadcast %262 : f32 to vector<8x128xf32>
    %264 = arith.mulf %13, %263 : vector<8x128xf32>
    %265 = arith.addf %261, %264 : vector<8x128xf32>
    %c58 = arith.constant 58 : index
    %266 = memref.load %arg2[%c58] : memref<128xf32, #tpu.memory_space<smem>>
    %267 = vector.broadcast %266 : f32 to vector<8x128xf32>
    %268 = arith.mulf %14, %267 : vector<8x128xf32>
    %269 = arith.addf %265, %268 : vector<8x128xf32>
    %c59 = arith.constant 59 : index
    %270 = memref.load %arg2[%c59] : memref<128xf32, #tpu.memory_space<smem>>
    %271 = vector.broadcast %270 : f32 to vector<8x128xf32>
    %272 = arith.mulf %15, %271 : vector<8x128xf32>
    %273 = arith.addf %269, %272 : vector<8x128xf32>
    %c60 = arith.constant 60 : index
    %274 = memref.load %arg2[%c60] : memref<128xf32, #tpu.memory_space<smem>>
    %275 = vector.broadcast %274 : f32 to vector<8x128xf32>
    %276 = arith.mulf %16, %275 : vector<8x128xf32>
    %277 = arith.addf %273, %276 : vector<8x128xf32>
    %c61 = arith.constant 61 : index
    %278 = memref.load %arg2[%c61] : memref<128xf32, #tpu.memory_space<smem>>
    %279 = vector.broadcast %278 : f32 to vector<8x128xf32>
    %280 = arith.mulf %17, %279 : vector<8x128xf32>
    %281 = arith.addf %277, %280 : vector<8x128xf32>
    %c62 = arith.constant 62 : index
    %282 = memref.load %arg2[%c62] : memref<128xf32, #tpu.memory_space<smem>>
    %283 = vector.broadcast %282 : f32 to vector<8x128xf32>
    %284 = arith.mulf %18, %283 : vector<8x128xf32>
    %285 = arith.addf %281, %284 : vector<8x128xf32>
    %c63 = arith.constant 63 : index
    %286 = memref.load %arg2[%c63] : memref<128xf32, #tpu.memory_space<smem>>
    %287 = vector.broadcast %286 : f32 to vector<8x128xf32>
    %288 = arith.mulf %19, %287 : vector<8x128xf32>
    %289 = arith.addf %285, %288 : vector<8x128xf32>
    %c3_9 = arith.constant 3 : index
    %290 = memref.load %arg3[%c3_9] : memref<8xf32, #tpu.memory_space<smem>>
    %291 = vector.broadcast %290 : f32 to vector<8x128xf32>
    %292 = arith.mulf %289, %291 : vector<8x128xf32>
    %c3_10 = arith.constant 3 : index
    %293 = memref.load %arg4[%c3_10] : memref<8xf32, #tpu.memory_space<smem>>
    %294 = vector.broadcast %293 : f32 to vector<8x128xf32>
    %295 = arith.addf %292, %294 : vector<8x128xf32>
    %c64 = arith.constant 64 : index
    %296 = memref.load %arg2[%c64] : memref<128xf32, #tpu.memory_space<smem>>
    %297 = vector.broadcast %296 : f32 to vector<8x128xf32>
    %298 = arith.mulf %4, %297 : vector<8x128xf32>
    %c65 = arith.constant 65 : index
    %299 = memref.load %arg2[%c65] : memref<128xf32, #tpu.memory_space<smem>>
    %300 = vector.broadcast %299 : f32 to vector<8x128xf32>
    %301 = arith.mulf %5, %300 : vector<8x128xf32>
    %302 = arith.addf %298, %301 : vector<8x128xf32>
    %c66 = arith.constant 66 : index
    %303 = memref.load %arg2[%c66] : memref<128xf32, #tpu.memory_space<smem>>
    %304 = vector.broadcast %303 : f32 to vector<8x128xf32>
    %305 = arith.mulf %6, %304 : vector<8x128xf32>
    %306 = arith.addf %302, %305 : vector<8x128xf32>
    %c67 = arith.constant 67 : index
    %307 = memref.load %arg2[%c67] : memref<128xf32, #tpu.memory_space<smem>>
    %308 = vector.broadcast %307 : f32 to vector<8x128xf32>
    %309 = arith.mulf %7, %308 : vector<8x128xf32>
    %310 = arith.addf %306, %309 : vector<8x128xf32>
    %c68 = arith.constant 68 : index
    %311 = memref.load %arg2[%c68] : memref<128xf32, #tpu.memory_space<smem>>
    %312 = vector.broadcast %311 : f32 to vector<8x128xf32>
    %313 = arith.mulf %8, %312 : vector<8x128xf32>
    %314 = arith.addf %310, %313 : vector<8x128xf32>
    %c69 = arith.constant 69 : index
    %315 = memref.load %arg2[%c69] : memref<128xf32, #tpu.memory_space<smem>>
    %316 = vector.broadcast %315 : f32 to vector<8x128xf32>
    %317 = arith.mulf %9, %316 : vector<8x128xf32>
    %318 = arith.addf %314, %317 : vector<8x128xf32>
    %c70 = arith.constant 70 : index
    %319 = memref.load %arg2[%c70] : memref<128xf32, #tpu.memory_space<smem>>
    %320 = vector.broadcast %319 : f32 to vector<8x128xf32>
    %321 = arith.mulf %10, %320 : vector<8x128xf32>
    %322 = arith.addf %318, %321 : vector<8x128xf32>
    %c71 = arith.constant 71 : index
    %323 = memref.load %arg2[%c71] : memref<128xf32, #tpu.memory_space<smem>>
    %324 = vector.broadcast %323 : f32 to vector<8x128xf32>
    %325 = arith.mulf %11, %324 : vector<8x128xf32>
    %326 = arith.addf %322, %325 : vector<8x128xf32>
    %c72 = arith.constant 72 : index
    %327 = memref.load %arg2[%c72] : memref<128xf32, #tpu.memory_space<smem>>
    %328 = vector.broadcast %327 : f32 to vector<8x128xf32>
    %329 = arith.mulf %12, %328 : vector<8x128xf32>
    %330 = arith.addf %326, %329 : vector<8x128xf32>
    %c73 = arith.constant 73 : index
    %331 = memref.load %arg2[%c73] : memref<128xf32, #tpu.memory_space<smem>>
    %332 = vector.broadcast %331 : f32 to vector<8x128xf32>
    %333 = arith.mulf %13, %332 : vector<8x128xf32>
    %334 = arith.addf %330, %333 : vector<8x128xf32>
    %c74 = arith.constant 74 : index
    %335 = memref.load %arg2[%c74] : memref<128xf32, #tpu.memory_space<smem>>
    %336 = vector.broadcast %335 : f32 to vector<8x128xf32>
    %337 = arith.mulf %14, %336 : vector<8x128xf32>
    %338 = arith.addf %334, %337 : vector<8x128xf32>
    %c75 = arith.constant 75 : index
    %339 = memref.load %arg2[%c75] : memref<128xf32, #tpu.memory_space<smem>>
    %340 = vector.broadcast %339 : f32 to vector<8x128xf32>
    %341 = arith.mulf %15, %340 : vector<8x128xf32>
    %342 = arith.addf %338, %341 : vector<8x128xf32>
    %c76 = arith.constant 76 : index
    %343 = memref.load %arg2[%c76] : memref<128xf32, #tpu.memory_space<smem>>
    %344 = vector.broadcast %343 : f32 to vector<8x128xf32>
    %345 = arith.mulf %16, %344 : vector<8x128xf32>
    %346 = arith.addf %342, %345 : vector<8x128xf32>
    %c77 = arith.constant 77 : index
    %347 = memref.load %arg2[%c77] : memref<128xf32, #tpu.memory_space<smem>>
    %348 = vector.broadcast %347 : f32 to vector<8x128xf32>
    %349 = arith.mulf %17, %348 : vector<8x128xf32>
    %350 = arith.addf %346, %349 : vector<8x128xf32>
    %c78 = arith.constant 78 : index
    %351 = memref.load %arg2[%c78] : memref<128xf32, #tpu.memory_space<smem>>
    %352 = vector.broadcast %351 : f32 to vector<8x128xf32>
    %353 = arith.mulf %18, %352 : vector<8x128xf32>
    %354 = arith.addf %350, %353 : vector<8x128xf32>
    %c79 = arith.constant 79 : index
    %355 = memref.load %arg2[%c79] : memref<128xf32, #tpu.memory_space<smem>>
    %356 = vector.broadcast %355 : f32 to vector<8x128xf32>
    %357 = arith.mulf %19, %356 : vector<8x128xf32>
    %358 = arith.addf %354, %357 : vector<8x128xf32>
    %c4_11 = arith.constant 4 : index
    %359 = memref.load %arg3[%c4_11] : memref<8xf32, #tpu.memory_space<smem>>
    %360 = vector.broadcast %359 : f32 to vector<8x128xf32>
    %361 = arith.mulf %358, %360 : vector<8x128xf32>
    %c4_12 = arith.constant 4 : index
    %362 = memref.load %arg4[%c4_12] : memref<8xf32, #tpu.memory_space<smem>>
    %363 = vector.broadcast %362 : f32 to vector<8x128xf32>
    %364 = arith.addf %361, %363 : vector<8x128xf32>
    %c80 = arith.constant 80 : index
    %365 = memref.load %arg2[%c80] : memref<128xf32, #tpu.memory_space<smem>>
    %366 = vector.broadcast %365 : f32 to vector<8x128xf32>
    %367 = arith.mulf %4, %366 : vector<8x128xf32>
    %c81 = arith.constant 81 : index
    %368 = memref.load %arg2[%c81] : memref<128xf32, #tpu.memory_space<smem>>
    %369 = vector.broadcast %368 : f32 to vector<8x128xf32>
    %370 = arith.mulf %5, %369 : vector<8x128xf32>
    %371 = arith.addf %367, %370 : vector<8x128xf32>
    %c82 = arith.constant 82 : index
    %372 = memref.load %arg2[%c82] : memref<128xf32, #tpu.memory_space<smem>>
    %373 = vector.broadcast %372 : f32 to vector<8x128xf32>
    %374 = arith.mulf %6, %373 : vector<8x128xf32>
    %375 = arith.addf %371, %374 : vector<8x128xf32>
    %c83 = arith.constant 83 : index
    %376 = memref.load %arg2[%c83] : memref<128xf32, #tpu.memory_space<smem>>
    %377 = vector.broadcast %376 : f32 to vector<8x128xf32>
    %378 = arith.mulf %7, %377 : vector<8x128xf32>
    %379 = arith.addf %375, %378 : vector<8x128xf32>
    %c84 = arith.constant 84 : index
    %380 = memref.load %arg2[%c84] : memref<128xf32, #tpu.memory_space<smem>>
    %381 = vector.broadcast %380 : f32 to vector<8x128xf32>
    %382 = arith.mulf %8, %381 : vector<8x128xf32>
    %383 = arith.addf %379, %382 : vector<8x128xf32>
    %c85 = arith.constant 85 : index
    %384 = memref.load %arg2[%c85] : memref<128xf32, #tpu.memory_space<smem>>
    %385 = vector.broadcast %384 : f32 to vector<8x128xf32>
    %386 = arith.mulf %9, %385 : vector<8x128xf32>
    %387 = arith.addf %383, %386 : vector<8x128xf32>
    %c86 = arith.constant 86 : index
    %388 = memref.load %arg2[%c86] : memref<128xf32, #tpu.memory_space<smem>>
    %389 = vector.broadcast %388 : f32 to vector<8x128xf32>
    %390 = arith.mulf %10, %389 : vector<8x128xf32>
    %391 = arith.addf %387, %390 : vector<8x128xf32>
    %c87 = arith.constant 87 : index
    %392 = memref.load %arg2[%c87] : memref<128xf32, #tpu.memory_space<smem>>
    %393 = vector.broadcast %392 : f32 to vector<8x128xf32>
    %394 = arith.mulf %11, %393 : vector<8x128xf32>
    %395 = arith.addf %391, %394 : vector<8x128xf32>
    %c88 = arith.constant 88 : index
    %396 = memref.load %arg2[%c88] : memref<128xf32, #tpu.memory_space<smem>>
    %397 = vector.broadcast %396 : f32 to vector<8x128xf32>
    %398 = arith.mulf %12, %397 : vector<8x128xf32>
    %399 = arith.addf %395, %398 : vector<8x128xf32>
    %c89 = arith.constant 89 : index
    %400 = memref.load %arg2[%c89] : memref<128xf32, #tpu.memory_space<smem>>
    %401 = vector.broadcast %400 : f32 to vector<8x128xf32>
    %402 = arith.mulf %13, %401 : vector<8x128xf32>
    %403 = arith.addf %399, %402 : vector<8x128xf32>
    %c90 = arith.constant 90 : index
    %404 = memref.load %arg2[%c90] : memref<128xf32, #tpu.memory_space<smem>>
    %405 = vector.broadcast %404 : f32 to vector<8x128xf32>
    %406 = arith.mulf %14, %405 : vector<8x128xf32>
    %407 = arith.addf %403, %406 : vector<8x128xf32>
    %c91 = arith.constant 91 : index
    %408 = memref.load %arg2[%c91] : memref<128xf32, #tpu.memory_space<smem>>
    %409 = vector.broadcast %408 : f32 to vector<8x128xf32>
    %410 = arith.mulf %15, %409 : vector<8x128xf32>
    %411 = arith.addf %407, %410 : vector<8x128xf32>
    %c92 = arith.constant 92 : index
    %412 = memref.load %arg2[%c92] : memref<128xf32, #tpu.memory_space<smem>>
    %413 = vector.broadcast %412 : f32 to vector<8x128xf32>
    %414 = arith.mulf %16, %413 : vector<8x128xf32>
    %415 = arith.addf %411, %414 : vector<8x128xf32>
    %c93 = arith.constant 93 : index
    %416 = memref.load %arg2[%c93] : memref<128xf32, #tpu.memory_space<smem>>
    %417 = vector.broadcast %416 : f32 to vector<8x128xf32>
    %418 = arith.mulf %17, %417 : vector<8x128xf32>
    %419 = arith.addf %415, %418 : vector<8x128xf32>
    %c94 = arith.constant 94 : index
    %420 = memref.load %arg2[%c94] : memref<128xf32, #tpu.memory_space<smem>>
    %421 = vector.broadcast %420 : f32 to vector<8x128xf32>
    %422 = arith.mulf %18, %421 : vector<8x128xf32>
    %423 = arith.addf %419, %422 : vector<8x128xf32>
    %c95 = arith.constant 95 : index
    %424 = memref.load %arg2[%c95] : memref<128xf32, #tpu.memory_space<smem>>
    %425 = vector.broadcast %424 : f32 to vector<8x128xf32>
    %426 = arith.mulf %19, %425 : vector<8x128xf32>
    %427 = arith.addf %423, %426 : vector<8x128xf32>
    %c5_13 = arith.constant 5 : index
    %428 = memref.load %arg3[%c5_13] : memref<8xf32, #tpu.memory_space<smem>>
    %429 = vector.broadcast %428 : f32 to vector<8x128xf32>
    %430 = arith.mulf %427, %429 : vector<8x128xf32>
    %c5_14 = arith.constant 5 : index
    %431 = memref.load %arg4[%c5_14] : memref<8xf32, #tpu.memory_space<smem>>
    %432 = vector.broadcast %431 : f32 to vector<8x128xf32>
    %433 = arith.addf %430, %432 : vector<8x128xf32>
    %c96 = arith.constant 96 : index
    %434 = memref.load %arg2[%c96] : memref<128xf32, #tpu.memory_space<smem>>
    %435 = vector.broadcast %434 : f32 to vector<8x128xf32>
    %436 = arith.mulf %4, %435 : vector<8x128xf32>
    %c97 = arith.constant 97 : index
    %437 = memref.load %arg2[%c97] : memref<128xf32, #tpu.memory_space<smem>>
    %438 = vector.broadcast %437 : f32 to vector<8x128xf32>
    %439 = arith.mulf %5, %438 : vector<8x128xf32>
    %440 = arith.addf %436, %439 : vector<8x128xf32>
    %c98 = arith.constant 98 : index
    %441 = memref.load %arg2[%c98] : memref<128xf32, #tpu.memory_space<smem>>
    %442 = vector.broadcast %441 : f32 to vector<8x128xf32>
    %443 = arith.mulf %6, %442 : vector<8x128xf32>
    %444 = arith.addf %440, %443 : vector<8x128xf32>
    %c99 = arith.constant 99 : index
    %445 = memref.load %arg2[%c99] : memref<128xf32, #tpu.memory_space<smem>>
    %446 = vector.broadcast %445 : f32 to vector<8x128xf32>
    %447 = arith.mulf %7, %446 : vector<8x128xf32>
    %448 = arith.addf %444, %447 : vector<8x128xf32>
    %c100 = arith.constant 100 : index
    %449 = memref.load %arg2[%c100] : memref<128xf32, #tpu.memory_space<smem>>
    %450 = vector.broadcast %449 : f32 to vector<8x128xf32>
    %451 = arith.mulf %8, %450 : vector<8x128xf32>
    %452 = arith.addf %448, %451 : vector<8x128xf32>
    %c101 = arith.constant 101 : index
    %453 = memref.load %arg2[%c101] : memref<128xf32, #tpu.memory_space<smem>>
    %454 = vector.broadcast %453 : f32 to vector<8x128xf32>
    %455 = arith.mulf %9, %454 : vector<8x128xf32>
    %456 = arith.addf %452, %455 : vector<8x128xf32>
    %c102 = arith.constant 102 : index
    %457 = memref.load %arg2[%c102] : memref<128xf32, #tpu.memory_space<smem>>
    %458 = vector.broadcast %457 : f32 to vector<8x128xf32>
    %459 = arith.mulf %10, %458 : vector<8x128xf32>
    %460 = arith.addf %456, %459 : vector<8x128xf32>
    %c103 = arith.constant 103 : index
    %461 = memref.load %arg2[%c103] : memref<128xf32, #tpu.memory_space<smem>>
    %462 = vector.broadcast %461 : f32 to vector<8x128xf32>
    %463 = arith.mulf %11, %462 : vector<8x128xf32>
    %464 = arith.addf %460, %463 : vector<8x128xf32>
    %c104 = arith.constant 104 : index
    %465 = memref.load %arg2[%c104] : memref<128xf32, #tpu.memory_space<smem>>
    %466 = vector.broadcast %465 : f32 to vector<8x128xf32>
    %467 = arith.mulf %12, %466 : vector<8x128xf32>
    %468 = arith.addf %464, %467 : vector<8x128xf32>
    %c105 = arith.constant 105 : index
    %469 = memref.load %arg2[%c105] : memref<128xf32, #tpu.memory_space<smem>>
    %470 = vector.broadcast %469 : f32 to vector<8x128xf32>
    %471 = arith.mulf %13, %470 : vector<8x128xf32>
    %472 = arith.addf %468, %471 : vector<8x128xf32>
    %c106 = arith.constant 106 : index
    %473 = memref.load %arg2[%c106] : memref<128xf32, #tpu.memory_space<smem>>
    %474 = vector.broadcast %473 : f32 to vector<8x128xf32>
    %475 = arith.mulf %14, %474 : vector<8x128xf32>
    %476 = arith.addf %472, %475 : vector<8x128xf32>
    %c107 = arith.constant 107 : index
    %477 = memref.load %arg2[%c107] : memref<128xf32, #tpu.memory_space<smem>>
    %478 = vector.broadcast %477 : f32 to vector<8x128xf32>
    %479 = arith.mulf %15, %478 : vector<8x128xf32>
    %480 = arith.addf %476, %479 : vector<8x128xf32>
    %c108 = arith.constant 108 : index
    %481 = memref.load %arg2[%c108] : memref<128xf32, #tpu.memory_space<smem>>
    %482 = vector.broadcast %481 : f32 to vector<8x128xf32>
    %483 = arith.mulf %16, %482 : vector<8x128xf32>
    %484 = arith.addf %480, %483 : vector<8x128xf32>
    %c109 = arith.constant 109 : index
    %485 = memref.load %arg2[%c109] : memref<128xf32, #tpu.memory_space<smem>>
    %486 = vector.broadcast %485 : f32 to vector<8x128xf32>
    %487 = arith.mulf %17, %486 : vector<8x128xf32>
    %488 = arith.addf %484, %487 : vector<8x128xf32>
    %c110 = arith.constant 110 : index
    %489 = memref.load %arg2[%c110] : memref<128xf32, #tpu.memory_space<smem>>
    %490 = vector.broadcast %489 : f32 to vector<8x128xf32>
    %491 = arith.mulf %18, %490 : vector<8x128xf32>
    %492 = arith.addf %488, %491 : vector<8x128xf32>
    %c111 = arith.constant 111 : index
    %493 = memref.load %arg2[%c111] : memref<128xf32, #tpu.memory_space<smem>>
    %494 = vector.broadcast %493 : f32 to vector<8x128xf32>
    %495 = arith.mulf %19, %494 : vector<8x128xf32>
    %496 = arith.addf %492, %495 : vector<8x128xf32>
    %c6_15 = arith.constant 6 : index
    %497 = memref.load %arg3[%c6_15] : memref<8xf32, #tpu.memory_space<smem>>
    %498 = vector.broadcast %497 : f32 to vector<8x128xf32>
    %499 = arith.mulf %496, %498 : vector<8x128xf32>
    %c6_16 = arith.constant 6 : index
    %500 = memref.load %arg4[%c6_16] : memref<8xf32, #tpu.memory_space<smem>>
    %501 = vector.broadcast %500 : f32 to vector<8x128xf32>
    %502 = arith.addf %499, %501 : vector<8x128xf32>
    %c112 = arith.constant 112 : index
    %503 = memref.load %arg2[%c112] : memref<128xf32, #tpu.memory_space<smem>>
    %504 = vector.broadcast %503 : f32 to vector<8x128xf32>
    %505 = arith.mulf %4, %504 : vector<8x128xf32>
    %c113 = arith.constant 113 : index
    %506 = memref.load %arg2[%c113] : memref<128xf32, #tpu.memory_space<smem>>
    %507 = vector.broadcast %506 : f32 to vector<8x128xf32>
    %508 = arith.mulf %5, %507 : vector<8x128xf32>
    %509 = arith.addf %505, %508 : vector<8x128xf32>
    %c114 = arith.constant 114 : index
    %510 = memref.load %arg2[%c114] : memref<128xf32, #tpu.memory_space<smem>>
    %511 = vector.broadcast %510 : f32 to vector<8x128xf32>
    %512 = arith.mulf %6, %511 : vector<8x128xf32>
    %513 = arith.addf %509, %512 : vector<8x128xf32>
    %c115 = arith.constant 115 : index
    %514 = memref.load %arg2[%c115] : memref<128xf32, #tpu.memory_space<smem>>
    %515 = vector.broadcast %514 : f32 to vector<8x128xf32>
    %516 = arith.mulf %7, %515 : vector<8x128xf32>
    %517 = arith.addf %513, %516 : vector<8x128xf32>
    %c116 = arith.constant 116 : index
    %518 = memref.load %arg2[%c116] : memref<128xf32, #tpu.memory_space<smem>>
    %519 = vector.broadcast %518 : f32 to vector<8x128xf32>
    %520 = arith.mulf %8, %519 : vector<8x128xf32>
    %521 = arith.addf %517, %520 : vector<8x128xf32>
    %c117 = arith.constant 117 : index
    %522 = memref.load %arg2[%c117] : memref<128xf32, #tpu.memory_space<smem>>
    %523 = vector.broadcast %522 : f32 to vector<8x128xf32>
    %524 = arith.mulf %9, %523 : vector<8x128xf32>
    %525 = arith.addf %521, %524 : vector<8x128xf32>
    %c118 = arith.constant 118 : index
    %526 = memref.load %arg2[%c118] : memref<128xf32, #tpu.memory_space<smem>>
    %527 = vector.broadcast %526 : f32 to vector<8x128xf32>
    %528 = arith.mulf %10, %527 : vector<8x128xf32>
    %529 = arith.addf %525, %528 : vector<8x128xf32>
    %c119 = arith.constant 119 : index
    %530 = memref.load %arg2[%c119] : memref<128xf32, #tpu.memory_space<smem>>
    %531 = vector.broadcast %530 : f32 to vector<8x128xf32>
    %532 = arith.mulf %11, %531 : vector<8x128xf32>
    %533 = arith.addf %529, %532 : vector<8x128xf32>
    %c120 = arith.constant 120 : index
    %534 = memref.load %arg2[%c120] : memref<128xf32, #tpu.memory_space<smem>>
    %535 = vector.broadcast %534 : f32 to vector<8x128xf32>
    %536 = arith.mulf %12, %535 : vector<8x128xf32>
    %537 = arith.addf %533, %536 : vector<8x128xf32>
    %c121 = arith.constant 121 : index
    %538 = memref.load %arg2[%c121] : memref<128xf32, #tpu.memory_space<smem>>
    %539 = vector.broadcast %538 : f32 to vector<8x128xf32>
    %540 = arith.mulf %13, %539 : vector<8x128xf32>
    %541 = arith.addf %537, %540 : vector<8x128xf32>
    %c122 = arith.constant 122 : index
    %542 = memref.load %arg2[%c122] : memref<128xf32, #tpu.memory_space<smem>>
    %543 = vector.broadcast %542 : f32 to vector<8x128xf32>
    %544 = arith.mulf %14, %543 : vector<8x128xf32>
    %545 = arith.addf %541, %544 : vector<8x128xf32>
    %c123 = arith.constant 123 : index
    %546 = memref.load %arg2[%c123] : memref<128xf32, #tpu.memory_space<smem>>
    %547 = vector.broadcast %546 : f32 to vector<8x128xf32>
    %548 = arith.mulf %15, %547 : vector<8x128xf32>
    %549 = arith.addf %545, %548 : vector<8x128xf32>
    %c124 = arith.constant 124 : index
    %550 = memref.load %arg2[%c124] : memref<128xf32, #tpu.memory_space<smem>>
    %551 = vector.broadcast %550 : f32 to vector<8x128xf32>
    %552 = arith.mulf %16, %551 : vector<8x128xf32>
    %553 = arith.addf %549, %552 : vector<8x128xf32>
    %c125 = arith.constant 125 : index
    %554 = memref.load %arg2[%c125] : memref<128xf32, #tpu.memory_space<smem>>
    %555 = vector.broadcast %554 : f32 to vector<8x128xf32>
    %556 = arith.mulf %17, %555 : vector<8x128xf32>
    %557 = arith.addf %553, %556 : vector<8x128xf32>
    %c126 = arith.constant 126 : index
    %558 = memref.load %arg2[%c126] : memref<128xf32, #tpu.memory_space<smem>>
    %559 = vector.broadcast %558 : f32 to vector<8x128xf32>
    %560 = arith.mulf %18, %559 : vector<8x128xf32>
    %561 = arith.addf %557, %560 : vector<8x128xf32>
    %c127 = arith.constant 127 : index
    %562 = memref.load %arg2[%c127] : memref<128xf32, #tpu.memory_space<smem>>
    %563 = vector.broadcast %562 : f32 to vector<8x128xf32>
    %564 = arith.mulf %19, %563 : vector<8x128xf32>
    %565 = arith.addf %561, %564 : vector<8x128xf32>
    %c7_17 = arith.constant 7 : index
    %566 = memref.load %arg3[%c7_17] : memref<8xf32, #tpu.memory_space<smem>>
    %567 = vector.broadcast %566 : f32 to vector<8x128xf32>
    %568 = arith.mulf %565, %567 : vector<8x128xf32>
    %c7_18 = arith.constant 7 : index
    %569 = memref.load %arg4[%c7_18] : memref<8xf32, #tpu.memory_space<smem>>
    %570 = vector.broadcast %569 : f32 to vector<8x128xf32>
    %571 = arith.addf %568, %570 : vector<8x128xf32>
    %572 = vector.extract_strided_slice %88 {offsets = [0, 0], sizes = [1, 128], strides = [1, 1]} : vector<8x128xf32> to vector<1x128xf32>
    %573 = vector.extract_strided_slice %88 {offsets = [1, 0], sizes = [1, 128], strides = [1, 1]} : vector<8x128xf32> to vector<1x128xf32>
    %574 = vector.extract_strided_slice %88 {offsets = [2, 0], sizes = [1, 128], strides = [1, 1]} : vector<8x128xf32> to vector<1x128xf32>
    %575 = vector.extract_strided_slice %88 {offsets = [3, 0], sizes = [1, 128], strides = [1, 1]} : vector<8x128xf32> to vector<1x128xf32>
    %576 = vector.extract_strided_slice %88 {offsets = [4, 0], sizes = [1, 128], strides = [1, 1]} : vector<8x128xf32> to vector<1x128xf32>
    %577 = vector.extract_strided_slice %88 {offsets = [5, 0], sizes = [1, 128], strides = [1, 1]} : vector<8x128xf32> to vector<1x128xf32>
    %578 = vector.extract_strided_slice %88 {offsets = [6, 0], sizes = [1, 128], strides = [1, 1]} : vector<8x128xf32> to vector<1x128xf32>
    %579 = vector.extract_strided_slice %88 {offsets = [7, 0], sizes = [1, 128], strides = [1, 1]} : vector<8x128xf32> to vector<1x128xf32>
    %c0_19 = arith.constant 0 : index
    %580 = memref.load %arg5[%c0_19] : memref<128xf32, #tpu.memory_space<smem>>
    %581 = vector.broadcast %580 : f32 to vector<1x128xf32>
    %582 = arith.mulf %572, %581 : vector<1x128xf32>
    %c1_20 = arith.constant 1 : index
    %583 = memref.load %arg5[%c1_20] : memref<128xf32, #tpu.memory_space<smem>>
    %584 = vector.broadcast %583 : f32 to vector<1x128xf32>
    %585 = arith.mulf %573, %584 : vector<1x128xf32>
    %586 = arith.addf %582, %585 : vector<1x128xf32>
    %c2_21 = arith.constant 2 : index
    %587 = memref.load %arg5[%c2_21] : memref<128xf32, #tpu.memory_space<smem>>
    %588 = vector.broadcast %587 : f32 to vector<1x128xf32>
    %589 = arith.mulf %574, %588 : vector<1x128xf32>
    %590 = arith.addf %586, %589 : vector<1x128xf32>
    %c3_22 = arith.constant 3 : index
    %591 = memref.load %arg5[%c3_22] : memref<128xf32, #tpu.memory_space<smem>>
    %592 = vector.broadcast %591 : f32 to vector<1x128xf32>
    %593 = arith.mulf %575, %592 : vector<1x128xf32>
    %594 = arith.addf %590, %593 : vector<1x128xf32>
    %c4_23 = arith.constant 4 : index
    %595 = memref.load %arg5[%c4_23] : memref<128xf32, #tpu.memory_space<smem>>
    %596 = vector.broadcast %595 : f32 to vector<1x128xf32>
    %597 = arith.mulf %576, %596 : vector<1x128xf32>
    %598 = arith.addf %594, %597 : vector<1x128xf32>
    %c5_24 = arith.constant 5 : index
    %599 = memref.load %arg5[%c5_24] : memref<128xf32, #tpu.memory_space<smem>>
    %600 = vector.broadcast %599 : f32 to vector<1x128xf32>
    %601 = arith.mulf %577, %600 : vector<1x128xf32>
    %602 = arith.addf %598, %601 : vector<1x128xf32>
    %c6_25 = arith.constant 6 : index
    %603 = memref.load %arg5[%c6_25] : memref<128xf32, #tpu.memory_space<smem>>
    %604 = vector.broadcast %603 : f32 to vector<1x128xf32>
    %605 = arith.mulf %578, %604 : vector<1x128xf32>
    %606 = arith.addf %602, %605 : vector<1x128xf32>
    %c7_26 = arith.constant 7 : index
    %607 = memref.load %arg5[%c7_26] : memref<128xf32, #tpu.memory_space<smem>>
    %608 = vector.broadcast %607 : f32 to vector<1x128xf32>
    %609 = arith.mulf %579, %608 : vector<1x128xf32>
    %610 = arith.addf %606, %609 : vector<1x128xf32>
    %c0_27 = arith.constant 0 : index
    %611 = memref.load %arg6[%c0_27] : memref<16xf32, #tpu.memory_space<smem>>
    %612 = vector.broadcast %611 : f32 to vector<1x128xf32>
    %613 = arith.mulf %610, %612 : vector<1x128xf32>
    %c0_28 = arith.constant 0 : index
    %614 = memref.load %arg7[%c0_28] : memref<16xf32, #tpu.memory_space<smem>>
    %615 = vector.broadcast %614 : f32 to vector<1x128xf32>
    %616 = arith.addf %613, %615 : vector<1x128xf32>
    %c8_29 = arith.constant 8 : index
    %617 = memref.load %arg5[%c8_29] : memref<128xf32, #tpu.memory_space<smem>>
    %618 = vector.broadcast %617 : f32 to vector<1x128xf32>
    %619 = arith.mulf %572, %618 : vector<1x128xf32>
    %c9_30 = arith.constant 9 : index
    %620 = memref.load %arg5[%c9_30] : memref<128xf32, #tpu.memory_space<smem>>
    %621 = vector.broadcast %620 : f32 to vector<1x128xf32>
    %622 = arith.mulf %573, %621 : vector<1x128xf32>
    %623 = arith.addf %619, %622 : vector<1x128xf32>
    %c10_31 = arith.constant 10 : index
    %624 = memref.load %arg5[%c10_31] : memref<128xf32, #tpu.memory_space<smem>>
    %625 = vector.broadcast %624 : f32 to vector<1x128xf32>
    %626 = arith.mulf %574, %625 : vector<1x128xf32>
    %627 = arith.addf %623, %626 : vector<1x128xf32>
    %c11_32 = arith.constant 11 : index
    %628 = memref.load %arg5[%c11_32] : memref<128xf32, #tpu.memory_space<smem>>
    %629 = vector.broadcast %628 : f32 to vector<1x128xf32>
    %630 = arith.mulf %575, %629 : vector<1x128xf32>
    %631 = arith.addf %627, %630 : vector<1x128xf32>
    %c12_33 = arith.constant 12 : index
    %632 = memref.load %arg5[%c12_33] : memref<128xf32, #tpu.memory_space<smem>>
    %633 = vector.broadcast %632 : f32 to vector<1x128xf32>
    %634 = arith.mulf %576, %633 : vector<1x128xf32>
    %635 = arith.addf %631, %634 : vector<1x128xf32>
    %c13_34 = arith.constant 13 : index
    %636 = memref.load %arg5[%c13_34] : memref<128xf32, #tpu.memory_space<smem>>
    %637 = vector.broadcast %636 : f32 to vector<1x128xf32>
    %638 = arith.mulf %577, %637 : vector<1x128xf32>
    %639 = arith.addf %635, %638 : vector<1x128xf32>
    %c14_35 = arith.constant 14 : index
    %640 = memref.load %arg5[%c14_35] : memref<128xf32, #tpu.memory_space<smem>>
    %641 = vector.broadcast %640 : f32 to vector<1x128xf32>
    %642 = arith.mulf %578, %641 : vector<1x128xf32>
    %643 = arith.addf %639, %642 : vector<1x128xf32>
    %c15_36 = arith.constant 15 : index
    %644 = memref.load %arg5[%c15_36] : memref<128xf32, #tpu.memory_space<smem>>
    %645 = vector.broadcast %644 : f32 to vector<1x128xf32>
    %646 = arith.mulf %579, %645 : vector<1x128xf32>
    %647 = arith.addf %643, %646 : vector<1x128xf32>
    %c1_37 = arith.constant 1 : index
    %648 = memref.load %arg6[%c1_37] : memref<16xf32, #tpu.memory_space<smem>>
    %649 = vector.broadcast %648 : f32 to vector<1x128xf32>
    %650 = arith.mulf %647, %649 : vector<1x128xf32>
    %c1_38 = arith.constant 1 : index
    %651 = memref.load %arg7[%c1_38] : memref<16xf32, #tpu.memory_space<smem>>
    %652 = vector.broadcast %651 : f32 to vector<1x128xf32>
    %653 = arith.addf %650, %652 : vector<1x128xf32>
    %654 = vector.extract_strided_slice %157 {offsets = [0, 0], sizes = [1, 128], strides = [1, 1]} : vector<8x128xf32> to vector<1x128xf32>
    %655 = vector.extract_strided_slice %157 {offsets = [1, 0], sizes = [1, 128], strides = [1, 1]} : vector<8x128xf32> to vector<1x128xf32>
    %656 = vector.extract_strided_slice %157 {offsets = [2, 0], sizes = [1, 128], strides = [1, 1]} : vector<8x128xf32> to vector<1x128xf32>
    %657 = vector.extract_strided_slice %157 {offsets = [3, 0], sizes = [1, 128], strides = [1, 1]} : vector<8x128xf32> to vector<1x128xf32>
    %658 = vector.extract_strided_slice %157 {offsets = [4, 0], sizes = [1, 128], strides = [1, 1]} : vector<8x128xf32> to vector<1x128xf32>
    %659 = vector.extract_strided_slice %157 {offsets = [5, 0], sizes = [1, 128], strides = [1, 1]} : vector<8x128xf32> to vector<1x128xf32>
    %660 = vector.extract_strided_slice %157 {offsets = [6, 0], sizes = [1, 128], strides = [1, 1]} : vector<8x128xf32> to vector<1x128xf32>
    %661 = vector.extract_strided_slice %157 {offsets = [7, 0], sizes = [1, 128], strides = [1, 1]} : vector<8x128xf32> to vector<1x128xf32>
    %c16_39 = arith.constant 16 : index
    %662 = memref.load %arg5[%c16_39] : memref<128xf32, #tpu.memory_space<smem>>
    %663 = vector.broadcast %662 : f32 to vector<1x128xf32>
    %664 = arith.mulf %654, %663 : vector<1x128xf32>
    %c17_40 = arith.constant 17 : index
    %665 = memref.load %arg5[%c17_40] : memref<128xf32, #tpu.memory_space<smem>>
    %666 = vector.broadcast %665 : f32 to vector<1x128xf32>
    %667 = arith.mulf %655, %666 : vector<1x128xf32>
    %668 = arith.addf %664, %667 : vector<1x128xf32>
    %c18_41 = arith.constant 18 : index
    %669 = memref.load %arg5[%c18_41] : memref<128xf32, #tpu.memory_space<smem>>
    %670 = vector.broadcast %669 : f32 to vector<1x128xf32>
    %671 = arith.mulf %656, %670 : vector<1x128xf32>
    %672 = arith.addf %668, %671 : vector<1x128xf32>
    %c19_42 = arith.constant 19 : index
    %673 = memref.load %arg5[%c19_42] : memref<128xf32, #tpu.memory_space<smem>>
    %674 = vector.broadcast %673 : f32 to vector<1x128xf32>
    %675 = arith.mulf %657, %674 : vector<1x128xf32>
    %676 = arith.addf %672, %675 : vector<1x128xf32>
    %c20_43 = arith.constant 20 : index
    %677 = memref.load %arg5[%c20_43] : memref<128xf32, #tpu.memory_space<smem>>
    %678 = vector.broadcast %677 : f32 to vector<1x128xf32>
    %679 = arith.mulf %658, %678 : vector<1x128xf32>
    %680 = arith.addf %676, %679 : vector<1x128xf32>
    %c21_44 = arith.constant 21 : index
    %681 = memref.load %arg5[%c21_44] : memref<128xf32, #tpu.memory_space<smem>>
    %682 = vector.broadcast %681 : f32 to vector<1x128xf32>
    %683 = arith.mulf %659, %682 : vector<1x128xf32>
    %684 = arith.addf %680, %683 : vector<1x128xf32>
    %c22_45 = arith.constant 22 : index
    %685 = memref.load %arg5[%c22_45] : memref<128xf32, #tpu.memory_space<smem>>
    %686 = vector.broadcast %685 : f32 to vector<1x128xf32>
    %687 = arith.mulf %660, %686 : vector<1x128xf32>
    %688 = arith.addf %684, %687 : vector<1x128xf32>
    %c23_46 = arith.constant 23 : index
    %689 = memref.load %arg5[%c23_46] : memref<128xf32, #tpu.memory_space<smem>>
    %690 = vector.broadcast %689 : f32 to vector<1x128xf32>
    %691 = arith.mulf %661, %690 : vector<1x128xf32>
    %692 = arith.addf %688, %691 : vector<1x128xf32>
    %c2_47 = arith.constant 2 : index
    %693 = memref.load %arg6[%c2_47] : memref<16xf32, #tpu.memory_space<smem>>
    %694 = vector.broadcast %693 : f32 to vector<1x128xf32>
    %695 = arith.mulf %692, %694 : vector<1x128xf32>
    %c2_48 = arith.constant 2 : index
    %696 = memref.load %arg7[%c2_48] : memref<16xf32, #tpu.memory_space<smem>>
    %697 = vector.broadcast %696 : f32 to vector<1x128xf32>
    %698 = arith.addf %695, %697 : vector<1x128xf32>
    %c24_49 = arith.constant 24 : index
    %699 = memref.load %arg5[%c24_49] : memref<128xf32, #tpu.memory_space<smem>>
    %700 = vector.broadcast %699 : f32 to vector<1x128xf32>
    %701 = arith.mulf %654, %700 : vector<1x128xf32>
    %c25_50 = arith.constant 25 : index
    %702 = memref.load %arg5[%c25_50] : memref<128xf32, #tpu.memory_space<smem>>
    %703 = vector.broadcast %702 : f32 to vector<1x128xf32>
    %704 = arith.mulf %655, %703 : vector<1x128xf32>
    %705 = arith.addf %701, %704 : vector<1x128xf32>
    %c26_51 = arith.constant 26 : index
    %706 = memref.load %arg5[%c26_51] : memref<128xf32, #tpu.memory_space<smem>>
    %707 = vector.broadcast %706 : f32 to vector<1x128xf32>
    %708 = arith.mulf %656, %707 : vector<1x128xf32>
    %709 = arith.addf %705, %708 : vector<1x128xf32>
    %c27_52 = arith.constant 27 : index
    %710 = memref.load %arg5[%c27_52] : memref<128xf32, #tpu.memory_space<smem>>
    %711 = vector.broadcast %710 : f32 to vector<1x128xf32>
    %712 = arith.mulf %657, %711 : vector<1x128xf32>
    %713 = arith.addf %709, %712 : vector<1x128xf32>
    %c28_53 = arith.constant 28 : index
    %714 = memref.load %arg5[%c28_53] : memref<128xf32, #tpu.memory_space<smem>>
    %715 = vector.broadcast %714 : f32 to vector<1x128xf32>
    %716 = arith.mulf %658, %715 : vector<1x128xf32>
    %717 = arith.addf %713, %716 : vector<1x128xf32>
    %c29_54 = arith.constant 29 : index
    %718 = memref.load %arg5[%c29_54] : memref<128xf32, #tpu.memory_space<smem>>
    %719 = vector.broadcast %718 : f32 to vector<1x128xf32>
    %720 = arith.mulf %659, %719 : vector<1x128xf32>
    %721 = arith.addf %717, %720 : vector<1x128xf32>
    %c30_55 = arith.constant 30 : index
    %722 = memref.load %arg5[%c30_55] : memref<128xf32, #tpu.memory_space<smem>>
    %723 = vector.broadcast %722 : f32 to vector<1x128xf32>
    %724 = arith.mulf %660, %723 : vector<1x128xf32>
    %725 = arith.addf %721, %724 : vector<1x128xf32>
    %c31_56 = arith.constant 31 : index
    %726 = memref.load %arg5[%c31_56] : memref<128xf32, #tpu.memory_space<smem>>
    %727 = vector.broadcast %726 : f32 to vector<1x128xf32>
    %728 = arith.mulf %661, %727 : vector<1x128xf32>
    %729 = arith.addf %725, %728 : vector<1x128xf32>
    %c3_57 = arith.constant 3 : index
    %730 = memref.load %arg6[%c3_57] : memref<16xf32, #tpu.memory_space<smem>>
    %731 = vector.broadcast %730 : f32 to vector<1x128xf32>
    %732 = arith.mulf %729, %731 : vector<1x128xf32>
    %c3_58 = arith.constant 3 : index
    %733 = memref.load %arg7[%c3_58] : memref<16xf32, #tpu.memory_space<smem>>
    %734 = vector.broadcast %733 : f32 to vector<1x128xf32>
    %735 = arith.addf %732, %734 : vector<1x128xf32>
    %736 = vector.extract_strided_slice %226 {offsets = [0, 0], sizes = [1, 128], strides = [1, 1]} : vector<8x128xf32> to vector<1x128xf32>
    %737 = vector.extract_strided_slice %226 {offsets = [1, 0], sizes = [1, 128], strides = [1, 1]} : vector<8x128xf32> to vector<1x128xf32>
    %738 = vector.extract_strided_slice %226 {offsets = [2, 0], sizes = [1, 128], strides = [1, 1]} : vector<8x128xf32> to vector<1x128xf32>
    %739 = vector.extract_strided_slice %226 {offsets = [3, 0], sizes = [1, 128], strides = [1, 1]} : vector<8x128xf32> to vector<1x128xf32>
    %740 = vector.extract_strided_slice %226 {offsets = [4, 0], sizes = [1, 128], strides = [1, 1]} : vector<8x128xf32> to vector<1x128xf32>
    %741 = vector.extract_strided_slice %226 {offsets = [5, 0], sizes = [1, 128], strides = [1, 1]} : vector<8x128xf32> to vector<1x128xf32>
    %742 = vector.extract_strided_slice %226 {offsets = [6, 0], sizes = [1, 128], strides = [1, 1]} : vector<8x128xf32> to vector<1x128xf32>
    %743 = vector.extract_strided_slice %226 {offsets = [7, 0], sizes = [1, 128], strides = [1, 1]} : vector<8x128xf32> to vector<1x128xf32>
    %c32_59 = arith.constant 32 : index
    %744 = memref.load %arg5[%c32_59] : memref<128xf32, #tpu.memory_space<smem>>
    %745 = vector.broadcast %744 : f32 to vector<1x128xf32>
    %746 = arith.mulf %736, %745 : vector<1x128xf32>
    %c33_60 = arith.constant 33 : index
    %747 = memref.load %arg5[%c33_60] : memref<128xf32, #tpu.memory_space<smem>>
    %748 = vector.broadcast %747 : f32 to vector<1x128xf32>
    %749 = arith.mulf %737, %748 : vector<1x128xf32>
    %750 = arith.addf %746, %749 : vector<1x128xf32>
    %c34_61 = arith.constant 34 : index
    %751 = memref.load %arg5[%c34_61] : memref<128xf32, #tpu.memory_space<smem>>
    %752 = vector.broadcast %751 : f32 to vector<1x128xf32>
    %753 = arith.mulf %738, %752 : vector<1x128xf32>
    %754 = arith.addf %750, %753 : vector<1x128xf32>
    %c35_62 = arith.constant 35 : index
    %755 = memref.load %arg5[%c35_62] : memref<128xf32, #tpu.memory_space<smem>>
    %756 = vector.broadcast %755 : f32 to vector<1x128xf32>
    %757 = arith.mulf %739, %756 : vector<1x128xf32>
    %758 = arith.addf %754, %757 : vector<1x128xf32>
    %c36_63 = arith.constant 36 : index
    %759 = memref.load %arg5[%c36_63] : memref<128xf32, #tpu.memory_space<smem>>
    %760 = vector.broadcast %759 : f32 to vector<1x128xf32>
    %761 = arith.mulf %740, %760 : vector<1x128xf32>
    %762 = arith.addf %758, %761 : vector<1x128xf32>
    %c37_64 = arith.constant 37 : index
    %763 = memref.load %arg5[%c37_64] : memref<128xf32, #tpu.memory_space<smem>>
    %764 = vector.broadcast %763 : f32 to vector<1x128xf32>
    %765 = arith.mulf %741, %764 : vector<1x128xf32>
    %766 = arith.addf %762, %765 : vector<1x128xf32>
    %c38_65 = arith.constant 38 : index
    %767 = memref.load %arg5[%c38_65] : memref<128xf32, #tpu.memory_space<smem>>
    %768 = vector.broadcast %767 : f32 to vector<1x128xf32>
    %769 = arith.mulf %742, %768 : vector<1x128xf32>
    %770 = arith.addf %766, %769 : vector<1x128xf32>
    %c39_66 = arith.constant 39 : index
    %771 = memref.load %arg5[%c39_66] : memref<128xf32, #tpu.memory_space<smem>>
    %772 = vector.broadcast %771 : f32 to vector<1x128xf32>
    %773 = arith.mulf %743, %772 : vector<1x128xf32>
    %774 = arith.addf %770, %773 : vector<1x128xf32>
    %c4_67 = arith.constant 4 : index
    %775 = memref.load %arg6[%c4_67] : memref<16xf32, #tpu.memory_space<smem>>
    %776 = vector.broadcast %775 : f32 to vector<1x128xf32>
    %777 = arith.mulf %774, %776 : vector<1x128xf32>
    %c4_68 = arith.constant 4 : index
    %778 = memref.load %arg7[%c4_68] : memref<16xf32, #tpu.memory_space<smem>>
    %779 = vector.broadcast %778 : f32 to vector<1x128xf32>
    %780 = arith.addf %777, %779 : vector<1x128xf32>
    %c40_69 = arith.constant 40 : index
    %781 = memref.load %arg5[%c40_69] : memref<128xf32, #tpu.memory_space<smem>>
    %782 = vector.broadcast %781 : f32 to vector<1x128xf32>
    %783 = arith.mulf %736, %782 : vector<1x128xf32>
    %c41_70 = arith.constant 41 : index
    %784 = memref.load %arg5[%c41_70] : memref<128xf32, #tpu.memory_space<smem>>
    %785 = vector.broadcast %784 : f32 to vector<1x128xf32>
    %786 = arith.mulf %737, %785 : vector<1x128xf32>
    %787 = arith.addf %783, %786 : vector<1x128xf32>
    %c42_71 = arith.constant 42 : index
    %788 = memref.load %arg5[%c42_71] : memref<128xf32, #tpu.memory_space<smem>>
    %789 = vector.broadcast %788 : f32 to vector<1x128xf32>
    %790 = arith.mulf %738, %789 : vector<1x128xf32>
    %791 = arith.addf %787, %790 : vector<1x128xf32>
    %c43_72 = arith.constant 43 : index
    %792 = memref.load %arg5[%c43_72] : memref<128xf32, #tpu.memory_space<smem>>
    %793 = vector.broadcast %792 : f32 to vector<1x128xf32>
    %794 = arith.mulf %739, %793 : vector<1x128xf32>
    %795 = arith.addf %791, %794 : vector<1x128xf32>
    %c44_73 = arith.constant 44 : index
    %796 = memref.load %arg5[%c44_73] : memref<128xf32, #tpu.memory_space<smem>>
    %797 = vector.broadcast %796 : f32 to vector<1x128xf32>
    %798 = arith.mulf %740, %797 : vector<1x128xf32>
    %799 = arith.addf %795, %798 : vector<1x128xf32>
    %c45_74 = arith.constant 45 : index
    %800 = memref.load %arg5[%c45_74] : memref<128xf32, #tpu.memory_space<smem>>
    %801 = vector.broadcast %800 : f32 to vector<1x128xf32>
    %802 = arith.mulf %741, %801 : vector<1x128xf32>
    %803 = arith.addf %799, %802 : vector<1x128xf32>
    %c46_75 = arith.constant 46 : index
    %804 = memref.load %arg5[%c46_75] : memref<128xf32, #tpu.memory_space<smem>>
    %805 = vector.broadcast %804 : f32 to vector<1x128xf32>
    %806 = arith.mulf %742, %805 : vector<1x128xf32>
    %807 = arith.addf %803, %806 : vector<1x128xf32>
    %c47_76 = arith.constant 47 : index
    %808 = memref.load %arg5[%c47_76] : memref<128xf32, #tpu.memory_space<smem>>
    %809 = vector.broadcast %808 : f32 to vector<1x128xf32>
    %810 = arith.mulf %743, %809 : vector<1x128xf32>
    %811 = arith.addf %807, %810 : vector<1x128xf32>
    %c5_77 = arith.constant 5 : index
    %812 = memref.load %arg6[%c5_77] : memref<16xf32, #tpu.memory_space<smem>>
    %813 = vector.broadcast %812 : f32 to vector<1x128xf32>
    %814 = arith.mulf %811, %813 : vector<1x128xf32>
    %c5_78 = arith.constant 5 : index
    %815 = memref.load %arg7[%c5_78] : memref<16xf32, #tpu.memory_space<smem>>
    %816 = vector.broadcast %815 : f32 to vector<1x128xf32>
    %817 = arith.addf %814, %816 : vector<1x128xf32>
    %818 = vector.extract_strided_slice %295 {offsets = [0, 0], sizes = [1, 128], strides = [1, 1]} : vector<8x128xf32> to vector<1x128xf32>
    %819 = vector.extract_strided_slice %295 {offsets = [1, 0], sizes = [1, 128], strides = [1, 1]} : vector<8x128xf32> to vector<1x128xf32>
    %820 = vector.extract_strided_slice %295 {offsets = [2, 0], sizes = [1, 128], strides = [1, 1]} : vector<8x128xf32> to vector<1x128xf32>
    %821 = vector.extract_strided_slice %295 {offsets = [3, 0], sizes = [1, 128], strides = [1, 1]} : vector<8x128xf32> to vector<1x128xf32>
    %822 = vector.extract_strided_slice %295 {offsets = [4, 0], sizes = [1, 128], strides = [1, 1]} : vector<8x128xf32> to vector<1x128xf32>
    %823 = vector.extract_strided_slice %295 {offsets = [5, 0], sizes = [1, 128], strides = [1, 1]} : vector<8x128xf32> to vector<1x128xf32>
    %824 = vector.extract_strided_slice %295 {offsets = [6, 0], sizes = [1, 128], strides = [1, 1]} : vector<8x128xf32> to vector<1x128xf32>
    %825 = vector.extract_strided_slice %295 {offsets = [7, 0], sizes = [1, 128], strides = [1, 1]} : vector<8x128xf32> to vector<1x128xf32>
    %c48_79 = arith.constant 48 : index
    %826 = memref.load %arg5[%c48_79] : memref<128xf32, #tpu.memory_space<smem>>
    %827 = vector.broadcast %826 : f32 to vector<1x128xf32>
    %828 = arith.mulf %818, %827 : vector<1x128xf32>
    %c49_80 = arith.constant 49 : index
    %829 = memref.load %arg5[%c49_80] : memref<128xf32, #tpu.memory_space<smem>>
    %830 = vector.broadcast %829 : f32 to vector<1x128xf32>
    %831 = arith.mulf %819, %830 : vector<1x128xf32>
    %832 = arith.addf %828, %831 : vector<1x128xf32>
    %c50_81 = arith.constant 50 : index
    %833 = memref.load %arg5[%c50_81] : memref<128xf32, #tpu.memory_space<smem>>
    %834 = vector.broadcast %833 : f32 to vector<1x128xf32>
    %835 = arith.mulf %820, %834 : vector<1x128xf32>
    %836 = arith.addf %832, %835 : vector<1x128xf32>
    %c51_82 = arith.constant 51 : index
    %837 = memref.load %arg5[%c51_82] : memref<128xf32, #tpu.memory_space<smem>>
    %838 = vector.broadcast %837 : f32 to vector<1x128xf32>
    %839 = arith.mulf %821, %838 : vector<1x128xf32>
    %840 = arith.addf %836, %839 : vector<1x128xf32>
    %c52_83 = arith.constant 52 : index
    %841 = memref.load %arg5[%c52_83] : memref<128xf32, #tpu.memory_space<smem>>
    %842 = vector.broadcast %841 : f32 to vector<1x128xf32>
    %843 = arith.mulf %822, %842 : vector<1x128xf32>
    %844 = arith.addf %840, %843 : vector<1x128xf32>
    %c53_84 = arith.constant 53 : index
    %845 = memref.load %arg5[%c53_84] : memref<128xf32, #tpu.memory_space<smem>>
    %846 = vector.broadcast %845 : f32 to vector<1x128xf32>
    %847 = arith.mulf %823, %846 : vector<1x128xf32>
    %848 = arith.addf %844, %847 : vector<1x128xf32>
    %c54_85 = arith.constant 54 : index
    %849 = memref.load %arg5[%c54_85] : memref<128xf32, #tpu.memory_space<smem>>
    %850 = vector.broadcast %849 : f32 to vector<1x128xf32>
    %851 = arith.mulf %824, %850 : vector<1x128xf32>
    %852 = arith.addf %848, %851 : vector<1x128xf32>
    %c55_86 = arith.constant 55 : index
    %853 = memref.load %arg5[%c55_86] : memref<128xf32, #tpu.memory_space<smem>>
    %854 = vector.broadcast %853 : f32 to vector<1x128xf32>
    %855 = arith.mulf %825, %854 : vector<1x128xf32>
    %856 = arith.addf %852, %855 : vector<1x128xf32>
    %c6_87 = arith.constant 6 : index
    %857 = memref.load %arg6[%c6_87] : memref<16xf32, #tpu.memory_space<smem>>
    %858 = vector.broadcast %857 : f32 to vector<1x128xf32>
    %859 = arith.mulf %856, %858 : vector<1x128xf32>
    %c6_88 = arith.constant 6 : index
    %860 = memref.load %arg7[%c6_88] : memref<16xf32, #tpu.memory_space<smem>>
    %861 = vector.broadcast %860 : f32 to vector<1x128xf32>
    %862 = arith.addf %859, %861 : vector<1x128xf32>
    %c56_89 = arith.constant 56 : index
    %863 = memref.load %arg5[%c56_89] : memref<128xf32, #tpu.memory_space<smem>>
    %864 = vector.broadcast %863 : f32 to vector<1x128xf32>
    %865 = arith.mulf %818, %864 : vector<1x128xf32>
    %c57_90 = arith.constant 57 : index
    %866 = memref.load %arg5[%c57_90] : memref<128xf32, #tpu.memory_space<smem>>
    %867 = vector.broadcast %866 : f32 to vector<1x128xf32>
    %868 = arith.mulf %819, %867 : vector<1x128xf32>
    %869 = arith.addf %865, %868 : vector<1x128xf32>
    %c58_91 = arith.constant 58 : index
    %870 = memref.load %arg5[%c58_91] : memref<128xf32, #tpu.memory_space<smem>>
    %871 = vector.broadcast %870 : f32 to vector<1x128xf32>
    %872 = arith.mulf %820, %871 : vector<1x128xf32>
    %873 = arith.addf %869, %872 : vector<1x128xf32>
    %c59_92 = arith.constant 59 : index
    %874 = memref.load %arg5[%c59_92] : memref<128xf32, #tpu.memory_space<smem>>
    %875 = vector.broadcast %874 : f32 to vector<1x128xf32>
    %876 = arith.mulf %821, %875 : vector<1x128xf32>
    %877 = arith.addf %873, %876 : vector<1x128xf32>
    %c60_93 = arith.constant 60 : index
    %878 = memref.load %arg5[%c60_93] : memref<128xf32, #tpu.memory_space<smem>>
    %879 = vector.broadcast %878 : f32 to vector<1x128xf32>
    %880 = arith.mulf %822, %879 : vector<1x128xf32>
    %881 = arith.addf %877, %880 : vector<1x128xf32>
    %c61_94 = arith.constant 61 : index
    %882 = memref.load %arg5[%c61_94] : memref<128xf32, #tpu.memory_space<smem>>
    %883 = vector.broadcast %882 : f32 to vector<1x128xf32>
    %884 = arith.mulf %823, %883 : vector<1x128xf32>
    %885 = arith.addf %881, %884 : vector<1x128xf32>
    %c62_95 = arith.constant 62 : index
    %886 = memref.load %arg5[%c62_95] : memref<128xf32, #tpu.memory_space<smem>>
    %887 = vector.broadcast %886 : f32 to vector<1x128xf32>
    %888 = arith.mulf %824, %887 : vector<1x128xf32>
    %889 = arith.addf %885, %888 : vector<1x128xf32>
    %c63_96 = arith.constant 63 : index
    %890 = memref.load %arg5[%c63_96] : memref<128xf32, #tpu.memory_space<smem>>
    %891 = vector.broadcast %890 : f32 to vector<1x128xf32>
    %892 = arith.mulf %825, %891 : vector<1x128xf32>
    %893 = arith.addf %889, %892 : vector<1x128xf32>
    %c7_97 = arith.constant 7 : index
    %894 = memref.load %arg6[%c7_97] : memref<16xf32, #tpu.memory_space<smem>>
    %895 = vector.broadcast %894 : f32 to vector<1x128xf32>
    %896 = arith.mulf %893, %895 : vector<1x128xf32>
    %c7_98 = arith.constant 7 : index
    %897 = memref.load %arg7[%c7_98] : memref<16xf32, #tpu.memory_space<smem>>
    %898 = vector.broadcast %897 : f32 to vector<1x128xf32>
    %899 = arith.addf %896, %898 : vector<1x128xf32>
    %900 = vector.extract_strided_slice %364 {offsets = [0, 0], sizes = [1, 128], strides = [1, 1]} : vector<8x128xf32> to vector<1x128xf32>
    %901 = vector.extract_strided_slice %364 {offsets = [1, 0], sizes = [1, 128], strides = [1, 1]} : vector<8x128xf32> to vector<1x128xf32>
    %902 = vector.extract_strided_slice %364 {offsets = [2, 0], sizes = [1, 128], strides = [1, 1]} : vector<8x128xf32> to vector<1x128xf32>
    %903 = vector.extract_strided_slice %364 {offsets = [3, 0], sizes = [1, 128], strides = [1, 1]} : vector<8x128xf32> to vector<1x128xf32>
    %904 = vector.extract_strided_slice %364 {offsets = [4, 0], sizes = [1, 128], strides = [1, 1]} : vector<8x128xf32> to vector<1x128xf32>
    %905 = vector.extract_strided_slice %364 {offsets = [5, 0], sizes = [1, 128], strides = [1, 1]} : vector<8x128xf32> to vector<1x128xf32>
    %906 = vector.extract_strided_slice %364 {offsets = [6, 0], sizes = [1, 128], strides = [1, 1]} : vector<8x128xf32> to vector<1x128xf32>
    %907 = vector.extract_strided_slice %364 {offsets = [7, 0], sizes = [1, 128], strides = [1, 1]} : vector<8x128xf32> to vector<1x128xf32>
    %c64_99 = arith.constant 64 : index
    %908 = memref.load %arg5[%c64_99] : memref<128xf32, #tpu.memory_space<smem>>
    %909 = vector.broadcast %908 : f32 to vector<1x128xf32>
    %910 = arith.mulf %900, %909 : vector<1x128xf32>
    %c65_100 = arith.constant 65 : index
    %911 = memref.load %arg5[%c65_100] : memref<128xf32, #tpu.memory_space<smem>>
    %912 = vector.broadcast %911 : f32 to vector<1x128xf32>
    %913 = arith.mulf %901, %912 : vector<1x128xf32>
    %914 = arith.addf %910, %913 : vector<1x128xf32>
    %c66_101 = arith.constant 66 : index
    %915 = memref.load %arg5[%c66_101] : memref<128xf32, #tpu.memory_space<smem>>
    %916 = vector.broadcast %915 : f32 to vector<1x128xf32>
    %917 = arith.mulf %902, %916 : vector<1x128xf32>
    %918 = arith.addf %914, %917 : vector<1x128xf32>
    %c67_102 = arith.constant 67 : index
    %919 = memref.load %arg5[%c67_102] : memref<128xf32, #tpu.memory_space<smem>>
    %920 = vector.broadcast %919 : f32 to vector<1x128xf32>
    %921 = arith.mulf %903, %920 : vector<1x128xf32>
    %922 = arith.addf %918, %921 : vector<1x128xf32>
    %c68_103 = arith.constant 68 : index
    %923 = memref.load %arg5[%c68_103] : memref<128xf32, #tpu.memory_space<smem>>
    %924 = vector.broadcast %923 : f32 to vector<1x128xf32>
    %925 = arith.mulf %904, %924 : vector<1x128xf32>
    %926 = arith.addf %922, %925 : vector<1x128xf32>
    %c69_104 = arith.constant 69 : index
    %927 = memref.load %arg5[%c69_104] : memref<128xf32, #tpu.memory_space<smem>>
    %928 = vector.broadcast %927 : f32 to vector<1x128xf32>
    %929 = arith.mulf %905, %928 : vector<1x128xf32>
    %930 = arith.addf %926, %929 : vector<1x128xf32>
    %c70_105 = arith.constant 70 : index
    %931 = memref.load %arg5[%c70_105] : memref<128xf32, #tpu.memory_space<smem>>
    %932 = vector.broadcast %931 : f32 to vector<1x128xf32>
    %933 = arith.mulf %906, %932 : vector<1x128xf32>
    %934 = arith.addf %930, %933 : vector<1x128xf32>
    %c71_106 = arith.constant 71 : index
    %935 = memref.load %arg5[%c71_106] : memref<128xf32, #tpu.memory_space<smem>>
    %936 = vector.broadcast %935 : f32 to vector<1x128xf32>
    %937 = arith.mulf %907, %936 : vector<1x128xf32>
    %938 = arith.addf %934, %937 : vector<1x128xf32>
    %c8_107 = arith.constant 8 : index
    %939 = memref.load %arg6[%c8_107] : memref<16xf32, #tpu.memory_space<smem>>
    %940 = vector.broadcast %939 : f32 to vector<1x128xf32>
    %941 = arith.mulf %938, %940 : vector<1x128xf32>
    %c8_108 = arith.constant 8 : index
    %942 = memref.load %arg7[%c8_108] : memref<16xf32, #tpu.memory_space<smem>>
    %943 = vector.broadcast %942 : f32 to vector<1x128xf32>
    %944 = arith.addf %941, %943 : vector<1x128xf32>
    %c72_109 = arith.constant 72 : index
    %945 = memref.load %arg5[%c72_109] : memref<128xf32, #tpu.memory_space<smem>>
    %946 = vector.broadcast %945 : f32 to vector<1x128xf32>
    %947 = arith.mulf %900, %946 : vector<1x128xf32>
    %c73_110 = arith.constant 73 : index
    %948 = memref.load %arg5[%c73_110] : memref<128xf32, #tpu.memory_space<smem>>
    %949 = vector.broadcast %948 : f32 to vector<1x128xf32>
    %950 = arith.mulf %901, %949 : vector<1x128xf32>
    %951 = arith.addf %947, %950 : vector<1x128xf32>
    %c74_111 = arith.constant 74 : index
    %952 = memref.load %arg5[%c74_111] : memref<128xf32, #tpu.memory_space<smem>>
    %953 = vector.broadcast %952 : f32 to vector<1x128xf32>
    %954 = arith.mulf %902, %953 : vector<1x128xf32>
    %955 = arith.addf %951, %954 : vector<1x128xf32>
    %c75_112 = arith.constant 75 : index
    %956 = memref.load %arg5[%c75_112] : memref<128xf32, #tpu.memory_space<smem>>
    %957 = vector.broadcast %956 : f32 to vector<1x128xf32>
    %958 = arith.mulf %903, %957 : vector<1x128xf32>
    %959 = arith.addf %955, %958 : vector<1x128xf32>
    %c76_113 = arith.constant 76 : index
    %960 = memref.load %arg5[%c76_113] : memref<128xf32, #tpu.memory_space<smem>>
    %961 = vector.broadcast %960 : f32 to vector<1x128xf32>
    %962 = arith.mulf %904, %961 : vector<1x128xf32>
    %963 = arith.addf %959, %962 : vector<1x128xf32>
    %c77_114 = arith.constant 77 : index
    %964 = memref.load %arg5[%c77_114] : memref<128xf32, #tpu.memory_space<smem>>
    %965 = vector.broadcast %964 : f32 to vector<1x128xf32>
    %966 = arith.mulf %905, %965 : vector<1x128xf32>
    %967 = arith.addf %963, %966 : vector<1x128xf32>
    %c78_115 = arith.constant 78 : index
    %968 = memref.load %arg5[%c78_115] : memref<128xf32, #tpu.memory_space<smem>>
    %969 = vector.broadcast %968 : f32 to vector<1x128xf32>
    %970 = arith.mulf %906, %969 : vector<1x128xf32>
    %971 = arith.addf %967, %970 : vector<1x128xf32>
    %c79_116 = arith.constant 79 : index
    %972 = memref.load %arg5[%c79_116] : memref<128xf32, #tpu.memory_space<smem>>
    %973 = vector.broadcast %972 : f32 to vector<1x128xf32>
    %974 = arith.mulf %907, %973 : vector<1x128xf32>
    %975 = arith.addf %971, %974 : vector<1x128xf32>
    %c9_117 = arith.constant 9 : index
    %976 = memref.load %arg6[%c9_117] : memref<16xf32, #tpu.memory_space<smem>>
    %977 = vector.broadcast %976 : f32 to vector<1x128xf32>
    %978 = arith.mulf %975, %977 : vector<1x128xf32>
    %c9_118 = arith.constant 9 : index
    %979 = memref.load %arg7[%c9_118] : memref<16xf32, #tpu.memory_space<smem>>
    %980 = vector.broadcast %979 : f32 to vector<1x128xf32>
    %981 = arith.addf %978, %980 : vector<1x128xf32>
    %982 = vector.extract_strided_slice %433 {offsets = [0, 0], sizes = [1, 128], strides = [1, 1]} : vector<8x128xf32> to vector<1x128xf32>
    %983 = vector.extract_strided_slice %433 {offsets = [1, 0], sizes = [1, 128], strides = [1, 1]} : vector<8x128xf32> to vector<1x128xf32>
    %984 = vector.extract_strided_slice %433 {offsets = [2, 0], sizes = [1, 128], strides = [1, 1]} : vector<8x128xf32> to vector<1x128xf32>
    %985 = vector.extract_strided_slice %433 {offsets = [3, 0], sizes = [1, 128], strides = [1, 1]} : vector<8x128xf32> to vector<1x128xf32>
    %986 = vector.extract_strided_slice %433 {offsets = [4, 0], sizes = [1, 128], strides = [1, 1]} : vector<8x128xf32> to vector<1x128xf32>
    %987 = vector.extract_strided_slice %433 {offsets = [5, 0], sizes = [1, 128], strides = [1, 1]} : vector<8x128xf32> to vector<1x128xf32>
    %988 = vector.extract_strided_slice %433 {offsets = [6, 0], sizes = [1, 128], strides = [1, 1]} : vector<8x128xf32> to vector<1x128xf32>
    %989 = vector.extract_strided_slice %433 {offsets = [7, 0], sizes = [1, 128], strides = [1, 1]} : vector<8x128xf32> to vector<1x128xf32>
    %c80_119 = arith.constant 80 : index
    %990 = memref.load %arg5[%c80_119] : memref<128xf32, #tpu.memory_space<smem>>
    %991 = vector.broadcast %990 : f32 to vector<1x128xf32>
    %992 = arith.mulf %982, %991 : vector<1x128xf32>
    %c81_120 = arith.constant 81 : index
    %993 = memref.load %arg5[%c81_120] : memref<128xf32, #tpu.memory_space<smem>>
    %994 = vector.broadcast %993 : f32 to vector<1x128xf32>
    %995 = arith.mulf %983, %994 : vector<1x128xf32>
    %996 = arith.addf %992, %995 : vector<1x128xf32>
    %c82_121 = arith.constant 82 : index
    %997 = memref.load %arg5[%c82_121] : memref<128xf32, #tpu.memory_space<smem>>
    %998 = vector.broadcast %997 : f32 to vector<1x128xf32>
    %999 = arith.mulf %984, %998 : vector<1x128xf32>
    %1000 = arith.addf %996, %999 : vector<1x128xf32>
    %c83_122 = arith.constant 83 : index
    %1001 = memref.load %arg5[%c83_122] : memref<128xf32, #tpu.memory_space<smem>>
    %1002 = vector.broadcast %1001 : f32 to vector<1x128xf32>
    %1003 = arith.mulf %985, %1002 : vector<1x128xf32>
    %1004 = arith.addf %1000, %1003 : vector<1x128xf32>
    %c84_123 = arith.constant 84 : index
    %1005 = memref.load %arg5[%c84_123] : memref<128xf32, #tpu.memory_space<smem>>
    %1006 = vector.broadcast %1005 : f32 to vector<1x128xf32>
    %1007 = arith.mulf %986, %1006 : vector<1x128xf32>
    %1008 = arith.addf %1004, %1007 : vector<1x128xf32>
    %c85_124 = arith.constant 85 : index
    %1009 = memref.load %arg5[%c85_124] : memref<128xf32, #tpu.memory_space<smem>>
    %1010 = vector.broadcast %1009 : f32 to vector<1x128xf32>
    %1011 = arith.mulf %987, %1010 : vector<1x128xf32>
    %1012 = arith.addf %1008, %1011 : vector<1x128xf32>
    %c86_125 = arith.constant 86 : index
    %1013 = memref.load %arg5[%c86_125] : memref<128xf32, #tpu.memory_space<smem>>
    %1014 = vector.broadcast %1013 : f32 to vector<1x128xf32>
    %1015 = arith.mulf %988, %1014 : vector<1x128xf32>
    %1016 = arith.addf %1012, %1015 : vector<1x128xf32>
    %c87_126 = arith.constant 87 : index
    %1017 = memref.load %arg5[%c87_126] : memref<128xf32, #tpu.memory_space<smem>>
    %1018 = vector.broadcast %1017 : f32 to vector<1x128xf32>
    %1019 = arith.mulf %989, %1018 : vector<1x128xf32>
    %1020 = arith.addf %1016, %1019 : vector<1x128xf32>
    %c10_127 = arith.constant 10 : index
    %1021 = memref.load %arg6[%c10_127] : memref<16xf32, #tpu.memory_space<smem>>
    %1022 = vector.broadcast %1021 : f32 to vector<1x128xf32>
    %1023 = arith.mulf %1020, %1022 : vector<1x128xf32>
    %c10_128 = arith.constant 10 : index
    %1024 = memref.load %arg7[%c10_128] : memref<16xf32, #tpu.memory_space<smem>>
    %1025 = vector.broadcast %1024 : f32 to vector<1x128xf32>
    %1026 = arith.addf %1023, %1025 : vector<1x128xf32>
    %c88_129 = arith.constant 88 : index
    %1027 = memref.load %arg5[%c88_129] : memref<128xf32, #tpu.memory_space<smem>>
    %1028 = vector.broadcast %1027 : f32 to vector<1x128xf32>
    %1029 = arith.mulf %982, %1028 : vector<1x128xf32>
    %c89_130 = arith.constant 89 : index
    %1030 = memref.load %arg5[%c89_130] : memref<128xf32, #tpu.memory_space<smem>>
    %1031 = vector.broadcast %1030 : f32 to vector<1x128xf32>
    %1032 = arith.mulf %983, %1031 : vector<1x128xf32>
    %1033 = arith.addf %1029, %1032 : vector<1x128xf32>
    %c90_131 = arith.constant 90 : index
    %1034 = memref.load %arg5[%c90_131] : memref<128xf32, #tpu.memory_space<smem>>
    %1035 = vector.broadcast %1034 : f32 to vector<1x128xf32>
    %1036 = arith.mulf %984, %1035 : vector<1x128xf32>
    %1037 = arith.addf %1033, %1036 : vector<1x128xf32>
    %c91_132 = arith.constant 91 : index
    %1038 = memref.load %arg5[%c91_132] : memref<128xf32, #tpu.memory_space<smem>>
    %1039 = vector.broadcast %1038 : f32 to vector<1x128xf32>
    %1040 = arith.mulf %985, %1039 : vector<1x128xf32>
    %1041 = arith.addf %1037, %1040 : vector<1x128xf32>
    %c92_133 = arith.constant 92 : index
    %1042 = memref.load %arg5[%c92_133] : memref<128xf32, #tpu.memory_space<smem>>
    %1043 = vector.broadcast %1042 : f32 to vector<1x128xf32>
    %1044 = arith.mulf %986, %1043 : vector<1x128xf32>
    %1045 = arith.addf %1041, %1044 : vector<1x128xf32>
    %c93_134 = arith.constant 93 : index
    %1046 = memref.load %arg5[%c93_134] : memref<128xf32, #tpu.memory_space<smem>>
    %1047 = vector.broadcast %1046 : f32 to vector<1x128xf32>
    %1048 = arith.mulf %987, %1047 : vector<1x128xf32>
    %1049 = arith.addf %1045, %1048 : vector<1x128xf32>
    %c94_135 = arith.constant 94 : index
    %1050 = memref.load %arg5[%c94_135] : memref<128xf32, #tpu.memory_space<smem>>
    %1051 = vector.broadcast %1050 : f32 to vector<1x128xf32>
    %1052 = arith.mulf %988, %1051 : vector<1x128xf32>
    %1053 = arith.addf %1049, %1052 : vector<1x128xf32>
    %c95_136 = arith.constant 95 : index
    %1054 = memref.load %arg5[%c95_136] : memref<128xf32, #tpu.memory_space<smem>>
    %1055 = vector.broadcast %1054 : f32 to vector<1x128xf32>
    %1056 = arith.mulf %989, %1055 : vector<1x128xf32>
    %1057 = arith.addf %1053, %1056 : vector<1x128xf32>
    %c11_137 = arith.constant 11 : index
    %1058 = memref.load %arg6[%c11_137] : memref<16xf32, #tpu.memory_space<smem>>
    %1059 = vector.broadcast %1058 : f32 to vector<1x128xf32>
    %1060 = arith.mulf %1057, %1059 : vector<1x128xf32>
    %c11_138 = arith.constant 11 : index
    %1061 = memref.load %arg7[%c11_138] : memref<16xf32, #tpu.memory_space<smem>>
    %1062 = vector.broadcast %1061 : f32 to vector<1x128xf32>
    %1063 = arith.addf %1060, %1062 : vector<1x128xf32>
    %1064 = vector.extract_strided_slice %502 {offsets = [0, 0], sizes = [1, 128], strides = [1, 1]} : vector<8x128xf32> to vector<1x128xf32>
    %1065 = vector.extract_strided_slice %502 {offsets = [1, 0], sizes = [1, 128], strides = [1, 1]} : vector<8x128xf32> to vector<1x128xf32>
    %1066 = vector.extract_strided_slice %502 {offsets = [2, 0], sizes = [1, 128], strides = [1, 1]} : vector<8x128xf32> to vector<1x128xf32>
    %1067 = vector.extract_strided_slice %502 {offsets = [3, 0], sizes = [1, 128], strides = [1, 1]} : vector<8x128xf32> to vector<1x128xf32>
    %1068 = vector.extract_strided_slice %502 {offsets = [4, 0], sizes = [1, 128], strides = [1, 1]} : vector<8x128xf32> to vector<1x128xf32>
    %1069 = vector.extract_strided_slice %502 {offsets = [5, 0], sizes = [1, 128], strides = [1, 1]} : vector<8x128xf32> to vector<1x128xf32>
    %1070 = vector.extract_strided_slice %502 {offsets = [6, 0], sizes = [1, 128], strides = [1, 1]} : vector<8x128xf32> to vector<1x128xf32>
    %1071 = vector.extract_strided_slice %502 {offsets = [7, 0], sizes = [1, 128], strides = [1, 1]} : vector<8x128xf32> to vector<1x128xf32>
    %c96_139 = arith.constant 96 : index
    %1072 = memref.load %arg5[%c96_139] : memref<128xf32, #tpu.memory_space<smem>>
    %1073 = vector.broadcast %1072 : f32 to vector<1x128xf32>
    %1074 = arith.mulf %1064, %1073 : vector<1x128xf32>
    %c97_140 = arith.constant 97 : index
    %1075 = memref.load %arg5[%c97_140] : memref<128xf32, #tpu.memory_space<smem>>
    %1076 = vector.broadcast %1075 : f32 to vector<1x128xf32>
    %1077 = arith.mulf %1065, %1076 : vector<1x128xf32>
    %1078 = arith.addf %1074, %1077 : vector<1x128xf32>
    %c98_141 = arith.constant 98 : index
    %1079 = memref.load %arg5[%c98_141] : memref<128xf32, #tpu.memory_space<smem>>
    %1080 = vector.broadcast %1079 : f32 to vector<1x128xf32>
    %1081 = arith.mulf %1066, %1080 : vector<1x128xf32>
    %1082 = arith.addf %1078, %1081 : vector<1x128xf32>
    %c99_142 = arith.constant 99 : index
    %1083 = memref.load %arg5[%c99_142] : memref<128xf32, #tpu.memory_space<smem>>
    %1084 = vector.broadcast %1083 : f32 to vector<1x128xf32>
    %1085 = arith.mulf %1067, %1084 : vector<1x128xf32>
    %1086 = arith.addf %1082, %1085 : vector<1x128xf32>
    %c100_143 = arith.constant 100 : index
    %1087 = memref.load %arg5[%c100_143] : memref<128xf32, #tpu.memory_space<smem>>
    %1088 = vector.broadcast %1087 : f32 to vector<1x128xf32>
    %1089 = arith.mulf %1068, %1088 : vector<1x128xf32>
    %1090 = arith.addf %1086, %1089 : vector<1x128xf32>
    %c101_144 = arith.constant 101 : index
    %1091 = memref.load %arg5[%c101_144] : memref<128xf32, #tpu.memory_space<smem>>
    %1092 = vector.broadcast %1091 : f32 to vector<1x128xf32>
    %1093 = arith.mulf %1069, %1092 : vector<1x128xf32>
    %1094 = arith.addf %1090, %1093 : vector<1x128xf32>
    %c102_145 = arith.constant 102 : index
    %1095 = memref.load %arg5[%c102_145] : memref<128xf32, #tpu.memory_space<smem>>
    %1096 = vector.broadcast %1095 : f32 to vector<1x128xf32>
    %1097 = arith.mulf %1070, %1096 : vector<1x128xf32>
    %1098 = arith.addf %1094, %1097 : vector<1x128xf32>
    %c103_146 = arith.constant 103 : index
    %1099 = memref.load %arg5[%c103_146] : memref<128xf32, #tpu.memory_space<smem>>
    %1100 = vector.broadcast %1099 : f32 to vector<1x128xf32>
    %1101 = arith.mulf %1071, %1100 : vector<1x128xf32>
    %1102 = arith.addf %1098, %1101 : vector<1x128xf32>
    %c12_147 = arith.constant 12 : index
    %1103 = memref.load %arg6[%c12_147] : memref<16xf32, #tpu.memory_space<smem>>
    %1104 = vector.broadcast %1103 : f32 to vector<1x128xf32>
    %1105 = arith.mulf %1102, %1104 : vector<1x128xf32>
    %c12_148 = arith.constant 12 : index
    %1106 = memref.load %arg7[%c12_148] : memref<16xf32, #tpu.memory_space<smem>>
    %1107 = vector.broadcast %1106 : f32 to vector<1x128xf32>
    %1108 = arith.addf %1105, %1107 : vector<1x128xf32>
    %c104_149 = arith.constant 104 : index
    %1109 = memref.load %arg5[%c104_149] : memref<128xf32, #tpu.memory_space<smem>>
    %1110 = vector.broadcast %1109 : f32 to vector<1x128xf32>
    %1111 = arith.mulf %1064, %1110 : vector<1x128xf32>
    %c105_150 = arith.constant 105 : index
    %1112 = memref.load %arg5[%c105_150] : memref<128xf32, #tpu.memory_space<smem>>
    %1113 = vector.broadcast %1112 : f32 to vector<1x128xf32>
    %1114 = arith.mulf %1065, %1113 : vector<1x128xf32>
    %1115 = arith.addf %1111, %1114 : vector<1x128xf32>
    %c106_151 = arith.constant 106 : index
    %1116 = memref.load %arg5[%c106_151] : memref<128xf32, #tpu.memory_space<smem>>
    %1117 = vector.broadcast %1116 : f32 to vector<1x128xf32>
    %1118 = arith.mulf %1066, %1117 : vector<1x128xf32>
    %1119 = arith.addf %1115, %1118 : vector<1x128xf32>
    %c107_152 = arith.constant 107 : index
    %1120 = memref.load %arg5[%c107_152] : memref<128xf32, #tpu.memory_space<smem>>
    %1121 = vector.broadcast %1120 : f32 to vector<1x128xf32>
    %1122 = arith.mulf %1067, %1121 : vector<1x128xf32>
    %1123 = arith.addf %1119, %1122 : vector<1x128xf32>
    %c108_153 = arith.constant 108 : index
    %1124 = memref.load %arg5[%c108_153] : memref<128xf32, #tpu.memory_space<smem>>
    %1125 = vector.broadcast %1124 : f32 to vector<1x128xf32>
    %1126 = arith.mulf %1068, %1125 : vector<1x128xf32>
    %1127 = arith.addf %1123, %1126 : vector<1x128xf32>
    %c109_154 = arith.constant 109 : index
    %1128 = memref.load %arg5[%c109_154] : memref<128xf32, #tpu.memory_space<smem>>
    %1129 = vector.broadcast %1128 : f32 to vector<1x128xf32>
    %1130 = arith.mulf %1069, %1129 : vector<1x128xf32>
    %1131 = arith.addf %1127, %1130 : vector<1x128xf32>
    %c110_155 = arith.constant 110 : index
    %1132 = memref.load %arg5[%c110_155] : memref<128xf32, #tpu.memory_space<smem>>
    %1133 = vector.broadcast %1132 : f32 to vector<1x128xf32>
    %1134 = arith.mulf %1070, %1133 : vector<1x128xf32>
    %1135 = arith.addf %1131, %1134 : vector<1x128xf32>
    %c111_156 = arith.constant 111 : index
    %1136 = memref.load %arg5[%c111_156] : memref<128xf32, #tpu.memory_space<smem>>
    %1137 = vector.broadcast %1136 : f32 to vector<1x128xf32>
    %1138 = arith.mulf %1071, %1137 : vector<1x128xf32>
    %1139 = arith.addf %1135, %1138 : vector<1x128xf32>
    %c13_157 = arith.constant 13 : index
    %1140 = memref.load %arg6[%c13_157] : memref<16xf32, #tpu.memory_space<smem>>
    %1141 = vector.broadcast %1140 : f32 to vector<1x128xf32>
    %1142 = arith.mulf %1139, %1141 : vector<1x128xf32>
    %c13_158 = arith.constant 13 : index
    %1143 = memref.load %arg7[%c13_158] : memref<16xf32, #tpu.memory_space<smem>>
    %1144 = vector.broadcast %1143 : f32 to vector<1x128xf32>
    %1145 = arith.addf %1142, %1144 : vector<1x128xf32>
    %1146 = vector.extract_strided_slice %571 {offsets = [0, 0], sizes = [1, 128], strides = [1, 1]} : vector<8x128xf32> to vector<1x128xf32>
    %1147 = vector.extract_strided_slice %571 {offsets = [1, 0], sizes = [1, 128], strides = [1, 1]} : vector<8x128xf32> to vector<1x128xf32>
    %1148 = vector.extract_strided_slice %571 {offsets = [2, 0], sizes = [1, 128], strides = [1, 1]} : vector<8x128xf32> to vector<1x128xf32>
    %1149 = vector.extract_strided_slice %571 {offsets = [3, 0], sizes = [1, 128], strides = [1, 1]} : vector<8x128xf32> to vector<1x128xf32>
    %1150 = vector.extract_strided_slice %571 {offsets = [4, 0], sizes = [1, 128], strides = [1, 1]} : vector<8x128xf32> to vector<1x128xf32>
    %1151 = vector.extract_strided_slice %571 {offsets = [5, 0], sizes = [1, 128], strides = [1, 1]} : vector<8x128xf32> to vector<1x128xf32>
    %1152 = vector.extract_strided_slice %571 {offsets = [6, 0], sizes = [1, 128], strides = [1, 1]} : vector<8x128xf32> to vector<1x128xf32>
    %1153 = vector.extract_strided_slice %571 {offsets = [7, 0], sizes = [1, 128], strides = [1, 1]} : vector<8x128xf32> to vector<1x128xf32>
    %c112_159 = arith.constant 112 : index
    %1154 = memref.load %arg5[%c112_159] : memref<128xf32, #tpu.memory_space<smem>>
    %1155 = vector.broadcast %1154 : f32 to vector<1x128xf32>
    %1156 = arith.mulf %1146, %1155 : vector<1x128xf32>
    %c113_160 = arith.constant 113 : index
    %1157 = memref.load %arg5[%c113_160] : memref<128xf32, #tpu.memory_space<smem>>
    %1158 = vector.broadcast %1157 : f32 to vector<1x128xf32>
    %1159 = arith.mulf %1147, %1158 : vector<1x128xf32>
    %1160 = arith.addf %1156, %1159 : vector<1x128xf32>
    %c114_161 = arith.constant 114 : index
    %1161 = memref.load %arg5[%c114_161] : memref<128xf32, #tpu.memory_space<smem>>
    %1162 = vector.broadcast %1161 : f32 to vector<1x128xf32>
    %1163 = arith.mulf %1148, %1162 : vector<1x128xf32>
    %1164 = arith.addf %1160, %1163 : vector<1x128xf32>
    %c115_162 = arith.constant 115 : index
    %1165 = memref.load %arg5[%c115_162] : memref<128xf32, #tpu.memory_space<smem>>
    %1166 = vector.broadcast %1165 : f32 to vector<1x128xf32>
    %1167 = arith.mulf %1149, %1166 : vector<1x128xf32>
    %1168 = arith.addf %1164, %1167 : vector<1x128xf32>
    %c116_163 = arith.constant 116 : index
    %1169 = memref.load %arg5[%c116_163] : memref<128xf32, #tpu.memory_space<smem>>
    %1170 = vector.broadcast %1169 : f32 to vector<1x128xf32>
    %1171 = arith.mulf %1150, %1170 : vector<1x128xf32>
    %1172 = arith.addf %1168, %1171 : vector<1x128xf32>
    %c117_164 = arith.constant 117 : index
    %1173 = memref.load %arg5[%c117_164] : memref<128xf32, #tpu.memory_space<smem>>
    %1174 = vector.broadcast %1173 : f32 to vector<1x128xf32>
    %1175 = arith.mulf %1151, %1174 : vector<1x128xf32>
    %1176 = arith.addf %1172, %1175 : vector<1x128xf32>
    %c118_165 = arith.constant 118 : index
    %1177 = memref.load %arg5[%c118_165] : memref<128xf32, #tpu.memory_space<smem>>
    %1178 = vector.broadcast %1177 : f32 to vector<1x128xf32>
    %1179 = arith.mulf %1152, %1178 : vector<1x128xf32>
    %1180 = arith.addf %1176, %1179 : vector<1x128xf32>
    %c119_166 = arith.constant 119 : index
    %1181 = memref.load %arg5[%c119_166] : memref<128xf32, #tpu.memory_space<smem>>
    %1182 = vector.broadcast %1181 : f32 to vector<1x128xf32>
    %1183 = arith.mulf %1153, %1182 : vector<1x128xf32>
    %1184 = arith.addf %1180, %1183 : vector<1x128xf32>
    %c14_167 = arith.constant 14 : index
    %1185 = memref.load %arg6[%c14_167] : memref<16xf32, #tpu.memory_space<smem>>
    %1186 = vector.broadcast %1185 : f32 to vector<1x128xf32>
    %1187 = arith.mulf %1184, %1186 : vector<1x128xf32>
    %c14_168 = arith.constant 14 : index
    %1188 = memref.load %arg7[%c14_168] : memref<16xf32, #tpu.memory_space<smem>>
    %1189 = vector.broadcast %1188 : f32 to vector<1x128xf32>
    %1190 = arith.addf %1187, %1189 : vector<1x128xf32>
    %c120_169 = arith.constant 120 : index
    %1191 = memref.load %arg5[%c120_169] : memref<128xf32, #tpu.memory_space<smem>>
    %1192 = vector.broadcast %1191 : f32 to vector<1x128xf32>
    %1193 = arith.mulf %1146, %1192 : vector<1x128xf32>
    %c121_170 = arith.constant 121 : index
    %1194 = memref.load %arg5[%c121_170] : memref<128xf32, #tpu.memory_space<smem>>
    %1195 = vector.broadcast %1194 : f32 to vector<1x128xf32>
    %1196 = arith.mulf %1147, %1195 : vector<1x128xf32>
    %1197 = arith.addf %1193, %1196 : vector<1x128xf32>
    %c122_171 = arith.constant 122 : index
    %1198 = memref.load %arg5[%c122_171] : memref<128xf32, #tpu.memory_space<smem>>
    %1199 = vector.broadcast %1198 : f32 to vector<1x128xf32>
    %1200 = arith.mulf %1148, %1199 : vector<1x128xf32>
    %1201 = arith.addf %1197, %1200 : vector<1x128xf32>
    %c123_172 = arith.constant 123 : index
    %1202 = memref.load %arg5[%c123_172] : memref<128xf32, #tpu.memory_space<smem>>
    %1203 = vector.broadcast %1202 : f32 to vector<1x128xf32>
    %1204 = arith.mulf %1149, %1203 : vector<1x128xf32>
    %1205 = arith.addf %1201, %1204 : vector<1x128xf32>
    %c124_173 = arith.constant 124 : index
    %1206 = memref.load %arg5[%c124_173] : memref<128xf32, #tpu.memory_space<smem>>
    %1207 = vector.broadcast %1206 : f32 to vector<1x128xf32>
    %1208 = arith.mulf %1150, %1207 : vector<1x128xf32>
    %1209 = arith.addf %1205, %1208 : vector<1x128xf32>
    %c125_174 = arith.constant 125 : index
    %1210 = memref.load %arg5[%c125_174] : memref<128xf32, #tpu.memory_space<smem>>
    %1211 = vector.broadcast %1210 : f32 to vector<1x128xf32>
    %1212 = arith.mulf %1151, %1211 : vector<1x128xf32>
    %1213 = arith.addf %1209, %1212 : vector<1x128xf32>
    %c126_175 = arith.constant 126 : index
    %1214 = memref.load %arg5[%c126_175] : memref<128xf32, #tpu.memory_space<smem>>
    %1215 = vector.broadcast %1214 : f32 to vector<1x128xf32>
    %1216 = arith.mulf %1152, %1215 : vector<1x128xf32>
    %1217 = arith.addf %1213, %1216 : vector<1x128xf32>
    %c127_176 = arith.constant 127 : index
    %1218 = memref.load %arg5[%c127_176] : memref<128xf32, #tpu.memory_space<smem>>
    %1219 = vector.broadcast %1218 : f32 to vector<1x128xf32>
    %1220 = arith.mulf %1153, %1219 : vector<1x128xf32>
    %1221 = arith.addf %1217, %1220 : vector<1x128xf32>
    %c15_177 = arith.constant 15 : index
    %1222 = memref.load %arg6[%c15_177] : memref<16xf32, #tpu.memory_space<smem>>
    %1223 = vector.broadcast %1222 : f32 to vector<1x128xf32>
    %1224 = arith.mulf %1221, %1223 : vector<1x128xf32>
    %c15_178 = arith.constant 15 : index
    %1225 = memref.load %arg7[%c15_178] : memref<16xf32, #tpu.memory_space<smem>>
    %1226 = vector.broadcast %1225 : f32 to vector<1x128xf32>
    %1227 = arith.addf %1224, %1226 : vector<1x128xf32>
    %1228 = tpu.concatenate %616, %653, %698, %735, %780, %817, %862, %899, %944, %981, %1026, %1063, %1108, %1145, %1190, %1227 in 0 : vector<1x128xf32>, vector<1x128xf32>, vector<1x128xf32>, vector<1x128xf32>, vector<1x128xf32>, vector<1x128xf32>, vector<1x128xf32>, vector<1x128xf32>, vector<1x128xf32>, vector<1x128xf32>, vector<1x128xf32>, vector<1x128xf32>, vector<1x128xf32>, vector<1x128xf32>, vector<1x128xf32>, vector<1x128xf32> -> vector<16x128xf32>
    %cst_179 = arith.constant 0.000000e+00 : f32
    %1229 = vector.broadcast %cst_179 : f32 to vector<16x128xf32>
    %1230 = arith.cmpf ogt, %1228, %1229 : vector<16x128xf32>
    %1231 = math.exp %1228 : vector<16x128xf32>
    %cst_180 = arith.constant 1.000000e+00 : f32
    %1232 = vector.broadcast %cst_180 : f32 to vector<16x128xf32>
    %1233 = arith.subf %1231, %1232 : vector<16x128xf32>
    %1234 = arith.select %1230, %1228, %1233 : vector<16x128xi1>, vector<16x128xf32>
    %cst_181 = arith.constant 0.000000e+00 : f32
    %1235 = vector.broadcast %cst_181 : f32 to vector<16x128xf32>
    %1236 = tpu.concatenate %1235, %1234, %1235 in 1 : vector<16x128xf32>, vector<16x128xf32>, vector<16x128xf32> -> vector<16x384xf32>
    %1237 = vector.extract_strided_slice %1236 {offsets = [0, 129], sizes = [16, 128], strides = [1, 1]} : vector<16x384xf32> to vector<16x128xf32>
    %1238 = arith.addf %1234, %1237 : vector<16x128xf32>
    %1239 = vector.extract_strided_slice %1236 {offsets = [0, 130], sizes = [16, 128], strides = [1, 1]} : vector<16x384xf32> to vector<16x128xf32>
    %1240 = arith.addf %1238, %1239 : vector<16x128xf32>
    %1241 = vector.extract_strided_slice %1236 {offsets = [0, 131], sizes = [16, 128], strides = [1, 1]} : vector<16x384xf32> to vector<16x128xf32>
    %1242 = arith.addf %1240, %1241 : vector<16x128xf32>
    %cst_182 = arith.constant 2.500000e-01 : f32
    %1243 = vector.broadcast %cst_182 : f32 to vector<16x128xf32>
    %1244 = arith.mulf %1242, %1243 : vector<16x128xf32>
    %cst_183 = arith.constant 0.000000e+00 : f32
    %1245 = vector.broadcast %cst_183 : f32 to vector<16x128xf32>
    %1246 = tpu.concatenate %1245, %1244, %1245 in 1 : vector<16x128xf32>, vector<16x128xf32>, vector<16x128xf32> -> vector<16x384xf32>
    %1247 = vector.extract_strided_slice %1246 {offsets = [0, 100], sizes = [16, 128], strides = [1, 1]} : vector<16x384xf32> to vector<16x128xf32>
    %c0_184 = arith.constant 0 : index
    %c0_185 = arith.constant 0 : index
    %c0_186 = arith.constant 0 : index
    %1248 = vector.load %arg8[%c0_184, %c0_185, %c0_186] : memref<16x16x1xf32, #tpu.memory_space<vmem>>, vector<1x16x1xf32>
    %1249 = vector.shape_cast %1248 : vector<1x16x1xf32> to vector<16x1xf32>
    %1250 = vector.broadcast %1249 : vector<16x1xf32> to vector<16x128xf32>
    %1251 = arith.mulf %1247, %1250 : vector<16x128xf32>
    %1252 = vector.extract_strided_slice %1246 {offsets = [0, 104], sizes = [16, 128], strides = [1, 1]} : vector<16x384xf32> to vector<16x128xf32>
    %c1_187 = arith.constant 1 : index
    %c0_188 = arith.constant 0 : index
    %c0_189 = arith.constant 0 : index
    %1253 = vector.load %arg8[%c1_187, %c0_188, %c0_189] : memref<16x16x1xf32, #tpu.memory_space<vmem>>, vector<1x16x1xf32>
    %1254 = vector.shape_cast %1253 : vector<1x16x1xf32> to vector<16x1xf32>
    %1255 = vector.broadcast %1254 : vector<16x1xf32> to vector<16x128xf32>
    %1256 = arith.mulf %1252, %1255 : vector<16x128xf32>
    %1257 = arith.addf %1251, %1256 : vector<16x128xf32>
    %1258 = vector.extract_strided_slice %1246 {offsets = [0, 108], sizes = [16, 128], strides = [1, 1]} : vector<16x384xf32> to vector<16x128xf32>
    %c2_190 = arith.constant 2 : index
    %c0_191 = arith.constant 0 : index
    %c0_192 = arith.constant 0 : index
    %1259 = vector.load %arg8[%c2_190, %c0_191, %c0_192] : memref<16x16x1xf32, #tpu.memory_space<vmem>>, vector<1x16x1xf32>
    %1260 = vector.shape_cast %1259 : vector<1x16x1xf32> to vector<16x1xf32>
    %1261 = vector.broadcast %1260 : vector<16x1xf32> to vector<16x128xf32>
    %1262 = arith.mulf %1258, %1261 : vector<16x128xf32>
    %1263 = arith.addf %1257, %1262 : vector<16x128xf32>
    %1264 = vector.extract_strided_slice %1246 {offsets = [0, 112], sizes = [16, 128], strides = [1, 1]} : vector<16x384xf32> to vector<16x128xf32>
    %c3_193 = arith.constant 3 : index
    %c0_194 = arith.constant 0 : index
    %c0_195 = arith.constant 0 : index
    %1265 = vector.load %arg8[%c3_193, %c0_194, %c0_195] : memref<16x16x1xf32, #tpu.memory_space<vmem>>, vector<1x16x1xf32>
    %1266 = vector.shape_cast %1265 : vector<1x16x1xf32> to vector<16x1xf32>
    %1267 = vector.broadcast %1266 : vector<16x1xf32> to vector<16x128xf32>
    %1268 = arith.mulf %1264, %1267 : vector<16x128xf32>
    %1269 = arith.addf %1263, %1268 : vector<16x128xf32>
    %1270 = vector.extract_strided_slice %1246 {offsets = [0, 116], sizes = [16, 128], strides = [1, 1]} : vector<16x384xf32> to vector<16x128xf32>
    %c4_196 = arith.constant 4 : index
    %c0_197 = arith.constant 0 : index
    %c0_198 = arith.constant 0 : index
    %1271 = vector.load %arg8[%c4_196, %c0_197, %c0_198] : memref<16x16x1xf32, #tpu.memory_space<vmem>>, vector<1x16x1xf32>
    %1272 = vector.shape_cast %1271 : vector<1x16x1xf32> to vector<16x1xf32>
    %1273 = vector.broadcast %1272 : vector<16x1xf32> to vector<16x128xf32>
    %1274 = arith.mulf %1270, %1273 : vector<16x128xf32>
    %1275 = arith.addf %1269, %1274 : vector<16x128xf32>
    %1276 = vector.extract_strided_slice %1246 {offsets = [0, 120], sizes = [16, 128], strides = [1, 1]} : vector<16x384xf32> to vector<16x128xf32>
    %c5_199 = arith.constant 5 : index
    %c0_200 = arith.constant 0 : index
    %c0_201 = arith.constant 0 : index
    %1277 = vector.load %arg8[%c5_199, %c0_200, %c0_201] : memref<16x16x1xf32, #tpu.memory_space<vmem>>, vector<1x16x1xf32>
    %1278 = vector.shape_cast %1277 : vector<1x16x1xf32> to vector<16x1xf32>
    %1279 = vector.broadcast %1278 : vector<16x1xf32> to vector<16x128xf32>
    %1280 = arith.mulf %1276, %1279 : vector<16x128xf32>
    %1281 = arith.addf %1275, %1280 : vector<16x128xf32>
    %1282 = vector.extract_strided_slice %1246 {offsets = [0, 124], sizes = [16, 128], strides = [1, 1]} : vector<16x384xf32> to vector<16x128xf32>
    %c6_202 = arith.constant 6 : index
    %c0_203 = arith.constant 0 : index
    %c0_204 = arith.constant 0 : index
    %1283 = vector.load %arg8[%c6_202, %c0_203, %c0_204] : memref<16x16x1xf32, #tpu.memory_space<vmem>>, vector<1x16x1xf32>
    %1284 = vector.shape_cast %1283 : vector<1x16x1xf32> to vector<16x1xf32>
    %1285 = vector.broadcast %1284 : vector<16x1xf32> to vector<16x128xf32>
    %1286 = arith.mulf %1282, %1285 : vector<16x128xf32>
    %1287 = arith.addf %1281, %1286 : vector<16x128xf32>
    %1288 = vector.extract_strided_slice %1246 {offsets = [0, 128], sizes = [16, 128], strides = [1, 1]} : vector<16x384xf32> to vector<16x128xf32>
    %c7_205 = arith.constant 7 : index
    %c0_206 = arith.constant 0 : index
    %c0_207 = arith.constant 0 : index
    %1289 = vector.load %arg8[%c7_205, %c0_206, %c0_207] : memref<16x16x1xf32, #tpu.memory_space<vmem>>, vector<1x16x1xf32>
    %1290 = vector.shape_cast %1289 : vector<1x16x1xf32> to vector<16x1xf32>
    %1291 = vector.broadcast %1290 : vector<16x1xf32> to vector<16x128xf32>
    %1292 = arith.mulf %1288, %1291 : vector<16x128xf32>
    %1293 = arith.addf %1287, %1292 : vector<16x128xf32>
    %1294 = vector.extract_strided_slice %1246 {offsets = [0, 132], sizes = [16, 128], strides = [1, 1]} : vector<16x384xf32> to vector<16x128xf32>
    %c8_208 = arith.constant 8 : index
    %c0_209 = arith.constant 0 : index
    %c0_210 = arith.constant 0 : index
    %1295 = vector.load %arg8[%c8_208, %c0_209, %c0_210] : memref<16x16x1xf32, #tpu.memory_space<vmem>>, vector<1x16x1xf32>
    %1296 = vector.shape_cast %1295 : vector<1x16x1xf32> to vector<16x1xf32>
    %1297 = vector.broadcast %1296 : vector<16x1xf32> to vector<16x128xf32>
    %1298 = arith.mulf %1294, %1297 : vector<16x128xf32>
    %1299 = arith.addf %1293, %1298 : vector<16x128xf32>
    %1300 = vector.extract_strided_slice %1246 {offsets = [0, 136], sizes = [16, 128], strides = [1, 1]} : vector<16x384xf32> to vector<16x128xf32>
    %c9_211 = arith.constant 9 : index
    %c0_212 = arith.constant 0 : index
    %c0_213 = arith.constant 0 : index
    %1301 = vector.load %arg8[%c9_211, %c0_212, %c0_213] : memref<16x16x1xf32, #tpu.memory_space<vmem>>, vector<1x16x1xf32>
    %1302 = vector.shape_cast %1301 : vector<1x16x1xf32> to vector<16x1xf32>
    %1303 = vector.broadcast %1302 : vector<16x1xf32> to vector<16x128xf32>
    %1304 = arith.mulf %1300, %1303 : vector<16x128xf32>
    %1305 = arith.addf %1299, %1304 : vector<16x128xf32>
    %1306 = vector.extract_strided_slice %1246 {offsets = [0, 140], sizes = [16, 128], strides = [1, 1]} : vector<16x384xf32> to vector<16x128xf32>
    %c10_214 = arith.constant 10 : index
    %c0_215 = arith.constant 0 : index
    %c0_216 = arith.constant 0 : index
    %1307 = vector.load %arg8[%c10_214, %c0_215, %c0_216] : memref<16x16x1xf32, #tpu.memory_space<vmem>>, vector<1x16x1xf32>
    %1308 = vector.shape_cast %1307 : vector<1x16x1xf32> to vector<16x1xf32>
    %1309 = vector.broadcast %1308 : vector<16x1xf32> to vector<16x128xf32>
    %1310 = arith.mulf %1306, %1309 : vector<16x128xf32>
    %1311 = arith.addf %1305, %1310 : vector<16x128xf32>
    %1312 = vector.extract_strided_slice %1246 {offsets = [0, 144], sizes = [16, 128], strides = [1, 1]} : vector<16x384xf32> to vector<16x128xf32>
    %c11_217 = arith.constant 11 : index
    %c0_218 = arith.constant 0 : index
    %c0_219 = arith.constant 0 : index
    %1313 = vector.load %arg8[%c11_217, %c0_218, %c0_219] : memref<16x16x1xf32, #tpu.memory_space<vmem>>, vector<1x16x1xf32>
    %1314 = vector.shape_cast %1313 : vector<1x16x1xf32> to vector<16x1xf32>
    %1315 = vector.broadcast %1314 : vector<16x1xf32> to vector<16x128xf32>
    %1316 = arith.mulf %1312, %1315 : vector<16x128xf32>
    %1317 = arith.addf %1311, %1316 : vector<16x128xf32>
    %1318 = vector.extract_strided_slice %1246 {offsets = [0, 148], sizes = [16, 128], strides = [1, 1]} : vector<16x384xf32> to vector<16x128xf32>
    %c12_220 = arith.constant 12 : index
    %c0_221 = arith.constant 0 : index
    %c0_222 = arith.constant 0 : index
    %1319 = vector.load %arg8[%c12_220, %c0_221, %c0_222] : memref<16x16x1xf32, #tpu.memory_space<vmem>>, vector<1x16x1xf32>
    %1320 = vector.shape_cast %1319 : vector<1x16x1xf32> to vector<16x1xf32>
    %1321 = vector.broadcast %1320 : vector<16x1xf32> to vector<16x128xf32>
    %1322 = arith.mulf %1318, %1321 : vector<16x128xf32>
    %1323 = arith.addf %1317, %1322 : vector<16x128xf32>
    %1324 = vector.extract_strided_slice %1246 {offsets = [0, 152], sizes = [16, 128], strides = [1, 1]} : vector<16x384xf32> to vector<16x128xf32>
    %c13_223 = arith.constant 13 : index
    %c0_224 = arith.constant 0 : index
    %c0_225 = arith.constant 0 : index
    %1325 = vector.load %arg8[%c13_223, %c0_224, %c0_225] : memref<16x16x1xf32, #tpu.memory_space<vmem>>, vector<1x16x1xf32>
    %1326 = vector.shape_cast %1325 : vector<1x16x1xf32> to vector<16x1xf32>
    %1327 = vector.broadcast %1326 : vector<16x1xf32> to vector<16x128xf32>
    %1328 = arith.mulf %1324, %1327 : vector<16x128xf32>
    %1329 = arith.addf %1323, %1328 : vector<16x128xf32>
    %1330 = vector.extract_strided_slice %1246 {offsets = [0, 156], sizes = [16, 128], strides = [1, 1]} : vector<16x384xf32> to vector<16x128xf32>
    %c14_226 = arith.constant 14 : index
    %c0_227 = arith.constant 0 : index
    %c0_228 = arith.constant 0 : index
    %1331 = vector.load %arg8[%c14_226, %c0_227, %c0_228] : memref<16x16x1xf32, #tpu.memory_space<vmem>>, vector<1x16x1xf32>
    %1332 = vector.shape_cast %1331 : vector<1x16x1xf32> to vector<16x1xf32>
    %1333 = vector.broadcast %1332 : vector<16x1xf32> to vector<16x128xf32>
    %1334 = arith.mulf %1330, %1333 : vector<16x128xf32>
    %1335 = arith.addf %1329, %1334 : vector<16x128xf32>
    %1336 = vector.extract_strided_slice %1246 {offsets = [0, 160], sizes = [16, 128], strides = [1, 1]} : vector<16x384xf32> to vector<16x128xf32>
    %c15_229 = arith.constant 15 : index
    %c0_230 = arith.constant 0 : index
    %c0_231 = arith.constant 0 : index
    %1337 = vector.load %arg8[%c15_229, %c0_230, %c0_231] : memref<16x16x1xf32, #tpu.memory_space<vmem>>, vector<1x16x1xf32>
    %1338 = vector.shape_cast %1337 : vector<1x16x1xf32> to vector<16x1xf32>
    %1339 = vector.broadcast %1338 : vector<16x1xf32> to vector<16x128xf32>
    %1340 = arith.mulf %1336, %1339 : vector<16x128xf32>
    %1341 = arith.addf %1335, %1340 : vector<16x128xf32>
    %1342 = vector.extract_strided_slice %1341 {offsets = [0, 0], sizes = [1, 128], strides = [1, 1]} : vector<16x128xf32> to vector<1x128xf32>
    %1343 = vector.extract_strided_slice %1341 {offsets = [1, 0], sizes = [1, 128], strides = [1, 1]} : vector<16x128xf32> to vector<1x128xf32>
    %1344 = vector.extract_strided_slice %1341 {offsets = [2, 0], sizes = [1, 128], strides = [1, 1]} : vector<16x128xf32> to vector<1x128xf32>
    %1345 = vector.extract_strided_slice %1341 {offsets = [3, 0], sizes = [1, 128], strides = [1, 1]} : vector<16x128xf32> to vector<1x128xf32>
    %1346 = vector.extract_strided_slice %1341 {offsets = [4, 0], sizes = [1, 128], strides = [1, 1]} : vector<16x128xf32> to vector<1x128xf32>
    %1347 = vector.extract_strided_slice %1341 {offsets = [5, 0], sizes = [1, 128], strides = [1, 1]} : vector<16x128xf32> to vector<1x128xf32>
    %1348 = vector.extract_strided_slice %1341 {offsets = [6, 0], sizes = [1, 128], strides = [1, 1]} : vector<16x128xf32> to vector<1x128xf32>
    %1349 = vector.extract_strided_slice %1341 {offsets = [7, 0], sizes = [1, 128], strides = [1, 1]} : vector<16x128xf32> to vector<1x128xf32>
    %1350 = vector.extract_strided_slice %1341 {offsets = [8, 0], sizes = [1, 128], strides = [1, 1]} : vector<16x128xf32> to vector<1x128xf32>
    %1351 = vector.extract_strided_slice %1341 {offsets = [9, 0], sizes = [1, 128], strides = [1, 1]} : vector<16x128xf32> to vector<1x128xf32>
    %1352 = vector.extract_strided_slice %1341 {offsets = [10, 0], sizes = [1, 128], strides = [1, 1]} : vector<16x128xf32> to vector<1x128xf32>
    %1353 = vector.extract_strided_slice %1341 {offsets = [11, 0], sizes = [1, 128], strides = [1, 1]} : vector<16x128xf32> to vector<1x128xf32>
    %1354 = vector.extract_strided_slice %1341 {offsets = [12, 0], sizes = [1, 128], strides = [1, 1]} : vector<16x128xf32> to vector<1x128xf32>
    %1355 = vector.extract_strided_slice %1341 {offsets = [13, 0], sizes = [1, 128], strides = [1, 1]} : vector<16x128xf32> to vector<1x128xf32>
    %1356 = vector.extract_strided_slice %1341 {offsets = [14, 0], sizes = [1, 128], strides = [1, 1]} : vector<16x128xf32> to vector<1x128xf32>
    %1357 = vector.extract_strided_slice %1341 {offsets = [15, 0], sizes = [1, 128], strides = [1, 1]} : vector<16x128xf32> to vector<1x128xf32>
    %c0_232 = arith.constant 0 : index
    %1358 = memref.load %arg9[%c0_232] : memref<256xf32, #tpu.memory_space<smem>>
    %1359 = vector.broadcast %1358 : f32 to vector<1x128xf32>
    %1360 = arith.mulf %1342, %1359 : vector<1x128xf32>
    %c1_233 = arith.constant 1 : index
    %1361 = memref.load %arg9[%c1_233] : memref<256xf32, #tpu.memory_space<smem>>
    %1362 = vector.broadcast %1361 : f32 to vector<1x128xf32>
    %1363 = arith.mulf %1343, %1362 : vector<1x128xf32>
    %1364 = arith.addf %1360, %1363 : vector<1x128xf32>
    %c2_234 = arith.constant 2 : index
    %1365 = memref.load %arg9[%c2_234] : memref<256xf32, #tpu.memory_space<smem>>
    %1366 = vector.broadcast %1365 : f32 to vector<1x128xf32>
    %1367 = arith.mulf %1344, %1366 : vector<1x128xf32>
    %1368 = arith.addf %1364, %1367 : vector<1x128xf32>
    %c3_235 = arith.constant 3 : index
    %1369 = memref.load %arg9[%c3_235] : memref<256xf32, #tpu.memory_space<smem>>
    %1370 = vector.broadcast %1369 : f32 to vector<1x128xf32>
    %1371 = arith.mulf %1345, %1370 : vector<1x128xf32>
    %1372 = arith.addf %1368, %1371 : vector<1x128xf32>
    %c4_236 = arith.constant 4 : index
    %1373 = memref.load %arg9[%c4_236] : memref<256xf32, #tpu.memory_space<smem>>
    %1374 = vector.broadcast %1373 : f32 to vector<1x128xf32>
    %1375 = arith.mulf %1346, %1374 : vector<1x128xf32>
    %1376 = arith.addf %1372, %1375 : vector<1x128xf32>
    %c5_237 = arith.constant 5 : index
    %1377 = memref.load %arg9[%c5_237] : memref<256xf32, #tpu.memory_space<smem>>
    %1378 = vector.broadcast %1377 : f32 to vector<1x128xf32>
    %1379 = arith.mulf %1347, %1378 : vector<1x128xf32>
    %1380 = arith.addf %1376, %1379 : vector<1x128xf32>
    %c6_238 = arith.constant 6 : index
    %1381 = memref.load %arg9[%c6_238] : memref<256xf32, #tpu.memory_space<smem>>
    %1382 = vector.broadcast %1381 : f32 to vector<1x128xf32>
    %1383 = arith.mulf %1348, %1382 : vector<1x128xf32>
    %1384 = arith.addf %1380, %1383 : vector<1x128xf32>
    %c7_239 = arith.constant 7 : index
    %1385 = memref.load %arg9[%c7_239] : memref<256xf32, #tpu.memory_space<smem>>
    %1386 = vector.broadcast %1385 : f32 to vector<1x128xf32>
    %1387 = arith.mulf %1349, %1386 : vector<1x128xf32>
    %1388 = arith.addf %1384, %1387 : vector<1x128xf32>
    %c8_240 = arith.constant 8 : index
    %1389 = memref.load %arg9[%c8_240] : memref<256xf32, #tpu.memory_space<smem>>
    %1390 = vector.broadcast %1389 : f32 to vector<1x128xf32>
    %1391 = arith.mulf %1350, %1390 : vector<1x128xf32>
    %1392 = arith.addf %1388, %1391 : vector<1x128xf32>
    %c9_241 = arith.constant 9 : index
    %1393 = memref.load %arg9[%c9_241] : memref<256xf32, #tpu.memory_space<smem>>
    %1394 = vector.broadcast %1393 : f32 to vector<1x128xf32>
    %1395 = arith.mulf %1351, %1394 : vector<1x128xf32>
    %1396 = arith.addf %1392, %1395 : vector<1x128xf32>
    %c10_242 = arith.constant 10 : index
    %1397 = memref.load %arg9[%c10_242] : memref<256xf32, #tpu.memory_space<smem>>
    %1398 = vector.broadcast %1397 : f32 to vector<1x128xf32>
    %1399 = arith.mulf %1352, %1398 : vector<1x128xf32>
    %1400 = arith.addf %1396, %1399 : vector<1x128xf32>
    %c11_243 = arith.constant 11 : index
    %1401 = memref.load %arg9[%c11_243] : memref<256xf32, #tpu.memory_space<smem>>
    %1402 = vector.broadcast %1401 : f32 to vector<1x128xf32>
    %1403 = arith.mulf %1353, %1402 : vector<1x128xf32>
    %1404 = arith.addf %1400, %1403 : vector<1x128xf32>
    %c12_244 = arith.constant 12 : index
    %1405 = memref.load %arg9[%c12_244] : memref<256xf32, #tpu.memory_space<smem>>
    %1406 = vector.broadcast %1405 : f32 to vector<1x128xf32>
    %1407 = arith.mulf %1354, %1406 : vector<1x128xf32>
    %1408 = arith.addf %1404, %1407 : vector<1x128xf32>
    %c13_245 = arith.constant 13 : index
    %1409 = memref.load %arg9[%c13_245] : memref<256xf32, #tpu.memory_space<smem>>
    %1410 = vector.broadcast %1409 : f32 to vector<1x128xf32>
    %1411 = arith.mulf %1355, %1410 : vector<1x128xf32>
    %1412 = arith.addf %1408, %1411 : vector<1x128xf32>
    %c14_246 = arith.constant 14 : index
    %1413 = memref.load %arg9[%c14_246] : memref<256xf32, #tpu.memory_space<smem>>
    %1414 = vector.broadcast %1413 : f32 to vector<1x128xf32>
    %1415 = arith.mulf %1356, %1414 : vector<1x128xf32>
    %1416 = arith.addf %1412, %1415 : vector<1x128xf32>
    %c15_247 = arith.constant 15 : index
    %1417 = memref.load %arg9[%c15_247] : memref<256xf32, #tpu.memory_space<smem>>
    %1418 = vector.broadcast %1417 : f32 to vector<1x128xf32>
    %1419 = arith.mulf %1357, %1418 : vector<1x128xf32>
    %1420 = arith.addf %1416, %1419 : vector<1x128xf32>
    %c0_248 = arith.constant 0 : index
    %1421 = memref.load %arg10[%c0_248] : memref<16xf32, #tpu.memory_space<smem>>
    %1422 = vector.broadcast %1421 : f32 to vector<1x128xf32>
    %1423 = arith.addf %1420, %1422 : vector<1x128xf32>
    %c0_249 = arith.constant 0 : index
    %1424 = memref.load %arg11[%c0_249] : memref<16xf32, #tpu.memory_space<smem>>
    %1425 = vector.broadcast %1424 : f32 to vector<1x128xf32>
    %1426 = arith.mulf %1423, %1425 : vector<1x128xf32>
    %c0_250 = arith.constant 0 : index
    %1427 = memref.load %arg12[%c0_250] : memref<16xf32, #tpu.memory_space<smem>>
    %1428 = vector.broadcast %1427 : f32 to vector<1x128xf32>
    %1429 = arith.addf %1426, %1428 : vector<1x128xf32>
    %c16_251 = arith.constant 16 : index
    %1430 = memref.load %arg9[%c16_251] : memref<256xf32, #tpu.memory_space<smem>>
    %1431 = vector.broadcast %1430 : f32 to vector<1x128xf32>
    %1432 = arith.mulf %1342, %1431 : vector<1x128xf32>
    %c17_252 = arith.constant 17 : index
    %1433 = memref.load %arg9[%c17_252] : memref<256xf32, #tpu.memory_space<smem>>
    %1434 = vector.broadcast %1433 : f32 to vector<1x128xf32>
    %1435 = arith.mulf %1343, %1434 : vector<1x128xf32>
    %1436 = arith.addf %1432, %1435 : vector<1x128xf32>
    %c18_253 = arith.constant 18 : index
    %1437 = memref.load %arg9[%c18_253] : memref<256xf32, #tpu.memory_space<smem>>
    %1438 = vector.broadcast %1437 : f32 to vector<1x128xf32>
    %1439 = arith.mulf %1344, %1438 : vector<1x128xf32>
    %1440 = arith.addf %1436, %1439 : vector<1x128xf32>
    %c19_254 = arith.constant 19 : index
    %1441 = memref.load %arg9[%c19_254] : memref<256xf32, #tpu.memory_space<smem>>
    %1442 = vector.broadcast %1441 : f32 to vector<1x128xf32>
    %1443 = arith.mulf %1345, %1442 : vector<1x128xf32>
    %1444 = arith.addf %1440, %1443 : vector<1x128xf32>
    %c20_255 = arith.constant 20 : index
    %1445 = memref.load %arg9[%c20_255] : memref<256xf32, #tpu.memory_space<smem>>
    %1446 = vector.broadcast %1445 : f32 to vector<1x128xf32>
    %1447 = arith.mulf %1346, %1446 : vector<1x128xf32>
    %1448 = arith.addf %1444, %1447 : vector<1x128xf32>
    %c21_256 = arith.constant 21 : index
    %1449 = memref.load %arg9[%c21_256] : memref<256xf32, #tpu.memory_space<smem>>
    %1450 = vector.broadcast %1449 : f32 to vector<1x128xf32>
    %1451 = arith.mulf %1347, %1450 : vector<1x128xf32>
    %1452 = arith.addf %1448, %1451 : vector<1x128xf32>
    %c22_257 = arith.constant 22 : index
    %1453 = memref.load %arg9[%c22_257] : memref<256xf32, #tpu.memory_space<smem>>
    %1454 = vector.broadcast %1453 : f32 to vector<1x128xf32>
    %1455 = arith.mulf %1348, %1454 : vector<1x128xf32>
    %1456 = arith.addf %1452, %1455 : vector<1x128xf32>
    %c23_258 = arith.constant 23 : index
    %1457 = memref.load %arg9[%c23_258] : memref<256xf32, #tpu.memory_space<smem>>
    %1458 = vector.broadcast %1457 : f32 to vector<1x128xf32>
    %1459 = arith.mulf %1349, %1458 : vector<1x128xf32>
    %1460 = arith.addf %1456, %1459 : vector<1x128xf32>
    %c24_259 = arith.constant 24 : index
    %1461 = memref.load %arg9[%c24_259] : memref<256xf32, #tpu.memory_space<smem>>
    %1462 = vector.broadcast %1461 : f32 to vector<1x128xf32>
    %1463 = arith.mulf %1350, %1462 : vector<1x128xf32>
    %1464 = arith.addf %1460, %1463 : vector<1x128xf32>
    %c25_260 = arith.constant 25 : index
    %1465 = memref.load %arg9[%c25_260] : memref<256xf32, #tpu.memory_space<smem>>
    %1466 = vector.broadcast %1465 : f32 to vector<1x128xf32>
    %1467 = arith.mulf %1351, %1466 : vector<1x128xf32>
    %1468 = arith.addf %1464, %1467 : vector<1x128xf32>
    %c26_261 = arith.constant 26 : index
    %1469 = memref.load %arg9[%c26_261] : memref<256xf32, #tpu.memory_space<smem>>
    %1470 = vector.broadcast %1469 : f32 to vector<1x128xf32>
    %1471 = arith.mulf %1352, %1470 : vector<1x128xf32>
    %1472 = arith.addf %1468, %1471 : vector<1x128xf32>
    %c27_262 = arith.constant 27 : index
    %1473 = memref.load %arg9[%c27_262] : memref<256xf32, #tpu.memory_space<smem>>
    %1474 = vector.broadcast %1473 : f32 to vector<1x128xf32>
    %1475 = arith.mulf %1353, %1474 : vector<1x128xf32>
    %1476 = arith.addf %1472, %1475 : vector<1x128xf32>
    %c28_263 = arith.constant 28 : index
    %1477 = memref.load %arg9[%c28_263] : memref<256xf32, #tpu.memory_space<smem>>
    %1478 = vector.broadcast %1477 : f32 to vector<1x128xf32>
    %1479 = arith.mulf %1354, %1478 : vector<1x128xf32>
    %1480 = arith.addf %1476, %1479 : vector<1x128xf32>
    %c29_264 = arith.constant 29 : index
    %1481 = memref.load %arg9[%c29_264] : memref<256xf32, #tpu.memory_space<smem>>
    %1482 = vector.broadcast %1481 : f32 to vector<1x128xf32>
    %1483 = arith.mulf %1355, %1482 : vector<1x128xf32>
    %1484 = arith.addf %1480, %1483 : vector<1x128xf32>
    %c30_265 = arith.constant 30 : index
    %1485 = memref.load %arg9[%c30_265] : memref<256xf32, #tpu.memory_space<smem>>
    %1486 = vector.broadcast %1485 : f32 to vector<1x128xf32>
    %1487 = arith.mulf %1356, %1486 : vector<1x128xf32>
    %1488 = arith.addf %1484, %1487 : vector<1x128xf32>
    %c31_266 = arith.constant 31 : index
    %1489 = memref.load %arg9[%c31_266] : memref<256xf32, #tpu.memory_space<smem>>
    %1490 = vector.broadcast %1489 : f32 to vector<1x128xf32>
    %1491 = arith.mulf %1357, %1490 : vector<1x128xf32>
    %1492 = arith.addf %1488, %1491 : vector<1x128xf32>
    %c1_267 = arith.constant 1 : index
    %1493 = memref.load %arg10[%c1_267] : memref<16xf32, #tpu.memory_space<smem>>
    %1494 = vector.broadcast %1493 : f32 to vector<1x128xf32>
    %1495 = arith.addf %1492, %1494 : vector<1x128xf32>
    %c1_268 = arith.constant 1 : index
    %1496 = memref.load %arg11[%c1_268] : memref<16xf32, #tpu.memory_space<smem>>
    %1497 = vector.broadcast %1496 : f32 to vector<1x128xf32>
    %1498 = arith.mulf %1495, %1497 : vector<1x128xf32>
    %c1_269 = arith.constant 1 : index
    %1499 = memref.load %arg12[%c1_269] : memref<16xf32, #tpu.memory_space<smem>>
    %1500 = vector.broadcast %1499 : f32 to vector<1x128xf32>
    %1501 = arith.addf %1498, %1500 : vector<1x128xf32>
    %c32_270 = arith.constant 32 : index
    %1502 = memref.load %arg9[%c32_270] : memref<256xf32, #tpu.memory_space<smem>>
    %1503 = vector.broadcast %1502 : f32 to vector<1x128xf32>
    %1504 = arith.mulf %1342, %1503 : vector<1x128xf32>
    %c33_271 = arith.constant 33 : index
    %1505 = memref.load %arg9[%c33_271] : memref<256xf32, #tpu.memory_space<smem>>
    %1506 = vector.broadcast %1505 : f32 to vector<1x128xf32>
    %1507 = arith.mulf %1343, %1506 : vector<1x128xf32>
    %1508 = arith.addf %1504, %1507 : vector<1x128xf32>
    %c34_272 = arith.constant 34 : index
    %1509 = memref.load %arg9[%c34_272] : memref<256xf32, #tpu.memory_space<smem>>
    %1510 = vector.broadcast %1509 : f32 to vector<1x128xf32>
    %1511 = arith.mulf %1344, %1510 : vector<1x128xf32>
    %1512 = arith.addf %1508, %1511 : vector<1x128xf32>
    %c35_273 = arith.constant 35 : index
    %1513 = memref.load %arg9[%c35_273] : memref<256xf32, #tpu.memory_space<smem>>
    %1514 = vector.broadcast %1513 : f32 to vector<1x128xf32>
    %1515 = arith.mulf %1345, %1514 : vector<1x128xf32>
    %1516 = arith.addf %1512, %1515 : vector<1x128xf32>
    %c36_274 = arith.constant 36 : index
    %1517 = memref.load %arg9[%c36_274] : memref<256xf32, #tpu.memory_space<smem>>
    %1518 = vector.broadcast %1517 : f32 to vector<1x128xf32>
    %1519 = arith.mulf %1346, %1518 : vector<1x128xf32>
    %1520 = arith.addf %1516, %1519 : vector<1x128xf32>
    %c37_275 = arith.constant 37 : index
    %1521 = memref.load %arg9[%c37_275] : memref<256xf32, #tpu.memory_space<smem>>
    %1522 = vector.broadcast %1521 : f32 to vector<1x128xf32>
    %1523 = arith.mulf %1347, %1522 : vector<1x128xf32>
    %1524 = arith.addf %1520, %1523 : vector<1x128xf32>
    %c38_276 = arith.constant 38 : index
    %1525 = memref.load %arg9[%c38_276] : memref<256xf32, #tpu.memory_space<smem>>
    %1526 = vector.broadcast %1525 : f32 to vector<1x128xf32>
    %1527 = arith.mulf %1348, %1526 : vector<1x128xf32>
    %1528 = arith.addf %1524, %1527 : vector<1x128xf32>
    %c39_277 = arith.constant 39 : index
    %1529 = memref.load %arg9[%c39_277] : memref<256xf32, #tpu.memory_space<smem>>
    %1530 = vector.broadcast %1529 : f32 to vector<1x128xf32>
    %1531 = arith.mulf %1349, %1530 : vector<1x128xf32>
    %1532 = arith.addf %1528, %1531 : vector<1x128xf32>
    %c40_278 = arith.constant 40 : index
    %1533 = memref.load %arg9[%c40_278] : memref<256xf32, #tpu.memory_space<smem>>
    %1534 = vector.broadcast %1533 : f32 to vector<1x128xf32>
    %1535 = arith.mulf %1350, %1534 : vector<1x128xf32>
    %1536 = arith.addf %1532, %1535 : vector<1x128xf32>
    %c41_279 = arith.constant 41 : index
    %1537 = memref.load %arg9[%c41_279] : memref<256xf32, #tpu.memory_space<smem>>
    %1538 = vector.broadcast %1537 : f32 to vector<1x128xf32>
    %1539 = arith.mulf %1351, %1538 : vector<1x128xf32>
    %1540 = arith.addf %1536, %1539 : vector<1x128xf32>
    %c42_280 = arith.constant 42 : index
    %1541 = memref.load %arg9[%c42_280] : memref<256xf32, #tpu.memory_space<smem>>
    %1542 = vector.broadcast %1541 : f32 to vector<1x128xf32>
    %1543 = arith.mulf %1352, %1542 : vector<1x128xf32>
    %1544 = arith.addf %1540, %1543 : vector<1x128xf32>
    %c43_281 = arith.constant 43 : index
    %1545 = memref.load %arg9[%c43_281] : memref<256xf32, #tpu.memory_space<smem>>
    %1546 = vector.broadcast %1545 : f32 to vector<1x128xf32>
    %1547 = arith.mulf %1353, %1546 : vector<1x128xf32>
    %1548 = arith.addf %1544, %1547 : vector<1x128xf32>
    %c44_282 = arith.constant 44 : index
    %1549 = memref.load %arg9[%c44_282] : memref<256xf32, #tpu.memory_space<smem>>
    %1550 = vector.broadcast %1549 : f32 to vector<1x128xf32>
    %1551 = arith.mulf %1354, %1550 : vector<1x128xf32>
    %1552 = arith.addf %1548, %1551 : vector<1x128xf32>
    %c45_283 = arith.constant 45 : index
    %1553 = memref.load %arg9[%c45_283] : memref<256xf32, #tpu.memory_space<smem>>
    %1554 = vector.broadcast %1553 : f32 to vector<1x128xf32>
    %1555 = arith.mulf %1355, %1554 : vector<1x128xf32>
    %1556 = arith.addf %1552, %1555 : vector<1x128xf32>
    %c46_284 = arith.constant 46 : index
    %1557 = memref.load %arg9[%c46_284] : memref<256xf32, #tpu.memory_space<smem>>
    %1558 = vector.broadcast %1557 : f32 to vector<1x128xf32>
    %1559 = arith.mulf %1356, %1558 : vector<1x128xf32>
    %1560 = arith.addf %1556, %1559 : vector<1x128xf32>
    %c47_285 = arith.constant 47 : index
    %1561 = memref.load %arg9[%c47_285] : memref<256xf32, #tpu.memory_space<smem>>
    %1562 = vector.broadcast %1561 : f32 to vector<1x128xf32>
    %1563 = arith.mulf %1357, %1562 : vector<1x128xf32>
    %1564 = arith.addf %1560, %1563 : vector<1x128xf32>
    %c2_286 = arith.constant 2 : index
    %1565 = memref.load %arg10[%c2_286] : memref<16xf32, #tpu.memory_space<smem>>
    %1566 = vector.broadcast %1565 : f32 to vector<1x128xf32>
    %1567 = arith.addf %1564, %1566 : vector<1x128xf32>
    %c2_287 = arith.constant 2 : index
    %1568 = memref.load %arg11[%c2_287] : memref<16xf32, #tpu.memory_space<smem>>
    %1569 = vector.broadcast %1568 : f32 to vector<1x128xf32>
    %1570 = arith.mulf %1567, %1569 : vector<1x128xf32>
    %c2_288 = arith.constant 2 : index
    %1571 = memref.load %arg12[%c2_288] : memref<16xf32, #tpu.memory_space<smem>>
    %1572 = vector.broadcast %1571 : f32 to vector<1x128xf32>
    %1573 = arith.addf %1570, %1572 : vector<1x128xf32>
    %c48_289 = arith.constant 48 : index
    %1574 = memref.load %arg9[%c48_289] : memref<256xf32, #tpu.memory_space<smem>>
    %1575 = vector.broadcast %1574 : f32 to vector<1x128xf32>
    %1576 = arith.mulf %1342, %1575 : vector<1x128xf32>
    %c49_290 = arith.constant 49 : index
    %1577 = memref.load %arg9[%c49_290] : memref<256xf32, #tpu.memory_space<smem>>
    %1578 = vector.broadcast %1577 : f32 to vector<1x128xf32>
    %1579 = arith.mulf %1343, %1578 : vector<1x128xf32>
    %1580 = arith.addf %1576, %1579 : vector<1x128xf32>
    %c50_291 = arith.constant 50 : index
    %1581 = memref.load %arg9[%c50_291] : memref<256xf32, #tpu.memory_space<smem>>
    %1582 = vector.broadcast %1581 : f32 to vector<1x128xf32>
    %1583 = arith.mulf %1344, %1582 : vector<1x128xf32>
    %1584 = arith.addf %1580, %1583 : vector<1x128xf32>
    %c51_292 = arith.constant 51 : index
    %1585 = memref.load %arg9[%c51_292] : memref<256xf32, #tpu.memory_space<smem>>
    %1586 = vector.broadcast %1585 : f32 to vector<1x128xf32>
    %1587 = arith.mulf %1345, %1586 : vector<1x128xf32>
    %1588 = arith.addf %1584, %1587 : vector<1x128xf32>
    %c52_293 = arith.constant 52 : index
    %1589 = memref.load %arg9[%c52_293] : memref<256xf32, #tpu.memory_space<smem>>
    %1590 = vector.broadcast %1589 : f32 to vector<1x128xf32>
    %1591 = arith.mulf %1346, %1590 : vector<1x128xf32>
    %1592 = arith.addf %1588, %1591 : vector<1x128xf32>
    %c53_294 = arith.constant 53 : index
    %1593 = memref.load %arg9[%c53_294] : memref<256xf32, #tpu.memory_space<smem>>
    %1594 = vector.broadcast %1593 : f32 to vector<1x128xf32>
    %1595 = arith.mulf %1347, %1594 : vector<1x128xf32>
    %1596 = arith.addf %1592, %1595 : vector<1x128xf32>
    %c54_295 = arith.constant 54 : index
    %1597 = memref.load %arg9[%c54_295] : memref<256xf32, #tpu.memory_space<smem>>
    %1598 = vector.broadcast %1597 : f32 to vector<1x128xf32>
    %1599 = arith.mulf %1348, %1598 : vector<1x128xf32>
    %1600 = arith.addf %1596, %1599 : vector<1x128xf32>
    %c55_296 = arith.constant 55 : index
    %1601 = memref.load %arg9[%c55_296] : memref<256xf32, #tpu.memory_space<smem>>
    %1602 = vector.broadcast %1601 : f32 to vector<1x128xf32>
    %1603 = arith.mulf %1349, %1602 : vector<1x128xf32>
    %1604 = arith.addf %1600, %1603 : vector<1x128xf32>
    %c56_297 = arith.constant 56 : index
    %1605 = memref.load %arg9[%c56_297] : memref<256xf32, #tpu.memory_space<smem>>
    %1606 = vector.broadcast %1605 : f32 to vector<1x128xf32>
    %1607 = arith.mulf %1350, %1606 : vector<1x128xf32>
    %1608 = arith.addf %1604, %1607 : vector<1x128xf32>
    %c57_298 = arith.constant 57 : index
    %1609 = memref.load %arg9[%c57_298] : memref<256xf32, #tpu.memory_space<smem>>
    %1610 = vector.broadcast %1609 : f32 to vector<1x128xf32>
    %1611 = arith.mulf %1351, %1610 : vector<1x128xf32>
    %1612 = arith.addf %1608, %1611 : vector<1x128xf32>
    %c58_299 = arith.constant 58 : index
    %1613 = memref.load %arg9[%c58_299] : memref<256xf32, #tpu.memory_space<smem>>
    %1614 = vector.broadcast %1613 : f32 to vector<1x128xf32>
    %1615 = arith.mulf %1352, %1614 : vector<1x128xf32>
    %1616 = arith.addf %1612, %1615 : vector<1x128xf32>
    %c59_300 = arith.constant 59 : index
    %1617 = memref.load %arg9[%c59_300] : memref<256xf32, #tpu.memory_space<smem>>
    %1618 = vector.broadcast %1617 : f32 to vector<1x128xf32>
    %1619 = arith.mulf %1353, %1618 : vector<1x128xf32>
    %1620 = arith.addf %1616, %1619 : vector<1x128xf32>
    %c60_301 = arith.constant 60 : index
    %1621 = memref.load %arg9[%c60_301] : memref<256xf32, #tpu.memory_space<smem>>
    %1622 = vector.broadcast %1621 : f32 to vector<1x128xf32>
    %1623 = arith.mulf %1354, %1622 : vector<1x128xf32>
    %1624 = arith.addf %1620, %1623 : vector<1x128xf32>
    %c61_302 = arith.constant 61 : index
    %1625 = memref.load %arg9[%c61_302] : memref<256xf32, #tpu.memory_space<smem>>
    %1626 = vector.broadcast %1625 : f32 to vector<1x128xf32>
    %1627 = arith.mulf %1355, %1626 : vector<1x128xf32>
    %1628 = arith.addf %1624, %1627 : vector<1x128xf32>
    %c62_303 = arith.constant 62 : index
    %1629 = memref.load %arg9[%c62_303] : memref<256xf32, #tpu.memory_space<smem>>
    %1630 = vector.broadcast %1629 : f32 to vector<1x128xf32>
    %1631 = arith.mulf %1356, %1630 : vector<1x128xf32>
    %1632 = arith.addf %1628, %1631 : vector<1x128xf32>
    %c63_304 = arith.constant 63 : index
    %1633 = memref.load %arg9[%c63_304] : memref<256xf32, #tpu.memory_space<smem>>
    %1634 = vector.broadcast %1633 : f32 to vector<1x128xf32>
    %1635 = arith.mulf %1357, %1634 : vector<1x128xf32>
    %1636 = arith.addf %1632, %1635 : vector<1x128xf32>
    %c3_305 = arith.constant 3 : index
    %1637 = memref.load %arg10[%c3_305] : memref<16xf32, #tpu.memory_space<smem>>
    %1638 = vector.broadcast %1637 : f32 to vector<1x128xf32>
    %1639 = arith.addf %1636, %1638 : vector<1x128xf32>
    %c3_306 = arith.constant 3 : index
    %1640 = memref.load %arg11[%c3_306] : memref<16xf32, #tpu.memory_space<smem>>
    %1641 = vector.broadcast %1640 : f32 to vector<1x128xf32>
    %1642 = arith.mulf %1639, %1641 : vector<1x128xf32>
    %c3_307 = arith.constant 3 : index
    %1643 = memref.load %arg12[%c3_307] : memref<16xf32, #tpu.memory_space<smem>>
    %1644 = vector.broadcast %1643 : f32 to vector<1x128xf32>
    %1645 = arith.addf %1642, %1644 : vector<1x128xf32>
    %c64_308 = arith.constant 64 : index
    %1646 = memref.load %arg9[%c64_308] : memref<256xf32, #tpu.memory_space<smem>>
    %1647 = vector.broadcast %1646 : f32 to vector<1x128xf32>
    %1648 = arith.mulf %1342, %1647 : vector<1x128xf32>
    %c65_309 = arith.constant 65 : index
    %1649 = memref.load %arg9[%c65_309] : memref<256xf32, #tpu.memory_space<smem>>
    %1650 = vector.broadcast %1649 : f32 to vector<1x128xf32>
    %1651 = arith.mulf %1343, %1650 : vector<1x128xf32>
    %1652 = arith.addf %1648, %1651 : vector<1x128xf32>
    %c66_310 = arith.constant 66 : index
    %1653 = memref.load %arg9[%c66_310] : memref<256xf32, #tpu.memory_space<smem>>
    %1654 = vector.broadcast %1653 : f32 to vector<1x128xf32>
    %1655 = arith.mulf %1344, %1654 : vector<1x128xf32>
    %1656 = arith.addf %1652, %1655 : vector<1x128xf32>
    %c67_311 = arith.constant 67 : index
    %1657 = memref.load %arg9[%c67_311] : memref<256xf32, #tpu.memory_space<smem>>
    %1658 = vector.broadcast %1657 : f32 to vector<1x128xf32>
    %1659 = arith.mulf %1345, %1658 : vector<1x128xf32>
    %1660 = arith.addf %1656, %1659 : vector<1x128xf32>
    %c68_312 = arith.constant 68 : index
    %1661 = memref.load %arg9[%c68_312] : memref<256xf32, #tpu.memory_space<smem>>
    %1662 = vector.broadcast %1661 : f32 to vector<1x128xf32>
    %1663 = arith.mulf %1346, %1662 : vector<1x128xf32>
    %1664 = arith.addf %1660, %1663 : vector<1x128xf32>
    %c69_313 = arith.constant 69 : index
    %1665 = memref.load %arg9[%c69_313] : memref<256xf32, #tpu.memory_space<smem>>
    %1666 = vector.broadcast %1665 : f32 to vector<1x128xf32>
    %1667 = arith.mulf %1347, %1666 : vector<1x128xf32>
    %1668 = arith.addf %1664, %1667 : vector<1x128xf32>
    %c70_314 = arith.constant 70 : index
    %1669 = memref.load %arg9[%c70_314] : memref<256xf32, #tpu.memory_space<smem>>
    %1670 = vector.broadcast %1669 : f32 to vector<1x128xf32>
    %1671 = arith.mulf %1348, %1670 : vector<1x128xf32>
    %1672 = arith.addf %1668, %1671 : vector<1x128xf32>
    %c71_315 = arith.constant 71 : index
    %1673 = memref.load %arg9[%c71_315] : memref<256xf32, #tpu.memory_space<smem>>
    %1674 = vector.broadcast %1673 : f32 to vector<1x128xf32>
    %1675 = arith.mulf %1349, %1674 : vector<1x128xf32>
    %1676 = arith.addf %1672, %1675 : vector<1x128xf32>
    %c72_316 = arith.constant 72 : index
    %1677 = memref.load %arg9[%c72_316] : memref<256xf32, #tpu.memory_space<smem>>
    %1678 = vector.broadcast %1677 : f32 to vector<1x128xf32>
    %1679 = arith.mulf %1350, %1678 : vector<1x128xf32>
    %1680 = arith.addf %1676, %1679 : vector<1x128xf32>
    %c73_317 = arith.constant 73 : index
    %1681 = memref.load %arg9[%c73_317] : memref<256xf32, #tpu.memory_space<smem>>
    %1682 = vector.broadcast %1681 : f32 to vector<1x128xf32>
    %1683 = arith.mulf %1351, %1682 : vector<1x128xf32>
    %1684 = arith.addf %1680, %1683 : vector<1x128xf32>
    %c74_318 = arith.constant 74 : index
    %1685 = memref.load %arg9[%c74_318] : memref<256xf32, #tpu.memory_space<smem>>
    %1686 = vector.broadcast %1685 : f32 to vector<1x128xf32>
    %1687 = arith.mulf %1352, %1686 : vector<1x128xf32>
    %1688 = arith.addf %1684, %1687 : vector<1x128xf32>
    %c75_319 = arith.constant 75 : index
    %1689 = memref.load %arg9[%c75_319] : memref<256xf32, #tpu.memory_space<smem>>
    %1690 = vector.broadcast %1689 : f32 to vector<1x128xf32>
    %1691 = arith.mulf %1353, %1690 : vector<1x128xf32>
    %1692 = arith.addf %1688, %1691 : vector<1x128xf32>
    %c76_320 = arith.constant 76 : index
    %1693 = memref.load %arg9[%c76_320] : memref<256xf32, #tpu.memory_space<smem>>
    %1694 = vector.broadcast %1693 : f32 to vector<1x128xf32>
    %1695 = arith.mulf %1354, %1694 : vector<1x128xf32>
    %1696 = arith.addf %1692, %1695 : vector<1x128xf32>
    %c77_321 = arith.constant 77 : index
    %1697 = memref.load %arg9[%c77_321] : memref<256xf32, #tpu.memory_space<smem>>
    %1698 = vector.broadcast %1697 : f32 to vector<1x128xf32>
    %1699 = arith.mulf %1355, %1698 : vector<1x128xf32>
    %1700 = arith.addf %1696, %1699 : vector<1x128xf32>
    %c78_322 = arith.constant 78 : index
    %1701 = memref.load %arg9[%c78_322] : memref<256xf32, #tpu.memory_space<smem>>
    %1702 = vector.broadcast %1701 : f32 to vector<1x128xf32>
    %1703 = arith.mulf %1356, %1702 : vector<1x128xf32>
    %1704 = arith.addf %1700, %1703 : vector<1x128xf32>
    %c79_323 = arith.constant 79 : index
    %1705 = memref.load %arg9[%c79_323] : memref<256xf32, #tpu.memory_space<smem>>
    %1706 = vector.broadcast %1705 : f32 to vector<1x128xf32>
    %1707 = arith.mulf %1357, %1706 : vector<1x128xf32>
    %1708 = arith.addf %1704, %1707 : vector<1x128xf32>
    %c4_324 = arith.constant 4 : index
    %1709 = memref.load %arg10[%c4_324] : memref<16xf32, #tpu.memory_space<smem>>
    %1710 = vector.broadcast %1709 : f32 to vector<1x128xf32>
    %1711 = arith.addf %1708, %1710 : vector<1x128xf32>
    %c4_325 = arith.constant 4 : index
    %1712 = memref.load %arg11[%c4_325] : memref<16xf32, #tpu.memory_space<smem>>
    %1713 = vector.broadcast %1712 : f32 to vector<1x128xf32>
    %1714 = arith.mulf %1711, %1713 : vector<1x128xf32>
    %c4_326 = arith.constant 4 : index
    %1715 = memref.load %arg12[%c4_326] : memref<16xf32, #tpu.memory_space<smem>>
    %1716 = vector.broadcast %1715 : f32 to vector<1x128xf32>
    %1717 = arith.addf %1714, %1716 : vector<1x128xf32>
    %c80_327 = arith.constant 80 : index
    %1718 = memref.load %arg9[%c80_327] : memref<256xf32, #tpu.memory_space<smem>>
    %1719 = vector.broadcast %1718 : f32 to vector<1x128xf32>
    %1720 = arith.mulf %1342, %1719 : vector<1x128xf32>
    %c81_328 = arith.constant 81 : index
    %1721 = memref.load %arg9[%c81_328] : memref<256xf32, #tpu.memory_space<smem>>
    %1722 = vector.broadcast %1721 : f32 to vector<1x128xf32>
    %1723 = arith.mulf %1343, %1722 : vector<1x128xf32>
    %1724 = arith.addf %1720, %1723 : vector<1x128xf32>
    %c82_329 = arith.constant 82 : index
    %1725 = memref.load %arg9[%c82_329] : memref<256xf32, #tpu.memory_space<smem>>
    %1726 = vector.broadcast %1725 : f32 to vector<1x128xf32>
    %1727 = arith.mulf %1344, %1726 : vector<1x128xf32>
    %1728 = arith.addf %1724, %1727 : vector<1x128xf32>
    %c83_330 = arith.constant 83 : index
    %1729 = memref.load %arg9[%c83_330] : memref<256xf32, #tpu.memory_space<smem>>
    %1730 = vector.broadcast %1729 : f32 to vector<1x128xf32>
    %1731 = arith.mulf %1345, %1730 : vector<1x128xf32>
    %1732 = arith.addf %1728, %1731 : vector<1x128xf32>
    %c84_331 = arith.constant 84 : index
    %1733 = memref.load %arg9[%c84_331] : memref<256xf32, #tpu.memory_space<smem>>
    %1734 = vector.broadcast %1733 : f32 to vector<1x128xf32>
    %1735 = arith.mulf %1346, %1734 : vector<1x128xf32>
    %1736 = arith.addf %1732, %1735 : vector<1x128xf32>
    %c85_332 = arith.constant 85 : index
    %1737 = memref.load %arg9[%c85_332] : memref<256xf32, #tpu.memory_space<smem>>
    %1738 = vector.broadcast %1737 : f32 to vector<1x128xf32>
    %1739 = arith.mulf %1347, %1738 : vector<1x128xf32>
    %1740 = arith.addf %1736, %1739 : vector<1x128xf32>
    %c86_333 = arith.constant 86 : index
    %1741 = memref.load %arg9[%c86_333] : memref<256xf32, #tpu.memory_space<smem>>
    %1742 = vector.broadcast %1741 : f32 to vector<1x128xf32>
    %1743 = arith.mulf %1348, %1742 : vector<1x128xf32>
    %1744 = arith.addf %1740, %1743 : vector<1x128xf32>
    %c87_334 = arith.constant 87 : index
    %1745 = memref.load %arg9[%c87_334] : memref<256xf32, #tpu.memory_space<smem>>
    %1746 = vector.broadcast %1745 : f32 to vector<1x128xf32>
    %1747 = arith.mulf %1349, %1746 : vector<1x128xf32>
    %1748 = arith.addf %1744, %1747 : vector<1x128xf32>
    %c88_335 = arith.constant 88 : index
    %1749 = memref.load %arg9[%c88_335] : memref<256xf32, #tpu.memory_space<smem>>
    %1750 = vector.broadcast %1749 : f32 to vector<1x128xf32>
    %1751 = arith.mulf %1350, %1750 : vector<1x128xf32>
    %1752 = arith.addf %1748, %1751 : vector<1x128xf32>
    %c89_336 = arith.constant 89 : index
    %1753 = memref.load %arg9[%c89_336] : memref<256xf32, #tpu.memory_space<smem>>
    %1754 = vector.broadcast %1753 : f32 to vector<1x128xf32>
    %1755 = arith.mulf %1351, %1754 : vector<1x128xf32>
    %1756 = arith.addf %1752, %1755 : vector<1x128xf32>
    %c90_337 = arith.constant 90 : index
    %1757 = memref.load %arg9[%c90_337] : memref<256xf32, #tpu.memory_space<smem>>
    %1758 = vector.broadcast %1757 : f32 to vector<1x128xf32>
    %1759 = arith.mulf %1352, %1758 : vector<1x128xf32>
    %1760 = arith.addf %1756, %1759 : vector<1x128xf32>
    %c91_338 = arith.constant 91 : index
    %1761 = memref.load %arg9[%c91_338] : memref<256xf32, #tpu.memory_space<smem>>
    %1762 = vector.broadcast %1761 : f32 to vector<1x128xf32>
    %1763 = arith.mulf %1353, %1762 : vector<1x128xf32>
    %1764 = arith.addf %1760, %1763 : vector<1x128xf32>
    %c92_339 = arith.constant 92 : index
    %1765 = memref.load %arg9[%c92_339] : memref<256xf32, #tpu.memory_space<smem>>
    %1766 = vector.broadcast %1765 : f32 to vector<1x128xf32>
    %1767 = arith.mulf %1354, %1766 : vector<1x128xf32>
    %1768 = arith.addf %1764, %1767 : vector<1x128xf32>
    %c93_340 = arith.constant 93 : index
    %1769 = memref.load %arg9[%c93_340] : memref<256xf32, #tpu.memory_space<smem>>
    %1770 = vector.broadcast %1769 : f32 to vector<1x128xf32>
    %1771 = arith.mulf %1355, %1770 : vector<1x128xf32>
    %1772 = arith.addf %1768, %1771 : vector<1x128xf32>
    %c94_341 = arith.constant 94 : index
    %1773 = memref.load %arg9[%c94_341] : memref<256xf32, #tpu.memory_space<smem>>
    %1774 = vector.broadcast %1773 : f32 to vector<1x128xf32>
    %1775 = arith.mulf %1356, %1774 : vector<1x128xf32>
    %1776 = arith.addf %1772, %1775 : vector<1x128xf32>
    %c95_342 = arith.constant 95 : index
    %1777 = memref.load %arg9[%c95_342] : memref<256xf32, #tpu.memory_space<smem>>
    %1778 = vector.broadcast %1777 : f32 to vector<1x128xf32>
    %1779 = arith.mulf %1357, %1778 : vector<1x128xf32>
    %1780 = arith.addf %1776, %1779 : vector<1x128xf32>
    %c5_343 = arith.constant 5 : index
    %1781 = memref.load %arg10[%c5_343] : memref<16xf32, #tpu.memory_space<smem>>
    %1782 = vector.broadcast %1781 : f32 to vector<1x128xf32>
    %1783 = arith.addf %1780, %1782 : vector<1x128xf32>
    %c5_344 = arith.constant 5 : index
    %1784 = memref.load %arg11[%c5_344] : memref<16xf32, #tpu.memory_space<smem>>
    %1785 = vector.broadcast %1784 : f32 to vector<1x128xf32>
    %1786 = arith.mulf %1783, %1785 : vector<1x128xf32>
    %c5_345 = arith.constant 5 : index
    %1787 = memref.load %arg12[%c5_345] : memref<16xf32, #tpu.memory_space<smem>>
    %1788 = vector.broadcast %1787 : f32 to vector<1x128xf32>
    %1789 = arith.addf %1786, %1788 : vector<1x128xf32>
    %c96_346 = arith.constant 96 : index
    %1790 = memref.load %arg9[%c96_346] : memref<256xf32, #tpu.memory_space<smem>>
    %1791 = vector.broadcast %1790 : f32 to vector<1x128xf32>
    %1792 = arith.mulf %1342, %1791 : vector<1x128xf32>
    %c97_347 = arith.constant 97 : index
    %1793 = memref.load %arg9[%c97_347] : memref<256xf32, #tpu.memory_space<smem>>
    %1794 = vector.broadcast %1793 : f32 to vector<1x128xf32>
    %1795 = arith.mulf %1343, %1794 : vector<1x128xf32>
    %1796 = arith.addf %1792, %1795 : vector<1x128xf32>
    %c98_348 = arith.constant 98 : index
    %1797 = memref.load %arg9[%c98_348] : memref<256xf32, #tpu.memory_space<smem>>
    %1798 = vector.broadcast %1797 : f32 to vector<1x128xf32>
    %1799 = arith.mulf %1344, %1798 : vector<1x128xf32>
    %1800 = arith.addf %1796, %1799 : vector<1x128xf32>
    %c99_349 = arith.constant 99 : index
    %1801 = memref.load %arg9[%c99_349] : memref<256xf32, #tpu.memory_space<smem>>
    %1802 = vector.broadcast %1801 : f32 to vector<1x128xf32>
    %1803 = arith.mulf %1345, %1802 : vector<1x128xf32>
    %1804 = arith.addf %1800, %1803 : vector<1x128xf32>
    %c100_350 = arith.constant 100 : index
    %1805 = memref.load %arg9[%c100_350] : memref<256xf32, #tpu.memory_space<smem>>
    %1806 = vector.broadcast %1805 : f32 to vector<1x128xf32>
    %1807 = arith.mulf %1346, %1806 : vector<1x128xf32>
    %1808 = arith.addf %1804, %1807 : vector<1x128xf32>
    %c101_351 = arith.constant 101 : index
    %1809 = memref.load %arg9[%c101_351] : memref<256xf32, #tpu.memory_space<smem>>
    %1810 = vector.broadcast %1809 : f32 to vector<1x128xf32>
    %1811 = arith.mulf %1347, %1810 : vector<1x128xf32>
    %1812 = arith.addf %1808, %1811 : vector<1x128xf32>
    %c102_352 = arith.constant 102 : index
    %1813 = memref.load %arg9[%c102_352] : memref<256xf32, #tpu.memory_space<smem>>
    %1814 = vector.broadcast %1813 : f32 to vector<1x128xf32>
    %1815 = arith.mulf %1348, %1814 : vector<1x128xf32>
    %1816 = arith.addf %1812, %1815 : vector<1x128xf32>
    %c103_353 = arith.constant 103 : index
    %1817 = memref.load %arg9[%c103_353] : memref<256xf32, #tpu.memory_space<smem>>
    %1818 = vector.broadcast %1817 : f32 to vector<1x128xf32>
    %1819 = arith.mulf %1349, %1818 : vector<1x128xf32>
    %1820 = arith.addf %1816, %1819 : vector<1x128xf32>
    %c104_354 = arith.constant 104 : index
    %1821 = memref.load %arg9[%c104_354] : memref<256xf32, #tpu.memory_space<smem>>
    %1822 = vector.broadcast %1821 : f32 to vector<1x128xf32>
    %1823 = arith.mulf %1350, %1822 : vector<1x128xf32>
    %1824 = arith.addf %1820, %1823 : vector<1x128xf32>
    %c105_355 = arith.constant 105 : index
    %1825 = memref.load %arg9[%c105_355] : memref<256xf32, #tpu.memory_space<smem>>
    %1826 = vector.broadcast %1825 : f32 to vector<1x128xf32>
    %1827 = arith.mulf %1351, %1826 : vector<1x128xf32>
    %1828 = arith.addf %1824, %1827 : vector<1x128xf32>
    %c106_356 = arith.constant 106 : index
    %1829 = memref.load %arg9[%c106_356] : memref<256xf32, #tpu.memory_space<smem>>
    %1830 = vector.broadcast %1829 : f32 to vector<1x128xf32>
    %1831 = arith.mulf %1352, %1830 : vector<1x128xf32>
    %1832 = arith.addf %1828, %1831 : vector<1x128xf32>
    %c107_357 = arith.constant 107 : index
    %1833 = memref.load %arg9[%c107_357] : memref<256xf32, #tpu.memory_space<smem>>
    %1834 = vector.broadcast %1833 : f32 to vector<1x128xf32>
    %1835 = arith.mulf %1353, %1834 : vector<1x128xf32>
    %1836 = arith.addf %1832, %1835 : vector<1x128xf32>
    %c108_358 = arith.constant 108 : index
    %1837 = memref.load %arg9[%c108_358] : memref<256xf32, #tpu.memory_space<smem>>
    %1838 = vector.broadcast %1837 : f32 to vector<1x128xf32>
    %1839 = arith.mulf %1354, %1838 : vector<1x128xf32>
    %1840 = arith.addf %1836, %1839 : vector<1x128xf32>
    %c109_359 = arith.constant 109 : index
    %1841 = memref.load %arg9[%c109_359] : memref<256xf32, #tpu.memory_space<smem>>
    %1842 = vector.broadcast %1841 : f32 to vector<1x128xf32>
    %1843 = arith.mulf %1355, %1842 : vector<1x128xf32>
    %1844 = arith.addf %1840, %1843 : vector<1x128xf32>
    %c110_360 = arith.constant 110 : index
    %1845 = memref.load %arg9[%c110_360] : memref<256xf32, #tpu.memory_space<smem>>
    %1846 = vector.broadcast %1845 : f32 to vector<1x128xf32>
    %1847 = arith.mulf %1356, %1846 : vector<1x128xf32>
    %1848 = arith.addf %1844, %1847 : vector<1x128xf32>
    %c111_361 = arith.constant 111 : index
    %1849 = memref.load %arg9[%c111_361] : memref<256xf32, #tpu.memory_space<smem>>
    %1850 = vector.broadcast %1849 : f32 to vector<1x128xf32>
    %1851 = arith.mulf %1357, %1850 : vector<1x128xf32>
    %1852 = arith.addf %1848, %1851 : vector<1x128xf32>
    %c6_362 = arith.constant 6 : index
    %1853 = memref.load %arg10[%c6_362] : memref<16xf32, #tpu.memory_space<smem>>
    %1854 = vector.broadcast %1853 : f32 to vector<1x128xf32>
    %1855 = arith.addf %1852, %1854 : vector<1x128xf32>
    %c6_363 = arith.constant 6 : index
    %1856 = memref.load %arg11[%c6_363] : memref<16xf32, #tpu.memory_space<smem>>
    %1857 = vector.broadcast %1856 : f32 to vector<1x128xf32>
    %1858 = arith.mulf %1855, %1857 : vector<1x128xf32>
    %c6_364 = arith.constant 6 : index
    %1859 = memref.load %arg12[%c6_364] : memref<16xf32, #tpu.memory_space<smem>>
    %1860 = vector.broadcast %1859 : f32 to vector<1x128xf32>
    %1861 = arith.addf %1858, %1860 : vector<1x128xf32>
    %c112_365 = arith.constant 112 : index
    %1862 = memref.load %arg9[%c112_365] : memref<256xf32, #tpu.memory_space<smem>>
    %1863 = vector.broadcast %1862 : f32 to vector<1x128xf32>
    %1864 = arith.mulf %1342, %1863 : vector<1x128xf32>
    %c113_366 = arith.constant 113 : index
    %1865 = memref.load %arg9[%c113_366] : memref<256xf32, #tpu.memory_space<smem>>
    %1866 = vector.broadcast %1865 : f32 to vector<1x128xf32>
    %1867 = arith.mulf %1343, %1866 : vector<1x128xf32>
    %1868 = arith.addf %1864, %1867 : vector<1x128xf32>
    %c114_367 = arith.constant 114 : index
    %1869 = memref.load %arg9[%c114_367] : memref<256xf32, #tpu.memory_space<smem>>
    %1870 = vector.broadcast %1869 : f32 to vector<1x128xf32>
    %1871 = arith.mulf %1344, %1870 : vector<1x128xf32>
    %1872 = arith.addf %1868, %1871 : vector<1x128xf32>
    %c115_368 = arith.constant 115 : index
    %1873 = memref.load %arg9[%c115_368] : memref<256xf32, #tpu.memory_space<smem>>
    %1874 = vector.broadcast %1873 : f32 to vector<1x128xf32>
    %1875 = arith.mulf %1345, %1874 : vector<1x128xf32>
    %1876 = arith.addf %1872, %1875 : vector<1x128xf32>
    %c116_369 = arith.constant 116 : index
    %1877 = memref.load %arg9[%c116_369] : memref<256xf32, #tpu.memory_space<smem>>
    %1878 = vector.broadcast %1877 : f32 to vector<1x128xf32>
    %1879 = arith.mulf %1346, %1878 : vector<1x128xf32>
    %1880 = arith.addf %1876, %1879 : vector<1x128xf32>
    %c117_370 = arith.constant 117 : index
    %1881 = memref.load %arg9[%c117_370] : memref<256xf32, #tpu.memory_space<smem>>
    %1882 = vector.broadcast %1881 : f32 to vector<1x128xf32>
    %1883 = arith.mulf %1347, %1882 : vector<1x128xf32>
    %1884 = arith.addf %1880, %1883 : vector<1x128xf32>
    %c118_371 = arith.constant 118 : index
    %1885 = memref.load %arg9[%c118_371] : memref<256xf32, #tpu.memory_space<smem>>
    %1886 = vector.broadcast %1885 : f32 to vector<1x128xf32>
    %1887 = arith.mulf %1348, %1886 : vector<1x128xf32>
    %1888 = arith.addf %1884, %1887 : vector<1x128xf32>
    %c119_372 = arith.constant 119 : index
    %1889 = memref.load %arg9[%c119_372] : memref<256xf32, #tpu.memory_space<smem>>
    %1890 = vector.broadcast %1889 : f32 to vector<1x128xf32>
    %1891 = arith.mulf %1349, %1890 : vector<1x128xf32>
    %1892 = arith.addf %1888, %1891 : vector<1x128xf32>
    %c120_373 = arith.constant 120 : index
    %1893 = memref.load %arg9[%c120_373] : memref<256xf32, #tpu.memory_space<smem>>
    %1894 = vector.broadcast %1893 : f32 to vector<1x128xf32>
    %1895 = arith.mulf %1350, %1894 : vector<1x128xf32>
    %1896 = arith.addf %1892, %1895 : vector<1x128xf32>
    %c121_374 = arith.constant 121 : index
    %1897 = memref.load %arg9[%c121_374] : memref<256xf32, #tpu.memory_space<smem>>
    %1898 = vector.broadcast %1897 : f32 to vector<1x128xf32>
    %1899 = arith.mulf %1351, %1898 : vector<1x128xf32>
    %1900 = arith.addf %1896, %1899 : vector<1x128xf32>
    %c122_375 = arith.constant 122 : index
    %1901 = memref.load %arg9[%c122_375] : memref<256xf32, #tpu.memory_space<smem>>
    %1902 = vector.broadcast %1901 : f32 to vector<1x128xf32>
    %1903 = arith.mulf %1352, %1902 : vector<1x128xf32>
    %1904 = arith.addf %1900, %1903 : vector<1x128xf32>
    %c123_376 = arith.constant 123 : index
    %1905 = memref.load %arg9[%c123_376] : memref<256xf32, #tpu.memory_space<smem>>
    %1906 = vector.broadcast %1905 : f32 to vector<1x128xf32>
    %1907 = arith.mulf %1353, %1906 : vector<1x128xf32>
    %1908 = arith.addf %1904, %1907 : vector<1x128xf32>
    %c124_377 = arith.constant 124 : index
    %1909 = memref.load %arg9[%c124_377] : memref<256xf32, #tpu.memory_space<smem>>
    %1910 = vector.broadcast %1909 : f32 to vector<1x128xf32>
    %1911 = arith.mulf %1354, %1910 : vector<1x128xf32>
    %1912 = arith.addf %1908, %1911 : vector<1x128xf32>
    %c125_378 = arith.constant 125 : index
    %1913 = memref.load %arg9[%c125_378] : memref<256xf32, #tpu.memory_space<smem>>
    %1914 = vector.broadcast %1913 : f32 to vector<1x128xf32>
    %1915 = arith.mulf %1355, %1914 : vector<1x128xf32>
    %1916 = arith.addf %1912, %1915 : vector<1x128xf32>
    %c126_379 = arith.constant 126 : index
    %1917 = memref.load %arg9[%c126_379] : memref<256xf32, #tpu.memory_space<smem>>
    %1918 = vector.broadcast %1917 : f32 to vector<1x128xf32>
    %1919 = arith.mulf %1356, %1918 : vector<1x128xf32>
    %1920 = arith.addf %1916, %1919 : vector<1x128xf32>
    %c127_380 = arith.constant 127 : index
    %1921 = memref.load %arg9[%c127_380] : memref<256xf32, #tpu.memory_space<smem>>
    %1922 = vector.broadcast %1921 : f32 to vector<1x128xf32>
    %1923 = arith.mulf %1357, %1922 : vector<1x128xf32>
    %1924 = arith.addf %1920, %1923 : vector<1x128xf32>
    %c7_381 = arith.constant 7 : index
    %1925 = memref.load %arg10[%c7_381] : memref<16xf32, #tpu.memory_space<smem>>
    %1926 = vector.broadcast %1925 : f32 to vector<1x128xf32>
    %1927 = arith.addf %1924, %1926 : vector<1x128xf32>
    %c7_382 = arith.constant 7 : index
    %1928 = memref.load %arg11[%c7_382] : memref<16xf32, #tpu.memory_space<smem>>
    %1929 = vector.broadcast %1928 : f32 to vector<1x128xf32>
    %1930 = arith.mulf %1927, %1929 : vector<1x128xf32>
    %c7_383 = arith.constant 7 : index
    %1931 = memref.load %arg12[%c7_383] : memref<16xf32, #tpu.memory_space<smem>>
    %1932 = vector.broadcast %1931 : f32 to vector<1x128xf32>
    %1933 = arith.addf %1930, %1932 : vector<1x128xf32>
    %c128 = arith.constant 128 : index
    %1934 = memref.load %arg9[%c128] : memref<256xf32, #tpu.memory_space<smem>>
    %1935 = vector.broadcast %1934 : f32 to vector<1x128xf32>
    %1936 = arith.mulf %1342, %1935 : vector<1x128xf32>
    %c129 = arith.constant 129 : index
    %1937 = memref.load %arg9[%c129] : memref<256xf32, #tpu.memory_space<smem>>
    %1938 = vector.broadcast %1937 : f32 to vector<1x128xf32>
    %1939 = arith.mulf %1343, %1938 : vector<1x128xf32>
    %1940 = arith.addf %1936, %1939 : vector<1x128xf32>
    %c130 = arith.constant 130 : index
    %1941 = memref.load %arg9[%c130] : memref<256xf32, #tpu.memory_space<smem>>
    %1942 = vector.broadcast %1941 : f32 to vector<1x128xf32>
    %1943 = arith.mulf %1344, %1942 : vector<1x128xf32>
    %1944 = arith.addf %1940, %1943 : vector<1x128xf32>
    %c131 = arith.constant 131 : index
    %1945 = memref.load %arg9[%c131] : memref<256xf32, #tpu.memory_space<smem>>
    %1946 = vector.broadcast %1945 : f32 to vector<1x128xf32>
    %1947 = arith.mulf %1345, %1946 : vector<1x128xf32>
    %1948 = arith.addf %1944, %1947 : vector<1x128xf32>
    %c132 = arith.constant 132 : index
    %1949 = memref.load %arg9[%c132] : memref<256xf32, #tpu.memory_space<smem>>
    %1950 = vector.broadcast %1949 : f32 to vector<1x128xf32>
    %1951 = arith.mulf %1346, %1950 : vector<1x128xf32>
    %1952 = arith.addf %1948, %1951 : vector<1x128xf32>
    %c133 = arith.constant 133 : index
    %1953 = memref.load %arg9[%c133] : memref<256xf32, #tpu.memory_space<smem>>
    %1954 = vector.broadcast %1953 : f32 to vector<1x128xf32>
    %1955 = arith.mulf %1347, %1954 : vector<1x128xf32>
    %1956 = arith.addf %1952, %1955 : vector<1x128xf32>
    %c134 = arith.constant 134 : index
    %1957 = memref.load %arg9[%c134] : memref<256xf32, #tpu.memory_space<smem>>
    %1958 = vector.broadcast %1957 : f32 to vector<1x128xf32>
    %1959 = arith.mulf %1348, %1958 : vector<1x128xf32>
    %1960 = arith.addf %1956, %1959 : vector<1x128xf32>
    %c135 = arith.constant 135 : index
    %1961 = memref.load %arg9[%c135] : memref<256xf32, #tpu.memory_space<smem>>
    %1962 = vector.broadcast %1961 : f32 to vector<1x128xf32>
    %1963 = arith.mulf %1349, %1962 : vector<1x128xf32>
    %1964 = arith.addf %1960, %1963 : vector<1x128xf32>
    %c136 = arith.constant 136 : index
    %1965 = memref.load %arg9[%c136] : memref<256xf32, #tpu.memory_space<smem>>
    %1966 = vector.broadcast %1965 : f32 to vector<1x128xf32>
    %1967 = arith.mulf %1350, %1966 : vector<1x128xf32>
    %1968 = arith.addf %1964, %1967 : vector<1x128xf32>
    %c137 = arith.constant 137 : index
    %1969 = memref.load %arg9[%c137] : memref<256xf32, #tpu.memory_space<smem>>
    %1970 = vector.broadcast %1969 : f32 to vector<1x128xf32>
    %1971 = arith.mulf %1351, %1970 : vector<1x128xf32>
    %1972 = arith.addf %1968, %1971 : vector<1x128xf32>
    %c138 = arith.constant 138 : index
    %1973 = memref.load %arg9[%c138] : memref<256xf32, #tpu.memory_space<smem>>
    %1974 = vector.broadcast %1973 : f32 to vector<1x128xf32>
    %1975 = arith.mulf %1352, %1974 : vector<1x128xf32>
    %1976 = arith.addf %1972, %1975 : vector<1x128xf32>
    %c139 = arith.constant 139 : index
    %1977 = memref.load %arg9[%c139] : memref<256xf32, #tpu.memory_space<smem>>
    %1978 = vector.broadcast %1977 : f32 to vector<1x128xf32>
    %1979 = arith.mulf %1353, %1978 : vector<1x128xf32>
    %1980 = arith.addf %1976, %1979 : vector<1x128xf32>
    %c140 = arith.constant 140 : index
    %1981 = memref.load %arg9[%c140] : memref<256xf32, #tpu.memory_space<smem>>
    %1982 = vector.broadcast %1981 : f32 to vector<1x128xf32>
    %1983 = arith.mulf %1354, %1982 : vector<1x128xf32>
    %1984 = arith.addf %1980, %1983 : vector<1x128xf32>
    %c141 = arith.constant 141 : index
    %1985 = memref.load %arg9[%c141] : memref<256xf32, #tpu.memory_space<smem>>
    %1986 = vector.broadcast %1985 : f32 to vector<1x128xf32>
    %1987 = arith.mulf %1355, %1986 : vector<1x128xf32>
    %1988 = arith.addf %1984, %1987 : vector<1x128xf32>
    %c142 = arith.constant 142 : index
    %1989 = memref.load %arg9[%c142] : memref<256xf32, #tpu.memory_space<smem>>
    %1990 = vector.broadcast %1989 : f32 to vector<1x128xf32>
    %1991 = arith.mulf %1356, %1990 : vector<1x128xf32>
    %1992 = arith.addf %1988, %1991 : vector<1x128xf32>
    %c143 = arith.constant 143 : index
    %1993 = memref.load %arg9[%c143] : memref<256xf32, #tpu.memory_space<smem>>
    %1994 = vector.broadcast %1993 : f32 to vector<1x128xf32>
    %1995 = arith.mulf %1357, %1994 : vector<1x128xf32>
    %1996 = arith.addf %1992, %1995 : vector<1x128xf32>
    %c8_384 = arith.constant 8 : index
    %1997 = memref.load %arg10[%c8_384] : memref<16xf32, #tpu.memory_space<smem>>
    %1998 = vector.broadcast %1997 : f32 to vector<1x128xf32>
    %1999 = arith.addf %1996, %1998 : vector<1x128xf32>
    %c8_385 = arith.constant 8 : index
    %2000 = memref.load %arg11[%c8_385] : memref<16xf32, #tpu.memory_space<smem>>
    %2001 = vector.broadcast %2000 : f32 to vector<1x128xf32>
    %2002 = arith.mulf %1999, %2001 : vector<1x128xf32>
    %c8_386 = arith.constant 8 : index
    %2003 = memref.load %arg12[%c8_386] : memref<16xf32, #tpu.memory_space<smem>>
    %2004 = vector.broadcast %2003 : f32 to vector<1x128xf32>
    %2005 = arith.addf %2002, %2004 : vector<1x128xf32>
    %c144 = arith.constant 144 : index
    %2006 = memref.load %arg9[%c144] : memref<256xf32, #tpu.memory_space<smem>>
    %2007 = vector.broadcast %2006 : f32 to vector<1x128xf32>
    %2008 = arith.mulf %1342, %2007 : vector<1x128xf32>
    %c145 = arith.constant 145 : index
    %2009 = memref.load %arg9[%c145] : memref<256xf32, #tpu.memory_space<smem>>
    %2010 = vector.broadcast %2009 : f32 to vector<1x128xf32>
    %2011 = arith.mulf %1343, %2010 : vector<1x128xf32>
    %2012 = arith.addf %2008, %2011 : vector<1x128xf32>
    %c146 = arith.constant 146 : index
    %2013 = memref.load %arg9[%c146] : memref<256xf32, #tpu.memory_space<smem>>
    %2014 = vector.broadcast %2013 : f32 to vector<1x128xf32>
    %2015 = arith.mulf %1344, %2014 : vector<1x128xf32>
    %2016 = arith.addf %2012, %2015 : vector<1x128xf32>
    %c147 = arith.constant 147 : index
    %2017 = memref.load %arg9[%c147] : memref<256xf32, #tpu.memory_space<smem>>
    %2018 = vector.broadcast %2017 : f32 to vector<1x128xf32>
    %2019 = arith.mulf %1345, %2018 : vector<1x128xf32>
    %2020 = arith.addf %2016, %2019 : vector<1x128xf32>
    %c148 = arith.constant 148 : index
    %2021 = memref.load %arg9[%c148] : memref<256xf32, #tpu.memory_space<smem>>
    %2022 = vector.broadcast %2021 : f32 to vector<1x128xf32>
    %2023 = arith.mulf %1346, %2022 : vector<1x128xf32>
    %2024 = arith.addf %2020, %2023 : vector<1x128xf32>
    %c149 = arith.constant 149 : index
    %2025 = memref.load %arg9[%c149] : memref<256xf32, #tpu.memory_space<smem>>
    %2026 = vector.broadcast %2025 : f32 to vector<1x128xf32>
    %2027 = arith.mulf %1347, %2026 : vector<1x128xf32>
    %2028 = arith.addf %2024, %2027 : vector<1x128xf32>
    %c150 = arith.constant 150 : index
    %2029 = memref.load %arg9[%c150] : memref<256xf32, #tpu.memory_space<smem>>
    %2030 = vector.broadcast %2029 : f32 to vector<1x128xf32>
    %2031 = arith.mulf %1348, %2030 : vector<1x128xf32>
    %2032 = arith.addf %2028, %2031 : vector<1x128xf32>
    %c151 = arith.constant 151 : index
    %2033 = memref.load %arg9[%c151] : memref<256xf32, #tpu.memory_space<smem>>
    %2034 = vector.broadcast %2033 : f32 to vector<1x128xf32>
    %2035 = arith.mulf %1349, %2034 : vector<1x128xf32>
    %2036 = arith.addf %2032, %2035 : vector<1x128xf32>
    %c152 = arith.constant 152 : index
    %2037 = memref.load %arg9[%c152] : memref<256xf32, #tpu.memory_space<smem>>
    %2038 = vector.broadcast %2037 : f32 to vector<1x128xf32>
    %2039 = arith.mulf %1350, %2038 : vector<1x128xf32>
    %2040 = arith.addf %2036, %2039 : vector<1x128xf32>
    %c153 = arith.constant 153 : index
    %2041 = memref.load %arg9[%c153] : memref<256xf32, #tpu.memory_space<smem>>
    %2042 = vector.broadcast %2041 : f32 to vector<1x128xf32>
    %2043 = arith.mulf %1351, %2042 : vector<1x128xf32>
    %2044 = arith.addf %2040, %2043 : vector<1x128xf32>
    %c154 = arith.constant 154 : index
    %2045 = memref.load %arg9[%c154] : memref<256xf32, #tpu.memory_space<smem>>
    %2046 = vector.broadcast %2045 : f32 to vector<1x128xf32>
    %2047 = arith.mulf %1352, %2046 : vector<1x128xf32>
    %2048 = arith.addf %2044, %2047 : vector<1x128xf32>
    %c155 = arith.constant 155 : index
    %2049 = memref.load %arg9[%c155] : memref<256xf32, #tpu.memory_space<smem>>
    %2050 = vector.broadcast %2049 : f32 to vector<1x128xf32>
    %2051 = arith.mulf %1353, %2050 : vector<1x128xf32>
    %2052 = arith.addf %2048, %2051 : vector<1x128xf32>
    %c156 = arith.constant 156 : index
    %2053 = memref.load %arg9[%c156] : memref<256xf32, #tpu.memory_space<smem>>
    %2054 = vector.broadcast %2053 : f32 to vector<1x128xf32>
    %2055 = arith.mulf %1354, %2054 : vector<1x128xf32>
    %2056 = arith.addf %2052, %2055 : vector<1x128xf32>
    %c157 = arith.constant 157 : index
    %2057 = memref.load %arg9[%c157] : memref<256xf32, #tpu.memory_space<smem>>
    %2058 = vector.broadcast %2057 : f32 to vector<1x128xf32>
    %2059 = arith.mulf %1355, %2058 : vector<1x128xf32>
    %2060 = arith.addf %2056, %2059 : vector<1x128xf32>
    %c158 = arith.constant 158 : index
    %2061 = memref.load %arg9[%c158] : memref<256xf32, #tpu.memory_space<smem>>
    %2062 = vector.broadcast %2061 : f32 to vector<1x128xf32>
    %2063 = arith.mulf %1356, %2062 : vector<1x128xf32>
    %2064 = arith.addf %2060, %2063 : vector<1x128xf32>
    %c159 = arith.constant 159 : index
    %2065 = memref.load %arg9[%c159] : memref<256xf32, #tpu.memory_space<smem>>
    %2066 = vector.broadcast %2065 : f32 to vector<1x128xf32>
    %2067 = arith.mulf %1357, %2066 : vector<1x128xf32>
    %2068 = arith.addf %2064, %2067 : vector<1x128xf32>
    %c9_387 = arith.constant 9 : index
    %2069 = memref.load %arg10[%c9_387] : memref<16xf32, #tpu.memory_space<smem>>
    %2070 = vector.broadcast %2069 : f32 to vector<1x128xf32>
    %2071 = arith.addf %2068, %2070 : vector<1x128xf32>
    %c9_388 = arith.constant 9 : index
    %2072 = memref.load %arg11[%c9_388] : memref<16xf32, #tpu.memory_space<smem>>
    %2073 = vector.broadcast %2072 : f32 to vector<1x128xf32>
    %2074 = arith.mulf %2071, %2073 : vector<1x128xf32>
    %c9_389 = arith.constant 9 : index
    %2075 = memref.load %arg12[%c9_389] : memref<16xf32, #tpu.memory_space<smem>>
    %2076 = vector.broadcast %2075 : f32 to vector<1x128xf32>
    %2077 = arith.addf %2074, %2076 : vector<1x128xf32>
    %c160 = arith.constant 160 : index
    %2078 = memref.load %arg9[%c160] : memref<256xf32, #tpu.memory_space<smem>>
    %2079 = vector.broadcast %2078 : f32 to vector<1x128xf32>
    %2080 = arith.mulf %1342, %2079 : vector<1x128xf32>
    %c161 = arith.constant 161 : index
    %2081 = memref.load %arg9[%c161] : memref<256xf32, #tpu.memory_space<smem>>
    %2082 = vector.broadcast %2081 : f32 to vector<1x128xf32>
    %2083 = arith.mulf %1343, %2082 : vector<1x128xf32>
    %2084 = arith.addf %2080, %2083 : vector<1x128xf32>
    %c162 = arith.constant 162 : index
    %2085 = memref.load %arg9[%c162] : memref<256xf32, #tpu.memory_space<smem>>
    %2086 = vector.broadcast %2085 : f32 to vector<1x128xf32>
    %2087 = arith.mulf %1344, %2086 : vector<1x128xf32>
    %2088 = arith.addf %2084, %2087 : vector<1x128xf32>
    %c163 = arith.constant 163 : index
    %2089 = memref.load %arg9[%c163] : memref<256xf32, #tpu.memory_space<smem>>
    %2090 = vector.broadcast %2089 : f32 to vector<1x128xf32>
    %2091 = arith.mulf %1345, %2090 : vector<1x128xf32>
    %2092 = arith.addf %2088, %2091 : vector<1x128xf32>
    %c164 = arith.constant 164 : index
    %2093 = memref.load %arg9[%c164] : memref<256xf32, #tpu.memory_space<smem>>
    %2094 = vector.broadcast %2093 : f32 to vector<1x128xf32>
    %2095 = arith.mulf %1346, %2094 : vector<1x128xf32>
    %2096 = arith.addf %2092, %2095 : vector<1x128xf32>
    %c165 = arith.constant 165 : index
    %2097 = memref.load %arg9[%c165] : memref<256xf32, #tpu.memory_space<smem>>
    %2098 = vector.broadcast %2097 : f32 to vector<1x128xf32>
    %2099 = arith.mulf %1347, %2098 : vector<1x128xf32>
    %2100 = arith.addf %2096, %2099 : vector<1x128xf32>
    %c166 = arith.constant 166 : index
    %2101 = memref.load %arg9[%c166] : memref<256xf32, #tpu.memory_space<smem>>
    %2102 = vector.broadcast %2101 : f32 to vector<1x128xf32>
    %2103 = arith.mulf %1348, %2102 : vector<1x128xf32>
    %2104 = arith.addf %2100, %2103 : vector<1x128xf32>
    %c167 = arith.constant 167 : index
    %2105 = memref.load %arg9[%c167] : memref<256xf32, #tpu.memory_space<smem>>
    %2106 = vector.broadcast %2105 : f32 to vector<1x128xf32>
    %2107 = arith.mulf %1349, %2106 : vector<1x128xf32>
    %2108 = arith.addf %2104, %2107 : vector<1x128xf32>
    %c168 = arith.constant 168 : index
    %2109 = memref.load %arg9[%c168] : memref<256xf32, #tpu.memory_space<smem>>
    %2110 = vector.broadcast %2109 : f32 to vector<1x128xf32>
    %2111 = arith.mulf %1350, %2110 : vector<1x128xf32>
    %2112 = arith.addf %2108, %2111 : vector<1x128xf32>
    %c169 = arith.constant 169 : index
    %2113 = memref.load %arg9[%c169] : memref<256xf32, #tpu.memory_space<smem>>
    %2114 = vector.broadcast %2113 : f32 to vector<1x128xf32>
    %2115 = arith.mulf %1351, %2114 : vector<1x128xf32>
    %2116 = arith.addf %2112, %2115 : vector<1x128xf32>
    %c170 = arith.constant 170 : index
    %2117 = memref.load %arg9[%c170] : memref<256xf32, #tpu.memory_space<smem>>
    %2118 = vector.broadcast %2117 : f32 to vector<1x128xf32>
    %2119 = arith.mulf %1352, %2118 : vector<1x128xf32>
    %2120 = arith.addf %2116, %2119 : vector<1x128xf32>
    %c171 = arith.constant 171 : index
    %2121 = memref.load %arg9[%c171] : memref<256xf32, #tpu.memory_space<smem>>
    %2122 = vector.broadcast %2121 : f32 to vector<1x128xf32>
    %2123 = arith.mulf %1353, %2122 : vector<1x128xf32>
    %2124 = arith.addf %2120, %2123 : vector<1x128xf32>
    %c172 = arith.constant 172 : index
    %2125 = memref.load %arg9[%c172] : memref<256xf32, #tpu.memory_space<smem>>
    %2126 = vector.broadcast %2125 : f32 to vector<1x128xf32>
    %2127 = arith.mulf %1354, %2126 : vector<1x128xf32>
    %2128 = arith.addf %2124, %2127 : vector<1x128xf32>
    %c173 = arith.constant 173 : index
    %2129 = memref.load %arg9[%c173] : memref<256xf32, #tpu.memory_space<smem>>
    %2130 = vector.broadcast %2129 : f32 to vector<1x128xf32>
    %2131 = arith.mulf %1355, %2130 : vector<1x128xf32>
    %2132 = arith.addf %2128, %2131 : vector<1x128xf32>
    %c174 = arith.constant 174 : index
    %2133 = memref.load %arg9[%c174] : memref<256xf32, #tpu.memory_space<smem>>
    %2134 = vector.broadcast %2133 : f32 to vector<1x128xf32>
    %2135 = arith.mulf %1356, %2134 : vector<1x128xf32>
    %2136 = arith.addf %2132, %2135 : vector<1x128xf32>
    %c175 = arith.constant 175 : index
    %2137 = memref.load %arg9[%c175] : memref<256xf32, #tpu.memory_space<smem>>
    %2138 = vector.broadcast %2137 : f32 to vector<1x128xf32>
    %2139 = arith.mulf %1357, %2138 : vector<1x128xf32>
    %2140 = arith.addf %2136, %2139 : vector<1x128xf32>
    %c10_390 = arith.constant 10 : index
    %2141 = memref.load %arg10[%c10_390] : memref<16xf32, #tpu.memory_space<smem>>
    %2142 = vector.broadcast %2141 : f32 to vector<1x128xf32>
    %2143 = arith.addf %2140, %2142 : vector<1x128xf32>
    %c10_391 = arith.constant 10 : index
    %2144 = memref.load %arg11[%c10_391] : memref<16xf32, #tpu.memory_space<smem>>
    %2145 = vector.broadcast %2144 : f32 to vector<1x128xf32>
    %2146 = arith.mulf %2143, %2145 : vector<1x128xf32>
    %c10_392 = arith.constant 10 : index
    %2147 = memref.load %arg12[%c10_392] : memref<16xf32, #tpu.memory_space<smem>>
    %2148 = vector.broadcast %2147 : f32 to vector<1x128xf32>
    %2149 = arith.addf %2146, %2148 : vector<1x128xf32>
    %c176 = arith.constant 176 : index
    %2150 = memref.load %arg9[%c176] : memref<256xf32, #tpu.memory_space<smem>>
    %2151 = vector.broadcast %2150 : f32 to vector<1x128xf32>
    %2152 = arith.mulf %1342, %2151 : vector<1x128xf32>
    %c177 = arith.constant 177 : index
    %2153 = memref.load %arg9[%c177] : memref<256xf32, #tpu.memory_space<smem>>
    %2154 = vector.broadcast %2153 : f32 to vector<1x128xf32>
    %2155 = arith.mulf %1343, %2154 : vector<1x128xf32>
    %2156 = arith.addf %2152, %2155 : vector<1x128xf32>
    %c178 = arith.constant 178 : index
    %2157 = memref.load %arg9[%c178] : memref<256xf32, #tpu.memory_space<smem>>
    %2158 = vector.broadcast %2157 : f32 to vector<1x128xf32>
    %2159 = arith.mulf %1344, %2158 : vector<1x128xf32>
    %2160 = arith.addf %2156, %2159 : vector<1x128xf32>
    %c179 = arith.constant 179 : index
    %2161 = memref.load %arg9[%c179] : memref<256xf32, #tpu.memory_space<smem>>
    %2162 = vector.broadcast %2161 : f32 to vector<1x128xf32>
    %2163 = arith.mulf %1345, %2162 : vector<1x128xf32>
    %2164 = arith.addf %2160, %2163 : vector<1x128xf32>
    %c180 = arith.constant 180 : index
    %2165 = memref.load %arg9[%c180] : memref<256xf32, #tpu.memory_space<smem>>
    %2166 = vector.broadcast %2165 : f32 to vector<1x128xf32>
    %2167 = arith.mulf %1346, %2166 : vector<1x128xf32>
    %2168 = arith.addf %2164, %2167 : vector<1x128xf32>
    %c181 = arith.constant 181 : index
    %2169 = memref.load %arg9[%c181] : memref<256xf32, #tpu.memory_space<smem>>
    %2170 = vector.broadcast %2169 : f32 to vector<1x128xf32>
    %2171 = arith.mulf %1347, %2170 : vector<1x128xf32>
    %2172 = arith.addf %2168, %2171 : vector<1x128xf32>
    %c182 = arith.constant 182 : index
    %2173 = memref.load %arg9[%c182] : memref<256xf32, #tpu.memory_space<smem>>
    %2174 = vector.broadcast %2173 : f32 to vector<1x128xf32>
    %2175 = arith.mulf %1348, %2174 : vector<1x128xf32>
    %2176 = arith.addf %2172, %2175 : vector<1x128xf32>
    %c183 = arith.constant 183 : index
    %2177 = memref.load %arg9[%c183] : memref<256xf32, #tpu.memory_space<smem>>
    %2178 = vector.broadcast %2177 : f32 to vector<1x128xf32>
    %2179 = arith.mulf %1349, %2178 : vector<1x128xf32>
    %2180 = arith.addf %2176, %2179 : vector<1x128xf32>
    %c184 = arith.constant 184 : index
    %2181 = memref.load %arg9[%c184] : memref<256xf32, #tpu.memory_space<smem>>
    %2182 = vector.broadcast %2181 : f32 to vector<1x128xf32>
    %2183 = arith.mulf %1350, %2182 : vector<1x128xf32>
    %2184 = arith.addf %2180, %2183 : vector<1x128xf32>
    %c185 = arith.constant 185 : index
    %2185 = memref.load %arg9[%c185] : memref<256xf32, #tpu.memory_space<smem>>
    %2186 = vector.broadcast %2185 : f32 to vector<1x128xf32>
    %2187 = arith.mulf %1351, %2186 : vector<1x128xf32>
    %2188 = arith.addf %2184, %2187 : vector<1x128xf32>
    %c186 = arith.constant 186 : index
    %2189 = memref.load %arg9[%c186] : memref<256xf32, #tpu.memory_space<smem>>
    %2190 = vector.broadcast %2189 : f32 to vector<1x128xf32>
    %2191 = arith.mulf %1352, %2190 : vector<1x128xf32>
    %2192 = arith.addf %2188, %2191 : vector<1x128xf32>
    %c187 = arith.constant 187 : index
    %2193 = memref.load %arg9[%c187] : memref<256xf32, #tpu.memory_space<smem>>
    %2194 = vector.broadcast %2193 : f32 to vector<1x128xf32>
    %2195 = arith.mulf %1353, %2194 : vector<1x128xf32>
    %2196 = arith.addf %2192, %2195 : vector<1x128xf32>
    %c188 = arith.constant 188 : index
    %2197 = memref.load %arg9[%c188] : memref<256xf32, #tpu.memory_space<smem>>
    %2198 = vector.broadcast %2197 : f32 to vector<1x128xf32>
    %2199 = arith.mulf %1354, %2198 : vector<1x128xf32>
    %2200 = arith.addf %2196, %2199 : vector<1x128xf32>
    %c189 = arith.constant 189 : index
    %2201 = memref.load %arg9[%c189] : memref<256xf32, #tpu.memory_space<smem>>
    %2202 = vector.broadcast %2201 : f32 to vector<1x128xf32>
    %2203 = arith.mulf %1355, %2202 : vector<1x128xf32>
    %2204 = arith.addf %2200, %2203 : vector<1x128xf32>
    %c190 = arith.constant 190 : index
    %2205 = memref.load %arg9[%c190] : memref<256xf32, #tpu.memory_space<smem>>
    %2206 = vector.broadcast %2205 : f32 to vector<1x128xf32>
    %2207 = arith.mulf %1356, %2206 : vector<1x128xf32>
    %2208 = arith.addf %2204, %2207 : vector<1x128xf32>
    %c191 = arith.constant 191 : index
    %2209 = memref.load %arg9[%c191] : memref<256xf32, #tpu.memory_space<smem>>
    %2210 = vector.broadcast %2209 : f32 to vector<1x128xf32>
    %2211 = arith.mulf %1357, %2210 : vector<1x128xf32>
    %2212 = arith.addf %2208, %2211 : vector<1x128xf32>
    %c11_393 = arith.constant 11 : index
    %2213 = memref.load %arg10[%c11_393] : memref<16xf32, #tpu.memory_space<smem>>
    %2214 = vector.broadcast %2213 : f32 to vector<1x128xf32>
    %2215 = arith.addf %2212, %2214 : vector<1x128xf32>
    %c11_394 = arith.constant 11 : index
    %2216 = memref.load %arg11[%c11_394] : memref<16xf32, #tpu.memory_space<smem>>
    %2217 = vector.broadcast %2216 : f32 to vector<1x128xf32>
    %2218 = arith.mulf %2215, %2217 : vector<1x128xf32>
    %c11_395 = arith.constant 11 : index
    %2219 = memref.load %arg12[%c11_395] : memref<16xf32, #tpu.memory_space<smem>>
    %2220 = vector.broadcast %2219 : f32 to vector<1x128xf32>
    %2221 = arith.addf %2218, %2220 : vector<1x128xf32>
    %c192 = arith.constant 192 : index
    %2222 = memref.load %arg9[%c192] : memref<256xf32, #tpu.memory_space<smem>>
    %2223 = vector.broadcast %2222 : f32 to vector<1x128xf32>
    %2224 = arith.mulf %1342, %2223 : vector<1x128xf32>
    %c193 = arith.constant 193 : index
    %2225 = memref.load %arg9[%c193] : memref<256xf32, #tpu.memory_space<smem>>
    %2226 = vector.broadcast %2225 : f32 to vector<1x128xf32>
    %2227 = arith.mulf %1343, %2226 : vector<1x128xf32>
    %2228 = arith.addf %2224, %2227 : vector<1x128xf32>
    %c194 = arith.constant 194 : index
    %2229 = memref.load %arg9[%c194] : memref<256xf32, #tpu.memory_space<smem>>
    %2230 = vector.broadcast %2229 : f32 to vector<1x128xf32>
    %2231 = arith.mulf %1344, %2230 : vector<1x128xf32>
    %2232 = arith.addf %2228, %2231 : vector<1x128xf32>
    %c195 = arith.constant 195 : index
    %2233 = memref.load %arg9[%c195] : memref<256xf32, #tpu.memory_space<smem>>
    %2234 = vector.broadcast %2233 : f32 to vector<1x128xf32>
    %2235 = arith.mulf %1345, %2234 : vector<1x128xf32>
    %2236 = arith.addf %2232, %2235 : vector<1x128xf32>
    %c196 = arith.constant 196 : index
    %2237 = memref.load %arg9[%c196] : memref<256xf32, #tpu.memory_space<smem>>
    %2238 = vector.broadcast %2237 : f32 to vector<1x128xf32>
    %2239 = arith.mulf %1346, %2238 : vector<1x128xf32>
    %2240 = arith.addf %2236, %2239 : vector<1x128xf32>
    %c197 = arith.constant 197 : index
    %2241 = memref.load %arg9[%c197] : memref<256xf32, #tpu.memory_space<smem>>
    %2242 = vector.broadcast %2241 : f32 to vector<1x128xf32>
    %2243 = arith.mulf %1347, %2242 : vector<1x128xf32>
    %2244 = arith.addf %2240, %2243 : vector<1x128xf32>
    %c198 = arith.constant 198 : index
    %2245 = memref.load %arg9[%c198] : memref<256xf32, #tpu.memory_space<smem>>
    %2246 = vector.broadcast %2245 : f32 to vector<1x128xf32>
    %2247 = arith.mulf %1348, %2246 : vector<1x128xf32>
    %2248 = arith.addf %2244, %2247 : vector<1x128xf32>
    %c199 = arith.constant 199 : index
    %2249 = memref.load %arg9[%c199] : memref<256xf32, #tpu.memory_space<smem>>
    %2250 = vector.broadcast %2249 : f32 to vector<1x128xf32>
    %2251 = arith.mulf %1349, %2250 : vector<1x128xf32>
    %2252 = arith.addf %2248, %2251 : vector<1x128xf32>
    %c200 = arith.constant 200 : index
    %2253 = memref.load %arg9[%c200] : memref<256xf32, #tpu.memory_space<smem>>
    %2254 = vector.broadcast %2253 : f32 to vector<1x128xf32>
    %2255 = arith.mulf %1350, %2254 : vector<1x128xf32>
    %2256 = arith.addf %2252, %2255 : vector<1x128xf32>
    %c201 = arith.constant 201 : index
    %2257 = memref.load %arg9[%c201] : memref<256xf32, #tpu.memory_space<smem>>
    %2258 = vector.broadcast %2257 : f32 to vector<1x128xf32>
    %2259 = arith.mulf %1351, %2258 : vector<1x128xf32>
    %2260 = arith.addf %2256, %2259 : vector<1x128xf32>
    %c202 = arith.constant 202 : index
    %2261 = memref.load %arg9[%c202] : memref<256xf32, #tpu.memory_space<smem>>
    %2262 = vector.broadcast %2261 : f32 to vector<1x128xf32>
    %2263 = arith.mulf %1352, %2262 : vector<1x128xf32>
    %2264 = arith.addf %2260, %2263 : vector<1x128xf32>
    %c203 = arith.constant 203 : index
    %2265 = memref.load %arg9[%c203] : memref<256xf32, #tpu.memory_space<smem>>
    %2266 = vector.broadcast %2265 : f32 to vector<1x128xf32>
    %2267 = arith.mulf %1353, %2266 : vector<1x128xf32>
    %2268 = arith.addf %2264, %2267 : vector<1x128xf32>
    %c204 = arith.constant 204 : index
    %2269 = memref.load %arg9[%c204] : memref<256xf32, #tpu.memory_space<smem>>
    %2270 = vector.broadcast %2269 : f32 to vector<1x128xf32>
    %2271 = arith.mulf %1354, %2270 : vector<1x128xf32>
    %2272 = arith.addf %2268, %2271 : vector<1x128xf32>
    %c205 = arith.constant 205 : index
    %2273 = memref.load %arg9[%c205] : memref<256xf32, #tpu.memory_space<smem>>
    %2274 = vector.broadcast %2273 : f32 to vector<1x128xf32>
    %2275 = arith.mulf %1355, %2274 : vector<1x128xf32>
    %2276 = arith.addf %2272, %2275 : vector<1x128xf32>
    %c206 = arith.constant 206 : index
    %2277 = memref.load %arg9[%c206] : memref<256xf32, #tpu.memory_space<smem>>
    %2278 = vector.broadcast %2277 : f32 to vector<1x128xf32>
    %2279 = arith.mulf %1356, %2278 : vector<1x128xf32>
    %2280 = arith.addf %2276, %2279 : vector<1x128xf32>
    %c207 = arith.constant 207 : index
    %2281 = memref.load %arg9[%c207] : memref<256xf32, #tpu.memory_space<smem>>
    %2282 = vector.broadcast %2281 : f32 to vector<1x128xf32>
    %2283 = arith.mulf %1357, %2282 : vector<1x128xf32>
    %2284 = arith.addf %2280, %2283 : vector<1x128xf32>
    %c12_396 = arith.constant 12 : index
    %2285 = memref.load %arg10[%c12_396] : memref<16xf32, #tpu.memory_space<smem>>
    %2286 = vector.broadcast %2285 : f32 to vector<1x128xf32>
    %2287 = arith.addf %2284, %2286 : vector<1x128xf32>
    %c12_397 = arith.constant 12 : index
    %2288 = memref.load %arg11[%c12_397] : memref<16xf32, #tpu.memory_space<smem>>
    %2289 = vector.broadcast %2288 : f32 to vector<1x128xf32>
    %2290 = arith.mulf %2287, %2289 : vector<1x128xf32>
    %c12_398 = arith.constant 12 : index
    %2291 = memref.load %arg12[%c12_398] : memref<16xf32, #tpu.memory_space<smem>>
    %2292 = vector.broadcast %2291 : f32 to vector<1x128xf32>
    %2293 = arith.addf %2290, %2292 : vector<1x128xf32>
    %c208 = arith.constant 208 : index
    %2294 = memref.load %arg9[%c208] : memref<256xf32, #tpu.memory_space<smem>>
    %2295 = vector.broadcast %2294 : f32 to vector<1x128xf32>
    %2296 = arith.mulf %1342, %2295 : vector<1x128xf32>
    %c209 = arith.constant 209 : index
    %2297 = memref.load %arg9[%c209] : memref<256xf32, #tpu.memory_space<smem>>
    %2298 = vector.broadcast %2297 : f32 to vector<1x128xf32>
    %2299 = arith.mulf %1343, %2298 : vector<1x128xf32>
    %2300 = arith.addf %2296, %2299 : vector<1x128xf32>
    %c210 = arith.constant 210 : index
    %2301 = memref.load %arg9[%c210] : memref<256xf32, #tpu.memory_space<smem>>
    %2302 = vector.broadcast %2301 : f32 to vector<1x128xf32>
    %2303 = arith.mulf %1344, %2302 : vector<1x128xf32>
    %2304 = arith.addf %2300, %2303 : vector<1x128xf32>
    %c211 = arith.constant 211 : index
    %2305 = memref.load %arg9[%c211] : memref<256xf32, #tpu.memory_space<smem>>
    %2306 = vector.broadcast %2305 : f32 to vector<1x128xf32>
    %2307 = arith.mulf %1345, %2306 : vector<1x128xf32>
    %2308 = arith.addf %2304, %2307 : vector<1x128xf32>
    %c212 = arith.constant 212 : index
    %2309 = memref.load %arg9[%c212] : memref<256xf32, #tpu.memory_space<smem>>
    %2310 = vector.broadcast %2309 : f32 to vector<1x128xf32>
    %2311 = arith.mulf %1346, %2310 : vector<1x128xf32>
    %2312 = arith.addf %2308, %2311 : vector<1x128xf32>
    %c213 = arith.constant 213 : index
    %2313 = memref.load %arg9[%c213] : memref<256xf32, #tpu.memory_space<smem>>
    %2314 = vector.broadcast %2313 : f32 to vector<1x128xf32>
    %2315 = arith.mulf %1347, %2314 : vector<1x128xf32>
    %2316 = arith.addf %2312, %2315 : vector<1x128xf32>
    %c214 = arith.constant 214 : index
    %2317 = memref.load %arg9[%c214] : memref<256xf32, #tpu.memory_space<smem>>
    %2318 = vector.broadcast %2317 : f32 to vector<1x128xf32>
    %2319 = arith.mulf %1348, %2318 : vector<1x128xf32>
    %2320 = arith.addf %2316, %2319 : vector<1x128xf32>
    %c215 = arith.constant 215 : index
    %2321 = memref.load %arg9[%c215] : memref<256xf32, #tpu.memory_space<smem>>
    %2322 = vector.broadcast %2321 : f32 to vector<1x128xf32>
    %2323 = arith.mulf %1349, %2322 : vector<1x128xf32>
    %2324 = arith.addf %2320, %2323 : vector<1x128xf32>
    %c216 = arith.constant 216 : index
    %2325 = memref.load %arg9[%c216] : memref<256xf32, #tpu.memory_space<smem>>
    %2326 = vector.broadcast %2325 : f32 to vector<1x128xf32>
    %2327 = arith.mulf %1350, %2326 : vector<1x128xf32>
    %2328 = arith.addf %2324, %2327 : vector<1x128xf32>
    %c217 = arith.constant 217 : index
    %2329 = memref.load %arg9[%c217] : memref<256xf32, #tpu.memory_space<smem>>
    %2330 = vector.broadcast %2329 : f32 to vector<1x128xf32>
    %2331 = arith.mulf %1351, %2330 : vector<1x128xf32>
    %2332 = arith.addf %2328, %2331 : vector<1x128xf32>
    %c218 = arith.constant 218 : index
    %2333 = memref.load %arg9[%c218] : memref<256xf32, #tpu.memory_space<smem>>
    %2334 = vector.broadcast %2333 : f32 to vector<1x128xf32>
    %2335 = arith.mulf %1352, %2334 : vector<1x128xf32>
    %2336 = arith.addf %2332, %2335 : vector<1x128xf32>
    %c219 = arith.constant 219 : index
    %2337 = memref.load %arg9[%c219] : memref<256xf32, #tpu.memory_space<smem>>
    %2338 = vector.broadcast %2337 : f32 to vector<1x128xf32>
    %2339 = arith.mulf %1353, %2338 : vector<1x128xf32>
    %2340 = arith.addf %2336, %2339 : vector<1x128xf32>
    %c220 = arith.constant 220 : index
    %2341 = memref.load %arg9[%c220] : memref<256xf32, #tpu.memory_space<smem>>
    %2342 = vector.broadcast %2341 : f32 to vector<1x128xf32>
    %2343 = arith.mulf %1354, %2342 : vector<1x128xf32>
    %2344 = arith.addf %2340, %2343 : vector<1x128xf32>
    %c221 = arith.constant 221 : index
    %2345 = memref.load %arg9[%c221] : memref<256xf32, #tpu.memory_space<smem>>
    %2346 = vector.broadcast %2345 : f32 to vector<1x128xf32>
    %2347 = arith.mulf %1355, %2346 : vector<1x128xf32>
    %2348 = arith.addf %2344, %2347 : vector<1x128xf32>
    %c222 = arith.constant 222 : index
    %2349 = memref.load %arg9[%c222] : memref<256xf32, #tpu.memory_space<smem>>
    %2350 = vector.broadcast %2349 : f32 to vector<1x128xf32>
    %2351 = arith.mulf %1356, %2350 : vector<1x128xf32>
    %2352 = arith.addf %2348, %2351 : vector<1x128xf32>
    %c223 = arith.constant 223 : index
    %2353 = memref.load %arg9[%c223] : memref<256xf32, #tpu.memory_space<smem>>
    %2354 = vector.broadcast %2353 : f32 to vector<1x128xf32>
    %2355 = arith.mulf %1357, %2354 : vector<1x128xf32>
    %2356 = arith.addf %2352, %2355 : vector<1x128xf32>
    %c13_399 = arith.constant 13 : index
    %2357 = memref.load %arg10[%c13_399] : memref<16xf32, #tpu.memory_space<smem>>
    %2358 = vector.broadcast %2357 : f32 to vector<1x128xf32>
    %2359 = arith.addf %2356, %2358 : vector<1x128xf32>
    %c13_400 = arith.constant 13 : index
    %2360 = memref.load %arg11[%c13_400] : memref<16xf32, #tpu.memory_space<smem>>
    %2361 = vector.broadcast %2360 : f32 to vector<1x128xf32>
    %2362 = arith.mulf %2359, %2361 : vector<1x128xf32>
    %c13_401 = arith.constant 13 : index
    %2363 = memref.load %arg12[%c13_401] : memref<16xf32, #tpu.memory_space<smem>>
    %2364 = vector.broadcast %2363 : f32 to vector<1x128xf32>
    %2365 = arith.addf %2362, %2364 : vector<1x128xf32>
    %c224 = arith.constant 224 : index
    %2366 = memref.load %arg9[%c224] : memref<256xf32, #tpu.memory_space<smem>>
    %2367 = vector.broadcast %2366 : f32 to vector<1x128xf32>
    %2368 = arith.mulf %1342, %2367 : vector<1x128xf32>
    %c225 = arith.constant 225 : index
    %2369 = memref.load %arg9[%c225] : memref<256xf32, #tpu.memory_space<smem>>
    %2370 = vector.broadcast %2369 : f32 to vector<1x128xf32>
    %2371 = arith.mulf %1343, %2370 : vector<1x128xf32>
    %2372 = arith.addf %2368, %2371 : vector<1x128xf32>
    %c226 = arith.constant 226 : index
    %2373 = memref.load %arg9[%c226] : memref<256xf32, #tpu.memory_space<smem>>
    %2374 = vector.broadcast %2373 : f32 to vector<1x128xf32>
    %2375 = arith.mulf %1344, %2374 : vector<1x128xf32>
    %2376 = arith.addf %2372, %2375 : vector<1x128xf32>
    %c227 = arith.constant 227 : index
    %2377 = memref.load %arg9[%c227] : memref<256xf32, #tpu.memory_space<smem>>
    %2378 = vector.broadcast %2377 : f32 to vector<1x128xf32>
    %2379 = arith.mulf %1345, %2378 : vector<1x128xf32>
    %2380 = arith.addf %2376, %2379 : vector<1x128xf32>
    %c228 = arith.constant 228 : index
    %2381 = memref.load %arg9[%c228] : memref<256xf32, #tpu.memory_space<smem>>
    %2382 = vector.broadcast %2381 : f32 to vector<1x128xf32>
    %2383 = arith.mulf %1346, %2382 : vector<1x128xf32>
    %2384 = arith.addf %2380, %2383 : vector<1x128xf32>
    %c229 = arith.constant 229 : index
    %2385 = memref.load %arg9[%c229] : memref<256xf32, #tpu.memory_space<smem>>
    %2386 = vector.broadcast %2385 : f32 to vector<1x128xf32>
    %2387 = arith.mulf %1347, %2386 : vector<1x128xf32>
    %2388 = arith.addf %2384, %2387 : vector<1x128xf32>
    %c230 = arith.constant 230 : index
    %2389 = memref.load %arg9[%c230] : memref<256xf32, #tpu.memory_space<smem>>
    %2390 = vector.broadcast %2389 : f32 to vector<1x128xf32>
    %2391 = arith.mulf %1348, %2390 : vector<1x128xf32>
    %2392 = arith.addf %2388, %2391 : vector<1x128xf32>
    %c231 = arith.constant 231 : index
    %2393 = memref.load %arg9[%c231] : memref<256xf32, #tpu.memory_space<smem>>
    %2394 = vector.broadcast %2393 : f32 to vector<1x128xf32>
    %2395 = arith.mulf %1349, %2394 : vector<1x128xf32>
    %2396 = arith.addf %2392, %2395 : vector<1x128xf32>
    %c232 = arith.constant 232 : index
    %2397 = memref.load %arg9[%c232] : memref<256xf32, #tpu.memory_space<smem>>
    %2398 = vector.broadcast %2397 : f32 to vector<1x128xf32>
    %2399 = arith.mulf %1350, %2398 : vector<1x128xf32>
    %2400 = arith.addf %2396, %2399 : vector<1x128xf32>
    %c233 = arith.constant 233 : index
    %2401 = memref.load %arg9[%c233] : memref<256xf32, #tpu.memory_space<smem>>
    %2402 = vector.broadcast %2401 : f32 to vector<1x128xf32>
    %2403 = arith.mulf %1351, %2402 : vector<1x128xf32>
    %2404 = arith.addf %2400, %2403 : vector<1x128xf32>
    %c234 = arith.constant 234 : index
    %2405 = memref.load %arg9[%c234] : memref<256xf32, #tpu.memory_space<smem>>
    %2406 = vector.broadcast %2405 : f32 to vector<1x128xf32>
    %2407 = arith.mulf %1352, %2406 : vector<1x128xf32>
    %2408 = arith.addf %2404, %2407 : vector<1x128xf32>
    %c235 = arith.constant 235 : index
    %2409 = memref.load %arg9[%c235] : memref<256xf32, #tpu.memory_space<smem>>
    %2410 = vector.broadcast %2409 : f32 to vector<1x128xf32>
    %2411 = arith.mulf %1353, %2410 : vector<1x128xf32>
    %2412 = arith.addf %2408, %2411 : vector<1x128xf32>
    %c236 = arith.constant 236 : index
    %2413 = memref.load %arg9[%c236] : memref<256xf32, #tpu.memory_space<smem>>
    %2414 = vector.broadcast %2413 : f32 to vector<1x128xf32>
    %2415 = arith.mulf %1354, %2414 : vector<1x128xf32>
    %2416 = arith.addf %2412, %2415 : vector<1x128xf32>
    %c237 = arith.constant 237 : index
    %2417 = memref.load %arg9[%c237] : memref<256xf32, #tpu.memory_space<smem>>
    %2418 = vector.broadcast %2417 : f32 to vector<1x128xf32>
    %2419 = arith.mulf %1355, %2418 : vector<1x128xf32>
    %2420 = arith.addf %2416, %2419 : vector<1x128xf32>
    %c238 = arith.constant 238 : index
    %2421 = memref.load %arg9[%c238] : memref<256xf32, #tpu.memory_space<smem>>
    %2422 = vector.broadcast %2421 : f32 to vector<1x128xf32>
    %2423 = arith.mulf %1356, %2422 : vector<1x128xf32>
    %2424 = arith.addf %2420, %2423 : vector<1x128xf32>
    %c239 = arith.constant 239 : index
    %2425 = memref.load %arg9[%c239] : memref<256xf32, #tpu.memory_space<smem>>
    %2426 = vector.broadcast %2425 : f32 to vector<1x128xf32>
    %2427 = arith.mulf %1357, %2426 : vector<1x128xf32>
    %2428 = arith.addf %2424, %2427 : vector<1x128xf32>
    %c14_402 = arith.constant 14 : index
    %2429 = memref.load %arg10[%c14_402] : memref<16xf32, #tpu.memory_space<smem>>
    %2430 = vector.broadcast %2429 : f32 to vector<1x128xf32>
    %2431 = arith.addf %2428, %2430 : vector<1x128xf32>
    %c14_403 = arith.constant 14 : index
    %2432 = memref.load %arg11[%c14_403] : memref<16xf32, #tpu.memory_space<smem>>
    %2433 = vector.broadcast %2432 : f32 to vector<1x128xf32>
    %2434 = arith.mulf %2431, %2433 : vector<1x128xf32>
    %c14_404 = arith.constant 14 : index
    %2435 = memref.load %arg12[%c14_404] : memref<16xf32, #tpu.memory_space<smem>>
    %2436 = vector.broadcast %2435 : f32 to vector<1x128xf32>
    %2437 = arith.addf %2434, %2436 : vector<1x128xf32>
    %c240 = arith.constant 240 : index
    %2438 = memref.load %arg9[%c240] : memref<256xf32, #tpu.memory_space<smem>>
    %2439 = vector.broadcast %2438 : f32 to vector<1x128xf32>
    %2440 = arith.mulf %1342, %2439 : vector<1x128xf32>
    %c241 = arith.constant 241 : index
    %2441 = memref.load %arg9[%c241] : memref<256xf32, #tpu.memory_space<smem>>
    %2442 = vector.broadcast %2441 : f32 to vector<1x128xf32>
    %2443 = arith.mulf %1343, %2442 : vector<1x128xf32>
    %2444 = arith.addf %2440, %2443 : vector<1x128xf32>
    %c242 = arith.constant 242 : index
    %2445 = memref.load %arg9[%c242] : memref<256xf32, #tpu.memory_space<smem>>
    %2446 = vector.broadcast %2445 : f32 to vector<1x128xf32>
    %2447 = arith.mulf %1344, %2446 : vector<1x128xf32>
    %2448 = arith.addf %2444, %2447 : vector<1x128xf32>
    %c243 = arith.constant 243 : index
    %2449 = memref.load %arg9[%c243] : memref<256xf32, #tpu.memory_space<smem>>
    %2450 = vector.broadcast %2449 : f32 to vector<1x128xf32>
    %2451 = arith.mulf %1345, %2450 : vector<1x128xf32>
    %2452 = arith.addf %2448, %2451 : vector<1x128xf32>
    %c244 = arith.constant 244 : index
    %2453 = memref.load %arg9[%c244] : memref<256xf32, #tpu.memory_space<smem>>
    %2454 = vector.broadcast %2453 : f32 to vector<1x128xf32>
    %2455 = arith.mulf %1346, %2454 : vector<1x128xf32>
    %2456 = arith.addf %2452, %2455 : vector<1x128xf32>
    %c245 = arith.constant 245 : index
    %2457 = memref.load %arg9[%c245] : memref<256xf32, #tpu.memory_space<smem>>
    %2458 = vector.broadcast %2457 : f32 to vector<1x128xf32>
    %2459 = arith.mulf %1347, %2458 : vector<1x128xf32>
    %2460 = arith.addf %2456, %2459 : vector<1x128xf32>
    %c246 = arith.constant 246 : index
    %2461 = memref.load %arg9[%c246] : memref<256xf32, #tpu.memory_space<smem>>
    %2462 = vector.broadcast %2461 : f32 to vector<1x128xf32>
    %2463 = arith.mulf %1348, %2462 : vector<1x128xf32>
    %2464 = arith.addf %2460, %2463 : vector<1x128xf32>
    %c247 = arith.constant 247 : index
    %2465 = memref.load %arg9[%c247] : memref<256xf32, #tpu.memory_space<smem>>
    %2466 = vector.broadcast %2465 : f32 to vector<1x128xf32>
    %2467 = arith.mulf %1349, %2466 : vector<1x128xf32>
    %2468 = arith.addf %2464, %2467 : vector<1x128xf32>
    %c248 = arith.constant 248 : index
    %2469 = memref.load %arg9[%c248] : memref<256xf32, #tpu.memory_space<smem>>
    %2470 = vector.broadcast %2469 : f32 to vector<1x128xf32>
    %2471 = arith.mulf %1350, %2470 : vector<1x128xf32>
    %2472 = arith.addf %2468, %2471 : vector<1x128xf32>
    %c249 = arith.constant 249 : index
    %2473 = memref.load %arg9[%c249] : memref<256xf32, #tpu.memory_space<smem>>
    %2474 = vector.broadcast %2473 : f32 to vector<1x128xf32>
    %2475 = arith.mulf %1351, %2474 : vector<1x128xf32>
    %2476 = arith.addf %2472, %2475 : vector<1x128xf32>
    %c250 = arith.constant 250 : index
    %2477 = memref.load %arg9[%c250] : memref<256xf32, #tpu.memory_space<smem>>
    %2478 = vector.broadcast %2477 : f32 to vector<1x128xf32>
    %2479 = arith.mulf %1352, %2478 : vector<1x128xf32>
    %2480 = arith.addf %2476, %2479 : vector<1x128xf32>
    %c251 = arith.constant 251 : index
    %2481 = memref.load %arg9[%c251] : memref<256xf32, #tpu.memory_space<smem>>
    %2482 = vector.broadcast %2481 : f32 to vector<1x128xf32>
    %2483 = arith.mulf %1353, %2482 : vector<1x128xf32>
    %2484 = arith.addf %2480, %2483 : vector<1x128xf32>
    %c252 = arith.constant 252 : index
    %2485 = memref.load %arg9[%c252] : memref<256xf32, #tpu.memory_space<smem>>
    %2486 = vector.broadcast %2485 : f32 to vector<1x128xf32>
    %2487 = arith.mulf %1354, %2486 : vector<1x128xf32>
    %2488 = arith.addf %2484, %2487 : vector<1x128xf32>
    %c253 = arith.constant 253 : index
    %2489 = memref.load %arg9[%c253] : memref<256xf32, #tpu.memory_space<smem>>
    %2490 = vector.broadcast %2489 : f32 to vector<1x128xf32>
    %2491 = arith.mulf %1355, %2490 : vector<1x128xf32>
    %2492 = arith.addf %2488, %2491 : vector<1x128xf32>
    %c254 = arith.constant 254 : index
    %2493 = memref.load %arg9[%c254] : memref<256xf32, #tpu.memory_space<smem>>
    %2494 = vector.broadcast %2493 : f32 to vector<1x128xf32>
    %2495 = arith.mulf %1356, %2494 : vector<1x128xf32>
    %2496 = arith.addf %2492, %2495 : vector<1x128xf32>
    %c255 = arith.constant 255 : index
    %2497 = memref.load %arg9[%c255] : memref<256xf32, #tpu.memory_space<smem>>
    %2498 = vector.broadcast %2497 : f32 to vector<1x128xf32>
    %2499 = arith.mulf %1357, %2498 : vector<1x128xf32>
    %2500 = arith.addf %2496, %2499 : vector<1x128xf32>
    %c15_405 = arith.constant 15 : index
    %2501 = memref.load %arg10[%c15_405] : memref<16xf32, #tpu.memory_space<smem>>
    %2502 = vector.broadcast %2501 : f32 to vector<1x128xf32>
    %2503 = arith.addf %2500, %2502 : vector<1x128xf32>
    %c15_406 = arith.constant 15 : index
    %2504 = memref.load %arg11[%c15_406] : memref<16xf32, #tpu.memory_space<smem>>
    %2505 = vector.broadcast %2504 : f32 to vector<1x128xf32>
    %2506 = arith.mulf %2503, %2505 : vector<1x128xf32>
    %c15_407 = arith.constant 15 : index
    %2507 = memref.load %arg12[%c15_407] : memref<16xf32, #tpu.memory_space<smem>>
    %2508 = vector.broadcast %2507 : f32 to vector<1x128xf32>
    %2509 = arith.addf %2506, %2508 : vector<1x128xf32>
    %2510 = tpu.concatenate %1429, %1501, %1573, %1645, %1717, %1789, %1861, %1933, %2005, %2077, %2149, %2221, %2293, %2365, %2437, %2509 in 0 : vector<1x128xf32>, vector<1x128xf32>, vector<1x128xf32>, vector<1x128xf32>, vector<1x128xf32>, vector<1x128xf32>, vector<1x128xf32>, vector<1x128xf32>, vector<1x128xf32>, vector<1x128xf32>, vector<1x128xf32>, vector<1x128xf32>, vector<1x128xf32>, vector<1x128xf32>, vector<1x128xf32>, vector<1x128xf32> -> vector<16x128xf32>
    %cst_408 = arith.constant 0.000000e+00 : f32
    %2511 = vector.broadcast %cst_408 : f32 to vector<16x128xf32>
    %2512 = arith.cmpf ogt, %2510, %2511 : vector<16x128xf32>
    %2513 = math.exp %2510 : vector<16x128xf32>
    %cst_409 = arith.constant 1.000000e+00 : f32
    %2514 = vector.broadcast %cst_409 : f32 to vector<16x128xf32>
    %2515 = arith.subf %2513, %2514 : vector<16x128xf32>
    %2516 = arith.select %2512, %2510, %2515 : vector<16x128xi1>, vector<16x128xf32>
    %cst_410 = arith.constant 0.000000e+00 : f32
    %2517 = vector.broadcast %cst_410 : f32 to vector<16x128xf32>
    %2518 = tpu.concatenate %2517, %2516, %2517 in 1 : vector<16x128xf32>, vector<16x128xf32>, vector<16x128xf32> -> vector<16x384xf32>
    %2519 = vector.extract_strided_slice %2518 {offsets = [0, 132], sizes = [16, 128], strides = [1, 1]} : vector<16x384xf32> to vector<16x128xf32>
    %2520 = arith.addf %2516, %2519 : vector<16x128xf32>
    %2521 = vector.extract_strided_slice %2518 {offsets = [0, 136], sizes = [16, 128], strides = [1, 1]} : vector<16x384xf32> to vector<16x128xf32>
    %2522 = arith.addf %2520, %2521 : vector<16x128xf32>
    %2523 = vector.extract_strided_slice %2518 {offsets = [0, 140], sizes = [16, 128], strides = [1, 1]} : vector<16x384xf32> to vector<16x128xf32>
    %2524 = arith.addf %2522, %2523 : vector<16x128xf32>
    %2525 = vector.extract_strided_slice %2518 {offsets = [0, 144], sizes = [16, 128], strides = [1, 1]} : vector<16x384xf32> to vector<16x128xf32>
    %2526 = arith.addf %2524, %2525 : vector<16x128xf32>
    %2527 = vector.extract_strided_slice %2518 {offsets = [0, 148], sizes = [16, 128], strides = [1, 1]} : vector<16x384xf32> to vector<16x128xf32>
    %2528 = arith.addf %2526, %2527 : vector<16x128xf32>
    %2529 = vector.extract_strided_slice %2518 {offsets = [0, 152], sizes = [16, 128], strides = [1, 1]} : vector<16x384xf32> to vector<16x128xf32>
    %2530 = arith.addf %2528, %2529 : vector<16x128xf32>
    %2531 = vector.extract_strided_slice %2518 {offsets = [0, 156], sizes = [16, 128], strides = [1, 1]} : vector<16x384xf32> to vector<16x128xf32>
    %2532 = arith.addf %2530, %2531 : vector<16x128xf32>
    %cst_411 = arith.constant 1.250000e-01 : f32
    %2533 = vector.broadcast %cst_411 : f32 to vector<16x128xf32>
    %2534 = arith.mulf %2532, %2533 : vector<16x128xf32>
    %2535 = tpu.iota {dimensions = array<i32: 1>} : vector<1x128xi32>
    %cst_412 = arith.constant 0.000000e+00 : f32
    %2536 = vector.broadcast %cst_412 : f32 to vector<1x128xf32>
    %c0_413 = arith.constant 0 : index
    %c0_414 = arith.constant 0 : index
    %c0_415 = arith.constant 0 : index
    %2537 = vector.load %arg13[%c0_413, %c0_414, %c0_415] : memref<4x16x128xf32, #tpu.memory_space<vmem>>, vector<1x16x128xf32>
    %2538 = vector.shape_cast %2537 : vector<1x16x128xf32> to vector<16x128xf32>
    %2539 = arith.mulf %2538, %2534 : vector<16x128xf32>
    %cst_416 = arith.constant dense<0.000000e+00> : vector<16xf32>
    %2540 = vector.multi_reduction <add>, %2539, %cst_416 [1] : vector<16x128xf32> to vector<16xf32>
    %2541 = vector.shape_cast %2540 : vector<16xf32> to vector<16x1xf32>
    %cst_417 = arith.constant dense<0.000000e+00> : vector<1xf32>
    %2542 = vector.multi_reduction <add>, %2541, %cst_417 [0] : vector<16x1xf32> to vector<1xf32>
    %2543 = vector.shape_cast %2542 : vector<1xf32> to vector<1x1xf32>
    %c0_418 = arith.constant 0 : index
    %2544 = memref.load %arg14[%c0_418] : memref<4xf32, #tpu.memory_space<smem>>
    %2545 = vector.broadcast %2544 : f32 to vector<1x1xf32>
    %2546 = arith.addf %2543, %2545 : vector<1x1xf32>
    %c0_i32 = arith.constant 0 : i32
    %2547 = vector.broadcast %c0_i32 : i32 to vector<1x128xi32>
    %2548 = arith.cmpi eq, %2535, %2547 : vector<1x128xi32>
    %cst_419 = arith.constant 1.000000e+00 : f32
    %cst_420 = arith.constant 0.000000e+00 : f32
    %2549 = vector.broadcast %cst_419 : f32 to vector<1x128xf32>
    %2550 = vector.broadcast %cst_420 : f32 to vector<1x128xf32>
    %2551 = arith.select %2548, %2549, %2550 : vector<1x128xi1>, vector<1x128xf32>
    %2552 = vector.broadcast %2546 : vector<1x1xf32> to vector<1x128xf32>
    %2553 = arith.mulf %2551, %2552 : vector<1x128xf32>
    %2554 = arith.addf %2536, %2553 : vector<1x128xf32>
    %c1_421 = arith.constant 1 : index
    %c0_422 = arith.constant 0 : index
    %c0_423 = arith.constant 0 : index
    %2555 = vector.load %arg13[%c1_421, %c0_422, %c0_423] : memref<4x16x128xf32, #tpu.memory_space<vmem>>, vector<1x16x128xf32>
    %2556 = vector.shape_cast %2555 : vector<1x16x128xf32> to vector<16x128xf32>
    %2557 = arith.mulf %2556, %2534 : vector<16x128xf32>
    %cst_424 = arith.constant dense<0.000000e+00> : vector<16xf32>
    %2558 = vector.multi_reduction <add>, %2557, %cst_424 [1] : vector<16x128xf32> to vector<16xf32>
    %2559 = vector.shape_cast %2558 : vector<16xf32> to vector<16x1xf32>
    %cst_425 = arith.constant dense<0.000000e+00> : vector<1xf32>
    %2560 = vector.multi_reduction <add>, %2559, %cst_425 [0] : vector<16x1xf32> to vector<1xf32>
    %2561 = vector.shape_cast %2560 : vector<1xf32> to vector<1x1xf32>
    %c1_426 = arith.constant 1 : index
    %2562 = memref.load %arg14[%c1_426] : memref<4xf32, #tpu.memory_space<smem>>
    %2563 = vector.broadcast %2562 : f32 to vector<1x1xf32>
    %2564 = arith.addf %2561, %2563 : vector<1x1xf32>
    %c1_i32 = arith.constant 1 : i32
    %2565 = vector.broadcast %c1_i32 : i32 to vector<1x128xi32>
    %2566 = arith.cmpi eq, %2535, %2565 : vector<1x128xi32>
    %cst_427 = arith.constant 1.000000e+00 : f32
    %cst_428 = arith.constant 0.000000e+00 : f32
    %2567 = vector.broadcast %cst_427 : f32 to vector<1x128xf32>
    %2568 = vector.broadcast %cst_428 : f32 to vector<1x128xf32>
    %2569 = arith.select %2566, %2567, %2568 : vector<1x128xi1>, vector<1x128xf32>
    %2570 = vector.broadcast %2564 : vector<1x1xf32> to vector<1x128xf32>
    %2571 = arith.mulf %2569, %2570 : vector<1x128xf32>
    %2572 = arith.addf %2554, %2571 : vector<1x128xf32>
    %c2_429 = arith.constant 2 : index
    %c0_430 = arith.constant 0 : index
    %c0_431 = arith.constant 0 : index
    %2573 = vector.load %arg13[%c2_429, %c0_430, %c0_431] : memref<4x16x128xf32, #tpu.memory_space<vmem>>, vector<1x16x128xf32>
    %2574 = vector.shape_cast %2573 : vector<1x16x128xf32> to vector<16x128xf32>
    %2575 = arith.mulf %2574, %2534 : vector<16x128xf32>
    %cst_432 = arith.constant dense<0.000000e+00> : vector<16xf32>
    %2576 = vector.multi_reduction <add>, %2575, %cst_432 [1] : vector<16x128xf32> to vector<16xf32>
    %2577 = vector.shape_cast %2576 : vector<16xf32> to vector<16x1xf32>
    %cst_433 = arith.constant dense<0.000000e+00> : vector<1xf32>
    %2578 = vector.multi_reduction <add>, %2577, %cst_433 [0] : vector<16x1xf32> to vector<1xf32>
    %2579 = vector.shape_cast %2578 : vector<1xf32> to vector<1x1xf32>
    %c2_434 = arith.constant 2 : index
    %2580 = memref.load %arg14[%c2_434] : memref<4xf32, #tpu.memory_space<smem>>
    %2581 = vector.broadcast %2580 : f32 to vector<1x1xf32>
    %2582 = arith.addf %2579, %2581 : vector<1x1xf32>
    %c2_i32 = arith.constant 2 : i32
    %2583 = vector.broadcast %c2_i32 : i32 to vector<1x128xi32>
    %2584 = arith.cmpi eq, %2535, %2583 : vector<1x128xi32>
    %cst_435 = arith.constant 1.000000e+00 : f32
    %cst_436 = arith.constant 0.000000e+00 : f32
    %2585 = vector.broadcast %cst_435 : f32 to vector<1x128xf32>
    %2586 = vector.broadcast %cst_436 : f32 to vector<1x128xf32>
    %2587 = arith.select %2584, %2585, %2586 : vector<1x128xi1>, vector<1x128xf32>
    %2588 = vector.broadcast %2582 : vector<1x1xf32> to vector<1x128xf32>
    %2589 = arith.mulf %2587, %2588 : vector<1x128xf32>
    %2590 = arith.addf %2572, %2589 : vector<1x128xf32>
    %c3_437 = arith.constant 3 : index
    %c0_438 = arith.constant 0 : index
    %c0_439 = arith.constant 0 : index
    %2591 = vector.load %arg13[%c3_437, %c0_438, %c0_439] : memref<4x16x128xf32, #tpu.memory_space<vmem>>, vector<1x16x128xf32>
    %2592 = vector.shape_cast %2591 : vector<1x16x128xf32> to vector<16x128xf32>
    %2593 = arith.mulf %2592, %2534 : vector<16x128xf32>
    %cst_440 = arith.constant dense<0.000000e+00> : vector<16xf32>
    %2594 = vector.multi_reduction <add>, %2593, %cst_440 [1] : vector<16x128xf32> to vector<16xf32>
    %2595 = vector.shape_cast %2594 : vector<16xf32> to vector<16x1xf32>
    %cst_441 = arith.constant dense<0.000000e+00> : vector<1xf32>
    %2596 = vector.multi_reduction <add>, %2595, %cst_441 [0] : vector<16x1xf32> to vector<1xf32>
    %2597 = vector.shape_cast %2596 : vector<1xf32> to vector<1x1xf32>
    %c3_442 = arith.constant 3 : index
    %2598 = memref.load %arg14[%c3_442] : memref<4xf32, #tpu.memory_space<smem>>
    %2599 = vector.broadcast %2598 : f32 to vector<1x1xf32>
    %2600 = arith.addf %2597, %2599 : vector<1x1xf32>
    %c3_i32 = arith.constant 3 : i32
    %2601 = vector.broadcast %c3_i32 : i32 to vector<1x128xi32>
    %2602 = arith.cmpi eq, %2535, %2601 : vector<1x128xi32>
    %cst_443 = arith.constant 1.000000e+00 : f32
    %cst_444 = arith.constant 0.000000e+00 : f32
    %2603 = vector.broadcast %cst_443 : f32 to vector<1x128xf32>
    %2604 = vector.broadcast %cst_444 : f32 to vector<1x128xf32>
    %2605 = arith.select %2602, %2603, %2604 : vector<1x128xi1>, vector<1x128xf32>
    %2606 = vector.broadcast %2600 : vector<1x1xf32> to vector<1x128xf32>
    %2607 = arith.mulf %2605, %2606 : vector<1x128xf32>
    %2608 = arith.addf %2590, %2607 : vector<1x128xf32>
    %c0_445 = arith.constant 0 : index
    %c0_446 = arith.constant 0 : index
    %c0_447 = arith.constant 0 : index
    %2609 = vector.load %arg15[%c0_445, %c0_446, %c0_447] : memref<1x1x128xf32, #tpu.memory_space<vmem>>, vector<1x1x128xf32>
    %2610 = vector.shape_cast %2609 : vector<1x1x128xf32> to vector<1x128xf32>
    %2611 = vector.shape_cast %2608 : vector<1x128xf32> to vector<1x1x128xf32>
    tpu.vector_store %arg15[%c0_445, %c0_446, %c0_447], %2611 {strides = array<i32>} : memref<1x1x128xf32, #tpu.memory_space<vmem>>, vector<1x1x128xf32>,
    return
  }
  func.func @transform_0(%arg0: i32) -> (i32, i32, i32) {
    %c0_i32 = arith.constant 0 : i32
    %c0_i32_0 = arith.constant 0 : i32
    %c0_i32_1 = arith.constant 0 : i32
    return %arg0, %c0_i32, %c0_i32_0 : i32, i32, i32
  }
  func.func @transform_1(%arg0: i32) -> i32 {
    %c0_i32 = arith.constant 0 : i32
    %c0_i32_0 = arith.constant 0 : i32
    return %c0_i32 : i32
  }
  func.func @transform_2(%arg0: i32) -> i32 {
    %c0_i32 = arith.constant 0 : i32
    %c0_i32_0 = arith.constant 0 : i32
    return %c0_i32 : i32
  }
  func.func @transform_3(%arg0: i32) -> i32 {
    %c0_i32 = arith.constant 0 : i32
    %c0_i32_0 = arith.constant 0 : i32
    return %c0_i32 : i32
  }
  func.func @transform_4(%arg0: i32) -> i32 {
    %c0_i32 = arith.constant 0 : i32
    %c0_i32_0 = arith.constant 0 : i32
    return %c0_i32 : i32
  }
  func.func @transform_5(%arg0: i32) -> i32 {
    %c0_i32 = arith.constant 0 : i32
    %c0_i32_0 = arith.constant 0 : i32
    return %c0_i32 : i32
  }
  func.func @transform_6(%arg0: i32) -> i32 {
    %c0_i32 = arith.constant 0 : i32
    %c0_i32_0 = arith.constant 0 : i32
    return %c0_i32 : i32
  }
  func.func @transform_7(%arg0: i32) -> (i32, i32, i32) {
    %c0_i32 = arith.constant 0 : i32
    %c0_i32_0 = arith.constant 0 : i32
    %c0_i32_1 = arith.constant 0 : i32
    %c0_i32_2 = arith.constant 0 : i32
    return %c0_i32, %c0_i32_0, %c0_i32_1 : i32, i32, i32
  }
  func.func @transform_8(%arg0: i32) -> i32 {
    %c0_i32 = arith.constant 0 : i32
    %c0_i32_0 = arith.constant 0 : i32
    return %c0_i32 : i32
  }
  func.func @transform_9(%arg0: i32) -> i32 {
    %c0_i32 = arith.constant 0 : i32
    %c0_i32_0 = arith.constant 0 : i32
    return %c0_i32 : i32
  }
  func.func @transform_10(%arg0: i32) -> i32 {
    %c0_i32 = arith.constant 0 : i32
    %c0_i32_0 = arith.constant 0 : i32
    return %c0_i32 : i32
  }
  func.func @transform_11(%arg0: i32) -> i32 {
    %c0_i32 = arith.constant 0 : i32
    %c0_i32_0 = arith.constant 0 : i32
    return %c0_i32 : i32
  }
  func.func @transform_12(%arg0: i32) -> (i32, i32, i32) {
    %c0_i32 = arith.constant 0 : i32
    %c0_i32_0 = arith.constant 0 : i32
    %c0_i32_1 = arith.constant 0 : i32
    %c0_i32_2 = arith.constant 0 : i32
    return %c0_i32, %c0_i32_0, %c0_i32_1 : i32, i32, i32
  }
  func.func @transform_13(%arg0: i32) -> i32 {
    %c0_i32 = arith.constant 0 : i32
    %c0_i32_0 = arith.constant 0 : i32
    return %c0_i32 : i32
  }
  func.func @transform_14(%arg0: i32) -> (i32, i32, i32) {
    %c0_i32 = arith.constant 0 : i32
    %c0_i32_0 = arith.constant 0 : i32
    %c0_i32_1 = arith.constant 0 : i32
    return %arg0, %c0_i32, %c0_i32_0 : i32, i32, i32
  }
}

</mosaic_0001>

<llo_original>
// kernel: tpu_custom_call.1
$region0: #{tpu_custom_call.1}
  #allocation0 [shape = 'u32[]', space=smem, size = 0x4, offset = 0x4, fixed_abs, tag = 'smem constant byte address 0x4 - core index']
  #allocation1 [shape = 'u32[144,128]{1,0:T(1,128)}', space=vmem, size = 0x12000, scoped, tag = 'internal scratch']
  %s0 = inlined_call_operand.vmem [shape: f32[2,8,128], index: 0, kind: input, shape index: {}]
  %s1 = inlined_call_operand.vmem [shape: f32[128], index: 1, kind: input, shape index: {}]
  %s2 = inlined_call_operand.vmem [shape: f32[8], index: 2, kind: input, shape index: {}]
  %s3 = inlined_call_operand.vmem [shape: f32[8], index: 3, kind: input, shape index: {}]
  %s4 = inlined_call_operand.vmem [shape: f32[128], index: 4, kind: input, shape index: {}]
  %s5 = inlined_call_operand.vmem [shape: f32[16], index: 5, kind: input, shape index: {}]
  %s6 = inlined_call_operand.vmem [shape: f32[16], index: 6, kind: input, shape index: {}]
  %s7 = inlined_call_operand.vmem [shape: f32[16,16,1], index: 7, kind: input, shape index: {}]
  %s8 = inlined_call_operand.vmem [shape: f32[256], index: 8, kind: input, shape index: {}]
  %s9 = inlined_call_operand.vmem [shape: f32[16], index: 9, kind: input, shape index: {}]
  %s10 = inlined_call_operand.vmem [shape: f32[16], index: 10, kind: input, shape index: {}]
  %s11 = inlined_call_operand.vmem [shape: f32[16], index: 11, kind: input, shape index: {}]
  %s12 = inlined_call_operand.vmem [shape: f32[4,16,128], index: 12, kind: input, shape index: {}]
  %s13 = inlined_call_operand.vmem [shape: f32[4], index: 13, kind: input, shape index: {}]
  %s14 = inlined_call_operand.hbm [shape: f32[2,1,128], index: 14, kind: output, shape index: {}]
  %s15 = sld [smem:[#allocation0]]
  $region133: #{tpu_custom_call.1} parent=0
    _
  %s17 = ssub.s32 1, %s15
  %s18 = scalar_select 0, %s17, %s15
  $region1: #{tpu_custom_call.1} parent=0
    #allocation2 [shape = 'u8[512]{0}', space=smem, size = 0x200, scoped, tag = 'input window, operand 1, single buffered']
    #allocation3 [shape = 's32[2]{0}', space=sflag, size = 0x8, scoped, tag = 'scoped memory for tpu_custom_call.1']
    #allocation4 [shape = 's32[2]{0}', space=sflag, size = 0x8, scoped, tag = 'scoped memory for tpu_custom_call.1']
    #allocation5 [shape = 'u8[512]{0}', space=smem, size = 0x200, scoped, tag = 'input window, operand 2, single buffered']
    #allocation6 [shape = 's32[1]{0}', space=sflag, size = 0x4, scoped, tag = 'scoped memory for tpu_custom_call.1']
    #allocation7 [shape = 'u8[512]{0}', space=smem, size = 0x200, scoped, tag = 'input window, operand 3, single buffered']
    #allocation8 [shape = 'u8[512]{0}', space=smem, size = 0x200, scoped, tag = 'input window, operand 4, single buffered']
    #allocation9 [shape = 's32[1]{0}', space=sflag, size = 0x4, scoped, tag = 'scoped memory for tpu_custom_call.1']
    #allocation10 [shape = 'u8[512]{0}', space=smem, size = 0x200, scoped, tag = 'input window, operand 5, single buffered']
    #allocation11 [shape = 'u8[512]{0}', space=smem, size = 0x200, scoped, tag = 'input window, operand 6, single buffered']
    #allocation12 [shape = 's32[1]{0}', space=sflag, size = 0x4, scoped, tag = 'scoped memory for tpu_custom_call.1']
    #allocation13 [shape = 'u8[1024]{0}', space=smem, size = 0x400, scoped, tag = 'input window, operand 8, single buffered']
    #allocation14 [shape = 'u8[512]{0}', space=smem, size = 0x200, scoped, tag = 'input window, operand 9, single buffered']
    #allocation15 [shape = 's32[1]{0}', space=sflag, size = 0x4, scoped, tag = 'scoped memory for tpu_custom_call.1']
    #allocation16 [shape = 'u8[512]{0}', space=smem, size = 0x200, scoped, tag = 'input window, operand 10, single buffered']
    #allocation17 [shape = 'u8[512]{0}', space=smem, size = 0x200, scoped, tag = 'input window, operand 11, single buffered']
    #allocation18 [shape = 's32[1]{0}', space=sflag, size = 0x4, scoped, tag = 'scoped memory for tpu_custom_call.1']
    #allocation19 [shape = 'u8[512]{0}', space=smem, size = 0x200, scoped, tag = 'input window, operand 13, single buffered']
    #allocation20 [shape = 'u8[1024]{0}', space=vmem, size = 0x400, scoped, tag = 'output window, operand 0']
    %19 = vsyncpa [#allocation4], 0
    %20 = vsyncpa [#allocation6], 0
    %21 = vsyncpa [#allocation9], 0
    %22 = vsyncpa [#allocation12], 0
    %23 = vsyncpa [#allocation15], 0
    %24 = vsyncpa [#allocation18], 0
    %25 = vsyncpa [#allocation3], 0
    %s26 = scalar_lea.sflag [#allocation3], 1
    %27 = vsyncpa %s26, 0
    loop: start=0, step=1, limit=4
    $region2: #{tpu_custom_call.1} parent=1 // loop_pre_header
      _
    $region3: #{tpu_custom_call.1} parent=1 // loop_header
      %s29 = sphi 0, %s33
      %p30 = scmp.ge.s32.totalorder %s29, 4
      %s39 = sphi 0, %s41
      %s42 = sphi 0, %s39
      %s43 = sphi 0, %s42
      %s59 = sphi 0, %s43
      %s63 = sphi 0, %s63
      %s65 = sphi 0, %s63
      %s66 = sphi 0, %s65
      %s80 = sphi 0, %s66
      %s84 = sphi 0, %s84
      %s86 = sphi 0, %s84
      %s87 = sphi 0, %s86
      %s101 = sphi 0, %s87
      %s105 = sphi 0, %s105
      %s107 = sphi 0, %s105
      %s108 = sphi 0, %s107
      %s122 = sphi 0, %s108
      %s126 = sphi 0, %s126
      %s128 = sphi 0, %s126
      %s129 = sphi 0, %s128
      %s143 = sphi 0, %s129
      %s147 = sphi 0, %s147
      %s149 = sphi 0, %s147
      %s150 = sphi 0, %s149
      %s164 = sphi 0, %s150
      %s168 = sphi 0, %s168
      %s170 = sphi 0, %s168
      %s171 = sphi 0, %s170
      %s185 = sphi 0, %s171
      %s189 = sphi 0, %s189
      %s191 = sphi 0, %s189
      %s192 = sphi 0, %s191
      %s206 = sphi 0, %s192
      %s210 = sphi 0, %s210
      %s212 = sphi 0, %s210
      %s213 = sphi 0, %s212
      %s227 = sphi 0, %s213
      %s231 = sphi 0, %s231
      %s233 = sphi 0, %s231
      %s234 = sphi 0, %s233
      %s248 = sphi 0, %s234
      %s252 = sphi 0, %s252
      %s254 = sphi 0, %s252
      %s255 = sphi 0, %s254
      %s269 = sphi 0, %s255
      %s273 = sphi 0, %s273
      %s275 = sphi 0, %s273
      %s276 = sphi 0, %s275
      %s290 = sphi 0, %s276
      %s294 = sphi 0, %s294
      %s296 = sphi 0, %s294
      %s297 = sphi 0, %s296
      %s311 = sphi 0, %s297
      %s315 = sphi 0, %s315
      %s317 = sphi 0, %s315
      %s318 = sphi 0, %s317
      %s332 = sphi 0, %s318
      %s338 = sphi 0, %s340
      %s341 = sphi 0, %s338
      %s342 = sphi 0, %s341
      %s358 = sphi 0, %s342
    $region4: #{tpu_custom_call.1} parent=1 // loop_header_branch
      %32 = sbr.rel (%p30) target = $region8
    $region5: #{tpu_custom_call.1} parent=1 // loop_body
      %s34 = ssub.s32 %s29, 1
      %s35 = ssub.s32 %s29, 2
      %s36 = sadd.s32 %s29, 1
      %s37 = ssub.s32 %s29, %s36
      %p38 = scmp.eq.s32.totalorder %s37, 0
      %s40 = sadd.s32 %s39, 1
      %s41 = scalar_select %p38, %s39, %s40
      %p44 = pneg %p38
      %p45 = scmp.eq.s32.totalorder %s29, 1
      %p46 = por %p44, %p45
      %p47 = scmp.ne.s32.totalorder %s39, %s42
      %p48 = scmp.eq.s32.totalorder %s29, 0
      %p49 = por %p47, %p48
      %p50 = scmp.ne.s32.totalorder %s39, %s42
      %p51 = scmp.eq.s32.totalorder %s34, 1
      %p52 = por %p50, %p51
      %p53 = scmp.ne.s32.totalorder %s42, %s43
      %p54 = scmp.eq.s32.totalorder %s34, 0
      %p55 = por %p53, %p54
      %p56 = scmp.ne.s32.totalorder %s42, %s43
      %p57 = scmp.eq.s32.totalorder %s35, 1
      %p58 = por %p56, %p57
      %p60 = scmp.ne.s32.totalorder %s43, %s59
      %p61 = scmp.eq.s32.totalorder %s35, 0
      %p62 = por %p60, %p61
      %s64 = sadd.s32 %s63, 1
      %p67 = scmp.eq.s32.totalorder %s29, 1
      %p68 = scmp.ne.s32.totalorder %s63, %s65
      %p69 = scmp.eq.s32.totalorder %s29, 0
      %p70 = por %p68, %p69
      %p71 = scmp.ne.s32.totalorder %s63, %s65
      %p72 = scmp.eq.s32.totalorder %s34, 1
      %p73 = por %p71, %p72
      %p74 = scmp.ne.s32.totalorder %s65, %s66
      %p75 = scmp.eq.s32.totalorder %s34, 0
      %p76 = por %p74, %p75
      %p77 = scmp.ne.s32.totalorder %s65, %s66
      %p78 = scmp.eq.s32.totalorder %s35, 1
      %p79 = por %p77, %p78
      %p81 = scmp.ne.s32.totalorder %s66, %s80
      %p82 = scmp.eq.s32.totalorder %s35, 0
      %p83 = por %p81, %p82
      %s85 = sadd.s32 %s84, 1
      %p88 = scmp.eq.s32.totalorder %s29, 1
      %p89 = scmp.ne.s32.totalorder %s84, %s86
      %p90 = scmp.eq.s32.totalorder %s29, 0
      %p91 = por %p89, %p90
      %p92 = scmp.ne.s32.totalorder %s84, %s86
      %p93 = scmp.eq.s32.totalorder %s34, 1
      %p94 = por %p92, %p93
      %p95 = scmp.ne.s32.totalorder %s86, %s87
      %p96 = scmp.eq.s32.totalorder %s34, 0
      %p97 = por %p95, %p96
      %p98 = scmp.ne.s32.totalorder %s86, %s87
      %p99 = scmp.eq.s32.totalorder %s35, 1
      %p100 = por %p98, %p99
      %p102 = scmp.ne.s32.totalorder %s87, %s101
      %p103 = scmp.eq.s32.totalorder %s35, 0
      %p104 = por %p102, %p103
      %s106 = sadd.s32 %s105, 1
      %p109 = scmp.eq.s32.totalorder %s29, 1
      %p110 = scmp.ne.s32.totalorder %s105, %s107
      %p111 = scmp.eq.s32.totalorder %s29, 0
      %p112 = por %p110, %p111
      %p113 = scmp.ne.s32.totalorder %s105, %s107
      %p114 = scmp.eq.s32.totalorder %s34, 1
      %p115 = por %p113, %p114
      %p116 = scmp.ne.s32.totalorder %s107, %s108
      %p117 = scmp.eq.s32.totalorder %s34, 0
      %p118 = por %p116, %p117
      %p119 = scmp.ne.s32.totalorder %s107, %s108
      %p120 = scmp.eq.s32.totalorder %s35, 1
      %p121 = por %p119, %p120
      %p123 = scmp.ne.s32.totalorder %s108, %s122
      %p124 = scmp.eq.s32.totalorder %s35, 0
      %p125 = por %p123, %p124
      %s127 = sadd.s32 %s126, 1
      %p130 = scmp.eq.s32.totalorder %s29, 1
      %p131 = scmp.ne.s32.totalorder %s126, %s128
      %p132 = scmp.eq.s32.totalorder %s29, 0
      %p133 = por %p131, %p132
      %p134 = scmp.ne.s32.totalorder %s126, %s128
      %p135 = scmp.eq.s32.totalorder %s34, 1
      %p136 = por %p134, %p135
      %p137 = scmp.ne.s32.totalorder %s128, %s129
      %p138 = scmp.eq.s32.totalorder %s34, 0
      %p139 = por %p137, %p138
      %p140 = scmp.ne.s32.totalorder %s128, %s129
      %p141 = scmp.eq.s32.totalorder %s35, 1
      %p142 = por %p140, %p141
      %p144 = scmp.ne.s32.totalorder %s129, %s143
      %p145 = scmp.eq.s32.totalorder %s35, 0
      %p146 = por %p144, %p145
      %s148 = sadd.s32 %s147, 1
      %p151 = scmp.eq.s32.totalorder %s29, 1
      %p152 = scmp.ne.s32.totalorder %s147, %s149
      %p153 = scmp.eq.s32.totalorder %s29, 0
      %p154 = por %p152, %p153
      %p155 = scmp.ne.s32.totalorder %s147, %s149
      %p156 = scmp.eq.s32.totalorder %s34, 1
      %p157 = por %p155, %p156
      %p158 = scmp.ne.s32.totalorder %s149, %s150
      %p159 = scmp.eq.s32.totalorder %s34, 0
      %p160 = por %p158, %p159
      %p161 = scmp.ne.s32.totalorder %s149, %s150
      %p162 = scmp.eq.s32.totalorder %s35, 1
      %p163 = por %p161, %p162
      %p165 = scmp.ne.s32.totalorder %s150, %s164
      %p166 = scmp.eq.s32.totalorder %s35, 0
      %p167 = por %p165, %p166
      %s169 = sadd.s32 %s168, 1
      %p172 = scmp.eq.s32.totalorder %s29, 1
      %p173 = scmp.ne.s32.totalorder %s168, %s170
      %p174 = scmp.eq.s32.totalorder %s29, 0
      %p175 = por %p173, %p174
      %p176 = scmp.ne.s32.totalorder %s168, %s170
      %p177 = scmp.eq.s32.totalorder %s34, 1
      %p178 = por %p176, %p177
      %p179 = scmp.ne.s32.totalorder %s170, %s171
      %p180 = scmp.eq.s32.totalorder %s34, 0
      %p181 = por %p179, %p180
      %p182 = scmp.ne.s32.totalorder %s170, %s171
      %p183 = scmp.eq.s32.totalorder %s35, 1
      %p184 = por %p182, %p183
      %p186 = scmp.ne.s32.totalorder %s171, %s185
      %p187 = scmp.eq.s32.totalorder %s35, 0
      %p188 = por %p186, %p187
      %s190 = sadd.s32 %s189, 1
      %p193 = scmp.eq.s32.totalorder %s29, 1
      %p194 = scmp.ne.s32.totalorder %s189, %s191
      %p195 = scmp.eq.s32.totalorder %s29, 0
      %p196 = por %p194, %p195
      %p197 = scmp.ne.s32.totalorder %s189, %s191
      %p198 = scmp.eq.s32.totalorder %s34, 1
      %p199 = por %p197, %p198
      %p200 = scmp.ne.s32.totalorder %s191, %s192
      %p201 = scmp.eq.s32.totalorder %s34, 0
      %p202 = por %p200, %p201
      %p203 = scmp.ne.s32.totalorder %s191, %s192
      %p204 = scmp.eq.s32.totalorder %s35, 1
      %p205 = por %p203, %p204
      %p207 = scmp.ne.s32.totalorder %s192, %s206
      %p208 = scmp.eq.s32.totalorder %s35, 0
      %p209 = por %p207, %p208
      %s211 = sadd.s32 %s210, 1
      %p214 = scmp.eq.s32.totalorder %s29, 1
      %p215 = scmp.ne.s32.totalorder %s210, %s212
      %p216 = scmp.eq.s32.totalorder %s29, 0
      %p217 = por %p215, %p216
      %p218 = scmp.ne.s32.totalorder %s210, %s212
      %p219 = scmp.eq.s32.totalorder %s34, 1
      %p220 = por %p218, %p219
      %p221 = scmp.ne.s32.totalorder %s212, %s213
      %p222 = scmp.eq.s32.totalorder %s34, 0
      %p223 = por %p221, %p222
      %p224 = scmp.ne.s32.totalorder %s212, %s213
      %p225 = scmp.eq.s32.totalorder %s35, 1
      %p226 = por %p224, %p225
      %p228 = scmp.ne.s32.totalorder %s213, %s227
      %p229 = scmp.eq.s32.totalorder %s35, 0
      %p230 = por %p228, %p229
      %s232 = sadd.s32 %s231, 1
      %p235 = scmp.eq.s32.totalorder %s29, 1
      %p236 = scmp.ne.s32.totalorder %s231, %s233
      %p237 = scmp.eq.s32.totalorder %s29, 0
      %p238 = por %p236, %p237
      %p239 = scmp.ne.s32.totalorder %s231, %s233
      %p240 = scmp.eq.s32.totalorder %s34, 1
      %p241 = por %p239, %p240
      %p242 = scmp.ne.s32.totalorder %s233, %s234
      %p243 = scmp.eq.s32.totalorder %s34, 0
      %p244 = por %p242, %p243
      %p245 = scmp.ne.s32.totalorder %s233, %s234
      %p246 = scmp.eq.s32.totalorder %s35, 1
      %p247 = por %p245, %p246
      %p249 = scmp.ne.s32.totalorder %s234, %s248
      %p250 = scmp.eq.s32.totalorder %s35, 0
      %p251 = por %p249, %p250
      %s253 = sadd.s32 %s252, 1
      %p256 = scmp.eq.s32.totalorder %s29, 1
      %p257 = scmp.ne.s32.totalorder %s252, %s254
      %p258 = scmp.eq.s32.totalorder %s29, 0
      %p259 = por %p257, %p258
      %p260 = scmp.ne.s32.totalorder %s252, %s254
      %p261 = scmp.eq.s32.totalorder %s34, 1
      %p262 = por %p260, %p261
      %p263 = scmp.ne.s32.totalorder %s254, %s255
      %p264 = scmp.eq.s32.totalorder %s34, 0
      %p265 = por %p263, %p264
      %p266 = scmp.ne.s32.totalorder %s254, %s255
      %p267 = scmp.eq.s32.totalorder %s35, 1
      %p268 = por %p266, %p267
      %p270 = scmp.ne.s32.totalorder %s255, %s269
      %p271 = scmp.eq.s32.totalorder %s35, 0
      %p272 = por %p270, %p271
      %s274 = sadd.s32 %s273, 1
      %p277 = scmp.eq.s32.totalorder %s29, 1
      %p278 = scmp.ne.s32.totalorder %s273, %s275
      %p279 = scmp.eq.s32.totalorder %s29, 0
      %p280 = por %p278, %p279
      %p281 = scmp.ne.s32.totalorder %s273, %s275
      %p282 = scmp.eq.s32.totalorder %s34, 1
      %p283 = por %p281, %p282
      %p284 = scmp.ne.s32.totalorder %s275, %s276
      %p285 = scmp.eq.s32.totalorder %s34, 0
      %p286 = por %p284, %p285
      %p287 = scmp.ne.s32.totalorder %s275, %s276
      %p288 = scmp.eq.s32.totalorder %s35, 1
      %p289 = por %p287, %p288
      %p291 = scmp.ne.s32.totalorder %s276, %s290
      %p292 = scmp.eq.s32.totalorder %s35, 0
      %p293 = por %p291, %p292
      %s295 = sadd.s32 %s294, 1
      %p298 = scmp.eq.s32.totalorder %s29, 1
      %p299 = scmp.ne.s32.totalorder %s294, %s296
      %p300 = scmp.eq.s32.totalorder %s29, 0
      %p301 = por %p299, %p300
      %p302 = scmp.ne.s32.totalorder %s294, %s296
      %p303 = scmp.eq.s32.totalorder %s34, 1
      %p304 = por %p302, %p303
      %p305 = scmp.ne.s32.totalorder %s296, %s297
      %p306 = scmp.eq.s32.totalorder %s34, 0
      %p307 = por %p305, %p306
      %p308 = scmp.ne.s32.totalorder %s296, %s297
      %p309 = scmp.eq.s32.totalorder %s35, 1
      %p310 = por %p308, %p309
      %p312 = scmp.ne.s32.totalorder %s297, %s311
      %p313 = scmp.eq.s32.totalorder %s35, 0
      %p314 = por %p312, %p313
      %s316 = sadd.s32 %s315, 1
      %p319 = scmp.eq.s32.totalorder %s29, 1
      %p320 = scmp.ne.s32.totalorder %s315, %s317
      %p321 = scmp.eq.s32.totalorder %s29, 0
      %p322 = por %p320, %p321
      %p323 = scmp.ne.s32.totalorder %s315, %s317
      %p324 = scmp.eq.s32.totalorder %s34, 1
      %p325 = por %p323, %p324
      %p326 = scmp.ne.s32.totalorder %s317, %s318
      %p327 = scmp.eq.s32.totalorder %s34, 0
      %p328 = por %p326, %p327
      %p329 = scmp.ne.s32.totalorder %s317, %s318
      %p330 = scmp.eq.s32.totalorder %s35, 1
      %p331 = por %p329, %p330
      %p333 = scmp.ne.s32.totalorder %s318, %s332
      %p334 = scmp.eq.s32.totalorder %s35, 0
      %p335 = por %p333, %p334
      %s336 = ssub.s32 %s29, %s36
      %p337 = scmp.eq.s32.totalorder %s336, 0
      %s339 = sadd.s32 %s338, 1
      %s340 = scalar_select %p337, %s338, %s339
      %p343 = pneg %p337
      %p344 = scmp.eq.s32.totalorder %s29, 1
      %p345 = por %p343, %p344
      %p346 = scmp.ne.s32.totalorder %s338, %s341
      %p347 = scmp.eq.s32.totalorder %s29, 0
      %p348 = por %p346, %p347
      %p349 = scmp.ne.s32.totalorder %s338, %s341
      %p350 = scmp.eq.s32.totalorder %s34, 1
      %p351 = por %p349, %p350
      %p352 = scmp.ne.s32.totalorder %s341, %s342
      %p353 = scmp.eq.s32.totalorder %s34, 0
      %p354 = por %p352, %p353
      %p355 = scmp.ne.s32.totalorder %s341, %s342
      %p356 = scmp.eq.s32.totalorder %s35, 1
      %p357 = por %p355, %p356
      %p359 = scmp.ne.s32.totalorder %s342, %s358
      %p360 = scmp.eq.s32.totalorder %s35, 0
      %p361 = por %p359, %p360
      %p362 = scmp.le.s32.totalorder 1, %s29
      %p363 = scmp.lt.s32.totalorder %s29, 3
      %p364 = pnand %p362, %p363
      %p365 = pneg %p364
      // Predicated region
      $region9: #{tpu_custom_call.1} parent=5 // pred_check
        _
      $region10: #{tpu_custom_call.1} parent=5 // pred_check_branch
        %367 = sbr.rel (%p364) target = $region12
      $region11: #{tpu_custom_call.1} parent=5 // pred_region
        %s368 = ssub.s32 %s29, 1
        // Predicated region
        $region13: #{tpu_custom_call.1} parent=11 // pred_check
          %p369 = pneg %p76
        $region14: #{tpu_custom_call.1} parent=11 // pred_check_branch
          %371 = sbr.rel (%p369) target = $region16
        $region15: #{tpu_custom_call.1} parent=11 // pred_region
          %s373 = ssub.s32 16, 16
          %374 = vsyncadd [#allocation4], %s373
          %s376 = sshll.u32 %s1, 4
          %s377 = int_to_ptr.vmem [resolvable:$true] %s376
          %379 = dma.vmem_to_smem %s377, 16, [#allocation2], [#allocation4]
        $region16: #{tpu_custom_call.1} parent=11 // pred_fallthru
          _
        // Predicated region
        $region17: #{tpu_custom_call.1} parent=11 // pred_check
          %p380 = pneg %p97
        $region18: #{tpu_custom_call.1} parent=11 // pred_check_branch
          %382 = sbr.rel (%p380) target = $region20
        $region19: #{tpu_custom_call.1} parent=11 // pred_region
          %s384 = ssub.s32 16, 16
          %385 = vsyncadd [#allocation6], %s384
          %s387 = sshll.u32 %s2, 4
          %s388 = int_to_ptr.vmem [resolvable:$true] %s387
          %390 = dma.vmem_to_smem %s388, 16, [#allocation5], [#allocation6]
        $region20: #{tpu_custom_call.1} parent=11 // pred_fallthru
          _
        // Predicated region
        $region21: #{tpu_custom_call.1} parent=11 // pred_check
          %p391 = pneg %p118
        $region22: #{tpu_custom_call.1} parent=11 // pred_check_branch
          %393 = sbr.rel (%p391) target = $region24
        $region23: #{tpu_custom_call.1} parent=11 // pred_region
          %s395 = ssub.s32 16, 16
          %396 = vsyncadd [#allocation6], %s395
          %s398 = sshll.u32 %s3, 4
          %s399 = int_to_ptr.vmem [resolvable:$true] %s398
          %401 = dma.vmem_to_smem %s399, 16, [#allocation7], [#allocation6]
        $region24: #{tpu_custom_call.1} parent=11 // pred_fallthru
          _
        // Predicated region
        $region25: #{tpu_custom_call.1} parent=11 // pred_check
          %p402 = pneg %p139
        $region26: #{tpu_custom_call.1} parent=11 // pred_check_branch
          %404 = sbr.rel (%p402) target = $region28
        $region27: #{tpu_custom_call.1} parent=11 // pred_region
          %s406 = ssub.s32 16, 16
          %407 = vsyncadd [#allocation9], %s406
          %s409 = sshll.u32 %s4, 4
          %s410 = int_to_ptr.vmem [resolvable:$true] %s409
          %412 = dma.vmem_to_smem %s410, 16, [#allocation8], [#allocation9]
        $region28: #{tpu_custom_call.1} parent=11 // pred_fallthru
          _
        // Predicated region
        $region29: #{tpu_custom_call.1} parent=11 // pred_check
          %p413 = pneg %p160
        $region30: #{tpu_custom_call.1} parent=11 // pred_check_branch
          %415 = sbr.rel (%p413) target = $region32
        $region31: #{tpu_custom_call.1} parent=11 // pred_region
          %s417 = ssub.s32 16, 16
          %418 = vsyncadd [#allocation9], %s417
          %s420 = sshll.u32 %s5, 4
          %s421 = int_to_ptr.vmem [resolvable:$true] %s420
          %423 = dma.vmem_to_smem %s421, 16, [#allocation10], [#allocation9]
        $region32: #{tpu_custom_call.1} parent=11 // pred_fallthru
          _
        // Predicated region
        $region33: #{tpu_custom_call.1} parent=11 // pred_check
          %p424 = pneg %p181
        $region34: #{tpu_custom_call.1} parent=11 // pred_check_branch
          %426 = sbr.rel (%p424) target = $region36
        $region35: #{tpu_custom_call.1} parent=11 // pred_region
          %s428 = ssub.s32 16, 16
          %429 = vsyncadd [#allocation12], %s428
          %s431 = sshll.u32 %s6, 4
          %s432 = int_to_ptr.vmem [resolvable:$true] %s431
          %434 = dma.vmem_to_smem %s432, 16, [#allocation11], [#allocation12]
        $region36: #{tpu_custom_call.1} parent=11 // pred_fallthru
          _
        // Predicated region
        $region37: #{tpu_custom_call.1} parent=11 // pred_check
          %p435 = pneg %p202
        $region38: #{tpu_custom_call.1} parent=11 // pred_check_branch
          %437 = sbr.rel (%p435) target = $region40
        $region39: #{tpu_custom_call.1} parent=11 // pred_region
          _
        $region40: #{tpu_custom_call.1} parent=11 // pred_fallthru
          _
        // Predicated region
        $region41: #{tpu_custom_call.1} parent=11 // pred_check
          %p438 = pneg %p223
        $region42: #{tpu_custom_call.1} parent=11 // pred_check_branch
          %440 = sbr.rel (%p438) target = $region44
        $region43: #{tpu_custom_call.1} parent=11 // pred_region
          %s442 = ssub.s32 32, 32
          %443 = vsyncadd [#allocation12], %s442
          %s445 = sshll.u32 %s8, 4
          %s446 = int_to_ptr.vmem [resolvable:$true] %s445
          %448 = dma.vmem_to_smem %s446, 32, [#allocation13], [#allocation12]
        $region44: #{tpu_custom_call.1} parent=11 // pred_fallthru
          _
        // Predicated region
        $region45: #{tpu_custom_call.1} parent=11 // pred_check
          %p449 = pneg %p244
        $region46: #{tpu_custom_call.1} parent=11 // pred_check_branch
          %451 = sbr.rel (%p449) target = $region48
        $region47: #{tpu_custom_call.1} parent=11 // pred_region
          %s453 = ssub.s32 16, 16
          %454 = vsyncadd [#allocation15], %s453
          %s456 = sshll.u32 %s9, 4
          %s457 = int_to_ptr.vmem [resolvable:$true] %s456
          %459 = dma.vmem_to_smem %s457, 16, [#allocation14], [#allocation15]
        $region48: #{tpu_custom_call.1} parent=11 // pred_fallthru
          _
        // Predicated region
        $region49: #{tpu_custom_call.1} parent=11 // pred_check
          %p460 = pneg %p265
        $region50: #{tpu_custom_call.1} parent=11 // pred_check_branch
          %462 = sbr.rel (%p460) target = $region52
        $region51: #{tpu_custom_call.1} parent=11 // pred_region
          %s464 = ssub.s32 16, 16
          %465 = vsyncadd [#allocation15], %s464
          %s467 = sshll.u32 %s10, 4
          %s468 = int_to_ptr.vmem [resolvable:$true] %s467
          %470 = dma.vmem_to_smem %s468, 16, [#allocation16], [#allocation15]
        $region52: #{tpu_custom_call.1} parent=11 // pred_fallthru
          _
        // Predicated region
        $region53: #{tpu_custom_call.1} parent=11 // pred_check
          %p471 = pneg %p286
        $region54: #{tpu_custom_call.1} parent=11 // pred_check_branch
          %473 = sbr.rel (%p471) target = $region56
        $region55: #{tpu_custom_call.1} parent=11 // pred_region
          %s475 = ssub.s32 16, 16
          %476 = vsyncadd [#allocation18], %s475
          %s478 = sshll.u32 %s11, 4
          %s479 = int_to_ptr.vmem [resolvable:$true] %s478
          %481 = dma.vmem_to_smem %s479, 16, [#allocation17], [#allocation18]
        $region56: #{tpu_custom_call.1} parent=11 // pred_fallthru
          _
        // Predicated region
        $region57: #{tpu_custom_call.1} parent=11 // pred_check
          %p482 = pneg %p307
        $region58: #{tpu_custom_call.1} parent=11 // pred_check_branch
          %484 = sbr.rel (%p482) target = $region60
        $region59: #{tpu_custom_call.1} parent=11 // pred_region
          _
        $region60: #{tpu_custom_call.1} parent=11 // pred_fallthru
          _
        // Predicated region
        $region61: #{tpu_custom_call.1} parent=11 // pred_check
          %p485 = pneg %p328
        $region62: #{tpu_custom_call.1} parent=11 // pred_check_branch
          %487 = sbr.rel (%p485) target = $region64
        $region63: #{tpu_custom_call.1} parent=11 // pred_region
          %s489 = ssub.s32 16, 16
          %490 = vsyncadd [#allocation18], %s489
          %s492 = sshll.u32 %s13, 4
          %s493 = int_to_ptr.vmem [resolvable:$true] %s492
          %495 = dma.vmem_to_smem %s493, 16, [#allocation19], [#allocation18]
        $region64: #{tpu_custom_call.1} parent=11 // pred_fallthru
          _
      $region12: #{tpu_custom_call.1} parent=5 // pred_fallthru
        _
      %p496 = scmp.lt.s32.totalorder %s29, 2
      // Predicated region
      $region65: #{tpu_custom_call.1} parent=5 // pred_check
        %p497 = pneg %p496
      $region66: #{tpu_custom_call.1} parent=5 // pred_check_branch
        %499 = sbr.rel (%p497) target = $region68
      $region67: #{tpu_custom_call.1} parent=5 // pred_region
        // Predicated region
        $region69: #{tpu_custom_call.1} parent=67 // pred_check
          %p500 = pneg %p49
        $region70: #{tpu_custom_call.1} parent=67 // pred_check_branch
          %502 = sbr.rel (%p500) target = $region72
        $region71: #{tpu_custom_call.1} parent=67 // pred_region
          %p503 = scmp.lt.s32.totalorder %s29, 1
          %s504 = scalar_select %p503, %s29, 1
          %s505 = smul.addr %s504, 8
          %s506 = scalar_lea.vmem %s0, %s505
        $region72: #{tpu_custom_call.1} parent=67 // pred_fallthru
          _
      $region68: #{tpu_custom_call.1} parent=5 // pred_fallthru
        _
      %p507 = scmp.le.s32.totalorder 1, %s29
      %p508 = scmp.lt.s32.totalorder %s29, 3
      %p509 = pnand %p507, %p508
      %p510 = pneg %p509
      // Predicated region
      $region73: #{tpu_custom_call.1} parent=5 // pred_check
        _
      $region74: #{tpu_custom_call.1} parent=5 // pred_check_branch
        %512 = sbr.rel (%p509) target = $region76
      $region75: #{tpu_custom_call.1} parent=5 // pred_region
        %s513 = ssub.s32 %s29, 1
        // Predicated region
        $region77: #{tpu_custom_call.1} parent=75 // pred_check
          %p514 = pneg %p76
        $region78: #{tpu_custom_call.1} parent=75 // pred_check_branch
          %516 = sbr.rel (%p514) target = $region80
        $region79: #{tpu_custom_call.1} parent=75 // pred_region
          %517 = dma.done [#allocation4], 16
        $region80: #{tpu_custom_call.1} parent=75 // pred_fallthru
          _
        // Predicated region
        $region81: #{tpu_custom_call.1} parent=75 // pred_check
          %p518 = pneg %p97
        $region82: #{tpu_custom_call.1} parent=75 // pred_check_branch
          %520 = sbr.rel (%p518) target = $region84
        $region83: #{tpu_custom_call.1} parent=75 // pred_region
          %521 = dma.done [#allocation6], 16
        $region84: #{tpu_custom_call.1} parent=75 // pred_fallthru
          _
        // Predicated region
        $region85: #{tpu_custom_call.1} parent=75 // pred_check
          %p522 = pneg %p118
        $region86: #{tpu_custom_call.1} parent=75 // pred_check_branch
          %524 = sbr.rel (%p522) target = $region88
        $region87: #{tpu_custom_call.1} parent=75 // pred_region
          %525 = dma.done [#allocation6], 16
        $region88: #{tpu_custom_call.1} parent=75 // pred_fallthru
          _
        // Predicated region
        $region89: #{tpu_custom_call.1} parent=75 // pred_check
          %p526 = pneg %p139
        $region90: #{tpu_custom_call.1} parent=75 // pred_check_branch
          %528 = sbr.rel (%p526) target = $region92
        $region91: #{tpu_custom_call.1} parent=75 // pred_region
          %529 = dma.done [#allocation9], 16
        $region92: #{tpu_custom_call.1} parent=75 // pred_fallthru
          _
        // Predicated region
        $region93: #{tpu_custom_call.1} parent=75 // pred_check
          %p530 = pneg %p160
        $region94: #{tpu_custom_call.1} parent=75 // pred_check_branch
          %532 = sbr.rel (%p530) target = $region96
        $region95: #{tpu_custom_call.1} parent=75 // pred_region
          %533 = dma.done [#allocation9], 16
        $region96: #{tpu_custom_call.1} parent=75 // pred_fallthru
          _
        // Predicated region
        $region97: #{tpu_custom_call.1} parent=75 // pred_check
          %p534 = pneg %p181
        $region98: #{tpu_custom_call.1} parent=75 // pred_check_branch
          %536 = sbr.rel (%p534) target = $region100
        $region99: #{tpu_custom_call.1} parent=75 // pred_region
          %537 = dma.done [#allocation12], 16
        $region100: #{tpu_custom_call.1} parent=75 // pred_fallthru
          _
        // Predicated region
        $region101: #{tpu_custom_call.1} parent=75 // pred_check
          %p538 = pneg %p223
        $region102: #{tpu_custom_call.1} parent=75 // pred_check_branch
          %540 = sbr.rel (%p538) target = $region104
        $region103: #{tpu_custom_call.1} parent=75 // pred_region
          %541 = dma.done [#allocation12], 32
        $region104: #{tpu_custom_call.1} parent=75 // pred_fallthru
          _
        // Predicated region
        $region105: #{tpu_custom_call.1} parent=75 // pred_check
          %p542 = pneg %p244
        $region106: #{tpu_custom_call.1} parent=75 // pred_check_branch
          %544 = sbr.rel (%p542) target = $region108
        $region107: #{tpu_custom_call.1} parent=75 // pred_region
          %545 = dma.done [#allocation15], 16
        $region108: #{tpu_custom_call.1} parent=75 // pred_fallthru
          _
        // Predicated region
        $region109: #{tpu_custom_call.1} parent=75 // pred_check
          %p546 = pneg %p265
        $region110: #{tpu_custom_call.1} parent=75 // pred_check_branch
          %548 = sbr.rel (%p546) target = $region112
        $region111: #{tpu_custom_call.1} parent=75 // pred_region
          %549 = dma.done [#allocation15], 16
        $region112: #{tpu_custom_call.1} parent=75 // pred_fallthru
          _
        // Predicated region
        $region113: #{tpu_custom_call.1} parent=75 // pred_check
          %p550 = pneg %p286
        $region114: #{tpu_custom_call.1} parent=75 // pred_check_branch
          %552 = sbr.rel (%p550) target = $region116
        $region115: #{tpu_custom_call.1} parent=75 // pred_region
          %553 = dma.done [#allocation18], 16
        $region116: #{tpu_custom_call.1} parent=75 // pred_fallthru
          _
        // Predicated region
        $region117: #{tpu_custom_call.1} parent=75 // pred_check
          %p554 = pneg %p328
        $region118: #{tpu_custom_call.1} parent=75 // pred_check_branch
          %556 = sbr.rel (%p554) target = $region120
        $region119: #{tpu_custom_call.1} parent=75 // pred_region
          %557 = dma.done [#allocation18], 16
        $region120: #{tpu_custom_call.1} parent=75 // pred_fallthru
          _
        %558 = sfence
        %p559 = scmp.lt.s32.totalorder %s34, 1
        %s560 = scalar_select %p559, %s34, 1
        %s561 = smul.addr %s560, 8
        %s562 = scalar_lea.vmem %s0, %s561
        %p563 = pneg %p55
        %p564 = pneg %p52
        %p565 = pneg %p76
        %p566 = pneg %p73
        %p567 = pneg %p97
        %p568 = pneg %p94
        %p569 = pneg %p118
        %p570 = pneg %p115
        %p571 = pneg %p139
        %p572 = pneg %p136
        %p573 = pneg %p160
        %p574 = pneg %p157
        %p575 = pneg %p181
        %p576 = pneg %p178
        %p577 = pneg %p202
        %p578 = pneg %p199
        %p579 = pneg %p223
        %p580 = pneg %p220
        %p581 = pneg %p244
        %p582 = pneg %p241
        %p583 = pneg %p265
        %p584 = pneg %p262
        %p585 = pneg %p286
        %p586 = pneg %p283
        %p587 = pneg %p307
        %p588 = pneg %p304
        %p589 = pneg %p328
        %p590 = pneg %p325
        %p591 = pneg %p354
        %p592 = pneg %p351
        %s593 = sand.u32 %s341, 1
        %s594 = scalar_lea.sflag [#allocation3], %s593
        %s595 = sand.u32 %s341, 1
        %s596 = scalar_lea.vmem [#allocation20], %s595
        %p597 = scmp.lt.s32.totalorder %s34, 1
        %s598 = scalar_select %p597, %s34, 1
        %s599 = smul.addr %s598, 8
        %s600 = scalar_lea.vmem %s0, %s599
        %v601 = vld [vmem:[%s600] sm:$0xff]
        %s602 = sld [smem:[#allocation2]]
        %v603 = vstv %s602
        %v604 = vmul.f32 %v603, 0.0
        %v605 = vmul.f32 %v601, %v603
        %s606 = sld [smem:[#allocation2 + $0x1]]
        %v607 = vstv %s606
        %v608 = vmul.f32 %v607, 0.0
        %v609 = vmul.f32 %v601, %v607
        %612 = vrot.lane.b32.xlu0 %v608, 127
        %v613 = vpop.permute.xlu0 %612
        %614 = vrot.lane.b32.xlu0 %v609, 127
        %v615 = vpop.permute.xlu0 %614
        %vm616 = vcmask 1039360
        %v617 = vsel %vm616, %v613, %v615
        %v620 = vadd.f32 %v604, %v617
        %v621 = vadd.f32 %v605, %v615
        %s622 = sld [smem:[#allocation2 + $0x2]]
        %v623 = vstv %s622
        %v624 = vmul.f32 %v623, 0.0
        %v625 = vmul.f32 %v601, %v623
        %628 = vrot.lane.b32.xlu0 %v624, 126
        %v629 = vpop.permute.xlu0 %628
        %630 = vrot.lane.b32.xlu0 %v625, 126
        %v631 = vpop.permute.xlu0 %630
        %vm632 = vcmask 1031168
        %v633 = vsel %vm632, %v629, %v631
        %v636 = vadd.f32 %v620, %v633
        %v637 = vadd.f32 %v621, %v631
        %s638 = sld [smem:[#allocation2 + $0x3]]
        %v639 = vstv %s638
        %v640 = vmul.f32 %v639, 0.0
        %v641 = vmul.f32 %v601, %v639
        %644 = vrot.lane.b32.xlu0 %v640, 125
        %v645 = vpop.permute.xlu0 %644
        %646 = vrot.lane.b32.xlu0 %v641, 125
        %v647 = vpop.permute.xlu0 %646
        %vm648 = vcmask 1022976
        %v649 = vsel %vm648, %v645, %v647
        %v652 = vadd.f32 %v636, %v649
        %v653 = vadd.f32 %v637, %v647
        %s654 = sld [smem:[#allocation2 + $0x4]]
        %v655 = vstv %s654
        %v656 = vmul.f32 %v655, 0.0
        %v657 = vmul.f32 %v601, %v655
        %660 = vrot.lane.b32.xlu0 %v656, 124
        %v661 = vpop.permute.xlu0 %660
        %662 = vrot.lane.b32.xlu0 %v657, 124
        %v663 = vpop.permute.xlu0 %662
        %vm664 = vcmask 1014784
        %v665 = vsel %vm664, %v661, %v663
        %v668 = vadd.f32 %v652, %v665
        %v669 = vadd.f32 %v653, %v663
        %s670 = sld [smem:[#allocation2 + $0x5]]
        %v671 = vstv %s670
        %v672 = vmul.f32 %v671, 0.0
        %v673 = vmul.f32 %v601, %v671
        %676 = vrot.lane.b32.xlu0 %v672, 123
        %v677 = vpop.permute.xlu0 %676
        %678 = vrot.lane.b32.xlu0 %v673, 123
        %v679 = vpop.permute.xlu0 %678
        %vm680 = vcmask 1006592
        %v681 = vsel %vm680, %v677, %v679
        %v684 = vadd.f32 %v668, %v681
        %v685 = vadd.f32 %v669, %v679
        %s686 = sld [smem:[#allocation2 + $0x6]]
        %v687 = vstv %s686
        %v688 = vmul.f32 %v687, 0.0
        %v689 = vmul.f32 %v601, %v687
        %692 = vrot.lane.b32.xlu0 %v688, 122
        %v693 = vpop.permute.xlu0 %692
        %694 = vrot.lane.b32.xlu0 %v689, 122
        %v695 = vpop.permute.xlu0 %694
        %vm696 = vcmask 998400
        %v697 = vsel %vm696, %v693, %v695
        %v700 = vadd.f32 %v684, %v697
        %v701 = vadd.f32 %v685, %v695
        %s702 = sld [smem:[#allocation2 + $0x7]]
        %v703 = vstv %s702
        %v704 = vmul.f32 %v601, %v703
        %706 = vrot.lane.b32.xlu0 %v704, 121
        %v707 = vpop.permute.xlu0 %706
        %v709 = vadd.f32 %v700, %v707
        %v710 = vadd.f32 %v701, %v707
        %s711 = sld [smem:[#allocation2 + $0x8]]
        %v712 = vstv %s711
        %v713 = vmul.f32 %v601, %v712
        %v714 = vmul.f32 %v712, 0.0
        %717 = vrot.lane.b32.xlu0 %v713, 120
        %v718 = vpop.permute.xlu0 %717
        %719 = vrot.lane.b32.xlu0 %v714, 120
        %v720 = vpop.permute.xlu0 %719
        %vm721 = vcmask 982016
        %v722 = vsel %vm721, %v718, %v720
        %v725 = vadd.f32 %v709, %v718
        %v726 = vadd.f32 %v710, %v722
        %s727 = sld [smem:[#allocation2 + $0x9]]
        %v728 = vstv %s727
        %v729 = vmul.f32 %v601, %v728
        %v730 = vmul.f32 %v728, 0.0
        %733 = vrot.lane.b32.xlu0 %v729, 119
        %v734 = vpop.permute.xlu0 %733
        %735 = vrot.lane.b32.xlu0 %v730, 119
        %v736 = vpop.permute.xlu0 %735
        %vm737 = vcmask 973824
        %v738 = vsel %vm737, %v734, %v736
        %v741 = vadd.f32 %v725, %v734
        %v742 = vadd.f32 %v726, %v738
        %s743 = sld [smem:[#allocation2 + $0xa]]
        %v744 = vstv %s743
        %v745 = vmul.f32 %v601, %v744
        %v746 = vmul.f32 %v744, 0.0
        %749 = vrot.lane.b32.xlu0 %v745, 118
        %v750 = vpop.permute.xlu0 %749
        %751 = vrot.lane.b32.xlu0 %v746, 118
        %v752 = vpop.permute.xlu0 %751
        %vm753 = vcmask 965632
        %v754 = vsel %vm753, %v750, %v752
        %v757 = vadd.f32 %v741, %v750
        %v758 = vadd.f32 %v742, %v754
        %s759 = sld [smem:[#allocation2 + $0xb]]
        %v760 = vstv %s759
        %v761 = vmul.f32 %v601, %v760
        %v762 = vmul.f32 %v760, 0.0
        %765 = vrot.lane.b32.xlu0 %v761, 117
        %v766 = vpop.permute.xlu0 %765
        %767 = vrot.lane.b32.xlu0 %v762, 117
        %v768 = vpop.permute.xlu0 %767
        %vm769 = vcmask 957440
        %v770 = vsel %vm769, %v766, %v768
        %v773 = vadd.f32 %v757, %v766
        %v774 = vadd.f32 %v758, %v770
        %s775 = sld [smem:[#allocation2 + $0xc]]
        %v776 = vstv %s775
        %v777 = vmul.f32 %v601, %v776
        %v778 = vmul.f32 %v776, 0.0
        %781 = vrot.lane.b32.xlu0 %v777, 116
        %v782 = vpop.permute.xlu0 %781
        %783 = vrot.lane.b32.xlu0 %v778, 116
        %v784 = vpop.permute.xlu0 %783
        %vm785 = vcmask 949248
        %v786 = vsel %vm785, %v782, %v784
        %v789 = vadd.f32 %v773, %v782
        %v790 = vadd.f32 %v774, %v786
        %s791 = sld [smem:[#allocation2 + $0xd]]
        %v792 = vstv %s791
        %v793 = vmul.f32 %v601, %v792
        %v794 = vmul.f32 %v792, 0.0
        %797 = vrot.lane.b32.xlu0 %v793, 115
        %v798 = vpop.permute.xlu0 %797
        %799 = vrot.lane.b32.xlu0 %v794, 115
        %v800 = vpop.permute.xlu0 %799
        %vm801 = vcmask 941056
        %v802 = vsel %vm801, %v798, %v800
        %v805 = vadd.f32 %v789, %v798
        %v806 = vadd.f32 %v790, %v802
        %s807 = sld [smem:[#allocation2 + $0xe]]
        %v808 = vstv %s807
        %v809 = vmul.f32 %v601, %v808
        %v810 = vmul.f32 %v808, 0.0
        %813 = vrot.lane.b32.xlu0 %v809, 114
        %v814 = vpop.permute.xlu0 %813
        %815 = vrot.lane.b32.xlu0 %v810, 114
        %v816 = vpop.permute.xlu0 %815
        %vm817 = vcmask 932864
        %v818 = vsel %vm817, %v814, %v816
        %v821 = vadd.f32 %v805, %v814
        %v822 = vadd.f32 %v806, %v818
        %s823 = sld [smem:[#allocation2 + $0xf]]
        %v824 = vstv %s823
        %v825 = vmul.f32 %v601, %v824
        %v826 = vmul.f32 %v824, 0.0
        %829 = vrot.lane.b32.xlu0 %v825, 113
        %v830 = vpop.permute.xlu0 %829
        %831 = vrot.lane.b32.xlu0 %v826, 113
        %v832 = vpop.permute.xlu0 %831
        %vm833 = vcmask 924672
        %v834 = vsel %vm833, %v830, %v832
        %v837 = vadd.f32 %v821, %v830
        %v838 = vadd.f32 %v822, %v834
        %s839 = sld [smem:[#allocation5]]
        %v840 = vstv %s839
        %v841 = vmul.f32 %v837, %v840
        %v842 = vmul.f32 %v838, %v840
        %s843 = sld [smem:[#allocation7]]
        %v844 = vstv %s843
        %v845 = vadd.f32 %v841, %v844
        %v846 = vadd.f32 %v842, %v844
        %s847 = sld [smem:[#allocation2 + $0x10]]
        %v848 = vstv %s847
        %v849 = vmul.f32 %v848, 0.0
        %v850 = vmul.f32 %v601, %v848
        %s851 = sld [smem:[#allocation2 + $0x11]]
        %v852 = vstv %s851
        %v853 = vmul.f32 %v852, 0.0
        %v854 = vmul.f32 %v601, %v852
        %857 = vrot.lane.b32.xlu0 %v853, 127
        %v858 = vpop.permute.xlu0 %857
        %859 = vrot.lane.b32.xlu0 %v854, 127
        %v860 = vpop.permute.xlu0 %859
        %v861 = vsel %vm616, %v858, %v860
        %v864 = vadd.f32 %v849, %v861
        %v865 = vadd.f32 %v850, %v860
        %s866 = sld [smem:[#allocation2 + $0x12]]
        %v867 = vstv %s866
        %v868 = vmul.f32 %v867, 0.0
        %v869 = vmul.f32 %v601, %v867
        %872 = vrot.lane.b32.xlu0 %v868, 126
        %v873 = vpop.permute.xlu0 %872
        %874 = vrot.lane.b32.xlu0 %v869, 126
        %v875 = vpop.permute.xlu0 %874
        %v876 = vsel %vm632, %v873, %v875
        %v879 = vadd.f32 %v864, %v876
        %v880 = vadd.f32 %v865, %v875
        %s881 = sld [smem:[#allocation2 + $0x13]]
        %v882 = vstv %s881
        %v883 = vmul.f32 %v882, 0.0
        %v884 = vmul.f32 %v601, %v882
        %887 = vrot.lane.b32.xlu0 %v883, 125
        %v888 = vpop.permute.xlu0 %887
        %889 = vrot.lane.b32.xlu0 %v884, 125
        %v890 = vpop.permute.xlu0 %889
        %v891 = vsel %vm648, %v888, %v890
        %v894 = vadd.f32 %v879, %v891
        %v895 = vadd.f32 %v880, %v890
        %s896 = sld [smem:[#allocation2 + $0x14]]
        %v897 = vstv %s896
        %v898 = vmul.f32 %v897, 0.0
        %v899 = vmul.f32 %v601, %v897
        %902 = vrot.lane.b32.xlu0 %v898, 124
        %v903 = vpop.permute.xlu0 %902
        %904 = vrot.lane.b32.xlu0 %v899, 124
        %v905 = vpop.permute.xlu0 %904
        %v906 = vsel %vm664, %v903, %v905
        %v909 = vadd.f32 %v894, %v906
        %v910 = vadd.f32 %v895, %v905
        %s911 = sld [smem:[#allocation2 + $0x15]]
        %v912 = vstv %s911
        %v913 = vmul.f32 %v912, 0.0
        %v914 = vmul.f32 %v601, %v912
        %917 = vrot.lane.b32.xlu0 %v913, 123
        %v918 = vpop.permute.xlu0 %917
        %919 = vrot.lane.b32.xlu0 %v914, 123
        %v920 = vpop.permute.xlu0 %919
        %v921 = vsel %vm680, %v918, %v920
        %v924 = vadd.f32 %v909, %v921
        %v925 = vadd.f32 %v910, %v920
        %s926 = sld [smem:[#allocation2 + $0x16]]
        %v927 = vstv %s926
        %v928 = vmul.f32 %v927, 0.0
        %v929 = vmul.f32 %v601, %v927
        %932 = vrot.lane.b32.xlu0 %v928, 122
        %v933 = vpop.permute.xlu0 %932
        %934 = vrot.lane.b32.xlu0 %v929, 122
        %v935 = vpop.permute.xlu0 %934
        %v936 = vsel %vm696, %v933, %v935
        %v939 = vadd.f32 %v924, %v936
        %v940 = vadd.f32 %v925, %v935
        %s941 = sld [smem:[#allocation2 + $0x17]]
        %v942 = vstv %s941
        %v943 = vmul.f32 %v601, %v942
        %945 = vrot.lane.b32.xlu0 %v943, 121
        %v946 = vpop.permute.xlu0 %945
        %v948 = vadd.f32 %v939, %v946
        %v949 = vadd.f32 %v940, %v946
        %s950 = sld [smem:[#allocation2 + $0x18]]
        %v951 = vstv %s950
        %v952 = vmul.f32 %v601, %v951
        %v953 = vmul.f32 %v951, 0.0
        %956 = vrot.lane.b32.xlu0 %v952, 120
        %v957 = vpop.permute.xlu0 %956
        %958 = vrot.lane.b32.xlu0 %v953, 120
        %v959 = vpop.permute.xlu0 %958
        %v960 = vsel %vm721, %v957, %v959
        %v963 = vadd.f32 %v948, %v957
        %v964 = vadd.f32 %v949, %v960
        %s965 = sld [smem:[#allocation2 + $0x19]]
        %v966 = vstv %s965
        %v967 = vmul.f32 %v601, %v966
        %v968 = vmul.f32 %v966, 0.0
        %971 = vrot.lane.b32.xlu0 %v967, 119
        %v972 = vpop.permute.xlu0 %971
        %973 = vrot.lane.b32.xlu0 %v968, 119
        %v974 = vpop.permute.xlu0 %973
        %v975 = vsel %vm737, %v972, %v974
        %v978 = vadd.f32 %v963, %v972
        %v979 = vadd.f32 %v964, %v975
        %s980 = sld [smem:[#allocation2 + $0x1a]]
        %v981 = vstv %s980
        %v982 = vmul.f32 %v601, %v981
        %v983 = vmul.f32 %v981, 0.0
        %986 = vrot.lane.b32.xlu0 %v982, 118
        %v987 = vpop.permute.xlu0 %986
        %988 = vrot.lane.b32.xlu0 %v983, 118
        %v989 = vpop.permute.xlu0 %988
        %v990 = vsel %vm753, %v987, %v989
        %v993 = vadd.f32 %v978, %v987
        %v994 = vadd.f32 %v979, %v990
        %s995 = sld [smem:[#allocation2 + $0x1b]]
        %v996 = vstv %s995
        %v997 = vmul.f32 %v601, %v996
        %v998 = vmul.f32 %v996, 0.0
        %1001 = vrot.lane.b32.xlu0 %v997, 117
        %v1002 = vpop.permute.xlu0 %1001
        %1003 = vrot.lane.b32.xlu0 %v998, 117
        %v1004 = vpop.permute.xlu0 %1003
        %v1005 = vsel %vm769, %v1002, %v1004
        %v1008 = vadd.f32 %v993, %v1002
        %v1009 = vadd.f32 %v994, %v1005
        %s1010 = sld [smem:[#allocation2 + $0x1c]]
        %v1011 = vstv %s1010
        %v1012 = vmul.f32 %v601, %v1011
        %v1013 = vmul.f32 %v1011, 0.0
        %1016 = vrot.lane.b32.xlu0 %v1012, 116
        %v1017 = vpop.permute.xlu0 %1016
        %1018 = vrot.lane.b32.xlu0 %v1013, 116
        %v1019 = vpop.permute.xlu0 %1018
        %v1020 = vsel %vm785, %v1017, %v1019
        %v1023 = vadd.f32 %v1008, %v1017
        %v1024 = vadd.f32 %v1009, %v1020
        %s1025 = sld [smem:[#allocation2 + $0x1d]]
        %v1026 = vstv %s1025
        %v1027 = vmul.f32 %v601, %v1026
        %v1028 = vmul.f32 %v1026, 0.0
        %1031 = vrot.lane.b32.xlu0 %v1027, 115
        %v1032 = vpop.permute.xlu0 %1031
        %1033 = vrot.lane.b32.xlu0 %v1028, 115
        %v1034 = vpop.permute.xlu0 %1033
        %v1035 = vsel %vm801, %v1032, %v1034
        %v1038 = vadd.f32 %v1023, %v1032
        %v1039 = vadd.f32 %v1024, %v1035
        %s1040 = sld [smem:[#allocation2 + $0x1e]]
        %v1041 = vstv %s1040
        %v1042 = vmul.f32 %v601, %v1041
        %v1043 = vmul.f32 %v1041, 0.0
        %1046 = vrot.lane.b32.xlu0 %v1042, 114
        %v1047 = vpop.permute.xlu0 %1046
        %1048 = vrot.lane.b32.xlu0 %v1043, 114
        %v1049 = vpop.permute.xlu0 %1048
        %v1050 = vsel %vm817, %v1047, %v1049
        %v1053 = vadd.f32 %v1038, %v1047
        %v1054 = vadd.f32 %v1039, %v1050
        %s1055 = sld [smem:[#allocation2 + $0x1f]]
        %v1056 = vstv %s1055
        %v1057 = vmul.f32 %v601, %v1056
        %v1058 = vmul.f32 %v1056, 0.0
        %1061 = vrot.lane.b32.xlu0 %v1057, 113
        %v1062 = vpop.permute.xlu0 %1061
        %1063 = vrot.lane.b32.xlu0 %v1058, 113
        %v1064 = vpop.permute.xlu0 %1063
        %v1065 = vsel %vm833, %v1062, %v1064
        %v1068 = vadd.f32 %v1053, %v1062
        %v1069 = vadd.f32 %v1054, %v1065
        %s1070 = sld [smem:[#allocation5 + $0x1]]
        %v1071 = vstv %s1070
        %v1072 = vmul.f32 %v1068, %v1071
        %v1073 = vmul.f32 %v1069, %v1071
        %s1074 = sld [smem:[#allocation7 + $0x1]]
        %v1075 = vstv %s1074
        %v1076 = vadd.f32 %v1072, %v1075
        %v1077 = vadd.f32 %v1073, %v1075
        %s1078 = sld [smem:[#allocation2 + $0x20]]
        %v1079 = vstv %s1078
        %v1080 = vmul.f32 %v1079, 0.0
        %v1081 = vmul.f32 %v601, %v1079
        %s1082 = sld [smem:[#allocation2 + $0x21]]
        %v1083 = vstv %s1082
        %v1084 = vmul.f32 %v1083, 0.0
        %v1085 = vmul.f32 %v601, %v1083
        %1088 = vrot.lane.b32.xlu0 %v1084, 127
        %v1089 = vpop.permute.xlu0 %1088
        %1090 = vrot.lane.b32.xlu0 %v1085, 127
        %v1091 = vpop.permute.xlu0 %1090
        %v1092 = vsel %vm616, %v1089, %v1091
        %v1095 = vadd.f32 %v1080, %v1092
        %v1096 = vadd.f32 %v1081, %v1091
        %s1097 = sld [smem:[#allocation2 + $0x22]]
        %v1098 = vstv %s1097
        %v1099 = vmul.f32 %v1098, 0.0
        %v1100 = vmul.f32 %v601, %v1098
        %1103 = vrot.lane.b32.xlu0 %v1099, 126
        %v1104 = vpop.permute.xlu0 %1103
        %1105 = vrot.lane.b32.xlu0 %v1100, 126
        %v1106 = vpop.permute.xlu0 %1105
        %v1107 = vsel %vm632, %v1104, %v1106
        %v1110 = vadd.f32 %v1095, %v1107
        %v1111 = vadd.f32 %v1096, %v1106
        %s1112 = sld [smem:[#allocation2 + $0x23]]
        %v1113 = vstv %s1112
        %v1114 = vmul.f32 %v1113, 0.0
        %v1115 = vmul.f32 %v601, %v1113
        %1118 = vrot.lane.b32.xlu0 %v1114, 125
        %v1119 = vpop.permute.xlu0 %1118
        %1120 = vrot.lane.b32.xlu0 %v1115, 125
        %v1121 = vpop.permute.xlu0 %1120
        %v1122 = vsel %vm648, %v1119, %v1121
        %v1125 = vadd.f32 %v1110, %v1122
        %v1126 = vadd.f32 %v1111, %v1121
        %s1127 = sld [smem:[#allocation2 + $0x24]]
        %v1128 = vstv %s1127
        %v1129 = vmul.f32 %v1128, 0.0
        %v1130 = vmul.f32 %v601, %v1128
        %1133 = vrot.lane.b32.xlu0 %v1129, 124
        %v1134 = vpop.permute.xlu0 %1133
        %1135 = vrot.lane.b32.xlu0 %v1130, 124
        %v1136 = vpop.permute.xlu0 %1135
        %v1137 = vsel %vm664, %v1134, %v1136
        %v1140 = vadd.f32 %v1125, %v1137
        %v1141 = vadd.f32 %v1126, %v1136
        %s1142 = sld [smem:[#allocation2 + $0x25]]
        %v1143 = vstv %s1142
        %v1144 = vmul.f32 %v1143, 0.0
        %v1145 = vmul.f32 %v601, %v1143
        %1148 = vrot.lane.b32.xlu0 %v1144, 123
        %v1149 = vpop.permute.xlu0 %1148
        %1150 = vrot.lane.b32.xlu0 %v1145, 123
        %v1151 = vpop.permute.xlu0 %1150
        %v1152 = vsel %vm680, %v1149, %v1151
        %v1155 = vadd.f32 %v1140, %v1152
        %v1156 = vadd.f32 %v1141, %v1151
        %s1157 = sld [smem:[#allocation2 + $0x26]]
        %v1158 = vstv %s1157
        %v1159 = vmul.f32 %v1158, 0.0
        %v1160 = vmul.f32 %v601, %v1158
        %1163 = vrot.lane.b32.xlu0 %v1159, 122
        %v1164 = vpop.permute.xlu0 %1163
        %1165 = vrot.lane.b32.xlu0 %v1160, 122
        %v1166 = vpop.permute.xlu0 %1165
        %v1167 = vsel %vm696, %v1164, %v1166
        %v1170 = vadd.f32 %v1155, %v1167
        %v1171 = vadd.f32 %v1156, %v1166
        %s1172 = sld [smem:[#allocation2 + $0x27]]
        %v1173 = vstv %s1172
        %v1174 = vmul.f32 %v601, %v1173
        %1176 = vrot.lane.b32.xlu0 %v1174, 121
        %v1177 = vpop.permute.xlu0 %1176
        %v1179 = vadd.f32 %v1170, %v1177
        %v1180 = vadd.f32 %v1171, %v1177
        %s1181 = sld [smem:[#allocation2 + $0x28]]
        %v1182 = vstv %s1181
        %v1183 = vmul.f32 %v601, %v1182
        %v1184 = vmul.f32 %v1182, 0.0
        %1187 = vrot.lane.b32.xlu0 %v1183, 120
        %v1188 = vpop.permute.xlu0 %1187
        %1189 = vrot.lane.b32.xlu0 %v1184, 120
        %v1190 = vpop.permute.xlu0 %1189
        %v1191 = vsel %vm721, %v1188, %v1190
        %v1194 = vadd.f32 %v1179, %v1188
        %v1195 = vadd.f32 %v1180, %v1191
        %s1196 = sld [smem:[#allocation2 + $0x29]]
        %v1197 = vstv %s1196
        %v1198 = vmul.f32 %v601, %v1197
        %v1199 = vmul.f32 %v1197, 0.0
        %1202 = vrot.lane.b32.xlu0 %v1198, 119
        %v1203 = vpop.permute.xlu0 %1202
        %1204 = vrot.lane.b32.xlu0 %v1199, 119
        %v1205 = vpop.permute.xlu0 %1204
        %v1206 = vsel %vm737, %v1203, %v1205
        %v1209 = vadd.f32 %v1194, %v1203
        %v1210 = vadd.f32 %v1195, %v1206
        %s1211 = sld [smem:[#allocation2 + $0x2a]]
        %v1212 = vstv %s1211
        %v1213 = vmul.f32 %v601, %v1212
        %v1214 = vmul.f32 %v1212, 0.0
        %1217 = vrot.lane.b32.xlu0 %v1213, 118
        %v1218 = vpop.permute.xlu0 %1217
        %1219 = vrot.lane.b32.xlu0 %v1214, 118
        %v1220 = vpop.permute.xlu0 %1219
        %v1221 = vsel %vm753, %v1218, %v1220
        %v1224 = vadd.f32 %v1209, %v1218
        %v1225 = vadd.f32 %v1210, %v1221
        %s1226 = sld [smem:[#allocation2 + $0x2b]]
        %v1227 = vstv %s1226
        %v1228 = vmul.f32 %v601, %v1227
        %v1229 = vmul.f32 %v1227, 0.0
        %1232 = vrot.lane.b32.xlu0 %v1228, 117
        %v1233 = vpop.permute.xlu0 %1232
        %1234 = vrot.lane.b32.xlu0 %v1229, 117
        %v1235 = vpop.permute.xlu0 %1234
        %v1236 = vsel %vm769, %v1233, %v1235
        %v1239 = vadd.f32 %v1224, %v1233
        %v1240 = vadd.f32 %v1225, %v1236
        %s1241 = sld [smem:[#allocation2 + $0x2c]]
        %v1242 = vstv %s1241
        %v1243 = vmul.f32 %v601, %v1242
        %v1244 = vmul.f32 %v1242, 0.0
        %1247 = vrot.lane.b32.xlu0 %v1243, 116
        %v1248 = vpop.permute.xlu0 %1247
        %1249 = vrot.lane.b32.xlu0 %v1244, 116
        %v1250 = vpop.permute.xlu0 %1249
        %v1251 = vsel %vm785, %v1248, %v1250
        %v1254 = vadd.f32 %v1239, %v1248
        %v1255 = vadd.f32 %v1240, %v1251
        %s1256 = sld [smem:[#allocation2 + $0x2d]]
        %v1257 = vstv %s1256
        %v1258 = vmul.f32 %v601, %v1257
        %v1259 = vmul.f32 %v1257, 0.0
        %1262 = vrot.lane.b32.xlu0 %v1258, 115
        %v1263 = vpop.permute.xlu0 %1262
        %1264 = vrot.lane.b32.xlu0 %v1259, 115
        %v1265 = vpop.permute.xlu0 %1264
        %v1266 = vsel %vm801, %v1263, %v1265
        %v1269 = vadd.f32 %v1254, %v1263
        %v1270 = vadd.f32 %v1255, %v1266
        %s1271 = sld [smem:[#allocation2 + $0x2e]]
        %v1272 = vstv %s1271
        %v1273 = vmul.f32 %v601, %v1272
        %v1274 = vmul.f32 %v1272, 0.0
        %1277 = vrot.lane.b32.xlu0 %v1273, 114
        %v1278 = vpop.permute.xlu0 %1277
        %1279 = vrot.lane.b32.xlu0 %v1274, 114
        %v1280 = vpop.permute.xlu0 %1279
        %v1281 = vsel %vm817, %v1278, %v1280
        %v1284 = vadd.f32 %v1269, %v1278
        %v1285 = vadd.f32 %v1270, %v1281
        %s1286 = sld [smem:[#allocation2 + $0x2f]]
        %v1287 = vstv %s1286
        %v1288 = vmul.f32 %v601, %v1287
        %v1289 = vmul.f32 %v1287, 0.0
        %1292 = vrot.lane.b32.xlu0 %v1288, 113
        %v1293 = vpop.permute.xlu0 %1292
        %1294 = vrot.lane.b32.xlu0 %v1289, 113
        %v1295 = vpop.permute.xlu0 %1294
        %v1296 = vsel %vm833, %v1293, %v1295
        %v1299 = vadd.f32 %v1284, %v1293
        %v1300 = vadd.f32 %v1285, %v1296
        %s1301 = sld [smem:[#allocation5 + $0x2]]
        %v1302 = vstv %s1301
        %v1303 = vmul.f32 %v1299, %v1302
        %v1304 = vmul.f32 %v1300, %v1302
        %s1305 = sld [smem:[#allocation7 + $0x2]]
        %v1306 = vstv %s1305
        %v1307 = vadd.f32 %v1303, %v1306
        %v1308 = vadd.f32 %v1304, %v1306
        %s1309 = sld [smem:[#allocation2 + $0x30]]
        %v1310 = vstv %s1309
        %v1311 = vmul.f32 %v1310, 0.0
        %v1312 = vmul.f32 %v601, %v1310
        %s1313 = sld [smem:[#allocation2 + $0x31]]
        %v1314 = vstv %s1313
        %v1315 = vmul.f32 %v1314, 0.0
        %v1316 = vmul.f32 %v601, %v1314
        %1319 = vrot.lane.b32.xlu0 %v1315, 127
        %v1320 = vpop.permute.xlu0 %1319
        %1321 = vrot.lane.b32.xlu0 %v1316, 127
        %v1322 = vpop.permute.xlu0 %1321
        %v1323 = vsel %vm616, %v1320, %v1322
        %v1326 = vadd.f32 %v1311, %v1323
        %v1327 = vadd.f32 %v1312, %v1322
        %s1328 = sld [smem:[#allocation2 + $0x32]]
        %v1329 = vstv %s1328
        %v1330 = vmul.f32 %v1329, 0.0
        %v1331 = vmul.f32 %v601, %v1329
        %1334 = vrot.lane.b32.xlu0 %v1330, 126
        %v1335 = vpop.permute.xlu0 %1334
        %1336 = vrot.lane.b32.xlu0 %v1331, 126
        %v1337 = vpop.permute.xlu0 %1336
        %v1338 = vsel %vm632, %v1335, %v1337
        %v1341 = vadd.f32 %v1326, %v1338
        %v1342 = vadd.f32 %v1327, %v1337
        %s1343 = sld [smem:[#allocation2 + $0x33]]
        %v1344 = vstv %s1343
        %v1345 = vmul.f32 %v1344, 0.0
        %v1346 = vmul.f32 %v601, %v1344
        %1349 = vrot.lane.b32.xlu0 %v1345, 125
        %v1350 = vpop.permute.xlu0 %1349
        %1351 = vrot.lane.b32.xlu0 %v1346, 125
        %v1352 = vpop.permute.xlu0 %1351
        %v1353 = vsel %vm648, %v1350, %v1352
        %v1356 = vadd.f32 %v1341, %v1353
        %v1357 = vadd.f32 %v1342, %v1352
        %s1358 = sld [smem:[#allocation2 + $0x34]]
        %v1359 = vstv %s1358
        %v1360 = vmul.f32 %v1359, 0.0
        %v1361 = vmul.f32 %v601, %v1359
        %1364 = vrot.lane.b32.xlu0 %v1360, 124
        %v1365 = vpop.permute.xlu0 %1364
        %1366 = vrot.lane.b32.xlu0 %v1361, 124
        %v1367 = vpop.permute.xlu0 %1366
        %v1368 = vsel %vm664, %v1365, %v1367
        %v1371 = vadd.f32 %v1356, %v1368
        %v1372 = vadd.f32 %v1357, %v1367
        %s1373 = sld [smem:[#allocation2 + $0x35]]
        %v1374 = vstv %s1373
        %v1375 = vmul.f32 %v1374, 0.0
        %v1376 = vmul.f32 %v601, %v1374
        %1379 = vrot.lane.b32.xlu0 %v1375, 123
        %v1380 = vpop.permute.xlu0 %1379
        %1381 = vrot.lane.b32.xlu0 %v1376, 123
        %v1382 = vpop.permute.xlu0 %1381
        %v1383 = vsel %vm680, %v1380, %v1382
        %v1386 = vadd.f32 %v1371, %v1383
        %v1387 = vadd.f32 %v1372, %v1382
        %s1388 = sld [smem:[#allocation2 + $0x36]]
        %v1389 = vstv %s1388
        %v1390 = vmul.f32 %v1389, 0.0
        %v1391 = vmul.f32 %v601, %v1389
        %1394 = vrot.lane.b32.xlu0 %v1390, 122
        %v1395 = vpop.permute.xlu0 %1394
        %1396 = vrot.lane.b32.xlu0 %v1391, 122
        %v1397 = vpop.permute.xlu0 %1396
        %v1398 = vsel %vm696, %v1395, %v1397
        %v1401 = vadd.f32 %v1386, %v1398
        %v1402 = vadd.f32 %v1387, %v1397
        %s1403 = sld [smem:[#allocation2 + $0x37]]
        %v1404 = vstv %s1403
        %v1405 = vmul.f32 %v601, %v1404
        %1407 = vrot.lane.b32.xlu0 %v1405, 121
        %v1408 = vpop.permute.xlu0 %1407
        %v1410 = vadd.f32 %v1401, %v1408
        %v1411 = vadd.f32 %v1402, %v1408
        %s1412 = sld [smem:[#allocation2 + $0x38]]
        %v1413 = vstv %s1412
        %v1414 = vmul.f32 %v601, %v1413
        %v1415 = vmul.f32 %v1413, 0.0
        %1418 = vrot.lane.b32.xlu0 %v1414, 120
        %v1419 = vpop.permute.xlu0 %1418
        %1420 = vrot.lane.b32.xlu0 %v1415, 120
        %v1421 = vpop.permute.xlu0 %1420
        %v1422 = vsel %vm721, %v1419, %v1421
        %v1425 = vadd.f32 %v1410, %v1419
        %v1426 = vadd.f32 %v1411, %v1422
        %s1427 = sld [smem:[#allocation2 + $0x39]]
        %v1428 = vstv %s1427
        %v1429 = vmul.f32 %v601, %v1428
        %v1430 = vmul.f32 %v1428, 0.0
        %1433 = vrot.lane.b32.xlu0 %v1429, 119
        %v1434 = vpop.permute.xlu0 %1433
        %1435 = vrot.lane.b32.xlu0 %v1430, 119
        %v1436 = vpop.permute.xlu0 %1435
        %v1437 = vsel %vm737, %v1434, %v1436
        %v1440 = vadd.f32 %v1425, %v1434
        %v1441 = vadd.f32 %v1426, %v1437
        %s1442 = sld [smem:[#allocation2 + $0x3a]]
        %v1443 = vstv %s1442
        %v1444 = vmul.f32 %v601, %v1443
        %v1445 = vmul.f32 %v1443, 0.0
        %1448 = vrot.lane.b32.xlu0 %v1444, 118
        %v1449 = vpop.permute.xlu0 %1448
        %1450 = vrot.lane.b32.xlu0 %v1445, 118
        %v1451 = vpop.permute.xlu0 %1450
        %v1452 = vsel %vm753, %v1449, %v1451
        %v1455 = vadd.f32 %v1440, %v1449
        %v1456 = vadd.f32 %v1441, %v1452
        %s1457 = sld [smem:[#allocation2 + $0x3b]]
        %v1458 = vstv %s1457
        %v1459 = vmul.f32 %v601, %v1458
        %v1460 = vmul.f32 %v1458, 0.0
        %1463 = vrot.lane.b32.xlu0 %v1459, 117
        %v1464 = vpop.permute.xlu0 %1463
        %1465 = vrot.lane.b32.xlu0 %v1460, 117
        %v1466 = vpop.permute.xlu0 %1465
        %v1467 = vsel %vm769, %v1464, %v1466
        %v1470 = vadd.f32 %v1455, %v1464
        %v1471 = vadd.f32 %v1456, %v1467
        %s1472 = sld [smem:[#allocation2 + $0x3c]]
        %v1473 = vstv %s1472
        %v1474 = vmul.f32 %v601, %v1473
        %v1475 = vmul.f32 %v1473, 0.0
        %1478 = vrot.lane.b32.xlu0 %v1474, 116
        %v1479 = vpop.permute.xlu0 %1478
        %1480 = vrot.lane.b32.xlu0 %v1475, 116
        %v1481 = vpop.permute.xlu0 %1480
        %v1482 = vsel %vm785, %v1479, %v1481
        %v1485 = vadd.f32 %v1470, %v1479
        %v1486 = vadd.f32 %v1471, %v1482
        %s1487 = sld [smem:[#allocation2 + $0x3d]]
        %v1488 = vstv %s1487
        %v1489 = vmul.f32 %v601, %v1488
        %v1490 = vmul.f32 %v1488, 0.0
        %1493 = vrot.lane.b32.xlu0 %v1489, 115
        %v1494 = vpop.permute.xlu0 %1493
        %1495 = vrot.lane.b32.xlu0 %v1490, 115
        %v1496 = vpop.permute.xlu0 %1495
        %v1497 = vsel %vm801, %v1494, %v1496
        %v1500 = vadd.f32 %v1485, %v1494
        %v1501 = vadd.f32 %v1486, %v1497
        %s1502 = sld [smem:[#allocation2 + $0x3e]]
        %v1503 = vstv %s1502
        %v1504 = vmul.f32 %v601, %v1503
        %v1505 = vmul.f32 %v1503, 0.0
        %1508 = vrot.lane.b32.xlu0 %v1504, 114
        %v1509 = vpop.permute.xlu0 %1508
        %1510 = vrot.lane.b32.xlu0 %v1505, 114
        %v1511 = vpop.permute.xlu0 %1510
        %v1512 = vsel %vm817, %v1509, %v1511
        %v1515 = vadd.f32 %v1500, %v1509
        %v1516 = vadd.f32 %v1501, %v1512
        %s1517 = sld [smem:[#allocation2 + $0x3f]]
        %v1518 = vstv %s1517
        %v1519 = vmul.f32 %v601, %v1518
        %v1520 = vmul.f32 %v1518, 0.0
        %1523 = vrot.lane.b32.xlu0 %v1519, 113
        %v1524 = vpop.permute.xlu0 %1523
        %1525 = vrot.lane.b32.xlu0 %v1520, 113
        %v1526 = vpop.permute.xlu0 %1525
        %v1527 = vsel %vm833, %v1524, %v1526
        %v1530 = vadd.f32 %v1515, %v1524
        %v1531 = vadd.f32 %v1516, %v1527
        %s1532 = sld [smem:[#allocation5 + $0x3]]
        %v1533 = vstv %s1532
        %v1534 = vmul.f32 %v1530, %v1533
        %v1535 = vmul.f32 %v1531, %v1533
        %s1536 = sld [smem:[#allocation7 + $0x3]]
        %v1537 = vstv %s1536
        %v1538 = vadd.f32 %v1534, %v1537
        %v1539 = vadd.f32 %v1535, %v1537
        %s1540 = sld [smem:[#allocation2 + $0x40]]
        %v1541 = vstv %s1540
        %v1542 = vmul.f32 %v1541, 0.0
        %v1543 = vmul.f32 %v601, %v1541
        %s1544 = sld [smem:[#allocation2 + $0x41]]
        %v1545 = vstv %s1544
        %v1546 = vmul.f32 %v1545, 0.0
        %v1547 = vmul.f32 %v601, %v1545
        %1550 = vrot.lane.b32.xlu0 %v1546, 127
        %v1551 = vpop.permute.xlu0 %1550
        %1552 = vrot.lane.b32.xlu0 %v1547, 127
        %v1553 = vpop.permute.xlu0 %1552
        %v1554 = vsel %vm616, %v1551, %v1553
        %v1557 = vadd.f32 %v1542, %v1554
        %v1558 = vadd.f32 %v1543, %v1553
        %s1559 = sld [smem:[#allocation2 + $0x42]]
        %v1560 = vstv %s1559
        %v1561 = vmul.f32 %v1560, 0.0
        %v1562 = vmul.f32 %v601, %v1560
        %1565 = vrot.lane.b32.xlu0 %v1561, 126
        %v1566 = vpop.permute.xlu0 %1565
        %1567 = vrot.lane.b32.xlu0 %v1562, 126
        %v1568 = vpop.permute.xlu0 %1567
        %v1569 = vsel %vm632, %v1566, %v1568
        %v1572 = vadd.f32 %v1557, %v1569
        %v1573 = vadd.f32 %v1558, %v1568
        %s1574 = sld [smem:[#allocation2 + $0x43]]
        %v1575 = vstv %s1574
        %v1576 = vmul.f32 %v1575, 0.0
        %v1577 = vmul.f32 %v601, %v1575
        %1580 = vrot.lane.b32.xlu0 %v1576, 125
        %v1581 = vpop.permute.xlu0 %1580
        %1582 = vrot.lane.b32.xlu0 %v1577, 125
        %v1583 = vpop.permute.xlu0 %1582
        %v1584 = vsel %vm648, %v1581, %v1583
        %v1587 = vadd.f32 %v1572, %v1584
        %v1588 = vadd.f32 %v1573, %v1583
        %s1589 = sld [smem:[#allocation2 + $0x44]]
        %v1590 = vstv %s1589
        %v1591 = vmul.f32 %v1590, 0.0
        %v1592 = vmul.f32 %v601, %v1590
        %1595 = vrot.lane.b32.xlu0 %v1591, 124
        %v1596 = vpop.permute.xlu0 %1595
        %1597 = vrot.lane.b32.xlu0 %v1592, 124
        %v1598 = vpop.permute.xlu0 %1597
        %v1599 = vsel %vm664, %v1596, %v1598
        %v1602 = vadd.f32 %v1587, %v1599
        %v1603 = vadd.f32 %v1588, %v1598
        %s1604 = sld [smem:[#allocation2 + $0x45]]
        %v1605 = vstv %s1604
        %v1606 = vmul.f32 %v1605, 0.0
        %v1607 = vmul.f32 %v601, %v1605
        %1610 = vrot.lane.b32.xlu0 %v1606, 123
        %v1611 = vpop.permute.xlu0 %1610
        %1612 = vrot.lane.b32.xlu0 %v1607, 123
        %v1613 = vpop.permute.xlu0 %1612
        %v1614 = vsel %vm680, %v1611, %v1613
        %v1617 = vadd.f32 %v1602, %v1614
        %v1618 = vadd.f32 %v1603, %v1613
        %s1619 = sld [smem:[#allocation2 + $0x46]]
        %v1620 = vstv %s1619
        %v1621 = vmul.f32 %v1620, 0.0
        %v1622 = vmul.f32 %v601, %v1620
        %1625 = vrot.lane.b32.xlu0 %v1621, 122
        %v1626 = vpop.permute.xlu0 %1625
        %1627 = vrot.lane.b32.xlu0 %v1622, 122
        %v1628 = vpop.permute.xlu0 %1627
        %v1629 = vsel %vm696, %v1626, %v1628
        %v1632 = vadd.f32 %v1617, %v1629
        %v1633 = vadd.f32 %v1618, %v1628
        %s1634 = sld [smem:[#allocation2 + $0x47]]
        %v1635 = vstv %s1634
        %v1636 = vmul.f32 %v601, %v1635
        %1638 = vrot.lane.b32.xlu0 %v1636, 121
        %v1639 = vpop.permute.xlu0 %1638
        %v1641 = vadd.f32 %v1632, %v1639
        %v1642 = vadd.f32 %v1633, %v1639
        %s1643 = sld [smem:[#allocation2 + $0x48]]
        %v1644 = vstv %s1643
        %v1645 = vmul.f32 %v601, %v1644
        %v1646 = vmul.f32 %v1644, 0.0
        %1649 = vrot.lane.b32.xlu0 %v1645, 120
        %v1650 = vpop.permute.xlu0 %1649
        %1651 = vrot.lane.b32.xlu0 %v1646, 120
        %v1652 = vpop.permute.xlu0 %1651
        %v1653 = vsel %vm721, %v1650, %v1652
        %v1656 = vadd.f32 %v1641, %v1650
        %v1657 = vadd.f32 %v1642, %v1653
        %s1658 = sld [smem:[#allocation2 + $0x49]]
        %v1659 = vstv %s1658
        %v1660 = vmul.f32 %v601, %v1659
        %v1661 = vmul.f32 %v1659, 0.0
        %1664 = vrot.lane.b32.xlu0 %v1660, 119
        %v1665 = vpop.permute.xlu0 %1664
        %1666 = vrot.lane.b32.xlu0 %v1661, 119
        %v1667 = vpop.permute.xlu0 %1666
        %v1668 = vsel %vm737, %v1665, %v1667
        %v1671 = vadd.f32 %v1656, %v1665
        %v1672 = vadd.f32 %v1657, %v1668
        %s1673 = sld [smem:[#allocation2 + $0x4a]]
        %v1674 = vstv %s1673
        %v1675 = vmul.f32 %v601, %v1674
        %v1676 = vmul.f32 %v1674, 0.0
        %1679 = vrot.lane.b32.xlu0 %v1675, 118
        %v1680 = vpop.permute.xlu0 %1679
        %1681 = vrot.lane.b32.xlu0 %v1676, 118
        %v1682 = vpop.permute.xlu0 %1681
        %v1683 = vsel %vm753, %v1680, %v1682
        %v1686 = vadd.f32 %v1671, %v1680
        %v1687 = vadd.f32 %v1672, %v1683
        %s1688 = sld [smem:[#allocation2 + $0x4b]]
        %v1689 = vstv %s1688
        %v1690 = vmul.f32 %v601, %v1689
        %v1691 = vmul.f32 %v1689, 0.0
        %1694 = vrot.lane.b32.xlu0 %v1690, 117
        %v1695 = vpop.permute.xlu0 %1694
        %1696 = vrot.lane.b32.xlu0 %v1691, 117
        %v1697 = vpop.permute.xlu0 %1696
        %v1698 = vsel %vm769, %v1695, %v1697
        %v1701 = vadd.f32 %v1686, %v1695
        %v1702 = vadd.f32 %v1687, %v1698
        %s1703 = sld [smem:[#allocation2 + $0x4c]]
        %v1704 = vstv %s1703
        %v1705 = vmul.f32 %v601, %v1704
        %v1706 = vmul.f32 %v1704, 0.0
        %1709 = vrot.lane.b32.xlu0 %v1705, 116
        %v1710 = vpop.permute.xlu0 %1709
        %1711 = vrot.lane.b32.xlu0 %v1706, 116
        %v1712 = vpop.permute.xlu0 %1711
        %v1713 = vsel %vm785, %v1710, %v1712
        %v1716 = vadd.f32 %v1701, %v1710
        %v1717 = vadd.f32 %v1702, %v1713
        %s1718 = sld [smem:[#allocation2 + $0x4d]]
        %v1719 = vstv %s1718
        %v1720 = vmul.f32 %v601, %v1719
        %v1721 = vmul.f32 %v1719, 0.0
        %1724 = vrot.lane.b32.xlu0 %v1720, 115
        %v1725 = vpop.permute.xlu0 %1724
        %1726 = vrot.lane.b32.xlu0 %v1721, 115
        %v1727 = vpop.permute.xlu0 %1726
        %v1728 = vsel %vm801, %v1725, %v1727
        %v1731 = vadd.f32 %v1716, %v1725
        %v1732 = vadd.f32 %v1717, %v1728
        %s1733 = sld [smem:[#allocation2 + $0x4e]]
        %v1734 = vstv %s1733
        %v1735 = vmul.f32 %v601, %v1734
        %v1736 = vmul.f32 %v1734, 0.0
        %1739 = vrot.lane.b32.xlu0 %v1735, 114
        %v1740 = vpop.permute.xlu0 %1739
        %1741 = vrot.lane.b32.xlu0 %v1736, 114
        %v1742 = vpop.permute.xlu0 %1741
        %v1743 = vsel %vm817, %v1740, %v1742
        %v1746 = vadd.f32 %v1731, %v1740
        %v1747 = vadd.f32 %v1732, %v1743
        %s1748 = sld [smem:[#allocation2 + $0x4f]]
        %v1749 = vstv %s1748
        %v1750 = vmul.f32 %v601, %v1749
        %v1751 = vmul.f32 %v1749, 0.0
        %1754 = vrot.lane.b32.xlu0 %v1750, 113
        %v1755 = vpop.permute.xlu0 %1754
        %1756 = vrot.lane.b32.xlu0 %v1751, 113
        %v1757 = vpop.permute.xlu0 %1756
        %v1758 = vsel %vm833, %v1755, %v1757
        %v1761 = vadd.f32 %v1746, %v1755
        %v1762 = vadd.f32 %v1747, %v1758
        %s1763 = sld [smem:[#allocation5 + $0x4]]
        %v1764 = vstv %s1763
        %v1765 = vmul.f32 %v1761, %v1764
        %v1766 = vmul.f32 %v1762, %v1764
        %s1767 = sld [smem:[#allocation7 + $0x4]]
        %v1768 = vstv %s1767
        %v1769 = vadd.f32 %v1765, %v1768
        %v1770 = vadd.f32 %v1766, %v1768
        %s1771 = sld [smem:[#allocation2 + $0x50]]
        %v1772 = vstv %s1771
        %v1773 = vmul.f32 %v1772, 0.0
        %v1774 = vmul.f32 %v601, %v1772
        %s1775 = sld [smem:[#allocation2 + $0x51]]
        %v1776 = vstv %s1775
        %v1777 = vmul.f32 %v1776, 0.0
        %v1778 = vmul.f32 %v601, %v1776
        %1781 = vrot.lane.b32.xlu0 %v1777, 127
        %v1782 = vpop.permute.xlu0 %1781
        %1783 = vrot.lane.b32.xlu0 %v1778, 127
        %v1784 = vpop.permute.xlu0 %1783
        %v1785 = vsel %vm616, %v1782, %v1784
        %v1788 = vadd.f32 %v1773, %v1785
        %v1789 = vadd.f32 %v1774, %v1784
        %s1790 = sld [smem:[#allocation2 + $0x52]]
        %v1791 = vstv %s1790
        %v1792 = vmul.f32 %v1791, 0.0
        %v1793 = vmul.f32 %v601, %v1791
        %1796 = vrot.lane.b32.xlu0 %v1792, 126
        %v1797 = vpop.permute.xlu0 %1796
        %1798 = vrot.lane.b32.xlu0 %v1793, 126
        %v1799 = vpop.permute.xlu0 %1798
        %v1800 = vsel %vm632, %v1797, %v1799
        %v1803 = vadd.f32 %v1788, %v1800
        %v1804 = vadd.f32 %v1789, %v1799
        %s1805 = sld [smem:[#allocation2 + $0x53]]
        %v1806 = vstv %s1805
        %v1807 = vmul.f32 %v1806, 0.0
        %v1808 = vmul.f32 %v601, %v1806
        %1811 = vrot.lane.b32.xlu0 %v1807, 125
        %v1812 = vpop.permute.xlu0 %1811
        %1813 = vrot.lane.b32.xlu0 %v1808, 125
        %v1814 = vpop.permute.xlu0 %1813
        %v1815 = vsel %vm648, %v1812, %v1814
        %v1818 = vadd.f32 %v1803, %v1815
        %v1819 = vadd.f32 %v1804, %v1814
        %s1820 = sld [smem:[#allocation2 + $0x54]]
        %v1821 = vstv %s1820
        %v1822 = vmul.f32 %v1821, 0.0
        %v1823 = vmul.f32 %v601, %v1821
        %1826 = vrot.lane.b32.xlu0 %v1822, 124
        %v1827 = vpop.permute.xlu0 %1826
        %1828 = vrot.lane.b32.xlu0 %v1823, 124
        %v1829 = vpop.permute.xlu0 %1828
        %v1830 = vsel %vm664, %v1827, %v1829
        %v1833 = vadd.f32 %v1818, %v1830
        %v1834 = vadd.f32 %v1819, %v1829
        %s1835 = sld [smem:[#allocation2 + $0x55]]
        %v1836 = vstv %s1835
        %v1837 = vmul.f32 %v1836, 0.0
        %v1838 = vmul.f32 %v601, %v1836
        %1841 = vrot.lane.b32.xlu0 %v1837, 123
        %v1842 = vpop.permute.xlu0 %1841
        %1843 = vrot.lane.b32.xlu0 %v1838, 123
        %v1844 = vpop.permute.xlu0 %1843
        %v1845 = vsel %vm680, %v1842, %v1844
        %v1848 = vadd.f32 %v1833, %v1845
        %v1849 = vadd.f32 %v1834, %v1844
        %s1850 = sld [smem:[#allocation2 + $0x56]]
        %v1851 = vstv %s1850
        %v1852 = vmul.f32 %v1851, 0.0
        %v1853 = vmul.f32 %v601, %v1851
        %1856 = vrot.lane.b32.xlu0 %v1852, 122
        %v1857 = vpop.permute.xlu0 %1856
        %1858 = vrot.lane.b32.xlu0 %v1853, 122
        %v1859 = vpop.permute.xlu0 %1858
        %v1860 = vsel %vm696, %v1857, %v1859
        %v1863 = vadd.f32 %v1848, %v1860
        %v1864 = vadd.f32 %v1849, %v1859
        %s1865 = sld [smem:[#allocation2 + $0x57]]
        %v1866 = vstv %s1865
        %v1867 = vmul.f32 %v601, %v1866
        %1869 = vrot.lane.b32.xlu0 %v1867, 121
        %v1870 = vpop.permute.xlu0 %1869
        %v1872 = vadd.f32 %v1863, %v1870
        %v1873 = vadd.f32 %v1864, %v1870
        %s1874 = sld [smem:[#allocation2 + $0x58]]
        %v1875 = vstv %s1874
        %v1876 = vmul.f32 %v601, %v1875
        %v1877 = vmul.f32 %v1875, 0.0
        %1880 = vrot.lane.b32.xlu0 %v1876, 120
        %v1881 = vpop.permute.xlu0 %1880
        %1882 = vrot.lane.b32.xlu0 %v1877, 120
        %v1883 = vpop.permute.xlu0 %1882
        %v1884 = vsel %vm721, %v1881, %v1883
        %v1887 = vadd.f32 %v1872, %v1881
        %v1888 = vadd.f32 %v1873, %v1884
        %s1889 = sld [smem:[#allocation2 + $0x59]]
        %v1890 = vstv %s1889
        %v1891 = vmul.f32 %v601, %v1890
        %v1892 = vmul.f32 %v1890, 0.0
        %1895 = vrot.lane.b32.xlu0 %v1891, 119
        %v1896 = vpop.permute.xlu0 %1895
        %1897 = vrot.lane.b32.xlu0 %v1892, 119
        %v1898 = vpop.permute.xlu0 %1897
        %v1899 = vsel %vm737, %v1896, %v1898
        %v1902 = vadd.f32 %v1887, %v1896
        %v1903 = vadd.f32 %v1888, %v1899
        %s1904 = sld [smem:[#allocation2 + $0x5a]]
        %v1905 = vstv %s1904
        %v1906 = vmul.f32 %v601, %v1905
        %v1907 = vmul.f32 %v1905, 0.0
        %1910 = vrot.lane.b32.xlu0 %v1906, 118
        %v1911 = vpop.permute.xlu0 %1910
        %1912 = vrot.lane.b32.xlu0 %v1907, 118
        %v1913 = vpop.permute.xlu0 %1912
        %v1914 = vsel %vm753, %v1911, %v1913
        %v1917 = vadd.f32 %v1902, %v1911
        %v1918 = vadd.f32 %v1903, %v1914
        %s1919 = sld [smem:[#allocation2 + $0x5b]]
        %v1920 = vstv %s1919
        %v1921 = vmul.f32 %v601, %v1920
        %v1922 = vmul.f32 %v1920, 0.0
        %1925 = vrot.lane.b32.xlu0 %v1921, 117
        %v1926 = vpop.permute.xlu0 %1925
        %1927 = vrot.lane.b32.xlu0 %v1922, 117
        %v1928 = vpop.permute.xlu0 %1927
        %v1929 = vsel %vm769, %v1926, %v1928
        %v1932 = vadd.f32 %v1917, %v1926
        %v1933 = vadd.f32 %v1918, %v1929
        %s1934 = sld [smem:[#allocation2 + $0x5c]]
        %v1935 = vstv %s1934
        %v1936 = vmul.f32 %v601, %v1935
        %v1937 = vmul.f32 %v1935, 0.0
        %1940 = vrot.lane.b32.xlu0 %v1936, 116
        %v1941 = vpop.permute.xlu0 %1940
        %1942 = vrot.lane.b32.xlu0 %v1937, 116
        %v1943 = vpop.permute.xlu0 %1942
        %v1944 = vsel %vm785, %v1941, %v1943
        %v1947 = vadd.f32 %v1932, %v1941
        %v1948 = vadd.f32 %v1933, %v1944
        %s1949 = sld [smem:[#allocation2 + $0x5d]]
        %v1950 = vstv %s1949
        %v1951 = vmul.f32 %v601, %v1950
        %v1952 = vmul.f32 %v1950, 0.0
        %1955 = vrot.lane.b32.xlu0 %v1951, 115
        %v1956 = vpop.permute.xlu0 %1955
        %1957 = vrot.lane.b32.xlu0 %v1952, 115
        %v1958 = vpop.permute.xlu0 %1957
        %v1959 = vsel %vm801, %v1956, %v1958
        %v1962 = vadd.f32 %v1947, %v1956
        %v1963 = vadd.f32 %v1948, %v1959
        %s1964 = sld [smem:[#allocation2 + $0x5e]]
        %v1965 = vstv %s1964
        %v1966 = vmul.f32 %v601, %v1965
        %v1967 = vmul.f32 %v1965, 0.0
        %1970 = vrot.lane.b32.xlu0 %v1966, 114
        %v1971 = vpop.permute.xlu0 %1970
        %1972 = vrot.lane.b32.xlu0 %v1967, 114
        %v1973 = vpop.permute.xlu0 %1972
        %v1974 = vsel %vm817, %v1971, %v1973
        %v1977 = vadd.f32 %v1962, %v1971
        %v1978 = vadd.f32 %v1963, %v1974
        %s1979 = sld [smem:[#allocation2 + $0x5f]]
        %v1980 = vstv %s1979
        %v1981 = vmul.f32 %v601, %v1980
        %v1982 = vmul.f32 %v1980, 0.0
        %1985 = vrot.lane.b32.xlu0 %v1981, 113
        %v1986 = vpop.permute.xlu0 %1985
        %1987 = vrot.lane.b32.xlu0 %v1982, 113
        %v1988 = vpop.permute.xlu0 %1987
        %v1989 = vsel %vm833, %v1986, %v1988
        %v1992 = vadd.f32 %v1977, %v1986
        %v1993 = vadd.f32 %v1978, %v1989
        %s1994 = sld [smem:[#allocation5 + $0x5]]
        %v1995 = vstv %s1994
        %v1996 = vmul.f32 %v1992, %v1995
        %v1997 = vmul.f32 %v1993, %v1995
        %s1998 = sld [smem:[#allocation7 + $0x5]]
        %v1999 = vstv %s1998
        %v2000 = vadd.f32 %v1996, %v1999
        %v2001 = vadd.f32 %v1997, %v1999
        %s2002 = sld [smem:[#allocation2 + $0x60]]
        %v2003 = vstv %s2002
        %v2004 = vmul.f32 %v2003, 0.0
        %v2005 = vmul.f32 %v601, %v2003
        %s2006 = sld [smem:[#allocation2 + $0x61]]
        %v2007 = vstv %s2006
        %v2008 = vmul.f32 %v2007, 0.0
        %v2009 = vmul.f32 %v601, %v2007
        %2012 = vrot.lane.b32.xlu0 %v2008, 127
        %v2013 = vpop.permute.xlu0 %2012
        %2014 = vrot.lane.b32.xlu0 %v2009, 127
        %v2015 = vpop.permute.xlu0 %2014
        %v2016 = vsel %vm616, %v2013, %v2015
        %v2019 = vadd.f32 %v2004, %v2016
        %v2020 = vadd.f32 %v2005, %v2015
        %s2021 = sld [smem:[#allocation2 + $0x62]]
        %v2022 = vstv %s2021
        %v2023 = vmul.f32 %v2022, 0.0
        %v2024 = vmul.f32 %v601, %v2022
        %2027 = vrot.lane.b32.xlu0 %v2023, 126
        %v2028 = vpop.permute.xlu0 %2027
        %2029 = vrot.lane.b32.xlu0 %v2024, 126
        %v2030 = vpop.permute.xlu0 %2029
        %v2031 = vsel %vm632, %v2028, %v2030
        %v2034 = vadd.f32 %v2019, %v2031
        %v2035 = vadd.f32 %v2020, %v2030
        %s2036 = sld [smem:[#allocation2 + $0x63]]
        %v2037 = vstv %s2036
        %v2038 = vmul.f32 %v2037, 0.0
        %v2039 = vmul.f32 %v601, %v2037
        %2042 = vrot.lane.b32.xlu0 %v2038, 125
        %v2043 = vpop.permute.xlu0 %2042
        %2044 = vrot.lane.b32.xlu0 %v2039, 125
        %v2045 = vpop.permute.xlu0 %2044
        %v2046 = vsel %vm648, %v2043, %v2045
        %v2049 = vadd.f32 %v2034, %v2046
        %v2050 = vadd.f32 %v2035, %v2045
        %s2051 = sld [smem:[#allocation2 + $0x64]]
        %v2052 = vstv %s2051
        %v2053 = vmul.f32 %v2052, 0.0
        %v2054 = vmul.f32 %v601, %v2052
        %2057 = vrot.lane.b32.xlu0 %v2053, 124
        %v2058 = vpop.permute.xlu0 %2057
        %2059 = vrot.lane.b32.xlu0 %v2054, 124
        %v2060 = vpop.permute.xlu0 %2059
        %v2061 = vsel %vm664, %v2058, %v2060
        %v2064 = vadd.f32 %v2049, %v2061
        %v2065 = vadd.f32 %v2050, %v2060
        %s2066 = sld [smem:[#allocation2 + $0x65]]
        %v2067 = vstv %s2066
        %v2068 = vmul.f32 %v2067, 0.0
        %v2069 = vmul.f32 %v601, %v2067
        %2072 = vrot.lane.b32.xlu0 %v2068, 123
        %v2073 = vpop.permute.xlu0 %2072
        %2074 = vrot.lane.b32.xlu0 %v2069, 123
        %v2075 = vpop.permute.xlu0 %2074
        %v2076 = vsel %vm680, %v2073, %v2075
        %v2079 = vadd.f32 %v2064, %v2076
        %v2080 = vadd.f32 %v2065, %v2075
        %s2081 = sld [smem:[#allocation2 + $0x66]]
        %v2082 = vstv %s2081
        %v2083 = vmul.f32 %v2082, 0.0
        %v2084 = vmul.f32 %v601, %v2082
        %2087 = vrot.lane.b32.xlu0 %v2083, 122
        %v2088 = vpop.permute.xlu0 %2087
        %2089 = vrot.lane.b32.xlu0 %v2084, 122
        %v2090 = vpop.permute.xlu0 %2089
        %v2091 = vsel %vm696, %v2088, %v2090
        %v2094 = vadd.f32 %v2079, %v2091
        %v2095 = vadd.f32 %v2080, %v2090
        %s2096 = sld [smem:[#allocation2 + $0x67]]
        %v2097 = vstv %s2096
        %v2098 = vmul.f32 %v601, %v2097
        %2100 = vrot.lane.b32.xlu0 %v2098, 121
        %v2101 = vpop.permute.xlu0 %2100
        %v2103 = vadd.f32 %v2094, %v2101
        %v2104 = vadd.f32 %v2095, %v2101
        %s2105 = sld [smem:[#allocation2 + $0x68]]
        %v2106 = vstv %s2105
        %v2107 = vmul.f32 %v601, %v2106
        %v2108 = vmul.f32 %v2106, 0.0
        %2111 = vrot.lane.b32.xlu0 %v2107, 120
        %v2112 = vpop.permute.xlu0 %2111
        %2113 = vrot.lane.b32.xlu0 %v2108, 120
        %v2114 = vpop.permute.xlu0 %2113
        %v2115 = vsel %vm721, %v2112, %v2114
        %v2118 = vadd.f32 %v2103, %v2112
        %v2119 = vadd.f32 %v2104, %v2115
        %s2120 = sld [smem:[#allocation2 + $0x69]]
        %v2121 = vstv %s2120
        %v2122 = vmul.f32 %v601, %v2121
        %v2123 = vmul.f32 %v2121, 0.0
        %2126 = vrot.lane.b32.xlu0 %v2122, 119
        %v2127 = vpop.permute.xlu0 %2126
        %2128 = vrot.lane.b32.xlu0 %v2123, 119
        %v2129 = vpop.permute.xlu0 %2128
        %v2130 = vsel %vm737, %v2127, %v2129
        %v2133 = vadd.f32 %v2118, %v2127
        %v2134 = vadd.f32 %v2119, %v2130
        %s2135 = sld [smem:[#allocation2 + $0x6a]]
        %v2136 = vstv %s2135
        %v2137 = vmul.f32 %v601, %v2136
        %v2138 = vmul.f32 %v2136, 0.0
        %2141 = vrot.lane.b32.xlu0 %v2137, 118
        %v2142 = vpop.permute.xlu0 %2141
        %2143 = vrot.lane.b32.xlu0 %v2138, 118
        %v2144 = vpop.permute.xlu0 %2143
        %v2145 = vsel %vm753, %v2142, %v2144
        %v2148 = vadd.f32 %v2133, %v2142
        %v2149 = vadd.f32 %v2134, %v2145
        %s2150 = sld [smem:[#allocation2 + $0x6b]]
        %v2151 = vstv %s2150
        %v2152 = vmul.f32 %v601, %v2151
        %v2153 = vmul.f32 %v2151, 0.0
        %2156 = vrot.lane.b32.xlu0 %v2152, 117
        %v2157 = vpop.permute.xlu0 %2156
        %2158 = vrot.lane.b32.xlu0 %v2153, 117
        %v2159 = vpop.permute.xlu0 %2158
        %v2160 = vsel %vm769, %v2157, %v2159
        %v2163 = vadd.f32 %v2148, %v2157
        %v2164 = vadd.f32 %v2149, %v2160
        %s2165 = sld [smem:[#allocation2 + $0x6c]]
        %v2166 = vstv %s2165
        %v2167 = vmul.f32 %v601, %v2166
        %v2168 = vmul.f32 %v2166, 0.0
        %2171 = vrot.lane.b32.xlu0 %v2167, 116
        %v2172 = vpop.permute.xlu0 %2171
        %2173 = vrot.lane.b32.xlu0 %v2168, 116
        %v2174 = vpop.permute.xlu0 %2173
        %v2175 = vsel %vm785, %v2172, %v2174
        %v2178 = vadd.f32 %v2163, %v2172
        %v2179 = vadd.f32 %v2164, %v2175
        %s2180 = sld [smem:[#allocation2 + $0x6d]]
        %v2181 = vstv %s2180
        %v2182 = vmul.f32 %v601, %v2181
        %v2183 = vmul.f32 %v2181, 0.0
        %2186 = vrot.lane.b32.xlu0 %v2182, 115
        %v2187 = vpop.permute.xlu0 %2186
        %2188 = vrot.lane.b32.xlu0 %v2183, 115
        %v2189 = vpop.permute.xlu0 %2188
        %v2190 = vsel %vm801, %v2187, %v2189
        %v2193 = vadd.f32 %v2178, %v2187
        %v2194 = vadd.f32 %v2179, %v2190
        %s2195 = sld [smem:[#allocation2 + $0x6e]]
        %v2196 = vstv %s2195
        %v2197 = vmul.f32 %v601, %v2196
        %v2198 = vmul.f32 %v2196, 0.0
        %2201 = vrot.lane.b32.xlu0 %v2197, 114
        %v2202 = vpop.permute.xlu0 %2201
        %2203 = vrot.lane.b32.xlu0 %v2198, 114
        %v2204 = vpop.permute.xlu0 %2203
        %v2205 = vsel %vm817, %v2202, %v2204
        %v2208 = vadd.f32 %v2193, %v2202
        %v2209 = vadd.f32 %v2194, %v2205
        %s2210 = sld [smem:[#allocation2 + $0x6f]]
        %v2211 = vstv %s2210
        %v2212 = vmul.f32 %v601, %v2211
        %v2213 = vmul.f32 %v2211, 0.0
        %2216 = vrot.lane.b32.xlu0 %v2212, 113
        %v2217 = vpop.permute.xlu0 %2216
        %2218 = vrot.lane.b32.xlu0 %v2213, 113
        %v2219 = vpop.permute.xlu0 %2218
        %v2220 = vsel %vm833, %v2217, %v2219
        %v2223 = vadd.f32 %v2208, %v2217
        %v2224 = vadd.f32 %v2209, %v2220
        %s2225 = sld [smem:[#allocation5 + $0x6]]
        %v2226 = vstv %s2225
        %v2227 = vmul.f32 %v2223, %v2226
        %v2228 = vmul.f32 %v2224, %v2226
        %s2229 = sld [smem:[#allocation7 + $0x6]]
        %v2230 = vstv %s2229
        %v2231 = vadd.f32 %v2227, %v2230
        %v2232 = vadd.f32 %v2228, %v2230
        %s2233 = sld [smem:[#allocation2 + $0x70]]
        %v2234 = vstv %s2233
        %v2235 = vmul.f32 %v2234, 0.0
        %v2236 = vmul.f32 %v601, %v2234
        %s2237 = sld [smem:[#allocation2 + $0x71]]
        %v2238 = vstv %s2237
        %v2239 = vmul.f32 %v2238, 0.0
        %v2240 = vmul.f32 %v601, %v2238
        %2243 = vrot.lane.b32.xlu0 %v2239, 127
        %v2244 = vpop.permute.xlu0 %2243
        %2245 = vrot.lane.b32.xlu0 %v2240, 127
        %v2246 = vpop.permute.xlu0 %2245
        %v2247 = vsel %vm616, %v2244, %v2246
        %v2250 = vadd.f32 %v2235, %v2247
        %v2251 = vadd.f32 %v2236, %v2246
        %s2252 = sld [smem:[#allocation2 + $0x72]]
        %v2253 = vstv %s2252
        %v2254 = vmul.f32 %v2253, 0.0
        %v2255 = vmul.f32 %v601, %v2253
        %2258 = vrot.lane.b32.xlu0 %v2254, 126
        %v2259 = vpop.permute.xlu0 %2258
        %2260 = vrot.lane.b32.xlu0 %v2255, 126
        %v2261 = vpop.permute.xlu0 %2260
        %v2262 = vsel %vm632, %v2259, %v2261
        %v2265 = vadd.f32 %v2250, %v2262
        %v2266 = vadd.f32 %v2251, %v2261
        %s2267 = sld [smem:[#allocation2 + $0x73]]
        %v2268 = vstv %s2267
        %v2269 = vmul.f32 %v2268, 0.0
        %v2270 = vmul.f32 %v601, %v2268
        %2273 = vrot.lane.b32.xlu0 %v2269, 125
        %v2274 = vpop.permute.xlu0 %2273
        %2275 = vrot.lane.b32.xlu0 %v2270, 125
        %v2276 = vpop.permute.xlu0 %2275
        %v2277 = vsel %vm648, %v2274, %v2276
        %v2280 = vadd.f32 %v2265, %v2277
        %v2281 = vadd.f32 %v2266, %v2276
        %s2282 = sld [smem:[#allocation2 + $0x74]]
        %v2283 = vstv %s2282
        %v2284 = vmul.f32 %v2283, 0.0
        %v2285 = vmul.f32 %v601, %v2283
        %2288 = vrot.lane.b32.xlu0 %v2284, 124
        %v2289 = vpop.permute.xlu0 %2288
        %2290 = vrot.lane.b32.xlu0 %v2285, 124
        %v2291 = vpop.permute.xlu0 %2290
        %v2292 = vsel %vm664, %v2289, %v2291
        %v2295 = vadd.f32 %v2280, %v2292
        %v2296 = vadd.f32 %v2281, %v2291
        %s2297 = sld [smem:[#allocation2 + $0x75]]
        %v2298 = vstv %s2297
        %v2299 = vmul.f32 %v2298, 0.0
        %v2300 = vmul.f32 %v601, %v2298
        %2303 = vrot.lane.b32.xlu0 %v2299, 123
        %v2304 = vpop.permute.xlu0 %2303
        %2305 = vrot.lane.b32.xlu0 %v2300, 123
        %v2306 = vpop.permute.xlu0 %2305
        %v2307 = vsel %vm680, %v2304, %v2306
        %v2310 = vadd.f32 %v2295, %v2307
        %v2311 = vadd.f32 %v2296, %v2306
        %s2312 = sld [smem:[#allocation2 + $0x76]]
        %v2313 = vstv %s2312
        %v2314 = vmul.f32 %v2313, 0.0
        %v2315 = vmul.f32 %v601, %v2313
        %2318 = vrot.lane.b32.xlu0 %v2314, 122
        %v2319 = vpop.permute.xlu0 %2318
        %2320 = vrot.lane.b32.xlu0 %v2315, 122
        %v2321 = vpop.permute.xlu0 %2320
        %v2322 = vsel %vm696, %v2319, %v2321
        %v2325 = vadd.f32 %v2310, %v2322
        %v2326 = vadd.f32 %v2311, %v2321
        %s2327 = sld [smem:[#allocation2 + $0x77]]
        %v2328 = vstv %s2327
        %v2329 = vmul.f32 %v601, %v2328
        %2331 = vrot.lane.b32.xlu0 %v2329, 121
        %v2332 = vpop.permute.xlu0 %2331
        %v2334 = vadd.f32 %v2325, %v2332
        %v2335 = vadd.f32 %v2326, %v2332
        %s2336 = sld [smem:[#allocation2 + $0x78]]
        %v2337 = vstv %s2336
        %v2338 = vmul.f32 %v601, %v2337
        %v2339 = vmul.f32 %v2337, 0.0
        %2342 = vrot.lane.b32.xlu0 %v2338, 120
        %v2343 = vpop.permute.xlu0 %2342
        %2344 = vrot.lane.b32.xlu0 %v2339, 120
        %v2345 = vpop.permute.xlu0 %2344
        %v2346 = vsel %vm721, %v2343, %v2345
        %v2349 = vadd.f32 %v2334, %v2343
        %v2350 = vadd.f32 %v2335, %v2346
        %s2351 = sld [smem:[#allocation2 + $0x79]]
        %v2352 = vstv %s2351
        %v2353 = vmul.f32 %v601, %v2352
        %v2354 = vmul.f32 %v2352, 0.0
        %2357 = vrot.lane.b32.xlu0 %v2353, 119
        %v2358 = vpop.permute.xlu0 %2357
        %2359 = vrot.lane.b32.xlu0 %v2354, 119
        %v2360 = vpop.permute.xlu0 %2359
        %v2361 = vsel %vm737, %v2358, %v2360
        %v2364 = vadd.f32 %v2349, %v2358
        %v2365 = vadd.f32 %v2350, %v2361
        %s2366 = sld [smem:[#allocation2 + $0x7a]]
        %v2367 = vstv %s2366
        %v2368 = vmul.f32 %v601, %v2367
        %v2369 = vmul.f32 %v2367, 0.0
        %2372 = vrot.lane.b32.xlu0 %v2368, 118
        %v2373 = vpop.permute.xlu0 %2372
        %2374 = vrot.lane.b32.xlu0 %v2369, 118
        %v2375 = vpop.permute.xlu0 %2374
        %v2376 = vsel %vm753, %v2373, %v2375
        %v2379 = vadd.f32 %v2364, %v2373
        %v2380 = vadd.f32 %v2365, %v2376
        %s2381 = sld [smem:[#allocation2 + $0x7b]]
        %v2382 = vstv %s2381
        %v2383 = vmul.f32 %v601, %v2382
        %v2384 = vmul.f32 %v2382, 0.0
        %2387 = vrot.lane.b32.xlu0 %v2383, 117
        %v2388 = vpop.permute.xlu0 %2387
        %2389 = vrot.lane.b32.xlu0 %v2384, 117
        %v2390 = vpop.permute.xlu0 %2389
        %v2391 = vsel %vm769, %v2388, %v2390
        %v2394 = vadd.f32 %v2379, %v2388
        %v2395 = vadd.f32 %v2380, %v2391
        %s2396 = sld [smem:[#allocation2 + $0x7c]]
        %v2397 = vstv %s2396
        %v2398 = vmul.f32 %v601, %v2397
        %v2399 = vmul.f32 %v2397, 0.0
        %2402 = vrot.lane.b32.xlu0 %v2398, 116
        %v2403 = vpop.permute.xlu0 %2402
        %2404 = vrot.lane.b32.xlu0 %v2399, 116
        %v2405 = vpop.permute.xlu0 %2404
        %v2406 = vsel %vm785, %v2403, %v2405
        %v2409 = vadd.f32 %v2394, %v2403
        %v2410 = vadd.f32 %v2395, %v2406
        %s2411 = sld [smem:[#allocation2 + $0x7d]]
        %v2412 = vstv %s2411
        %v2413 = vmul.f32 %v601, %v2412
        %v2414 = vmul.f32 %v2412, 0.0
        %2417 = vrot.lane.b32.xlu0 %v2413, 115
        %v2418 = vpop.permute.xlu0 %2417
        %2419 = vrot.lane.b32.xlu0 %v2414, 115
        %v2420 = vpop.permute.xlu0 %2419
        %v2421 = vsel %vm801, %v2418, %v2420
        %v2424 = vadd.f32 %v2409, %v2418
        %v2425 = vadd.f32 %v2410, %v2421
        %s2426 = sld [smem:[#allocation2 + $0x7e]]
        %v2427 = vstv %s2426
        %v2428 = vmul.f32 %v601, %v2427
        %v2429 = vmul.f32 %v2427, 0.0
        %2432 = vrot.lane.b32.xlu0 %v2428, 114
        %v2433 = vpop.permute.xlu0 %2432
        %2434 = vrot.lane.b32.xlu0 %v2429, 114
        %v2435 = vpop.permute.xlu0 %2434
        %v2436 = vsel %vm817, %v2433, %v2435
        %v2439 = vadd.f32 %v2424, %v2433
        %v2440 = vadd.f32 %v2425, %v2436
        %s2441 = sld [smem:[#allocation2 + $0x7f]]
        %v2442 = vstv %s2441
        %v2443 = vmul.f32 %v601, %v2442
        %v2444 = vmul.f32 %v2442, 0.0
        %2447 = vrot.lane.b32.xlu0 %v2443, 113
        %v2448 = vpop.permute.xlu0 %2447
        %2449 = vrot.lane.b32.xlu0 %v2444, 113
        %v2450 = vpop.permute.xlu0 %2449
        %v2451 = vsel %vm833, %v2448, %v2450
        %v2454 = vadd.f32 %v2439, %v2448
        %v2455 = vadd.f32 %v2440, %v2451
        %s2456 = sld [smem:[#allocation5 + $0x7]]
        %v2457 = vstv %s2456
        %v2458 = vmul.f32 %v2454, %v2457
        %v2459 = vmul.f32 %v2455, %v2457
        %s2460 = sld [smem:[#allocation7 + $0x7]]
        %v2461 = vstv %s2460
        %v2462 = vadd.f32 %v2458, %v2461
        %v2463 = vadd.f32 %v2459, %v2461
        %s2464 = sld [smem:[#allocation8]]
        %v2465 = vstv %s2464
        %v2466 = vmul.f32 %v845, %v2465
        %v2467 = vmul.f32 %v846, %v2465
        %s2468 = sld [smem:[#allocation8 + $0x1]]
        %v2469 = vstv %s2468
        %v2470 = vmul.f32 %v845, %v2469
        %v2471 = vmul.f32 %v846, %v2469
        %v2474 = vrot.slane %v2470, 1
        %v2475 = vrot.slane %v2471, 1
        %v2478 = vadd.f32 %v2466, %v2474
        %v2479 = vadd.f32 %v2467, %v2475
        %s2480 = sld [smem:[#allocation8 + $0x2]]
        %v2481 = vstv %s2480
        %v2482 = vmul.f32 %v845, %v2481
        %v2483 = vmul.f32 %v846, %v2481
        %v2486 = vrot.slane %v2482, 2
        %v2487 = vrot.slane %v2483, 2
        %v2490 = vadd.f32 %v2478, %v2486
        %v2491 = vadd.f32 %v2479, %v2487
        %s2492 = sld [smem:[#allocation8 + $0x3]]
        %v2493 = vstv %s2492
        %v2494 = vmul.f32 %v845, %v2493
        %v2495 = vmul.f32 %v846, %v2493
        %v2498 = vrot.slane %v2494, 3
        %v2499 = vrot.slane %v2495, 3
        %v2502 = vadd.f32 %v2490, %v2498
        %v2503 = vadd.f32 %v2491, %v2499
        %s2504 = sld [smem:[#allocation8 + $0x4]]
        %v2505 = vstv %s2504
        %v2506 = vmul.f32 %v845, %v2505
        %v2507 = vmul.f32 %v846, %v2505
        %v2510 = vrot.slane %v2506, 4
        %v2511 = vrot.slane %v2507, 4
        %v2514 = vadd.f32 %v2502, %v2510
        %v2515 = vadd.f32 %v2503, %v2511
        %s2516 = sld [smem:[#allocation8 + $0x5]]
        %v2517 = vstv %s2516
        %v2518 = vmul.f32 %v845, %v2517
        %v2519 = vmul.f32 %v846, %v2517
        %v2522 = vrot.slane %v2518, 5
        %v2523 = vrot.slane %v2519, 5
        %v2526 = vadd.f32 %v2514, %v2522
        %v2527 = vadd.f32 %v2515, %v2523
        %s2528 = sld [smem:[#allocation8 + $0x6]]
        %v2529 = vstv %s2528
        %v2530 = vmul.f32 %v845, %v2529
        %v2531 = vmul.f32 %v846, %v2529
        %v2534 = vrot.slane %v2530, 6
        %v2535 = vrot.slane %v2531, 6
        %v2538 = vadd.f32 %v2526, %v2534
        %v2539 = vadd.f32 %v2527, %v2535
        %s2540 = sld [smem:[#allocation8 + $0x7]]
        %v2541 = vstv %s2540
        %v2542 = vmul.f32 %v845, %v2541
        %v2543 = vmul.f32 %v846, %v2541
        %v2546 = vrot.slane %v2542, 7
        %v2547 = vrot.slane %v2543, 7
        %v2550 = vadd.f32 %v2538, %v2546
        %v2551 = vadd.f32 %v2539, %v2547
        %s2552 = sld [smem:[#allocation10]]
        %v2553 = vstv %s2552
        %v2554 = vmul.f32 %v2550, %v2553
        %v2555 = vmul.f32 %v2551, %v2553
        %s2556 = sld [smem:[#allocation11]]
        %v2557 = vstv %s2556
        %v2558 = vadd.f32 %v2554, %v2557
        %v2559 = vadd.f32 %v2555, %v2557
        %s2560 = sld [smem:[#allocation8 + $0x8]]
        %v2561 = vstv %s2560
        %v2562 = vmul.f32 %v845, %v2561
        %v2563 = vmul.f32 %v846, %v2561
        %s2564 = sld [smem:[#allocation8 + $0x9]]
        %v2565 = vstv %s2564
        %v2566 = vmul.f32 %v845, %v2565
        %v2567 = vmul.f32 %v846, %v2565
        %v2570 = vrot.slane %v2566, 1
        %v2571 = vrot.slane %v2567, 1
        %v2574 = vadd.f32 %v2562, %v2570
        %v2575 = vadd.f32 %v2563, %v2571
        %s2576 = sld [smem:[#allocation8 + $0xa]]
        %v2577 = vstv %s2576
        %v2578 = vmul.f32 %v845, %v2577
        %v2579 = vmul.f32 %v846, %v2577
        %v2582 = vrot.slane %v2578, 2
        %v2583 = vrot.slane %v2579, 2
        %v2586 = vadd.f32 %v2574, %v2582
        %v2587 = vadd.f32 %v2575, %v2583
        %s2588 = sld [smem:[#allocation8 + $0xb]]
        %v2589 = vstv %s2588
        %v2590 = vmul.f32 %v845, %v2589
        %v2591 = vmul.f32 %v846, %v2589
        %v2594 = vrot.slane %v2590, 3
        %v2595 = vrot.slane %v2591, 3
        %v2598 = vadd.f32 %v2586, %v2594
        %v2599 = vadd.f32 %v2587, %v2595
        %s2600 = sld [smem:[#allocation8 + $0xc]]
        %v2601 = vstv %s2600
        %v2602 = vmul.f32 %v845, %v2601
        %v2603 = vmul.f32 %v846, %v2601
        %v2606 = vrot.slane %v2602, 4
        %v2607 = vrot.slane %v2603, 4
        %v2610 = vadd.f32 %v2598, %v2606
        %v2611 = vadd.f32 %v2599, %v2607
        %s2612 = sld [smem:[#allocation8 + $0xd]]
        %v2613 = vstv %s2612
        %v2614 = vmul.f32 %v845, %v2613
        %v2615 = vmul.f32 %v846, %v2613
        %v2618 = vrot.slane %v2614, 5
        %v2619 = vrot.slane %v2615, 5
        %v2622 = vadd.f32 %v2610, %v2618
        %v2623 = vadd.f32 %v2611, %v2619
        %s2624 = sld [smem:[#allocation8 + $0xe]]
        %v2625 = vstv %s2624
        %v2626 = vmul.f32 %v845, %v2625
        %v2627 = vmul.f32 %v846, %v2625
        %v2630 = vrot.slane %v2626, 6
        %v2631 = vrot.slane %v2627, 6
        %v2634 = vadd.f32 %v2622, %v2630
        %v2635 = vadd.f32 %v2623, %v2631
        %s2636 = sld [smem:[#allocation8 + $0xf]]
        %v2637 = vstv %s2636
        %v2638 = vmul.f32 %v845, %v2637
        %v2639 = vmul.f32 %v846, %v2637
        %v2642 = vrot.slane %v2638, 7
        %v2643 = vrot.slane %v2639, 7
        %v2646 = vadd.f32 %v2634, %v2642
        %v2647 = vadd.f32 %v2635, %v2643
        %s2648 = sld [smem:[#allocation10 + $0x1]]
        %v2649 = vstv %s2648
        %v2650 = vmul.f32 %v2646, %v2649
        %v2651 = vmul.f32 %v2647, %v2649
        %s2652 = sld [smem:[#allocation11 + $0x1]]
        %v2653 = vstv %s2652
        %v2654 = vadd.f32 %v2650, %v2653
        %v2655 = vadd.f32 %v2651, %v2653
        %s2656 = sld [smem:[#allocation8 + $0x10]]
        %v2657 = vstv %s2656
        %v2658 = vmul.f32 %v1076, %v2657
        %v2659 = vmul.f32 %v1077, %v2657
        %s2660 = sld [smem:[#allocation8 + $0x11]]
        %v2661 = vstv %s2660
        %v2662 = vmul.f32 %v1076, %v2661
        %v2663 = vmul.f32 %v1077, %v2661
        %v2666 = vrot.slane %v2662, 1
        %v2667 = vrot.slane %v2663, 1
        %v2670 = vadd.f32 %v2658, %v2666
        %v2671 = vadd.f32 %v2659, %v2667
        %s2672 = sld [smem:[#allocation8 + $0x12]]
        %v2673 = vstv %s2672
        %v2674 = vmul.f32 %v1076, %v2673
        %v2675 = vmul.f32 %v1077, %v2673
        %v2678 = vrot.slane %v2674, 2
        %v2679 = vrot.slane %v2675, 2
        %v2682 = vadd.f32 %v2670, %v2678
        %v2683 = vadd.f32 %v2671, %v2679
        %s2684 = sld [smem:[#allocation8 + $0x13]]
        %v2685 = vstv %s2684
        %v2686 = vmul.f32 %v1076, %v2685
        %v2687 = vmul.f32 %v1077, %v2685
        %v2690 = vrot.slane %v2686, 3
        %v2691 = vrot.slane %v2687, 3
        %v2694 = vadd.f32 %v2682, %v2690
        %v2695 = vadd.f32 %v2683, %v2691
        %s2696 = sld [smem:[#allocation8 + $0x14]]
        %v2697 = vstv %s2696
        %v2698 = vmul.f32 %v1076, %v2697
        %v2699 = vmul.f32 %v1077, %v2697
        %v2702 = vrot.slane %v2698, 4
        %v2703 = vrot.slane %v2699, 4
        %v2706 = vadd.f32 %v2694, %v2702
        %v2707 = vadd.f32 %v2695, %v2703
        %s2708 = sld [smem:[#allocation8 + $0x15]]
        %v2709 = vstv %s2708
        %v2710 = vmul.f32 %v1076, %v2709
        %v2711 = vmul.f32 %v1077, %v2709
        %v2714 = vrot.slane %v2710, 5
        %v2715 = vrot.slane %v2711, 5
        %v2718 = vadd.f32 %v2706, %v2714
        %v2719 = vadd.f32 %v2707, %v2715
        %s2720 = sld [smem:[#allocation8 + $0x16]]
        %v2721 = vstv %s2720
        %v2722 = vmul.f32 %v1076, %v2721
        %v2723 = vmul.f32 %v1077, %v2721
        %v2726 = vrot.slane %v2722, 6
        %v2727 = vrot.slane %v2723, 6
        %v2730 = vadd.f32 %v2718, %v2726
        %v2731 = vadd.f32 %v2719, %v2727
        %s2732 = sld [smem:[#allocation8 + $0x17]]
        %v2733 = vstv %s2732
        %v2734 = vmul.f32 %v1076, %v2733
        %v2735 = vmul.f32 %v1077, %v2733
        %v2738 = vrot.slane %v2734, 7
        %v2739 = vrot.slane %v2735, 7
        %v2742 = vadd.f32 %v2730, %v2738
        %v2743 = vadd.f32 %v2731, %v2739
        %s2744 = sld [smem:[#allocation10 + $0x2]]
        %v2745 = vstv %s2744
        %v2746 = vmul.f32 %v2742, %v2745
        %v2747 = vmul.f32 %v2743, %v2745
        %s2748 = sld [smem:[#allocation11 + $0x2]]
        %v2749 = vstv %s2748
        %v2750 = vadd.f32 %v2746, %v2749
        %v2751 = vadd.f32 %v2747, %v2749
        %s2752 = sld [smem:[#allocation8 + $0x18]]
        %v2753 = vstv %s2752
        %v2754 = vmul.f32 %v1076, %v2753
        %v2755 = vmul.f32 %v1077, %v2753
        %s2756 = sld [smem:[#allocation8 + $0x19]]
        %v2757 = vstv %s2756
        %v2758 = vmul.f32 %v1076, %v2757
        %v2759 = vmul.f32 %v1077, %v2757
        %v2762 = vrot.slane %v2758, 1
        %v2763 = vrot.slane %v2759, 1
        %v2766 = vadd.f32 %v2754, %v2762
        %v2767 = vadd.f32 %v2755, %v2763
        %s2768 = sld [smem:[#allocation8 + $0x1a]]
        %v2769 = vstv %s2768
        %v2770 = vmul.f32 %v1076, %v2769
        %v2771 = vmul.f32 %v1077, %v2769
        %v2774 = vrot.slane %v2770, 2
        %v2775 = vrot.slane %v2771, 2
        %v2778 = vadd.f32 %v2766, %v2774
        %v2779 = vadd.f32 %v2767, %v2775
        %s2780 = sld [smem:[#allocation8 + $0x1b]]
        %v2781 = vstv %s2780
        %v2782 = vmul.f32 %v1076, %v2781
        %v2783 = vmul.f32 %v1077, %v2781
        %v2786 = vrot.slane %v2782, 3
        %v2787 = vrot.slane %v2783, 3
        %v2790 = vadd.f32 %v2778, %v2786
        %v2791 = vadd.f32 %v2779, %v2787
        %s2792 = sld [smem:[#allocation8 + $0x1c]]
        %v2793 = vstv %s2792
        %v2794 = vmul.f32 %v1076, %v2793
        %v2795 = vmul.f32 %v1077, %v2793
        %v2798 = vrot.slane %v2794, 4
        %v2799 = vrot.slane %v2795, 4
        %v2802 = vadd.f32 %v2790, %v2798
        %v2803 = vadd.f32 %v2791, %v2799
        %s2804 = sld [smem:[#allocation8 + $0x1d]]
        %v2805 = vstv %s2804
        %v2806 = vmul.f32 %v1076, %v2805
        %v2807 = vmul.f32 %v1077, %v2805
        %v2810 = vrot.slane %v2806, 5
        %v2811 = vrot.slane %v2807, 5
        %v2814 = vadd.f32 %v2802, %v2810
        %v2815 = vadd.f32 %v2803, %v2811
        %s2816 = sld [smem:[#allocation8 + $0x1e]]
        %v2817 = vstv %s2816
        %v2818 = vmul.f32 %v1076, %v2817
        %v2819 = vmul.f32 %v1077, %v2817
        %v2822 = vrot.slane %v2818, 6
        %v2823 = vrot.slane %v2819, 6
        %v2826 = vadd.f32 %v2814, %v2822
        %v2827 = vadd.f32 %v2815, %v2823
        %s2828 = sld [smem:[#allocation8 + $0x1f]]
        %v2829 = vstv %s2828
        %v2830 = vmul.f32 %v1076, %v2829
        %v2831 = vmul.f32 %v1077, %v2829
        %v2834 = vrot.slane %v2830, 7
        %v2835 = vrot.slane %v2831, 7
        %v2838 = vadd.f32 %v2826, %v2834
        %v2839 = vadd.f32 %v2827, %v2835
        %s2840 = sld [smem:[#allocation10 + $0x3]]
        %v2841 = vstv %s2840
        %v2842 = vmul.f32 %v2838, %v2841
        %v2843 = vmul.f32 %v2839, %v2841
        %s2844 = sld [smem:[#allocation11 + $0x3]]
        %v2845 = vstv %s2844
        %v2846 = vadd.f32 %v2842, %v2845
        %v2847 = vadd.f32 %v2843, %v2845
        %s2848 = sld [smem:[#allocation8 + $0x20]]
        %v2849 = vstv %s2848
        %v2850 = vmul.f32 %v1307, %v2849
        %v2851 = vmul.f32 %v1308, %v2849
        %s2852 = sld [smem:[#allocation8 + $0x21]]
        %v2853 = vstv %s2852
        %v2854 = vmul.f32 %v1307, %v2853
        %v2855 = vmul.f32 %v1308, %v2853
        %v2858 = vrot.slane %v2854, 1
        %v2859 = vrot.slane %v2855, 1
        %v2862 = vadd.f32 %v2850, %v2858
        %v2863 = vadd.f32 %v2851, %v2859
        %s2864 = sld [smem:[#allocation8 + $0x22]]
        %v2865 = vstv %s2864
        %v2866 = vmul.f32 %v1307, %v2865
        %v2867 = vmul.f32 %v1308, %v2865
        %v2870 = vrot.slane %v2866, 2
        %v2871 = vrot.slane %v2867, 2
        %v2874 = vadd.f32 %v2862, %v2870
        %v2875 = vadd.f32 %v2863, %v2871
        %s2876 = sld [smem:[#allocation8 + $0x23]]
        %v2877 = vstv %s2876
        %v2878 = vmul.f32 %v1307, %v2877
        %v2879 = vmul.f32 %v1308, %v2877
        %v2882 = vrot.slane %v2878, 3
        %v2883 = vrot.slane %v2879, 3
        %v2886 = vadd.f32 %v2874, %v2882
        %v2887 = vadd.f32 %v2875, %v2883
        %s2888 = sld [smem:[#allocation8 + $0x24]]
        %v2889 = vstv %s2888
        %v2890 = vmul.f32 %v1307, %v2889
        %v2891 = vmul.f32 %v1308, %v2889
        %v2894 = vrot.slane %v2890, 4
        %v2895 = vrot.slane %v2891, 4
        %v2898 = vadd.f32 %v2886, %v2894
        %v2899 = vadd.f32 %v2887, %v2895
        %s2900 = sld [smem:[#allocation8 + $0x25]]
        %v2901 = vstv %s2900
        %v2902 = vmul.f32 %v1307, %v2901
        %v2903 = vmul.f32 %v1308, %v2901
        %v2906 = vrot.slane %v2902, 5
        %v2907 = vrot.slane %v2903, 5
        %v2910 = vadd.f32 %v2898, %v2906
        %v2911 = vadd.f32 %v2899, %v2907
        %s2912 = sld [smem:[#allocation8 + $0x26]]
        %v2913 = vstv %s2912
        %v2914 = vmul.f32 %v1307, %v2913
        %v2915 = vmul.f32 %v1308, %v2913
        %v2918 = vrot.slane %v2914, 6
        %v2919 = vrot.slane %v2915, 6
        %v2922 = vadd.f32 %v2910, %v2918
        %v2923 = vadd.f32 %v2911, %v2919
        %s2924 = sld [smem:[#allocation8 + $0x27]]
        %v2925 = vstv %s2924
        %v2926 = vmul.f32 %v1307, %v2925
        %v2927 = vmul.f32 %v1308, %v2925
        %v2930 = vrot.slane %v2926, 7
        %v2931 = vrot.slane %v2927, 7
        %v2934 = vadd.f32 %v2922, %v2930
        %v2935 = vadd.f32 %v2923, %v2931
        %s2936 = sld [smem:[#allocation10 + $0x4]]
        %v2937 = vstv %s2936
        %v2938 = vmul.f32 %v2934, %v2937
        %v2939 = vmul.f32 %v2935, %v2937
        %s2940 = sld [smem:[#allocation11 + $0x4]]
        %v2941 = vstv %s2940
        %v2942 = vadd.f32 %v2938, %v2941
        %v2943 = vadd.f32 %v2939, %v2941
        %s2944 = sld [smem:[#allocation8 + $0x28]]
        %v2945 = vstv %s2944
        %v2946 = vmul.f32 %v1307, %v2945
        %v2947 = vmul.f32 %v1308, %v2945
        %s2948 = sld [smem:[#allocation8 + $0x29]]
        %v2949 = vstv %s2948
        %v2950 = vmul.f32 %v1307, %v2949
        %v2951 = vmul.f32 %v1308, %v2949
        %v2954 = vrot.slane %v2950, 1
        %v2955 = vrot.slane %v2951, 1
        %v2958 = vadd.f32 %v2946, %v2954
        %v2959 = vadd.f32 %v2947, %v2955
        %s2960 = sld [smem:[#allocation8 + $0x2a]]
        %v2961 = vstv %s2960
        %v2962 = vmul.f32 %v1307, %v2961
        %v2963 = vmul.f32 %v1308, %v2961
        %v2966 = vrot.slane %v2962, 2
        %v2967 = vrot.slane %v2963, 2
        %v2970 = vadd.f32 %v2958, %v2966
        %v2971 = vadd.f32 %v2959, %v2967
        %s2972 = sld [smem:[#allocation8 + $0x2b]]
        %v2973 = vstv %s2972
        %v2974 = vmul.f32 %v1307, %v2973
        %v2975 = vmul.f32 %v1308, %v2973
        %v2978 = vrot.slane %v2974, 3
        %v2979 = vrot.slane %v2975, 3
        %v2982 = vadd.f32 %v2970, %v2978
        %v2983 = vadd.f32 %v2971, %v2979
        %s2984 = sld [smem:[#allocation8 + $0x2c]]
        %v2985 = vstv %s2984
        %v2986 = vmul.f32 %v1307, %v2985
        %v2987 = vmul.f32 %v1308, %v2985
        %v2990 = vrot.slane %v2986, 4
        %v2991 = vrot.slane %v2987, 4
        %v2994 = vadd.f32 %v2982, %v2990
        %v2995 = vadd.f32 %v2983, %v2991
        %s2996 = sld [smem:[#allocation8 + $0x2d]]
        %v2997 = vstv %s2996
        %v2998 = vmul.f32 %v1307, %v2997
        %v2999 = vmul.f32 %v1308, %v2997
        %v3002 = vrot.slane %v2998, 5
        %v3003 = vrot.slane %v2999, 5
        %v3006 = vadd.f32 %v2994, %v3002
        %v3007 = vadd.f32 %v2995, %v3003
        %s3008 = sld [smem:[#allocation8 + $0x2e]]
        %v3009 = vstv %s3008
        %v3010 = vmul.f32 %v1307, %v3009
        %v3011 = vmul.f32 %v1308, %v3009
        %v3014 = vrot.slane %v3010, 6
        %v3015 = vrot.slane %v3011, 6
        %v3018 = vadd.f32 %v3006, %v3014
        %v3019 = vadd.f32 %v3007, %v3015
        %s3020 = sld [smem:[#allocation8 + $0x2f]]
        %v3021 = vstv %s3020
        %v3022 = vmul.f32 %v1307, %v3021
        %v3023 = vmul.f32 %v1308, %v3021
        %v3026 = vrot.slane %v3022, 7
        %v3027 = vrot.slane %v3023, 7
        %v3030 = vadd.f32 %v3018, %v3026
        %v3031 = vadd.f32 %v3019, %v3027
        %s3032 = sld [smem:[#allocation10 + $0x5]]
        %v3033 = vstv %s3032
        %v3034 = vmul.f32 %v3030, %v3033
        %v3035 = vmul.f32 %v3031, %v3033
        %s3036 = sld [smem:[#allocation11 + $0x5]]
        %v3037 = vstv %s3036
        %v3038 = vadd.f32 %v3034, %v3037
        %v3039 = vadd.f32 %v3035, %v3037
        %s3040 = sld [smem:[#allocation8 + $0x30]]
        %v3041 = vstv %s3040
        %v3042 = vmul.f32 %v1538, %v3041
        %v3043 = vmul.f32 %v1539, %v3041
        %s3044 = sld [smem:[#allocation8 + $0x31]]
        %v3045 = vstv %s3044
        %v3046 = vmul.f32 %v1538, %v3045
        %v3047 = vmul.f32 %v1539, %v3045
        %v3050 = vrot.slane %v3046, 1
        %v3051 = vrot.slane %v3047, 1
        %v3054 = vadd.f32 %v3042, %v3050
        %v3055 = vadd.f32 %v3043, %v3051
        %s3056 = sld [smem:[#allocation8 + $0x32]]
        %v3057 = vstv %s3056
        %v3058 = vmul.f32 %v1538, %v3057
        %v3059 = vmul.f32 %v1539, %v3057
        %v3062 = vrot.slane %v3058, 2
        %v3063 = vrot.slane %v3059, 2
        %v3066 = vadd.f32 %v3054, %v3062
        %v3067 = vadd.f32 %v3055, %v3063
        %s3068 = sld [smem:[#allocation8 + $0x33]]
        %v3069 = vstv %s3068
        %v3070 = vmul.f32 %v1538, %v3069
        %v3071 = vmul.f32 %v1539, %v3069
        %v3074 = vrot.slane %v3070, 3
        %v3075 = vrot.slane %v3071, 3
        %v3078 = vadd.f32 %v3066, %v3074
        %v3079 = vadd.f32 %v3067, %v3075
        %s3080 = sld [smem:[#allocation8 + $0x34]]
        %v3081 = vstv %s3080
        %v3082 = vmul.f32 %v1538, %v3081
        %v3083 = vmul.f32 %v1539, %v3081
        %v3086 = vrot.slane %v3082, 4
        %v3087 = vrot.slane %v3083, 4
        %v3090 = vadd.f32 %v3078, %v3086
        %v3091 = vadd.f32 %v3079, %v3087
        %s3092 = sld [smem:[#allocation8 + $0x35]]
        %v3093 = vstv %s3092
        %v3094 = vmul.f32 %v1538, %v3093
        %v3095 = vmul.f32 %v1539, %v3093
        %v3098 = vrot.slane %v3094, 5
        %v3099 = vrot.slane %v3095, 5
        %v3102 = vadd.f32 %v3090, %v3098
        %v3103 = vadd.f32 %v3091, %v3099
        %s3104 = sld [smem:[#allocation8 + $0x36]]
        %v3105 = vstv %s3104
        %v3106 = vmul.f32 %v1538, %v3105
        %v3107 = vmul.f32 %v1539, %v3105
        %v3110 = vrot.slane %v3106, 6
        %v3111 = vrot.slane %v3107, 6
        %v3114 = vadd.f32 %v3102, %v3110
        %v3115 = vadd.f32 %v3103, %v3111
        %s3116 = sld [smem:[#allocation8 + $0x37]]
        %v3117 = vstv %s3116
        %v3118 = vmul.f32 %v1538, %v3117
        %v3119 = vmul.f32 %v1539, %v3117
        %v3122 = vrot.slane %v3118, 7
        %v3123 = vrot.slane %v3119, 7
        %v3126 = vadd.f32 %v3114, %v3122
        %v3127 = vadd.f32 %v3115, %v3123
        %s3128 = sld [smem:[#allocation10 + $0x6]]
        %v3129 = vstv %s3128
        %v3130 = vmul.f32 %v3126, %v3129
        %v3131 = vmul.f32 %v3127, %v3129
        %s3132 = sld [smem:[#allocation11 + $0x6]]
        %v3133 = vstv %s3132
        %v3134 = vadd.f32 %v3130, %v3133
        %v3135 = vadd.f32 %v3131, %v3133
        %s3136 = sld [smem:[#allocation8 + $0x38]]
        %v3137 = vstv %s3136
        %v3138 = vmul.f32 %v1538, %v3137
        %v3139 = vmul.f32 %v1539, %v3137
        %s3140 = sld [smem:[#allocation8 + $0x39]]
        %v3141 = vstv %s3140
        %v3142 = vmul.f32 %v1538, %v3141
        %v3143 = vmul.f32 %v1539, %v3141
        %v3146 = vrot.slane %v3142, 1
        %v3147 = vrot.slane %v3143, 1
        %v3150 = vadd.f32 %v3138, %v3146
        %v3151 = vadd.f32 %v3139, %v3147
        %s3152 = sld [smem:[#allocation8 + $0x3a]]
        %v3153 = vstv %s3152
        %v3154 = vmul.f32 %v1538, %v3153
        %v3155 = vmul.f32 %v1539, %v3153
        %v3158 = vrot.slane %v3154, 2
        %v3159 = vrot.slane %v3155, 2
        %v3162 = vadd.f32 %v3150, %v3158
        %v3163 = vadd.f32 %v3151, %v3159
        %s3164 = sld [smem:[#allocation8 + $0x3b]]
        %v3165 = vstv %s3164
        %v3166 = vmul.f32 %v1538, %v3165
        %v3167 = vmul.f32 %v1539, %v3165
        %v3170 = vrot.slane %v3166, 3
        %v3171 = vrot.slane %v3167, 3
        %v3174 = vadd.f32 %v3162, %v3170
        %v3175 = vadd.f32 %v3163, %v3171
        %s3176 = sld [smem:[#allocation8 + $0x3c]]
        %v3177 = vstv %s3176
        %v3178 = vmul.f32 %v1538, %v3177
        %v3179 = vmul.f32 %v1539, %v3177
        %v3182 = vrot.slane %v3178, 4
        %v3183 = vrot.slane %v3179, 4
        %v3186 = vadd.f32 %v3174, %v3182
        %v3187 = vadd.f32 %v3175, %v3183
        %s3188 = sld [smem:[#allocation8 + $0x3d]]
        %v3189 = vstv %s3188
        %v3190 = vmul.f32 %v1538, %v3189
        %v3191 = vmul.f32 %v1539, %v3189
        %v3194 = vrot.slane %v3190, 5
        %v3195 = vrot.slane %v3191, 5
        %v3198 = vadd.f32 %v3186, %v3194
        %v3199 = vadd.f32 %v3187, %v3195
        %s3200 = sld [smem:[#allocation8 + $0x3e]]
        %v3201 = vstv %s3200
        %v3202 = vmul.f32 %v1538, %v3201
        %v3203 = vmul.f32 %v1539, %v3201
        %v3206 = vrot.slane %v3202, 6
        %v3207 = vrot.slane %v3203, 6
        %v3210 = vadd.f32 %v3198, %v3206
        %v3211 = vadd.f32 %v3199, %v3207
        %s3212 = sld [smem:[#allocation8 + $0x3f]]
        %v3213 = vstv %s3212
        %v3214 = vmul.f32 %v1538, %v3213
        %v3215 = vmul.f32 %v1539, %v3213
        %v3218 = vrot.slane %v3214, 7
        %v3219 = vrot.slane %v3215, 7
        %v3222 = vadd.f32 %v3210, %v3218
        %v3223 = vadd.f32 %v3211, %v3219
        %s3224 = sld [smem:[#allocation10 + $0x7]]
        %v3225 = vstv %s3224
        %v3226 = vmul.f32 %v3222, %v3225
        %v3227 = vmul.f32 %v3223, %v3225
        %s3228 = sld [smem:[#allocation11 + $0x7]]
        %v3229 = vstv %s3228
        %v3230 = vadd.f32 %v3226, %v3229
        %v3231 = vadd.f32 %v3227, %v3229
        %s3232 = sld [smem:[#allocation8 + $0x40]]
        %v3233 = vstv %s3232
        %v3234 = vmul.f32 %v1769, %v3233
        %v3235 = vmul.f32 %v1770, %v3233
        %s3236 = sld [smem:[#allocation8 + $0x41]]
        %v3237 = vstv %s3236
        %v3238 = vmul.f32 %v1769, %v3237
        %v3239 = vmul.f32 %v1770, %v3237
        %v3242 = vrot.slane %v3238, 1
        %v3243 = vrot.slane %v3239, 1
        %v3246 = vadd.f32 %v3234, %v3242
        %v3247 = vadd.f32 %v3235, %v3243
        %s3248 = sld [smem:[#allocation8 + $0x42]]
        %v3249 = vstv %s3248
        %v3250 = vmul.f32 %v1769, %v3249
        %v3251 = vmul.f32 %v1770, %v3249
        %v3254 = vrot.slane %v3250, 2
        %v3255 = vrot.slane %v3251, 2
        %v3258 = vadd.f32 %v3246, %v3254
        %v3259 = vadd.f32 %v3247, %v3255
        %s3260 = sld [smem:[#allocation8 + $0x43]]
        %v3261 = vstv %s3260
        %v3262 = vmul.f32 %v1769, %v3261
        %v3263 = vmul.f32 %v1770, %v3261
        %v3266 = vrot.slane %v3262, 3
        %v3267 = vrot.slane %v3263, 3
        %v3270 = vadd.f32 %v3258, %v3266
        %v3271 = vadd.f32 %v3259, %v3267
        %s3272 = sld [smem:[#allocation8 + $0x44]]
        %v3273 = vstv %s3272
        %v3274 = vmul.f32 %v1769, %v3273
        %v3275 = vmul.f32 %v1770, %v3273
        %v3278 = vrot.slane %v3274, 4
        %v3279 = vrot.slane %v3275, 4
        %v3282 = vadd.f32 %v3270, %v3278
        %v3283 = vadd.f32 %v3271, %v3279
        %s3284 = sld [smem:[#allocation8 + $0x45]]
        %v3285 = vstv %s3284
        %v3286 = vmul.f32 %v1769, %v3285
        %v3287 = vmul.f32 %v1770, %v3285
        %v3290 = vrot.slane %v3286, 5
        %v3291 = vrot.slane %v3287, 5
        %v3294 = vadd.f32 %v3282, %v3290
        %v3295 = vadd.f32 %v3283, %v3291
        %s3296 = sld [smem:[#allocation8 + $0x46]]
        %v3297 = vstv %s3296
        %v3298 = vmul.f32 %v1769, %v3297
        %v3299 = vmul.f32 %v1770, %v3297
        %v3302 = vrot.slane %v3298, 6
        %v3303 = vrot.slane %v3299, 6
        %v3306 = vadd.f32 %v3294, %v3302
        %v3307 = vadd.f32 %v3295, %v3303
        %s3308 = sld [smem:[#allocation8 + $0x47]]
        %v3309 = vstv %s3308
        %v3310 = vmul.f32 %v1769, %v3309
        %v3311 = vmul.f32 %v1770, %v3309
        %v3314 = vrot.slane %v3310, 7
        %v3315 = vrot.slane %v3311, 7
        %v3318 = vadd.f32 %v3306, %v3314
        %v3319 = vadd.f32 %v3307, %v3315
        %s3320 = sld [smem:[#allocation10 + $0x8]]
        %v3321 = vstv %s3320
        %v3322 = vmul.f32 %v3318, %v3321
        %v3323 = vmul.f32 %v3319, %v3321
        %s3324 = sld [smem:[#allocation11 + $0x8]]
        %v3325 = vstv %s3324
        %v3326 = vadd.f32 %v3322, %v3325
        %v3327 = vadd.f32 %v3323, %v3325
        %s3328 = sld [smem:[#allocation8 + $0x48]]
        %v3329 = vstv %s3328
        %v3330 = vmul.f32 %v1769, %v3329
        %v3331 = vmul.f32 %v1770, %v3329
        %s3332 = sld [smem:[#allocation8 + $0x49]]
        %v3333 = vstv %s3332
        %v3334 = vmul.f32 %v1769, %v3333
        %v3335 = vmul.f32 %v1770, %v3333
        %v3338 = vrot.slane %v3334, 1
        %v3339 = vrot.slane %v3335, 1
        %v3342 = vadd.f32 %v3330, %v3338
        %v3343 = vadd.f32 %v3331, %v3339
        %s3344 = sld [smem:[#allocation8 + $0x4a]]
        %v3345 = vstv %s3344
        %v3346 = vmul.f32 %v1769, %v3345
        %v3347 = vmul.f32 %v1770, %v3345
        %v3350 = vrot.slane %v3346, 2
        %v3351 = vrot.slane %v3347, 2
        %v3354 = vadd.f32 %v3342, %v3350
        %v3355 = vadd.f32 %v3343, %v3351
        %s3356 = sld [smem:[#allocation8 + $0x4b]]
        %v3357 = vstv %s3356
        %v3358 = vmul.f32 %v1769, %v3357
        %v3359 = vmul.f32 %v1770, %v3357
        %v3362 = vrot.slane %v3358, 3
        %v3363 = vrot.slane %v3359, 3
        %v3366 = vadd.f32 %v3354, %v3362
        %v3367 = vadd.f32 %v3355, %v3363
        %s3368 = sld [smem:[#allocation8 + $0x4c]]
        %v3369 = vstv %s3368
        %v3370 = vmul.f32 %v1769, %v3369
        %v3371 = vmul.f32 %v1770, %v3369
        %v3374 = vrot.slane %v3370, 4
        %v3375 = vrot.slane %v3371, 4
        %v3378 = vadd.f32 %v3366, %v3374
        %v3379 = vadd.f32 %v3367, %v3375
        %s3380 = sld [smem:[#allocation8 + $0x4d]]
        %v3381 = vstv %s3380
        %v3382 = vmul.f32 %v1769, %v3381
        %v3383 = vmul.f32 %v1770, %v3381
        %v3386 = vrot.slane %v3382, 5
        %v3387 = vrot.slane %v3383, 5
        %v3390 = vadd.f32 %v3378, %v3386
        %v3391 = vadd.f32 %v3379, %v3387
        %s3392 = sld [smem:[#allocation8 + $0x4e]]
        %v3393 = vstv %s3392
        %v3394 = vmul.f32 %v1769, %v3393
        %v3395 = vmul.f32 %v1770, %v3393
        %v3398 = vrot.slane %v3394, 6
        %v3399 = vrot.slane %v3395, 6
        %v3402 = vadd.f32 %v3390, %v3398
        %v3403 = vadd.f32 %v3391, %v3399
        %s3404 = sld [smem:[#allocation8 + $0x4f]]
        %v3405 = vstv %s3404
        %v3406 = vmul.f32 %v1769, %v3405
        %v3407 = vmul.f32 %v1770, %v3405
        %v3410 = vrot.slane %v3406, 7
        %v3411 = vrot.slane %v3407, 7
        %v3414 = vadd.f32 %v3402, %v3410
        %v3415 = vadd.f32 %v3403, %v3411
        %s3416 = sld [smem:[#allocation10 + $0x9]]
        %v3417 = vstv %s3416
        %v3418 = vmul.f32 %v3414, %v3417
        %v3419 = vmul.f32 %v3415, %v3417
        %s3420 = sld [smem:[#allocation11 + $0x9]]
        %v3421 = vstv %s3420
        %v3422 = vadd.f32 %v3418, %v3421
        %v3423 = vadd.f32 %v3419, %v3421
        %s3424 = sld [smem:[#allocation8 + $0x50]]
        %v3425 = vstv %s3424
        %v3426 = vmul.f32 %v2000, %v3425
        %v3427 = vmul.f32 %v2001, %v3425
        %s3428 = sld [smem:[#allocation8 + $0x51]]
        %v3429 = vstv %s3428
        %v3430 = vmul.f32 %v2000, %v3429
        %v3431 = vmul.f32 %v2001, %v3429
        %v3434 = vrot.slane %v3430, 1
        %v3435 = vrot.slane %v3431, 1
        %v3438 = vadd.f32 %v3426, %v3434
        %v3439 = vadd.f32 %v3427, %v3435
        %s3440 = sld [smem:[#allocation8 + $0x52]]
        %v3441 = vstv %s3440
        %v3442 = vmul.f32 %v2000, %v3441
        %v3443 = vmul.f32 %v2001, %v3441
        %v3446 = vrot.slane %v3442, 2
        %v3447 = vrot.slane %v3443, 2
        %v3450 = vadd.f32 %v3438, %v3446
        %v3451 = vadd.f32 %v3439, %v3447
        %s3452 = sld [smem:[#allocation8 + $0x53]]
        %v3453 = vstv %s3452
        %v3454 = vmul.f32 %v2000, %v3453
        %v3455 = vmul.f32 %v2001, %v3453
        %v3458 = vrot.slane %v3454, 3
        %v3459 = vrot.slane %v3455, 3
        %v3462 = vadd.f32 %v3450, %v3458
        %v3463 = vadd.f32 %v3451, %v3459
        %s3464 = sld [smem:[#allocation8 + $0x54]]
        %v3465 = vstv %s3464
        %v3466 = vmul.f32 %v2000, %v3465
        %v3467 = vmul.f32 %v2001, %v3465
        %v3470 = vrot.slane %v3466, 4
        %v3471 = vrot.slane %v3467, 4
        %v3474 = vadd.f32 %v3462, %v3470
        %v3475 = vadd.f32 %v3463, %v3471
        %s3476 = sld [smem:[#allocation8 + $0x55]]
        %v3477 = vstv %s3476
        %v3478 = vmul.f32 %v2000, %v3477
        %v3479 = vmul.f32 %v2001, %v3477
        %v3482 = vrot.slane %v3478, 5
        %v3483 = vrot.slane %v3479, 5
        %v3486 = vadd.f32 %v3474, %v3482
        %v3487 = vadd.f32 %v3475, %v3483
        %s3488 = sld [smem:[#allocation8 + $0x56]]
        %v3489 = vstv %s3488
        %v3490 = vmul.f32 %v2000, %v3489
        %v3491 = vmul.f32 %v2001, %v3489
        %v3494 = vrot.slane %v3490, 6
        %v3495 = vrot.slane %v3491, 6
        %v3498 = vadd.f32 %v3486, %v3494
        %v3499 = vadd.f32 %v3487, %v3495
        %s3500 = sld [smem:[#allocation8 + $0x57]]
        %v3501 = vstv %s3500
        %v3502 = vmul.f32 %v2000, %v3501
        %v3503 = vmul.f32 %v2001, %v3501
        %v3506 = vrot.slane %v3502, 7
        %v3507 = vrot.slane %v3503, 7
        %v3510 = vadd.f32 %v3498, %v3506
        %v3511 = vadd.f32 %v3499, %v3507
        %s3512 = sld [smem:[#allocation10 + $0xa]]
        %v3513 = vstv %s3512
        %v3514 = vmul.f32 %v3510, %v3513
        %v3515 = vmul.f32 %v3511, %v3513
        %s3516 = sld [smem:[#allocation11 + $0xa]]
        %v3517 = vstv %s3516
        %v3518 = vadd.f32 %v3514, %v3517
        %v3519 = vadd.f32 %v3515, %v3517
        %s3520 = sld [smem:[#allocation8 + $0x58]]
        %v3521 = vstv %s3520
        %v3522 = vmul.f32 %v2000, %v3521
        %v3523 = vmul.f32 %v2001, %v3521
        %s3524 = sld [smem:[#allocation8 + $0x59]]
        %v3525 = vstv %s3524
        %v3526 = vmul.f32 %v2000, %v3525
        %v3527 = vmul.f32 %v2001, %v3525
        %v3530 = vrot.slane %v3526, 1
        %v3531 = vrot.slane %v3527, 1
        %v3534 = vadd.f32 %v3522, %v3530
        %v3535 = vadd.f32 %v3523, %v3531
        %s3536 = sld [smem:[#allocation8 + $0x5a]]
        %v3537 = vstv %s3536
        %v3538 = vmul.f32 %v2000, %v3537
        %v3539 = vmul.f32 %v2001, %v3537
        %v3542 = vrot.slane %v3538, 2
        %v3543 = vrot.slane %v3539, 2
        %v3546 = vadd.f32 %v3534, %v3542
        %v3547 = vadd.f32 %v3535, %v3543
        %s3548 = sld [smem:[#allocation8 + $0x5b]]
        %v3549 = vstv %s3548
        %v3550 = vmul.f32 %v2000, %v3549
        %v3551 = vmul.f32 %v2001, %v3549
        %v3554 = vrot.slane %v3550, 3
        %v3555 = vrot.slane %v3551, 3
        %v3558 = vadd.f32 %v3546, %v3554
        %v3559 = vadd.f32 %v3547, %v3555
        %s3560 = sld [smem:[#allocation8 + $0x5c]]
        %v3561 = vstv %s3560
        %v3562 = vmul.f32 %v2000, %v3561
        %v3563 = vmul.f32 %v2001, %v3561
        %v3566 = vrot.slane %v3562, 4
        %v3567 = vrot.slane %v3563, 4
        %v3570 = vadd.f32 %v3558, %v3566
        %v3571 = vadd.f32 %v3559, %v3567
        %s3572 = sld [smem:[#allocation8 + $0x5d]]
        %v3573 = vstv %s3572
        %v3574 = vmul.f32 %v2000, %v3573
        %v3575 = vmul.f32 %v2001, %v3573
        %v3578 = vrot.slane %v3574, 5
        %v3579 = vrot.slane %v3575, 5
        %v3582 = vadd.f32 %v3570, %v3578
        %v3583 = vadd.f32 %v3571, %v3579
        %s3584 = sld [smem:[#allocation8 + $0x5e]]
        %v3585 = vstv %s3584
        %v3586 = vmul.f32 %v2000, %v3585
        %v3587 = vmul.f32 %v2001, %v3585
        %v3590 = vrot.slane %v3586, 6
        %v3591 = vrot.slane %v3587, 6
        %v3594 = vadd.f32 %v3582, %v3590
        %v3595 = vadd.f32 %v3583, %v3591
        %s3596 = sld [smem:[#allocation8 + $0x5f]]
        %v3597 = vstv %s3596
        %v3598 = vmul.f32 %v2000, %v3597
        %v3599 = vmul.f32 %v2001, %v3597
        %v3602 = vrot.slane %v3598, 7
        %v3603 = vrot.slane %v3599, 7
        %v3606 = vadd.f32 %v3594, %v3602
        %v3607 = vadd.f32 %v3595, %v3603
        %s3608 = sld [smem:[#allocation10 + $0xb]]
        %v3609 = vstv %s3608
        %v3610 = vmul.f32 %v3606, %v3609
        %v3611 = vmul.f32 %v3607, %v3609
        %s3612 = sld [smem:[#allocation11 + $0xb]]
        %v3613 = vstv %s3612
        %v3614 = vadd.f32 %v3610, %v3613
        %v3615 = vadd.f32 %v3611, %v3613
        %s3616 = sld [smem:[#allocation8 + $0x60]]
        %v3617 = vstv %s3616
        %v3618 = vmul.f32 %v2231, %v3617
        %v3619 = vmul.f32 %v2232, %v3617
        %s3620 = sld [smem:[#allocation8 + $0x61]]
        %v3621 = vstv %s3620
        %v3622 = vmul.f32 %v2231, %v3621
        %v3623 = vmul.f32 %v2232, %v3621
        %v3626 = vrot.slane %v3622, 1
        %v3627 = vrot.slane %v3623, 1
        %v3630 = vadd.f32 %v3618, %v3626
        %v3631 = vadd.f32 %v3619, %v3627
        %s3632 = sld [smem:[#allocation8 + $0x62]]
        %v3633 = vstv %s3632
        %v3634 = vmul.f32 %v2231, %v3633
        %v3635 = vmul.f32 %v2232, %v3633
        %v3638 = vrot.slane %v3634, 2
        %v3639 = vrot.slane %v3635, 2
        %v3642 = vadd.f32 %v3630, %v3638
        %v3643 = vadd.f32 %v3631, %v3639
        %s3644 = sld [smem:[#allocation8 + $0x63]]
        %v3645 = vstv %s3644
        %v3646 = vmul.f32 %v2231, %v3645
        %v3647 = vmul.f32 %v2232, %v3645
        %v3650 = vrot.slane %v3646, 3
        %v3651 = vrot.slane %v3647, 3
        %v3654 = vadd.f32 %v3642, %v3650
        %v3655 = vadd.f32 %v3643, %v3651
        %s3656 = sld [smem:[#allocation8 + $0x64]]
        %v3657 = vstv %s3656
        %v3658 = vmul.f32 %v2231, %v3657
        %v3659 = vmul.f32 %v2232, %v3657
        %v3662 = vrot.slane %v3658, 4
        %v3663 = vrot.slane %v3659, 4
        %v3666 = vadd.f32 %v3654, %v3662
        %v3667 = vadd.f32 %v3655, %v3663
        %s3668 = sld [smem:[#allocation8 + $0x65]]
        %v3669 = vstv %s3668
        %v3670 = vmul.f32 %v2231, %v3669
        %v3671 = vmul.f32 %v2232, %v3669
        %v3674 = vrot.slane %v3670, 5
        %v3675 = vrot.slane %v3671, 5
        %v3678 = vadd.f32 %v3666, %v3674
        %v3679 = vadd.f32 %v3667, %v3675
        %s3680 = sld [smem:[#allocation8 + $0x66]]
        %v3681 = vstv %s3680
        %v3682 = vmul.f32 %v2231, %v3681
        %v3683 = vmul.f32 %v2232, %v3681
        %v3686 = vrot.slane %v3682, 6
        %v3687 = vrot.slane %v3683, 6
        %v3690 = vadd.f32 %v3678, %v3686
        %v3691 = vadd.f32 %v3679, %v3687
        %s3692 = sld [smem:[#allocation8 + $0x67]]
        %v3693 = vstv %s3692
        %v3694 = vmul.f32 %v2231, %v3693
        %v3695 = vmul.f32 %v2232, %v3693
        %v3698 = vrot.slane %v3694, 7
        %v3699 = vrot.slane %v3695, 7
        %v3702 = vadd.f32 %v3690, %v3698
        %v3703 = vadd.f32 %v3691, %v3699
        %s3704 = sld [smem:[#allocation10 + $0xc]]
        %v3705 = vstv %s3704
        %v3706 = vmul.f32 %v3702, %v3705
        %v3707 = vmul.f32 %v3703, %v3705
        %s3708 = sld [smem:[#allocation11 + $0xc]]
        %v3709 = vstv %s3708
        %v3710 = vadd.f32 %v3706, %v3709
        %v3711 = vadd.f32 %v3707, %v3709
        %s3712 = sld [smem:[#allocation8 + $0x68]]
        %v3713 = vstv %s3712
        %v3714 = vmul.f32 %v2231, %v3713
        %v3715 = vmul.f32 %v2232, %v3713
        %s3716 = sld [smem:[#allocation8 + $0x69]]
        %v3717 = vstv %s3716
        %v3718 = vmul.f32 %v2231, %v3717
        %v3719 = vmul.f32 %v2232, %v3717
        %v3722 = vrot.slane %v3718, 1
        %v3723 = vrot.slane %v3719, 1
        %v3726 = vadd.f32 %v3714, %v3722
        %v3727 = vadd.f32 %v3715, %v3723
        %s3728 = sld [smem:[#allocation8 + $0x6a]]
        %v3729 = vstv %s3728
        %v3730 = vmul.f32 %v2231, %v3729
        %v3731 = vmul.f32 %v2232, %v3729
        %v3734 = vrot.slane %v3730, 2
        %v3735 = vrot.slane %v3731, 2
        %v3738 = vadd.f32 %v3726, %v3734
        %v3739 = vadd.f32 %v3727, %v3735
        %s3740 = sld [smem:[#allocation8 + $0x6b]]
        %v3741 = vstv %s3740
        %v3742 = vmul.f32 %v2231, %v3741
        %v3743 = vmul.f32 %v2232, %v3741
        %v3746 = vrot.slane %v3742, 3
        %v3747 = vrot.slane %v3743, 3
        %v3750 = vadd.f32 %v3738, %v3746
        %v3751 = vadd.f32 %v3739, %v3747
        %s3752 = sld [smem:[#allocation8 + $0x6c]]
        %v3753 = vstv %s3752
        %v3754 = vmul.f32 %v2231, %v3753
        %v3755 = vmul.f32 %v2232, %v3753
        %v3758 = vrot.slane %v3754, 4
        %v3759 = vrot.slane %v3755, 4
        %v3762 = vadd.f32 %v3750, %v3758
        %v3763 = vadd.f32 %v3751, %v3759
        %s3764 = sld [smem:[#allocation8 + $0x6d]]
        %v3765 = vstv %s3764
        %v3766 = vmul.f32 %v2231, %v3765
        %v3767 = vmul.f32 %v2232, %v3765
        %v3770 = vrot.slane %v3766, 5
        %v3771 = vrot.slane %v3767, 5
        %v3774 = vadd.f32 %v3762, %v3770
        %v3775 = vadd.f32 %v3763, %v3771
        %s3776 = sld [smem:[#allocation8 + $0x6e]]
        %v3777 = vstv %s3776
        %v3778 = vmul.f32 %v2231, %v3777
        %v3779 = vmul.f32 %v2232, %v3777
        %v3782 = vrot.slane %v3778, 6
        %v3783 = vrot.slane %v3779, 6
        %v3786 = vadd.f32 %v3774, %v3782
        %v3787 = vadd.f32 %v3775, %v3783
        %s3788 = sld [smem:[#allocation8 + $0x6f]]
        %v3789 = vstv %s3788
        %v3790 = vmul.f32 %v2231, %v3789
        %v3791 = vmul.f32 %v2232, %v3789
        %v3794 = vrot.slane %v3790, 7
        %v3795 = vrot.slane %v3791, 7
        %v3798 = vadd.f32 %v3786, %v3794
        %v3799 = vadd.f32 %v3787, %v3795
        %s3800 = sld [smem:[#allocation10 + $0xd]]
        %v3801 = vstv %s3800
        %v3802 = vmul.f32 %v3798, %v3801
        %v3803 = vmul.f32 %v3799, %v3801
        %s3804 = sld [smem:[#allocation11 + $0xd]]
        %v3805 = vstv %s3804
        %v3806 = vadd.f32 %v3802, %v3805
        %v3807 = vadd.f32 %v3803, %v3805
        %s3808 = sld [smem:[#allocation8 + $0x70]]
        %v3809 = vstv %s3808
        %v3810 = vmul.f32 %v2462, %v3809
        %v3811 = vmul.f32 %v2463, %v3809
        %s3812 = sld [smem:[#allocation8 + $0x71]]
        %v3813 = vstv %s3812
        %v3814 = vmul.f32 %v2462, %v3813
        %v3815 = vmul.f32 %v2463, %v3813
        %v3818 = vrot.slane %v3814, 1
        %v3819 = vrot.slane %v3815, 1
        %v3822 = vadd.f32 %v3810, %v3818
        %v3823 = vadd.f32 %v3811, %v3819
        %s3824 = sld [smem:[#allocation8 + $0x72]]
        %v3825 = vstv %s3824
        %v3826 = vmul.f32 %v2462, %v3825
        %v3827 = vmul.f32 %v2463, %v3825
        %v3830 = vrot.slane %v3826, 2
        %v3831 = vrot.slane %v3827, 2
        %v3834 = vadd.f32 %v3822, %v3830
        %v3835 = vadd.f32 %v3823, %v3831
        %s3836 = sld [smem:[#allocation8 + $0x73]]
        %v3837 = vstv %s3836
        %v3838 = vmul.f32 %v2462, %v3837
        %v3839 = vmul.f32 %v2463, %v3837
        %v3842 = vrot.slane %v3838, 3
        %v3843 = vrot.slane %v3839, 3
        %v3846 = vadd.f32 %v3834, %v3842
        %v3847 = vadd.f32 %v3835, %v3843
        %s3848 = sld [smem:[#allocation8 + $0x74]]
        %v3849 = vstv %s3848
        %v3850 = vmul.f32 %v2462, %v3849
        %v3851 = vmul.f32 %v2463, %v3849
        %v3854 = vrot.slane %v3850, 4
        %v3855 = vrot.slane %v3851, 4
        %v3858 = vadd.f32 %v3846, %v3854
        %v3859 = vadd.f32 %v3847, %v3855
        %s3860 = sld [smem:[#allocation8 + $0x75]]
        %v3861 = vstv %s3860
        %v3862 = vmul.f32 %v2462, %v3861
        %v3863 = vmul.f32 %v2463, %v3861
        %v3866 = vrot.slane %v3862, 5
        %v3867 = vrot.slane %v3863, 5
        %v3870 = vadd.f32 %v3858, %v3866
        %v3871 = vadd.f32 %v3859, %v3867
        %s3872 = sld [smem:[#allocation8 + $0x76]]
        %v3873 = vstv %s3872
        %v3874 = vmul.f32 %v2462, %v3873
        %v3875 = vmul.f32 %v2463, %v3873
        %v3878 = vrot.slane %v3874, 6
        %v3879 = vrot.slane %v3875, 6
        %v3882 = vadd.f32 %v3870, %v3878
        %v3883 = vadd.f32 %v3871, %v3879
        %s3884 = sld [smem:[#allocation8 + $0x77]]
        %v3885 = vstv %s3884
        %v3886 = vmul.f32 %v2462, %v3885
        %v3887 = vmul.f32 %v2463, %v3885
        %v3890 = vrot.slane %v3886, 7
        %v3891 = vrot.slane %v3887, 7
        %v3894 = vadd.f32 %v3882, %v3890
        %v3895 = vadd.f32 %v3883, %v3891
        %s3896 = sld [smem:[#allocation10 + $0xe]]
        %v3897 = vstv %s3896
        %v3898 = vmul.f32 %v3894, %v3897
        %v3899 = vmul.f32 %v3895, %v3897
        %s3900 = sld [smem:[#allocation11 + $0xe]]
        %v3901 = vstv %s3900
        %v3902 = vadd.f32 %v3898, %v3901
        %v3903 = vadd.f32 %v3899, %v3901
        %s3904 = sld [smem:[#allocation8 + $0x78]]
        %v3905 = vstv %s3904
        %v3906 = vmul.f32 %v2462, %v3905
        %v3907 = vmul.f32 %v2463, %v3905
        %s3908 = sld [smem:[#allocation8 + $0x79]]
        %v3909 = vstv %s3908
        %v3910 = vmul.f32 %v2462, %v3909
        %v3911 = vmul.f32 %v2463, %v3909
        %v3914 = vrot.slane %v3910, 1
        %v3915 = vrot.slane %v3911, 1
        %v3918 = vadd.f32 %v3906, %v3914
        %v3919 = vadd.f32 %v3907, %v3915
        %s3920 = sld [smem:[#allocation8 + $0x7a]]
        %v3921 = vstv %s3920
        %v3922 = vmul.f32 %v2462, %v3921
        %v3923 = vmul.f32 %v2463, %v3921
        %v3926 = vrot.slane %v3922, 2
        %v3927 = vrot.slane %v3923, 2
        %v3930 = vadd.f32 %v3918, %v3926
        %v3931 = vadd.f32 %v3919, %v3927
        %s3932 = sld [smem:[#allocation8 + $0x7b]]
        %v3933 = vstv %s3932
        %v3934 = vmul.f32 %v2462, %v3933
        %v3935 = vmul.f32 %v2463, %v3933
        %v3938 = vrot.slane %v3934, 3
        %v3939 = vrot.slane %v3935, 3
        %v3942 = vadd.f32 %v3930, %v3938
        %v3943 = vadd.f32 %v3931, %v3939
        %s3944 = sld [smem:[#allocation8 + $0x7c]]
        %v3945 = vstv %s3944
        %v3946 = vmul.f32 %v2462, %v3945
        %v3947 = vmul.f32 %v2463, %v3945
        %v3950 = vrot.slane %v3946, 4
        %v3951 = vrot.slane %v3947, 4
        %v3954 = vadd.f32 %v3942, %v3950
        %v3955 = vadd.f32 %v3943, %v3951
        %s3956 = sld [smem:[#allocation8 + $0x7d]]
        %v3957 = vstv %s3956
        %v3958 = vmul.f32 %v2462, %v3957
        %v3959 = vmul.f32 %v2463, %v3957
        %v3962 = vrot.slane %v3958, 5
        %v3963 = vrot.slane %v3959, 5
        %v3966 = vadd.f32 %v3954, %v3962
        %v3967 = vadd.f32 %v3955, %v3963
        %s3968 = sld [smem:[#allocation8 + $0x7e]]
        %v3969 = vstv %s3968
        %v3970 = vmul.f32 %v2462, %v3969
        %v3971 = vmul.f32 %v2463, %v3969
        %v3974 = vrot.slane %v3970, 6
        %v3975 = vrot.slane %v3971, 6
        %v3978 = vadd.f32 %v3966, %v3974
        %v3979 = vadd.f32 %v3967, %v3975
        %s3980 = sld [smem:[#allocation8 + $0x7f]]
        %v3981 = vstv %s3980
        %v3982 = vmul.f32 %v2462, %v3981
        %v3983 = vmul.f32 %v2463, %v3981
        %v3986 = vrot.slane %v3982, 7
        %v3987 = vrot.slane %v3983, 7
        %v3990 = vadd.f32 %v3978, %v3986
        %v3991 = vadd.f32 %v3979, %v3987
        %s3992 = sld [smem:[#allocation10 + $0xf]]
        %v3993 = vstv %s3992
        %v3994 = vmul.f32 %v3990, %v3993
        %v3995 = vmul.f32 %v3991, %v3993
        %s3996 = sld [smem:[#allocation11 + $0xf]]
        %v3997 = vstv %s3996
        %v3998 = vadd.f32 %v3994, %v3997
        %v3999 = vadd.f32 %v3995, %v3997
        %v4002 = vrot.slane %v2654, 7
        %v4003 = vrot.slane %v2655, 7
        %v4008 = vrot.slane %v2750, 6
        %v4009 = vrot.slane %v2751, 6
        %v4014 = vrot.slane %v2846, 5
        %v4015 = vrot.slane %v2847, 5
        %v4020 = vrot.slane %v2942, 4
        %v4021 = vrot.slane %v2943, 4
        %v4026 = vrot.slane %v3038, 3
        %v4027 = vrot.slane %v3039, 3
        %v4032 = vrot.slane %v3134, 2
        %v4033 = vrot.slane %v3135, 2
        %v4038 = vrot.slane %v3230, 1
        %v4039 = vrot.slane %v3231, 1
        %v4044 = vrot.slane %v3422, 7
        %v4045 = vrot.slane %v3423, 7
        %v4050 = vrot.slane %v3518, 6
        %v4051 = vrot.slane %v3519, 6
        %v4056 = vrot.slane %v3614, 5
        %v4057 = vrot.slane %v3615, 5
        %v4062 = vrot.slane %v3710, 4
        %v4063 = vrot.slane %v3711, 4
        %v4068 = vrot.slane %v3806, 3
        %v4069 = vrot.slane %v3807, 3
        %v4074 = vrot.slane %v3902, 2
        %v4075 = vrot.slane %v3903, 2
        %v4080 = vrot.slane %v3998, 1
        %v4081 = vrot.slane %v3999, 1
        %vm4084 = vcmask 1040384
        %v4085 = vsel %vm4084, %v2558, %v4002
        %v4086 = vsel %vm4084, %v2559, %v4003
        %vm4087 = vcmask 1041408
        %v4088 = vsel %vm4087, %v4085, %v4008
        %v4089 = vsel %vm4087, %v4086, %v4009
        %vm4090 = vcmask 1042432
        %v4091 = vsel %vm4090, %v4088, %v4014
        %v4092 = vsel %vm4090, %v4089, %v4015
        %vm4093 = vcmask 1043456
        %v4094 = vsel %vm4093, %v4091, %v4020
        %v4095 = vsel %vm4093, %v4092, %v4021
        %vm4096 = vcmask 1044480
        %v4097 = vsel %vm4096, %v4094, %v4026
        %v4098 = vsel %vm4096, %v4095, %v4027
        %vm4099 = vcmask 1045504
        %v4100 = vsel %vm4099, %v4097, %v4032
        %v4101 = vsel %vm4099, %v4098, %v4033
        %vm4102 = vcmask 1046528
        %v4103 = vsel %vm4102, %v4100, %v4038
        %v4104 = vsel %vm4102, %v4101, %v4039
        %v4105 = vsel %vm4084, %v3326, %v4044
        %v4106 = vsel %vm4084, %v3327, %v4045
        %v4107 = vsel %vm4087, %v4105, %v4050
        %v4108 = vsel %vm4087, %v4106, %v4051
        %v4109 = vsel %vm4090, %v4107, %v4056
        %v4110 = vsel %vm4090, %v4108, %v4057
        %v4111 = vsel %vm4093, %v4109, %v4062
        %v4112 = vsel %vm4093, %v4110, %v4063
        %v4113 = vsel %vm4096, %v4111, %v4068
        %v4114 = vsel %vm4096, %v4112, %v4069
        %v4115 = vsel %vm4099, %v4113, %v4074
        %v4116 = vsel %vm4099, %v4114, %v4075
        %v4117 = vsel %vm4102, %v4115, %v4080
        %v4118 = vsel %vm4102, %v4116, %v4081
        %vm4119 = vcmp.gt.f32.partialorder %v4103, 0.0
        %vm4120 = vcmp.gt.f32.partialorder %v4104, 0.0
        %vm4121 = vcmp.gt.f32.partialorder %v4117, 0.0
        %vm4122 = vcmp.gt.f32.partialorder %v4118, 0.0
        %v4123 = vmul.f32 %v4103, 1.442695
        %v4124 = vpow.pop %v4123
        %v4125 = vmul.f32 %v4104, 1.442695
        %v4126 = vpow.pop %v4125
        %v4127 = vmul.f32 %v4117, 1.442695
        %v4128 = vpow.pop %v4127
        %v4129 = vmul.f32 %v4118, 1.442695
        %v4130 = vpow.pop %v4129
        %v4131 = vsub.f32 %v4124, 1.0
        %v4132 = vsub.f32 %v4126, 1.0
        %v4133 = vsub.f32 %v4128, 1.0
        %v4134 = vsub.f32 %v4130, 1.0
        %v4135 = vsel %vm4119, %v4103, %v4131
        %v4136 = vsel %vm4120, %v4104, %v4132
        %v4137 = vsel %vm4121, %v4117, %v4133
        %v4138 = vsel %vm4122, %v4118, %v4134
        %4143 = vrot.lane.b32.xlu0 %v4135, 7
        %v4144 = vpop.permute.xlu0 %4143
        %4145 = vrot.lane.b32.xlu0 %v4136, 7
        %v4146 = vpop.permute.xlu0 %4145
        %4147 = vrot.lane.b32.xlu0 %v4137, 7
        %v4148 = vpop.permute.xlu0 %4147
        %4149 = vrot.lane.b32.xlu0 %v4138, 7
        %v4150 = vpop.permute.xlu0 %4149
        %vm4151 = vcmask 56320
        %v4152 = vsel %vm4151, %v4144, %v4146
        %v4153 = vsel %vm4151, %v4148, %v4150
        %4155 = vrot.lane.b32.xlu0 %v4152, 120
        %v4156 = vpop.permute.xlu0 %4155
        %4157 = vrot.lane.b32.xlu0 0.0, 120
        %v4158 = vpop.permute.xlu0 %4157
        %4159 = vrot.lane.b32.xlu0 %v4153, 120
        %v4160 = vpop.permute.xlu0 %4159
        %v4161 = vsel %vm721, %v4156, %v4158
        %v4162 = vsel %vm721, %v4160, %v4158
        %v4167 = vadd.f32 %v4135, %v4156
        %v4168 = vadd.f32 %v4136, %v4161
        %v4169 = vadd.f32 %v4137, %v4160
        %v4170 = vadd.f32 %v4138, %v4162
        %4171 = vrot.lane.b32.xlu0 %v4152, 119
        %v4172 = vpop.permute.xlu0 %4171
        %4173 = vrot.lane.b32.xlu0 0.0, 119
        %v4174 = vpop.permute.xlu0 %4173
        %4175 = vrot.lane.b32.xlu0 %v4153, 119
        %v4176 = vpop.permute.xlu0 %4175
        %v4177 = vsel %vm737, %v4172, %v4174
        %v4178 = vsel %vm737, %v4176, %v4174
        %v4183 = vadd.f32 %v4167, %v4172
        %v4184 = vadd.f32 %v4168, %v4177
        %v4185 = vadd.f32 %v4169, %v4176
        %v4186 = vadd.f32 %v4170, %v4178
        %4187 = vrot.lane.b32.xlu0 %v4152, 118
        %v4188 = vpop.permute.xlu0 %4187
        %4189 = vrot.lane.b32.xlu0 0.0, 118
        %v4190 = vpop.permute.xlu0 %4189
        %4191 = vrot.lane.b32.xlu0 %v4153, 118
        %v4192 = vpop.permute.xlu0 %4191
        %v4193 = vsel %vm753, %v4188, %v4190
        %v4194 = vsel %vm753, %v4192, %v4190
        %v4199 = vadd.f32 %v4183, %v4188
        %v4200 = vadd.f32 %v4184, %v4193
        %v4201 = vadd.f32 %v4185, %v4192
        %v4202 = vadd.f32 %v4186, %v4194
        %v4203 = vmul.f32 %v4199, 0.25
        %v4204 = vmul.f32 %v4200, 0.25
        %v4205 = vmul.f32 %v4201, 0.25
        %v4206 = vmul.f32 %v4202, 0.25
        %4211 = vrot.lane.b32.xlu0 %v4203, 7
        %v4212 = vpop.permute.xlu0 %4211
        %4213 = vrot.lane.b32.xlu0 %v4204, 7
        %v4214 = vpop.permute.xlu0 %4213
        %4215 = vrot.lane.b32.xlu0 %v4205, 7
        %v4216 = vpop.permute.xlu0 %4215
        %4217 = vrot.lane.b32.xlu0 %v4206, 7
        %v4218 = vpop.permute.xlu0 %4217
        %v4219 = vsel %vm4151, %v4212, %v4214
        %v4220 = vsel %vm4151, %v4216, %v4218
        %v4223 = vld [vmem:[%s7] sm:$0xff]
        %v4224 = vld [vmem:[%s7 + $0x8] sm:$0xff]
        %4226 = vset.pattern.permute.xlu0 0
        %4227 = vperm.xlu0 %4226, %v4223
        %v4228 = vpop.permute.xlu0 %4227
        %4231 = vset.pattern.permute.xlu0 0
        %4232 = vperm.xlu0 %4231, %v4224
        %v4233 = vpop.permute.xlu0 %4232
        %v4235 = vmul.f32 %v4228, 0.0
        %v4236 = vmul.f32 %v4219, %v4228
        %v4237 = vmul.f32 %v4233, 0.0
        %v4238 = vmul.f32 %v4220, %v4233
        %s4239 = scalar_lea.vmem %s7, 16
        %v4240 = vld [vmem:[%s4239] sm:$0xff]
        %v4241 = vld [vmem:[%s4239 + $0x8] sm:$0xff]
        %4243 = vset.pattern.permute.xlu0 0
        %4244 = vperm.xlu0 %4243, %v4240
        %v4245 = vpop.permute.xlu0 %4244
        %4248 = vset.pattern.permute.xlu0 0
        %4249 = vperm.xlu0 %4248, %v4241
        %v4250 = vpop.permute.xlu0 %4249
        %v4252 = vmul.f32 %v4245, 0.0
        %v4253 = vmul.f32 %v4219, %v4245
        %v4254 = vmul.f32 %v4250, 0.0
        %v4255 = vmul.f32 %v4220, %v4250
        %4260 = vrot.lane.b32.xlu0 %v4252, 124
        %v4261 = vpop.permute.xlu0 %4260
        %4262 = vrot.lane.b32.xlu0 %v4253, 124
        %v4263 = vpop.permute.xlu0 %4262
        %4264 = vrot.lane.b32.xlu0 %v4254, 124
        %v4265 = vpop.permute.xlu0 %4264
        %4266 = vrot.lane.b32.xlu0 %v4255, 124
        %v4267 = vpop.permute.xlu0 %4266
        %v4268 = vsel %vm664, %v4261, %v4263
        %v4269 = vsel %vm664, %v4265, %v4267
        %v4274 = vadd.f32 %v4235, %v4268
        %v4275 = vadd.f32 %v4236, %v4263
        %v4276 = vadd.f32 %v4237, %v4269
        %v4277 = vadd.f32 %v4238, %v4267
        %s4278 = scalar_lea.vmem %s7, 32
        %v4279 = vld [vmem:[%s4278] sm:$0xff]
        %v4280 = vld [vmem:[%s4278 + $0x8] sm:$0xff]
        %4282 = vset.pattern.permute.xlu0 0
        %4283 = vperm.xlu0 %4282, %v4279
        %v4284 = vpop.permute.xlu0 %4283
        %4287 = vset.pattern.permute.xlu0 0
        %4288 = vperm.xlu0 %4287, %v4280
        %v4289 = vpop.permute.xlu0 %4288
        %v4291 = vmul.f32 %v4284, 0.0
        %v4292 = vmul.f32 %v4219, %v4284
        %v4293 = vmul.f32 %v4289, 0.0
        %v4294 = vmul.f32 %v4220, %v4289
        %4299 = vrot.lane.b32.xlu0 %v4291, 120
        %v4300 = vpop.permute.xlu0 %4299
        %4301 = vrot.lane.b32.xlu0 %v4292, 120
        %v4302 = vpop.permute.xlu0 %4301
        %4303 = vrot.lane.b32.xlu0 %v4293, 120
        %v4304 = vpop.permute.xlu0 %4303
        %4305 = vrot.lane.b32.xlu0 %v4294, 120
        %v4306 = vpop.permute.xlu0 %4305
        %v4307 = vsel %vm721, %v4300, %v4302
        %v4308 = vsel %vm721, %v4304, %v4306
        %v4313 = vadd.f32 %v4274, %v4307
        %v4314 = vadd.f32 %v4275, %v4302
        %v4315 = vadd.f32 %v4276, %v4308
        %v4316 = vadd.f32 %v4277, %v4306
        %s4317 = scalar_lea.vmem %s7, 48
        %v4318 = vld [vmem:[%s4317] sm:$0xff]
        %v4319 = vld [vmem:[%s4317 + $0x8] sm:$0xff]
        %4321 = vset.pattern.permute.xlu0 0
        %4322 = vperm.xlu0 %4321, %v4318
        %v4323 = vpop.permute.xlu0 %4322
        %4326 = vset.pattern.permute.xlu0 0
        %4327 = vperm.xlu0 %4326, %v4319
        %v4328 = vpop.permute.xlu0 %4327
        %v4330 = vmul.f32 %v4323, 0.0
        %v4331 = vmul.f32 %v4219, %v4323
        %v4332 = vmul.f32 %v4328, 0.0
        %v4333 = vmul.f32 %v4220, %v4328
        %4338 = vrot.lane.b32.xlu0 %v4330, 116
        %v4339 = vpop.permute.xlu0 %4338
        %4340 = vrot.lane.b32.xlu0 %v4331, 116
        %v4341 = vpop.permute.xlu0 %4340
        %4342 = vrot.lane.b32.xlu0 %v4332, 116
        %v4343 = vpop.permute.xlu0 %4342
        %4344 = vrot.lane.b32.xlu0 %v4333, 116
        %v4345 = vpop.permute.xlu0 %4344
        %v4346 = vsel %vm785, %v4339, %v4341
        %v4347 = vsel %vm785, %v4343, %v4345
        %v4352 = vadd.f32 %v4313, %v4346
        %v4353 = vadd.f32 %v4314, %v4341
        %v4354 = vadd.f32 %v4315, %v4347
        %v4355 = vadd.f32 %v4316, %v4345
        %s4356 = scalar_lea.vmem %s7, 64
        %v4357 = vld [vmem:[%s4356] sm:$0xff]
        %v4358 = vld [vmem:[%s4356 + $0x8] sm:$0xff]
        %4360 = vset.pattern.permute.xlu0 0
        %4361 = vperm.xlu0 %4360, %v4357
        %v4362 = vpop.permute.xlu0 %4361
        %4365 = vset.pattern.permute.xlu0 0
        %4366 = vperm.xlu0 %4365, %v4358
        %v4367 = vpop.permute.xlu0 %4366
        %v4369 = vmul.f32 %v4362, 0.0
        %v4370 = vmul.f32 %v4219, %v4362
        %v4371 = vmul.f32 %v4367, 0.0
        %v4372 = vmul.f32 %v4220, %v4367
        %4377 = vrot.lane.b32.xlu0 %v4369, 112
        %v4378 = vpop.permute.xlu0 %4377
        %4379 = vrot.lane.b32.xlu0 %v4370, 112
        %v4380 = vpop.permute.xlu0 %4379
        %4381 = vrot.lane.b32.xlu0 %v4371, 112
        %v4382 = vpop.permute.xlu0 %4381
        %4383 = vrot.lane.b32.xlu0 %v4372, 112
        %v4384 = vpop.permute.xlu0 %4383
        %vm4385 = vcmask 916480
        %v4386 = vsel %vm4385, %v4378, %v4380
        %v4387 = vsel %vm4385, %v4382, %v4384
        %v4392 = vadd.f32 %v4352, %v4386
        %v4393 = vadd.f32 %v4353, %v4380
        %v4394 = vadd.f32 %v4354, %v4387
        %v4395 = vadd.f32 %v4355, %v4384
        %s4396 = scalar_lea.vmem %s7, 80
        %v4397 = vld [vmem:[%s4396] sm:$0xff]
        %v4398 = vld [vmem:[%s4396 + $0x8] sm:$0xff]
        %4400 = vset.pattern.permute.xlu0 0
        %4401 = vperm.xlu0 %4400, %v4397
        %v4402 = vpop.permute.xlu0 %4401
        %4405 = vset.pattern.permute.xlu0 0
        %4406 = vperm.xlu0 %4405, %v4398
        %v4407 = vpop.permute.xlu0 %4406
        %v4409 = vmul.f32 %v4402, 0.0
        %v4410 = vmul.f32 %v4219, %v4402
        %v4411 = vmul.f32 %v4407, 0.0
        %v4412 = vmul.f32 %v4220, %v4407
        %4417 = vrot.lane.b32.xlu0 %v4409, 108
        %v4418 = vpop.permute.xlu0 %4417
        %4419 = vrot.lane.b32.xlu0 %v4410, 108
        %v4420 = vpop.permute.xlu0 %4419
        %4421 = vrot.lane.b32.xlu0 %v4411, 108
        %v4422 = vpop.permute.xlu0 %4421
        %4423 = vrot.lane.b32.xlu0 %v4412, 108
        %v4424 = vpop.permute.xlu0 %4423
        %vm4425 = vcmask 883712
        %v4426 = vsel %vm4425, %v4418, %v4420
        %v4427 = vsel %vm4425, %v4422, %v4424
        %v4432 = vadd.f32 %v4392, %v4426
        %v4433 = vadd.f32 %v4393, %v4420
        %v4434 = vadd.f32 %v4394, %v4427
        %v4435 = vadd.f32 %v4395, %v4424
        %s4436 = scalar_lea.vmem %s7, 96
        %v4437 = vld [vmem:[%s4436] sm:$0xff]
        %v4438 = vld [vmem:[%s4436 + $0x8] sm:$0xff]
        %4440 = vset.pattern.permute.xlu0 0
        %4441 = vperm.xlu0 %4440, %v4437
        %v4442 = vpop.permute.xlu0 %4441
        %4445 = vset.pattern.permute.xlu0 0
        %4446 = vperm.xlu0 %4445, %v4438
        %v4447 = vpop.permute.xlu0 %4446
        %v4449 = vmul.f32 %v4442, 0.0
        %v4450 = vmul.f32 %v4219, %v4442
        %v4451 = vmul.f32 %v4447, 0.0
        %v4452 = vmul.f32 %v4220, %v4447
        %4457 = vrot.lane.b32.xlu0 %v4449, 104
        %v4458 = vpop.permute.xlu0 %4457
        %4459 = vrot.lane.b32.xlu0 %v4450, 104
        %v4460 = vpop.permute.xlu0 %4459
        %4461 = vrot.lane.b32.xlu0 %v4451, 104
        %v4462 = vpop.permute.xlu0 %4461
        %4463 = vrot.lane.b32.xlu0 %v4452, 104
        %v4464 = vpop.permute.xlu0 %4463
        %vm4465 = vcmask 850944
        %v4466 = vsel %vm4465, %v4458, %v4460
        %v4467 = vsel %vm4465, %v4462, %v4464
        %v4472 = vadd.f32 %v4432, %v4466
        %v4473 = vadd.f32 %v4433, %v4460
        %v4474 = vadd.f32 %v4434, %v4467
        %v4475 = vadd.f32 %v4435, %v4464
        %s4476 = scalar_lea.vmem %s7, 112
        %v4477 = vld [vmem:[%s4476] sm:$0xff]
        %v4478 = vld [vmem:[%s4476 + $0x8] sm:$0xff]
        %4480 = vset.pattern.permute.xlu0 0
        %4481 = vperm.xlu0 %4480, %v4477
        %v4482 = vpop.permute.xlu0 %4481
        %4485 = vset.pattern.permute.xlu0 0
        %4486 = vperm.xlu0 %4485, %v4478
        %v4487 = vpop.permute.xlu0 %4486
        %v4489 = vmul.f32 %v4219, %v4482
        %v4490 = vmul.f32 %v4220, %v4487
        %4493 = vrot.lane.b32.xlu0 %v4489, 100
        %v4494 = vpop.permute.xlu0 %4493
        %4495 = vrot.lane.b32.xlu0 %v4490, 100
        %v4496 = vpop.permute.xlu0 %4495
        %v4499 = vadd.f32 %v4472, %v4494
        %v4500 = vadd.f32 %v4473, %v4494
        %v4501 = vadd.f32 %v4474, %v4496
        %v4502 = vadd.f32 %v4475, %v4496
        %s4503 = scalar_lea.vmem %s7, 128
        %v4504 = vld [vmem:[%s4503] sm:$0xff]
        %v4505 = vld [vmem:[%s4503 + $0x8] sm:$0xff]
        %4507 = vset.pattern.permute.xlu0 0
        %4508 = vperm.xlu0 %4507, %v4504
        %v4509 = vpop.permute.xlu0 %4508
        %4512 = vset.pattern.permute.xlu0 0
        %4513 = vperm.xlu0 %4512, %v4505
        %v4514 = vpop.permute.xlu0 %4513
        %v4516 = vmul.f32 %v4219, %v4509
        %v4517 = vmul.f32 %v4509, 0.0
        %v4518 = vmul.f32 %v4220, %v4514
        %v4519 = vmul.f32 %v4514, 0.0
        %4524 = vrot.lane.b32.xlu0 %v4516, 96
        %v4525 = vpop.permute.xlu0 %4524
        %4526 = vrot.lane.b32.xlu0 %v4517, 96
        %v4527 = vpop.permute.xlu0 %4526
        %4528 = vrot.lane.b32.xlu0 %v4518, 96
        %v4529 = vpop.permute.xlu0 %4528
        %4530 = vrot.lane.b32.xlu0 %v4519, 96
        %v4531 = vpop.permute.xlu0 %4530
        %vm4532 = vcmask 785408
        %v4533 = vsel %vm4532, %v4525, %v4527
        %v4534 = vsel %vm4532, %v4529, %v4531
        %v4539 = vadd.f32 %v4499, %v4525
        %v4540 = vadd.f32 %v4500, %v4533
        %v4541 = vadd.f32 %v4501, %v4529
        %v4542 = vadd.f32 %v4502, %v4534
        %s4543 = scalar_lea.vmem %s7, 144
        %v4544 = vld [vmem:[%s4543] sm:$0xff]
        %v4545 = vld [vmem:[%s4543 + $0x8] sm:$0xff]
        %4547 = vset.pattern.permute.xlu0 0
        %4548 = vperm.xlu0 %4547, %v4544
        %v4549 = vpop.permute.xlu0 %4548
        %4552 = vset.pattern.permute.xlu0 0
        %4553 = vperm.xlu0 %4552, %v4545
        %v4554 = vpop.permute.xlu0 %4553
        %v4556 = vmul.f32 %v4219, %v4549
        %v4557 = vmul.f32 %v4549, 0.0
        %v4558 = vmul.f32 %v4220, %v4554
        %v4559 = vmul.f32 %v4554, 0.0
        %4564 = vrot.lane.b32.xlu0 %v4556, 92
        %v4565 = vpop.permute.xlu0 %4564
        %4566 = vrot.lane.b32.xlu0 %v4557, 92
        %v4567 = vpop.permute.xlu0 %4566
        %4568 = vrot.lane.b32.xlu0 %v4558, 92
        %v4569 = vpop.permute.xlu0 %4568
        %4570 = vrot.lane.b32.xlu0 %v4559, 92
        %v4571 = vpop.permute.xlu0 %4570
        %vm4572 = vcmask 752640
        %v4573 = vsel %vm4572, %v4565, %v4567
        %v4574 = vsel %vm4572, %v4569, %v4571
        %v4579 = vadd.f32 %v4539, %v4565
        %v4580 = vadd.f32 %v4540, %v4573
        %v4581 = vadd.f32 %v4541, %v4569
        %v4582 = vadd.f32 %v4542, %v4574
        %s4583 = scalar_lea.vmem %s7, 160
        %v4584 = vld [vmem:[%s4583] sm:$0xff]
        %v4585 = vld [vmem:[%s4583 + $0x8] sm:$0xff]
        %4587 = vset.pattern.permute.xlu0 0
        %4588 = vperm.xlu0 %4587, %v4584
        %v4589 = vpop.permute.xlu0 %4588
        %4592 = vset.pattern.permute.xlu0 0
        %4593 = vperm.xlu0 %4592, %v4585
        %v4594 = vpop.permute.xlu0 %4593
        %v4596 = vmul.f32 %v4219, %v4589
        %v4597 = vmul.f32 %v4589, 0.0
        %v4598 = vmul.f32 %v4220, %v4594
        %v4599 = vmul.f32 %v4594, 0.0
        %4604 = vrot.lane.b32.xlu0 %v4596, 88
        %v4605 = vpop.permute.xlu0 %4604
        %4606 = vrot.lane.b32.xlu0 %v4597, 88
        %v4607 = vpop.permute.xlu0 %4606
        %4608 = vrot.lane.b32.xlu0 %v4598, 88
        %v4609 = vpop.permute.xlu0 %4608
        %4610 = vrot.lane.b32.xlu0 %v4599, 88
        %v4611 = vpop.permute.xlu0 %4610
        %vm4612 = vcmask 719872
        %v4613 = vsel %vm4612, %v4605, %v4607
        %v4614 = vsel %vm4612, %v4609, %v4611
        %v4619 = vadd.f32 %v4579, %v4605
        %v4620 = vadd.f32 %v4580, %v4613
        %v4621 = vadd.f32 %v4581, %v4609
        %v4622 = vadd.f32 %v4582, %v4614
        %s4623 = scalar_lea.vmem %s7, 176
        %v4624 = vld [vmem:[%s4623] sm:$0xff]
        %v4625 = vld [vmem:[%s4623 + $0x8] sm:$0xff]
        %4627 = vset.pattern.permute.xlu0 0
        %4628 = vperm.xlu0 %4627, %v4624
        %v4629 = vpop.permute.xlu0 %4628
        %4632 = vset.pattern.permute.xlu0 0
        %4633 = vperm.xlu0 %4632, %v4625
        %v4634 = vpop.permute.xlu0 %4633
        %v4636 = vmul.f32 %v4219, %v4629
        %v4637 = vmul.f32 %v4629, 0.0
        %v4638 = vmul.f32 %v4220, %v4634
        %v4639 = vmul.f32 %v4634, 0.0
        %4644 = vrot.lane.b32.xlu0 %v4636, 84
        %v4645 = vpop.permute.xlu0 %4644
        %4646 = vrot.lane.b32.xlu0 %v4637, 84
        %v4647 = vpop.permute.xlu0 %4646
        %4648 = vrot.lane.b32.xlu0 %v4638, 84
        %v4649 = vpop.permute.xlu0 %4648
        %4650 = vrot.lane.b32.xlu0 %v4639, 84
        %v4651 = vpop.permute.xlu0 %4650
        %vm4652 = vcmask 687104
        %v4653 = vsel %vm4652, %v4645, %v4647
        %v4654 = vsel %vm4652, %v4649, %v4651
        %v4659 = vadd.f32 %v4619, %v4645
        %v4660 = vadd.f32 %v4620, %v4653
        %v4661 = vadd.f32 %v4621, %v4649
        %v4662 = vadd.f32 %v4622, %v4654
        %s4663 = scalar_lea.vmem %s7, 192
        %v4664 = vld [vmem:[%s4663] sm:$0xff]
        %v4665 = vld [vmem:[%s4663 + $0x8] sm:$0xff]
        %4667 = vset.pattern.permute.xlu0 0
        %4668 = vperm.xlu0 %4667, %v4664
        %v4669 = vpop.permute.xlu0 %4668
        %4672 = vset.pattern.permute.xlu0 0
        %4673 = vperm.xlu0 %4672, %v4665
        %v4674 = vpop.permute.xlu0 %4673
        %v4676 = vmul.f32 %v4219, %v4669
        %v4677 = vmul.f32 %v4669, 0.0
        %v4678 = vmul.f32 %v4220, %v4674
        %v4679 = vmul.f32 %v4674, 0.0
        %4684 = vrot.lane.b32.xlu0 %v4676, 80
        %v4685 = vpop.permute.xlu0 %4684
        %4686 = vrot.lane.b32.xlu0 %v4677, 80
        %v4687 = vpop.permute.xlu0 %4686
        %4688 = vrot.lane.b32.xlu0 %v4678, 80
        %v4689 = vpop.permute.xlu0 %4688
        %4690 = vrot.lane.b32.xlu0 %v4679, 80
        %v4691 = vpop.permute.xlu0 %4690
        %vm4692 = vcmask 654336
        %v4693 = vsel %vm4692, %v4685, %v4687
        %v4694 = vsel %vm4692, %v4689, %v4691
        %v4699 = vadd.f32 %v4659, %v4685
        %v4700 = vadd.f32 %v4660, %v4693
        %v4701 = vadd.f32 %v4661, %v4689
        %v4702 = vadd.f32 %v4662, %v4694
        %s4703 = scalar_lea.vmem %s7, 208
        %v4704 = vld [vmem:[%s4703] sm:$0xff]
        %v4705 = vld [vmem:[%s4703 + $0x8] sm:$0xff]
        %4707 = vset.pattern.permute.xlu0 0
        %4708 = vperm.xlu0 %4707, %v4704
        %v4709 = vpop.permute.xlu0 %4708
        %4712 = vset.pattern.permute.xlu0 0
        %4713 = vperm.xlu0 %4712, %v4705
        %v4714 = vpop.permute.xlu0 %4713
        %v4716 = vmul.f32 %v4219, %v4709
        %v4717 = vmul.f32 %v4709, 0.0
        %v4718 = vmul.f32 %v4220, %v4714
        %v4719 = vmul.f32 %v4714, 0.0
        %4724 = vrot.lane.b32.xlu0 %v4716, 76
        %v4725 = vpop.permute.xlu0 %4724
        %4726 = vrot.lane.b32.xlu0 %v4717, 76
        %v4727 = vpop.permute.xlu0 %4726
        %4728 = vrot.lane.b32.xlu0 %v4718, 76
        %v4729 = vpop.permute.xlu0 %4728
        %4730 = vrot.lane.b32.xlu0 %v4719, 76
        %v4731 = vpop.permute.xlu0 %4730
        %vm4732 = vcmask 621568
        %v4733 = vsel %vm4732, %v4725, %v4727
        %v4734 = vsel %vm4732, %v4729, %v4731
        %v4739 = vadd.f32 %v4699, %v4725
        %v4740 = vadd.f32 %v4700, %v4733
        %v4741 = vadd.f32 %v4701, %v4729
        %v4742 = vadd.f32 %v4702, %v4734
        %s4743 = scalar_lea.vmem %s7, 224
        %v4744 = vld [vmem:[%s4743] sm:$0xff]
        %v4745 = vld [vmem:[%s4743 + $0x8] sm:$0xff]
        %4747 = vset.pattern.permute.xlu0 0
        %4748 = vperm.xlu0 %4747, %v4744
        %v4749 = vpop.permute.xlu0 %4748
        %4752 = vset.pattern.permute.xlu0 0
        %4753 = vperm.xlu0 %4752, %v4745
        %v4754 = vpop.permute.xlu0 %4753
        %v4756 = vmul.f32 %v4219, %v4749
        %v4757 = vmul.f32 %v4749, 0.0
        %v4758 = vmul.f32 %v4220, %v4754
        %v4759 = vmul.f32 %v4754, 0.0
        %4764 = vrot.lane.b32.xlu0 %v4756, 72
        %v4765 = vpop.permute.xlu0 %4764
        %4766 = vrot.lane.b32.xlu0 %v4757, 72
        %v4767 = vpop.permute.xlu0 %4766
        %4768 = vrot.lane.b32.xlu0 %v4758, 72
        %v4769 = vpop.permute.xlu0 %4768
        %4770 = vrot.lane.b32.xlu0 %v4759, 72
        %v4771 = vpop.permute.xlu0 %4770
        %vm4772 = vcmask 588800
        %v4773 = vsel %vm4772, %v4765, %v4767
        %v4774 = vsel %vm4772, %v4769, %v4771
        %v4779 = vadd.f32 %v4739, %v4765
        %v4780 = vadd.f32 %v4740, %v4773
        %v4781 = vadd.f32 %v4741, %v4769
        %v4782 = vadd.f32 %v4742, %v4774
        %s4783 = scalar_lea.vmem %s7, 240
        %v4784 = vld [vmem:[%s4783] sm:$0xff]
        %v4785 = vld [vmem:[%s4783 + $0x8] sm:$0xff]
        %4787 = vset.pattern.permute.xlu0 0
        %4788 = vperm.xlu0 %4787, %v4784
        %v4789 = vpop.permute.xlu0 %4788
        %4792 = vset.pattern.permute.xlu0 0
        %4793 = vperm.xlu0 %4792, %v4785
        %v4794 = vpop.permute.xlu0 %4793
        %v4796 = vmul.f32 %v4219, %v4789
        %v4797 = vmul.f32 %v4789, 0.0
        %v4798 = vmul.f32 %v4220, %v4794
        %v4799 = vmul.f32 %v4794, 0.0
        %4804 = vrot.lane.b32.xlu0 %v4796, 68
        %v4805 = vpop.permute.xlu0 %4804
        %4806 = vrot.lane.b32.xlu0 %v4797, 68
        %v4807 = vpop.permute.xlu0 %4806
        %4808 = vrot.lane.b32.xlu0 %v4798, 68
        %v4809 = vpop.permute.xlu0 %4808
        %4810 = vrot.lane.b32.xlu0 %v4799, 68
        %v4811 = vpop.permute.xlu0 %4810
        %vm4812 = vcmask 556032
        %v4813 = vsel %vm4812, %v4805, %v4807
        %v4814 = vsel %vm4812, %v4809, %v4811
        %v4819 = vadd.f32 %v4779, %v4805
        %v4820 = vadd.f32 %v4780, %v4813
        %v4821 = vadd.f32 %v4781, %v4809
        %v4822 = vadd.f32 %v4782, %v4814
        %s4823 = sld [smem:[#allocation13]]
        %v4824 = vstv %s4823
        %v4825 = vmul.f32 %v4819, %v4824
        %v4826 = vmul.f32 %v4820, %v4824
        %s4827 = sld [smem:[#allocation13 + $0x1]]
        %v4828 = vstv %s4827
        %v4829 = vmul.f32 %v4819, %v4828
        %v4830 = vmul.f32 %v4820, %v4828
        %v4833 = vrot.slane %v4829, 1
        %v4834 = vrot.slane %v4830, 1
        %v4837 = vadd.f32 %v4825, %v4833
        %v4838 = vadd.f32 %v4826, %v4834
        %s4839 = sld [smem:[#allocation13 + $0x2]]
        %v4840 = vstv %s4839
        %v4841 = vmul.f32 %v4819, %v4840
        %v4842 = vmul.f32 %v4820, %v4840
        %v4845 = vrot.slane %v4841, 2
        %v4846 = vrot.slane %v4842, 2
        %v4849 = vadd.f32 %v4837, %v4845
        %v4850 = vadd.f32 %v4838, %v4846
        %s4851 = sld [smem:[#allocation13 + $0x3]]
        %v4852 = vstv %s4851
        %v4853 = vmul.f32 %v4819, %v4852
        %v4854 = vmul.f32 %v4820, %v4852
        %v4857 = vrot.slane %v4853, 3
        %v4858 = vrot.slane %v4854, 3
        %v4861 = vadd.f32 %v4849, %v4857
        %v4862 = vadd.f32 %v4850, %v4858
        %s4863 = sld [smem:[#allocation13 + $0x4]]
        %v4864 = vstv %s4863
        %v4865 = vmul.f32 %v4819, %v4864
        %v4866 = vmul.f32 %v4820, %v4864
        %v4869 = vrot.slane %v4865, 4
        %v4870 = vrot.slane %v4866, 4
        %v4873 = vadd.f32 %v4861, %v4869
        %v4874 = vadd.f32 %v4862, %v4870
        %s4875 = sld [smem:[#allocation13 + $0x5]]
        %v4876 = vstv %s4875
        %v4877 = vmul.f32 %v4819, %v4876
        %v4878 = vmul.f32 %v4820, %v4876
        %v4881 = vrot.slane %v4877, 5
        %v4882 = vrot.slane %v4878, 5
        %v4885 = vadd.f32 %v4873, %v4881
        %v4886 = vadd.f32 %v4874, %v4882
        %s4887 = sld [smem:[#allocation13 + $0x6]]
        %v4888 = vstv %s4887
        %v4889 = vmul.f32 %v4819, %v4888
        %v4890 = vmul.f32 %v4820, %v4888
        %v4893 = vrot.slane %v4889, 6
        %v4894 = vrot.slane %v4890, 6
        %v4897 = vadd.f32 %v4885, %v4893
        %v4898 = vadd.f32 %v4886, %v4894
        %s4899 = sld [smem:[#allocation13 + $0x7]]
        %v4900 = vstv %s4899
        %v4901 = vmul.f32 %v4819, %v4900
        %v4902 = vmul.f32 %v4820, %v4900
        %v4905 = vrot.slane %v4901, 7
        %v4906 = vrot.slane %v4902, 7
        %v4909 = vadd.f32 %v4897, %v4905
        %v4910 = vadd.f32 %v4898, %v4906
        %s4911 = sld [smem:[#allocation13 + $0x8]]
        %v4912 = vstv %s4911
        %v4913 = vmul.f32 %v4821, %v4912
        %v4914 = vmul.f32 %v4822, %v4912
        %v4915 = vadd.f32 %v4909, %v4913
        %v4916 = vadd.f32 %v4910, %v4914
        %s4917 = sld [smem:[#allocation13 + $0x9]]
        %v4918 = vstv %s4917
        %v4919 = vmul.f32 %v4821, %v4918
        %v4920 = vmul.f32 %v4822, %v4918
        %v4923 = vrot.slane %v4919, 1
        %v4924 = vrot.slane %v4920, 1
        %v4927 = vadd.f32 %v4915, %v4923
        %v4928 = vadd.f32 %v4916, %v4924
        %s4929 = sld [smem:[#allocation13 + $0xa]]
        %v4930 = vstv %s4929
        %v4931 = vmul.f32 %v4821, %v4930
        %v4932 = vmul.f32 %v4822, %v4930
        %v4935 = vrot.slane %v4931, 2
        %v4936 = vrot.slane %v4932, 2
        %v4939 = vadd.f32 %v4927, %v4935
        %v4940 = vadd.f32 %v4928, %v4936
        %s4941 = sld [smem:[#allocation13 + $0xb]]
        %v4942 = vstv %s4941
        %v4943 = vmul.f32 %v4821, %v4942
        %v4944 = vmul.f32 %v4822, %v4942
        %v4947 = vrot.slane %v4943, 3
        %v4948 = vrot.slane %v4944, 3
        %v4951 = vadd.f32 %v4939, %v4947
        %v4952 = vadd.f32 %v4940, %v4948
        %s4953 = sld [smem:[#allocation13 + $0xc]]
        %v4954 = vstv %s4953
        %v4955 = vmul.f32 %v4821, %v4954
        %v4956 = vmul.f32 %v4822, %v4954
        %v4959 = vrot.slane %v4955, 4
        %v4960 = vrot.slane %v4956, 4
        %v4963 = vadd.f32 %v4951, %v4959
        %v4964 = vadd.f32 %v4952, %v4960
        %s4965 = sld [smem:[#allocation13 + $0xd]]
        %v4966 = vstv %s4965
        %v4967 = vmul.f32 %v4821, %v4966
        %v4968 = vmul.f32 %v4822, %v4966
        %v4971 = vrot.slane %v4967, 5
        %v4972 = vrot.slane %v4968, 5
        %v4975 = vadd.f32 %v4963, %v4971
        %v4976 = vadd.f32 %v4964, %v4972
        %s4977 = sld [smem:[#allocation13 + $0xe]]
        %v4978 = vstv %s4977
        %v4979 = vmul.f32 %v4821, %v4978
        %v4980 = vmul.f32 %v4822, %v4978
        %v4983 = vrot.slane %v4979, 6
        %v4984 = vrot.slane %v4980, 6
        %v4987 = vadd.f32 %v4975, %v4983
        %v4988 = vadd.f32 %v4976, %v4984
        %s4989 = sld [smem:[#allocation13 + $0xf]]
        %v4990 = vstv %s4989
        %v4991 = vmul.f32 %v4821, %v4990
        %v4992 = vmul.f32 %v4822, %v4990
        %v4995 = vrot.slane %v4991, 7
        %v4996 = vrot.slane %v4992, 7
        %v4999 = vadd.f32 %v4987, %v4995
        %v5000 = vadd.f32 %v4988, %v4996
        %s5001 = sld [smem:[#allocation14]]
        %v5002 = vstv %s5001
        %v5003 = vadd.f32 %v4999, %v5002
        %v5004 = vadd.f32 %v5000, %v5002
        %s5005 = sld [smem:[#allocation16]]
        %v5006 = vstv %s5005
        %v5007 = vmul.f32 %v5003, %v5006
        %v5008 = vmul.f32 %v5004, %v5006
        %s5009 = sld [smem:[#allocation17]]
        %v5010 = vstv %s5009
        %v5011 = vadd.f32 %v5007, %v5010
        %v5012 = vadd.f32 %v5008, %v5010
        %s5013 = sld [smem:[#allocation13 + $0x10]]
        %v5014 = vstv %s5013
        %v5015 = vmul.f32 %v4819, %v5014
        %v5016 = vmul.f32 %v4820, %v5014
        %s5017 = sld [smem:[#allocation13 + $0x11]]
        %v5018 = vstv %s5017
        %v5019 = vmul.f32 %v4819, %v5018
        %v5020 = vmul.f32 %v4820, %v5018
        %v5023 = vrot.slane %v5019, 1
        %v5024 = vrot.slane %v5020, 1
        %v5027 = vadd.f32 %v5015, %v5023
        %v5028 = vadd.f32 %v5016, %v5024
        %s5029 = sld [smem:[#allocation13 + $0x12]]
        %v5030 = vstv %s5029
        %v5031 = vmul.f32 %v4819, %v5030
        %v5032 = vmul.f32 %v4820, %v5030
        %v5035 = vrot.slane %v5031, 2
        %v5036 = vrot.slane %v5032, 2
        %v5039 = vadd.f32 %v5027, %v5035
        %v5040 = vadd.f32 %v5028, %v5036
        %s5041 = sld [smem:[#allocation13 + $0x13]]
        %v5042 = vstv %s5041
        %v5043 = vmul.f32 %v4819, %v5042
        %v5044 = vmul.f32 %v4820, %v5042
        %v5047 = vrot.slane %v5043, 3
        %v5048 = vrot.slane %v5044, 3
        %v5051 = vadd.f32 %v5039, %v5047
        %v5052 = vadd.f32 %v5040, %v5048
        %s5053 = sld [smem:[#allocation13 + $0x14]]
        %v5054 = vstv %s5053
        %v5055 = vmul.f32 %v4819, %v5054
        %v5056 = vmul.f32 %v4820, %v5054
        %v5059 = vrot.slane %v5055, 4
        %v5060 = vrot.slane %v5056, 4
        %v5063 = vadd.f32 %v5051, %v5059
        %v5064 = vadd.f32 %v5052, %v5060
        %s5065 = sld [smem:[#allocation13 + $0x15]]
        %v5066 = vstv %s5065
        %v5067 = vmul.f32 %v4819, %v5066
        %v5068 = vmul.f32 %v4820, %v5066
        %v5071 = vrot.slane %v5067, 5
        %v5072 = vrot.slane %v5068, 5
        %v5075 = vadd.f32 %v5063, %v5071
        %v5076 = vadd.f32 %v5064, %v5072
        %s5077 = sld [smem:[#allocation13 + $0x16]]
        %v5078 = vstv %s5077
        %v5079 = vmul.f32 %v4819, %v5078
        %v5080 = vmul.f32 %v4820, %v5078
        %v5083 = vrot.slane %v5079, 6
        %v5084 = vrot.slane %v5080, 6
        %v5087 = vadd.f32 %v5075, %v5083
        %v5088 = vadd.f32 %v5076, %v5084
        %s5089 = sld [smem:[#allocation13 + $0x17]]
        %v5090 = vstv %s5089
        %v5091 = vmul.f32 %v4819, %v5090
        %v5092 = vmul.f32 %v4820, %v5090
        %v5095 = vrot.slane %v5091, 7
        %v5096 = vrot.slane %v5092, 7
        %v5099 = vadd.f32 %v5087, %v5095
        %v5100 = vadd.f32 %v5088, %v5096
        %s5101 = sld [smem:[#allocation13 + $0x18]]
        %v5102 = vstv %s5101
        %v5103 = vmul.f32 %v4821, %v5102
        %v5104 = vmul.f32 %v4822, %v5102
        %v5105 = vadd.f32 %v5099, %v5103
        %v5106 = vadd.f32 %v5100, %v5104
        %s5107 = sld [smem:[#allocation13 + $0x19]]
        %v5108 = vstv %s5107
        %v5109 = vmul.f32 %v4821, %v5108
        %v5110 = vmul.f32 %v4822, %v5108
        %v5113 = vrot.slane %v5109, 1
        %v5114 = vrot.slane %v5110, 1
        %v5117 = vadd.f32 %v5105, %v5113
        %v5118 = vadd.f32 %v5106, %v5114
        %s5119 = sld [smem:[#allocation13 + $0x1a]]
        %v5120 = vstv %s5119
        %v5121 = vmul.f32 %v4821, %v5120
        %v5122 = vmul.f32 %v4822, %v5120
        %v5125 = vrot.slane %v5121, 2
        %v5126 = vrot.slane %v5122, 2
        %v5129 = vadd.f32 %v5117, %v5125
        %v5130 = vadd.f32 %v5118, %v5126
        %s5131 = sld [smem:[#allocation13 + $0x1b]]
        %v5132 = vstv %s5131
        %v5133 = vmul.f32 %v4821, %v5132
        %v5134 = vmul.f32 %v4822, %v5132
        %v5137 = vrot.slane %v5133, 3
        %v5138 = vrot.slane %v5134, 3
        %v5141 = vadd.f32 %v5129, %v5137
        %v5142 = vadd.f32 %v5130, %v5138
        %s5143 = sld [smem:[#allocation13 + $0x1c]]
        %v5144 = vstv %s5143
        %v5145 = vmul.f32 %v4821, %v5144
        %v5146 = vmul.f32 %v4822, %v5144
        %v5149 = vrot.slane %v5145, 4
        %v5150 = vrot.slane %v5146, 4
        %v5153 = vadd.f32 %v5141, %v5149
        %v5154 = vadd.f32 %v5142, %v5150
        %s5155 = sld [smem:[#allocation13 + $0x1d]]
        %v5156 = vstv %s5155
        %v5157 = vmul.f32 %v4821, %v5156
        %v5158 = vmul.f32 %v4822, %v5156
        %v5161 = vrot.slane %v5157, 5
        %v5162 = vrot.slane %v5158, 5
        %v5165 = vadd.f32 %v5153, %v5161
        %v5166 = vadd.f32 %v5154, %v5162
        %s5167 = sld [smem:[#allocation13 + $0x1e]]
        %v5168 = vstv %s5167
        %v5169 = vmul.f32 %v4821, %v5168
        %v5170 = vmul.f32 %v4822, %v5168
        %v5173 = vrot.slane %v5169, 6
        %v5174 = vrot.slane %v5170, 6
        %v5177 = vadd.f32 %v5165, %v5173
        %v5178 = vadd.f32 %v5166, %v5174
        %s5179 = sld [smem:[#allocation13 + $0x1f]]
        %v5180 = vstv %s5179
        %v5181 = vmul.f32 %v4821, %v5180
        %v5182 = vmul.f32 %v4822, %v5180
        %v5185 = vrot.slane %v5181, 7
        %v5186 = vrot.slane %v5182, 7
        %v5189 = vadd.f32 %v5177, %v5185
        %v5190 = vadd.f32 %v5178, %v5186
        %s5191 = sld [smem:[#allocation14 + $0x1]]
        %v5192 = vstv %s5191
        %v5193 = vadd.f32 %v5189, %v5192
        %v5194 = vadd.f32 %v5190, %v5192
        %s5195 = sld [smem:[#allocation16 + $0x1]]
        %v5196 = vstv %s5195
        %v5197 = vmul.f32 %v5193, %v5196
        %v5198 = vmul.f32 %v5194, %v5196
        %s5199 = sld [smem:[#allocation17 + $0x1]]
        %v5200 = vstv %s5199
        %v5201 = vadd.f32 %v5197, %v5200
        %v5202 = vadd.f32 %v5198, %v5200
        %s5203 = sld [smem:[#allocation13 + $0x20]]
        %v5204 = vstv %s5203
        %v5205 = vmul.f32 %v4819, %v5204
        %v5206 = vmul.f32 %v4820, %v5204
        %s5207 = sld [smem:[#allocation13 + $0x21]]
        %v5208 = vstv %s5207
        %v5209 = vmul.f32 %v4819, %v5208
        %v5210 = vmul.f32 %v4820, %v5208
        %v5213 = vrot.slane %v5209, 1
        %v5214 = vrot.slane %v5210, 1
        %v5217 = vadd.f32 %v5205, %v5213
        %v5218 = vadd.f32 %v5206, %v5214
        %s5219 = sld [smem:[#allocation13 + $0x22]]
        %v5220 = vstv %s5219
        %v5221 = vmul.f32 %v4819, %v5220
        %v5222 = vmul.f32 %v4820, %v5220
        %v5225 = vrot.slane %v5221, 2
        %v5226 = vrot.slane %v5222, 2
        %v5229 = vadd.f32 %v5217, %v5225
        %v5230 = vadd.f32 %v5218, %v5226
        %s5231 = sld [smem:[#allocation13 + $0x23]]
        %v5232 = vstv %s5231
        %v5233 = vmul.f32 %v4819, %v5232
        %v5234 = vmul.f32 %v4820, %v5232
        %v5237 = vrot.slane %v5233, 3
        %v5238 = vrot.slane %v5234, 3
        %v5241 = vadd.f32 %v5229, %v5237
        %v5242 = vadd.f32 %v5230, %v5238
        %s5243 = sld [smem:[#allocation13 + $0x24]]
        %v5244 = vstv %s5243
        %v5245 = vmul.f32 %v4819, %v5244
        %v5246 = vmul.f32 %v4820, %v5244
        %v5249 = vrot.slane %v5245, 4
        %v5250 = vrot.slane %v5246, 4
        %v5253 = vadd.f32 %v5241, %v5249
        %v5254 = vadd.f32 %v5242, %v5250
        %s5255 = sld [smem:[#allocation13 + $0x25]]
        %v5256 = vstv %s5255
        %v5257 = vmul.f32 %v4819, %v5256
        %v5258 = vmul.f32 %v4820, %v5256
        %v5261 = vrot.slane %v5257, 5
        %v5262 = vrot.slane %v5258, 5
        %v5265 = vadd.f32 %v5253, %v5261
        %v5266 = vadd.f32 %v5254, %v5262
        %s5267 = sld [smem:[#allocation13 + $0x26]]
        %v5268 = vstv %s5267
        %v5269 = vmul.f32 %v4819, %v5268
        %v5270 = vmul.f32 %v4820, %v5268
        %v5273 = vrot.slane %v5269, 6
        %v5274 = vrot.slane %v5270, 6
        %v5277 = vadd.f32 %v5265, %v5273
        %v5278 = vadd.f32 %v5266, %v5274
        %s5279 = sld [smem:[#allocation13 + $0x27]]
        %v5280 = vstv %s5279
        %v5281 = vmul.f32 %v4819, %v5280
        %v5282 = vmul.f32 %v4820, %v5280
        %v5285 = vrot.slane %v5281, 7
        %v5286 = vrot.slane %v5282, 7
        %v5289 = vadd.f32 %v5277, %v5285
        %v5290 = vadd.f32 %v5278, %v5286
        %s5291 = sld [smem:[#allocation13 + $0x28]]
        %v5292 = vstv %s5291
        %v5293 = vmul.f32 %v4821, %v5292
        %v5294 = vmul.f32 %v4822, %v5292
        %v5295 = vadd.f32 %v5289, %v5293
        %v5296 = vadd.f32 %v5290, %v5294
        %s5297 = sld [smem:[#allocation13 + $0x29]]
        %v5298 = vstv %s5297
        %v5299 = vmul.f32 %v4821, %v5298
        %v5300 = vmul.f32 %v4822, %v5298
        %v5303 = vrot.slane %v5299, 1
        %v5304 = vrot.slane %v5300, 1
        %v5307 = vadd.f32 %v5295, %v5303
        %v5308 = vadd.f32 %v5296, %v5304
        %s5309 = sld [smem:[#allocation13 + $0x2a]]
        %v5310 = vstv %s5309
        %v5311 = vmul.f32 %v4821, %v5310
        %v5312 = vmul.f32 %v4822, %v5310
        %v5315 = vrot.slane %v5311, 2
        %v5316 = vrot.slane %v5312, 2
        %v5319 = vadd.f32 %v5307, %v5315
        %v5320 = vadd.f32 %v5308, %v5316
        %s5321 = sld [smem:[#allocation13 + $0x2b]]
        %v5322 = vstv %s5321
        %v5323 = vmul.f32 %v4821, %v5322
        %v5324 = vmul.f32 %v4822, %v5322
        %v5327 = vrot.slane %v5323, 3
        %v5328 = vrot.slane %v5324, 3
        %v5331 = vadd.f32 %v5319, %v5327
        %v5332 = vadd.f32 %v5320, %v5328
        %s5333 = sld [smem:[#allocation13 + $0x2c]]
        %v5334 = vstv %s5333
        %v5335 = vmul.f32 %v4821, %v5334
        %v5336 = vmul.f32 %v4822, %v5334
        %v5339 = vrot.slane %v5335, 4
        %v5340 = vrot.slane %v5336, 4
        %v5343 = vadd.f32 %v5331, %v5339
        %v5344 = vadd.f32 %v5332, %v5340
        %s5345 = sld [smem:[#allocation13 + $0x2d]]
        %v5346 = vstv %s5345
        %v5347 = vmul.f32 %v4821, %v5346
        %v5348 = vmul.f32 %v4822, %v5346
        %v5351 = vrot.slane %v5347, 5
        %v5352 = vrot.slane %v5348, 5
        %v5355 = vadd.f32 %v5343, %v5351
        %v5356 = vadd.f32 %v5344, %v5352
        %s5357 = sld [smem:[#allocation13 + $0x2e]]
        %v5358 = vstv %s5357
        %v5359 = vmul.f32 %v4821, %v5358
        %v5360 = vmul.f32 %v4822, %v5358
        %v5363 = vrot.slane %v5359, 6
        %v5364 = vrot.slane %v5360, 6
        %v5367 = vadd.f32 %v5355, %v5363
        %v5368 = vadd.f32 %v5356, %v5364
        %s5369 = sld [smem:[#allocation13 + $0x2f]]
        %v5370 = vstv %s5369
        %v5371 = vmul.f32 %v4821, %v5370
        %v5372 = vmul.f32 %v4822, %v5370
        %v5375 = vrot.slane %v5371, 7
        %v5376 = vrot.slane %v5372, 7
        %v5379 = vadd.f32 %v5367, %v5375
        %v5380 = vadd.f32 %v5368, %v5376
        %s5381 = sld [smem:[#allocation14 + $0x2]]
        %v5382 = vstv %s5381
        %v5383 = vadd.f32 %v5379, %v5382
        %v5384 = vadd.f32 %v5380, %v5382
        %s5385 = sld [smem:[#allocation16 + $0x2]]
        %v5386 = vstv %s5385
        %v5387 = vmul.f32 %v5383, %v5386
        %v5388 = vmul.f32 %v5384, %v5386
        %s5389 = sld [smem:[#allocation17 + $0x2]]
        %v5390 = vstv %s5389
        %v5391 = vadd.f32 %v5387, %v5390
        %v5392 = vadd.f32 %v5388, %v5390
        %s5393 = sld [smem:[#allocation13 + $0x30]]
        %v5394 = vstv %s5393
        %v5395 = vmul.f32 %v4819, %v5394
        %v5396 = vmul.f32 %v4820, %v5394
        %s5397 = sld [smem:[#allocation13 + $0x31]]
        %v5398 = vstv %s5397
        %v5399 = vmul.f32 %v4819, %v5398
        %v5400 = vmul.f32 %v4820, %v5398
        %v5403 = vrot.slane %v5399, 1
        %v5404 = vrot.slane %v5400, 1
        %v5407 = vadd.f32 %v5395, %v5403
        %v5408 = vadd.f32 %v5396, %v5404
        %s5409 = sld [smem:[#allocation13 + $0x32]]
        %v5410 = vstv %s5409
        %v5411 = vmul.f32 %v4819, %v5410
        %v5412 = vmul.f32 %v4820, %v5410
        %v5415 = vrot.slane %v5411, 2
        %v5416 = vrot.slane %v5412, 2
        %v5419 = vadd.f32 %v5407, %v5415
        %v5420 = vadd.f32 %v5408, %v5416
        %s5421 = sld [smem:[#allocation13 + $0x33]]
        %v5422 = vstv %s5421
        %v5423 = vmul.f32 %v4819, %v5422
        %v5424 = vmul.f32 %v4820, %v5422
        %v5427 = vrot.slane %v5423, 3
        %v5428 = vrot.slane %v5424, 3
        %v5431 = vadd.f32 %v5419, %v5427
        %v5432 = vadd.f32 %v5420, %v5428
        %s5433 = sld [smem:[#allocation13 + $0x34]]
        %v5434 = vstv %s5433
        %v5435 = vmul.f32 %v4819, %v5434
        %v5436 = vmul.f32 %v4820, %v5434
        %v5439 = vrot.slane %v5435, 4
        %v5440 = vrot.slane %v5436, 4
        %v5443 = vadd.f32 %v5431, %v5439
        %v5444 = vadd.f32 %v5432, %v5440
        %s5445 = sld [smem:[#allocation13 + $0x35]]
        %v5446 = vstv %s5445
        %v5447 = vmul.f32 %v4819, %v5446
        %v5448 = vmul.f32 %v4820, %v5446
        %v5451 = vrot.slane %v5447, 5
        %v5452 = vrot.slane %v5448, 5
        %v5455 = vadd.f32 %v5443, %v5451
        %v5456 = vadd.f32 %v5444, %v5452
        %s5457 = sld [smem:[#allocation13 + $0x36]]
        %v5458 = vstv %s5457
        %v5459 = vmul.f32 %v4819, %v5458
        %v5460 = vmul.f32 %v4820, %v5458
        %v5463 = vrot.slane %v5459, 6
        %v5464 = vrot.slane %v5460, 6
        %v5467 = vadd.f32 %v5455, %v5463
        %v5468 = vadd.f32 %v5456, %v5464
        %s5469 = sld [smem:[#allocation13 + $0x37]]
        %v5470 = vstv %s5469
        %v5471 = vmul.f32 %v4819, %v5470
        %v5472 = vmul.f32 %v4820, %v5470
        %v5475 = vrot.slane %v5471, 7
        %v5476 = vrot.slane %v5472, 7
        %v5479 = vadd.f32 %v5467, %v5475
        %v5480 = vadd.f32 %v5468, %v5476
        %s5481 = sld [smem:[#allocation13 + $0x38]]
        %v5482 = vstv %s5481
        %v5483 = vmul.f32 %v4821, %v5482
        %v5484 = vmul.f32 %v4822, %v5482
        %v5485 = vadd.f32 %v5479, %v5483
        %v5486 = vadd.f32 %v5480, %v5484
        %s5487 = sld [smem:[#allocation13 + $0x39]]
        %v5488 = vstv %s5487
        %v5489 = vmul.f32 %v4821, %v5488
        %v5490 = vmul.f32 %v4822, %v5488
        %v5493 = vrot.slane %v5489, 1
        %v5494 = vrot.slane %v5490, 1
        %v5497 = vadd.f32 %v5485, %v5493
        %v5498 = vadd.f32 %v5486, %v5494
        %s5499 = sld [smem:[#allocation13 + $0x3a]]
        %v5500 = vstv %s5499
        %v5501 = vmul.f32 %v4821, %v5500
        %v5502 = vmul.f32 %v4822, %v5500
        %v5505 = vrot.slane %v5501, 2
        %v5506 = vrot.slane %v5502, 2
        %v5509 = vadd.f32 %v5497, %v5505
        %v5510 = vadd.f32 %v5498, %v5506
        %s5511 = sld [smem:[#allocation13 + $0x3b]]
        %v5512 = vstv %s5511
        %v5513 = vmul.f32 %v4821, %v5512
        %v5514 = vmul.f32 %v4822, %v5512
        %v5517 = vrot.slane %v5513, 3
        %v5518 = vrot.slane %v5514, 3
        %v5521 = vadd.f32 %v5509, %v5517
        %v5522 = vadd.f32 %v5510, %v5518
        %s5523 = sld [smem:[#allocation13 + $0x3c]]
        %v5524 = vstv %s5523
        %v5525 = vmul.f32 %v4821, %v5524
        %v5526 = vmul.f32 %v4822, %v5524
        %v5529 = vrot.slane %v5525, 4
        %v5530 = vrot.slane %v5526, 4
        %v5533 = vadd.f32 %v5521, %v5529
        %v5534 = vadd.f32 %v5522, %v5530
        %s5535 = sld [smem:[#allocation13 + $0x3d]]
        %v5536 = vstv %s5535
        %v5537 = vmul.f32 %v4821, %v5536
        %v5538 = vmul.f32 %v4822, %v5536
        %v5541 = vrot.slane %v5537, 5
        %v5542 = vrot.slane %v5538, 5
        %v5545 = vadd.f32 %v5533, %v5541
        %v5546 = vadd.f32 %v5534, %v5542
        %s5547 = sld [smem:[#allocation13 + $0x3e]]
        %v5548 = vstv %s5547
        %v5549 = vmul.f32 %v4821, %v5548
        %v5550 = vmul.f32 %v4822, %v5548
        %v5553 = vrot.slane %v5549, 6
        %v5554 = vrot.slane %v5550, 6
        %v5557 = vadd.f32 %v5545, %v5553
        %v5558 = vadd.f32 %v5546, %v5554
        %s5559 = sld [smem:[#allocation13 + $0x3f]]
        %v5560 = vstv %s5559
        %v5561 = vmul.f32 %v4821, %v5560
        %v5562 = vmul.f32 %v4822, %v5560
        %v5565 = vrot.slane %v5561, 7
        %v5566 = vrot.slane %v5562, 7
        %v5569 = vadd.f32 %v5557, %v5565
        %v5570 = vadd.f32 %v5558, %v5566
        %s5571 = sld [smem:[#allocation14 + $0x3]]
        %v5572 = vstv %s5571
        %v5573 = vadd.f32 %v5569, %v5572
        %v5574 = vadd.f32 %v5570, %v5572
        %s5575 = sld [smem:[#allocation16 + $0x3]]
        %v5576 = vstv %s5575
        %v5577 = vmul.f32 %v5573, %v5576
        %v5578 = vmul.f32 %v5574, %v5576
        %s5579 = sld [smem:[#allocation17 + $0x3]]
        %v5580 = vstv %s5579
        %v5581 = vadd.f32 %v5577, %v5580
        %v5582 = vadd.f32 %v5578, %v5580
        %s5583 = sld [smem:[#allocation13 + $0x40]]
        %v5584 = vstv %s5583
        %v5585 = vmul.f32 %v4819, %v5584
        %v5586 = vmul.f32 %v4820, %v5584
        %s5587 = sld [smem:[#allocation13 + $0x41]]
        %v5588 = vstv %s5587
        %v5589 = vmul.f32 %v4819, %v5588
        %v5590 = vmul.f32 %v4820, %v5588
        %v5593 = vrot.slane %v5589, 1
        %v5594 = vrot.slane %v5590, 1
        %v5597 = vadd.f32 %v5585, %v5593
        %v5598 = vadd.f32 %v5586, %v5594
        %s5599 = sld [smem:[#allocation13 + $0x42]]
        %v5600 = vstv %s5599
        %v5601 = vmul.f32 %v4819, %v5600
        %v5602 = vmul.f32 %v4820, %v5600
        %v5605 = vrot.slane %v5601, 2
        %v5606 = vrot.slane %v5602, 2
        %v5609 = vadd.f32 %v5597, %v5605
        %v5610 = vadd.f32 %v5598, %v5606
        %s5611 = sld [smem:[#allocation13 + $0x43]]
        %v5612 = vstv %s5611
        %v5613 = vmul.f32 %v4819, %v5612
        %v5614 = vmul.f32 %v4820, %v5612
        %v5617 = vrot.slane %v5613, 3
        %v5618 = vrot.slane %v5614, 3
        %v5621 = vadd.f32 %v5609, %v5617
        %v5622 = vadd.f32 %v5610, %v5618
        %s5623 = sld [smem:[#allocation13 + $0x44]]
        %v5624 = vstv %s5623
        %v5625 = vmul.f32 %v4819, %v5624
        %v5626 = vmul.f32 %v4820, %v5624
        %v5629 = vrot.slane %v5625, 4
        %v5630 = vrot.slane %v5626, 4
        %v5633 = vadd.f32 %v5621, %v5629
        %v5634 = vadd.f32 %v5622, %v5630
        %s5635 = sld [smem:[#allocation13 + $0x45]]
        %v5636 = vstv %s5635
        %v5637 = vmul.f32 %v4819, %v5636
        %v5638 = vmul.f32 %v4820, %v5636
        %v5641 = vrot.slane %v5637, 5
        %v5642 = vrot.slane %v5638, 5
        %v5645 = vadd.f32 %v5633, %v5641
        %v5646 = vadd.f32 %v5634, %v5642
        %s5647 = sld [smem:[#allocation13 + $0x46]]
        %v5648 = vstv %s5647
        %v5649 = vmul.f32 %v4819, %v5648
        %v5650 = vmul.f32 %v4820, %v5648
        %v5653 = vrot.slane %v5649, 6
        %v5654 = vrot.slane %v5650, 6
        %v5657 = vadd.f32 %v5645, %v5653
        %v5658 = vadd.f32 %v5646, %v5654
        %s5659 = sld [smem:[#allocation13 + $0x47]]
        %v5660 = vstv %s5659
        %v5661 = vmul.f32 %v4819, %v5660
        %v5662 = vmul.f32 %v4820, %v5660
        %v5665 = vrot.slane %v5661, 7
        %v5666 = vrot.slane %v5662, 7
        %v5669 = vadd.f32 %v5657, %v5665
        %v5670 = vadd.f32 %v5658, %v5666
        %s5671 = sld [smem:[#allocation13 + $0x48]]
        %v5672 = vstv %s5671
        %v5673 = vmul.f32 %v4821, %v5672
        %v5674 = vmul.f32 %v4822, %v5672
        %v5675 = vadd.f32 %v5669, %v5673
        %v5676 = vadd.f32 %v5670, %v5674
        %s5677 = sld [smem:[#allocation13 + $0x49]]
        %v5678 = vstv %s5677
        %v5679 = vmul.f32 %v4821, %v5678
        %v5680 = vmul.f32 %v4822, %v5678
        %v5683 = vrot.slane %v5679, 1
        %v5684 = vrot.slane %v5680, 1
        %v5687 = vadd.f32 %v5675, %v5683
        %v5688 = vadd.f32 %v5676, %v5684
        %s5689 = sld [smem:[#allocation13 + $0x4a]]
        %v5690 = vstv %s5689
        %v5691 = vmul.f32 %v4821, %v5690
        %v5692 = vmul.f32 %v4822, %v5690
        %v5695 = vrot.slane %v5691, 2
        %v5696 = vrot.slane %v5692, 2
        %v5699 = vadd.f32 %v5687, %v5695
        %v5700 = vadd.f32 %v5688, %v5696
        %s5701 = sld [smem:[#allocation13 + $0x4b]]
        %v5702 = vstv %s5701
        %v5703 = vmul.f32 %v4821, %v5702
        %v5704 = vmul.f32 %v4822, %v5702
        %v5707 = vrot.slane %v5703, 3
        %v5708 = vrot.slane %v5704, 3
        %v5711 = vadd.f32 %v5699, %v5707
        %v5712 = vadd.f32 %v5700, %v5708
        %s5713 = sld [smem:[#allocation13 + $0x4c]]
        %v5714 = vstv %s5713
        %v5715 = vmul.f32 %v4821, %v5714
        %v5716 = vmul.f32 %v4822, %v5714
        %v5719 = vrot.slane %v5715, 4
        %v5720 = vrot.slane %v5716, 4
        %v5723 = vadd.f32 %v5711, %v5719
        %v5724 = vadd.f32 %v5712, %v5720
        %s5725 = sld [smem:[#allocation13 + $0x4d]]
        %v5726 = vstv %s5725
        %v5727 = vmul.f32 %v4821, %v5726
        %v5728 = vmul.f32 %v4822, %v5726
        %v5731 = vrot.slane %v5727, 5
        %v5732 = vrot.slane %v5728, 5
        %v5735 = vadd.f32 %v5723, %v5731
        %v5736 = vadd.f32 %v5724, %v5732
        %s5737 = sld [smem:[#allocation13 + $0x4e]]
        %v5738 = vstv %s5737
        %v5739 = vmul.f32 %v4821, %v5738
        %v5740 = vmul.f32 %v4822, %v5738
        %v5743 = vrot.slane %v5739, 6
        %v5744 = vrot.slane %v5740, 6
        %v5747 = vadd.f32 %v5735, %v5743
        %v5748 = vadd.f32 %v5736, %v5744
        %s5749 = sld [smem:[#allocation13 + $0x4f]]
        %v5750 = vstv %s5749
        %v5751 = vmul.f32 %v4821, %v5750
        %v5752 = vmul.f32 %v4822, %v5750
        %v5755 = vrot.slane %v5751, 7
        %v5756 = vrot.slane %v5752, 7
        %v5759 = vadd.f32 %v5747, %v5755
        %v5760 = vadd.f32 %v5748, %v5756
        %s5761 = sld [smem:[#allocation14 + $0x4]]
        %v5762 = vstv %s5761
        %v5763 = vadd.f32 %v5759, %v5762
        %v5764 = vadd.f32 %v5760, %v5762
        %s5765 = sld [smem:[#allocation16 + $0x4]]
        %v5766 = vstv %s5765
        %v5767 = vmul.f32 %v5763, %v5766
        %v5768 = vmul.f32 %v5764, %v5766
        %s5769 = sld [smem:[#allocation17 + $0x4]]
        %v5770 = vstv %s5769
        %v5771 = vadd.f32 %v5767, %v5770
        %v5772 = vadd.f32 %v5768, %v5770
        %s5773 = sld [smem:[#allocation13 + $0x50]]
        %v5774 = vstv %s5773
        %v5775 = vmul.f32 %v4819, %v5774
        %v5776 = vmul.f32 %v4820, %v5774
        %s5777 = sld [smem:[#allocation13 + $0x51]]
        %v5778 = vstv %s5777
        %v5779 = vmul.f32 %v4819, %v5778
        %v5780 = vmul.f32 %v4820, %v5778
        %v5783 = vrot.slane %v5779, 1
        %v5784 = vrot.slane %v5780, 1
        %v5787 = vadd.f32 %v5775, %v5783
        %v5788 = vadd.f32 %v5776, %v5784
        %s5789 = sld [smem:[#allocation13 + $0x52]]
        %v5790 = vstv %s5789
        %v5791 = vmul.f32 %v4819, %v5790
        %v5792 = vmul.f32 %v4820, %v5790
        %v5795 = vrot.slane %v5791, 2
        %v5796 = vrot.slane %v5792, 2
        %v5799 = vadd.f32 %v5787, %v5795
        %v5800 = vadd.f32 %v5788, %v5796
        %s5801 = sld [smem:[#allocation13 + $0x53]]
        %v5802 = vstv %s5801
        %v5803 = vmul.f32 %v4819, %v5802
        %v5804 = vmul.f32 %v4820, %v5802
        %v5807 = vrot.slane %v5803, 3
        %v5808 = vrot.slane %v5804, 3
        %v5811 = vadd.f32 %v5799, %v5807
        %v5812 = vadd.f32 %v5800, %v5808
        %s5813 = sld [smem:[#allocation13 + $0x54]]
        %v5814 = vstv %s5813
        %v5815 = vmul.f32 %v4819, %v5814
        %v5816 = vmul.f32 %v4820, %v5814
        %v5819 = vrot.slane %v5815, 4
        %v5820 = vrot.slane %v5816, 4
        %v5823 = vadd.f32 %v5811, %v5819
        %v5824 = vadd.f32 %v5812, %v5820
        %s5825 = sld [smem:[#allocation13 + $0x55]]
        %v5826 = vstv %s5825
        %v5827 = vmul.f32 %v4819, %v5826
        %v5828 = vmul.f32 %v4820, %v5826
        %v5831 = vrot.slane %v5827, 5
        %v5832 = vrot.slane %v5828, 5
        %v5835 = vadd.f32 %v5823, %v5831
        %v5836 = vadd.f32 %v5824, %v5832
        %s5837 = sld [smem:[#allocation13 + $0x56]]
        %v5838 = vstv %s5837
        %v5839 = vmul.f32 %v4819, %v5838
        %v5840 = vmul.f32 %v4820, %v5838
        %v5843 = vrot.slane %v5839, 6
        %v5844 = vrot.slane %v5840, 6
        %v5847 = vadd.f32 %v5835, %v5843
        %v5848 = vadd.f32 %v5836, %v5844
        %s5849 = sld [smem:[#allocation13 + $0x57]]
        %v5850 = vstv %s5849
        %v5851 = vmul.f32 %v4819, %v5850
        %v5852 = vmul.f32 %v4820, %v5850
        %v5855 = vrot.slane %v5851, 7
        %v5856 = vrot.slane %v5852, 7
        %v5859 = vadd.f32 %v5847, %v5855
        %v5860 = vadd.f32 %v5848, %v5856
        %s5861 = sld [smem:[#allocation13 + $0x58]]
        %v5862 = vstv %s5861
        %v5863 = vmul.f32 %v4821, %v5862
        %v5864 = vmul.f32 %v4822, %v5862
        %v5865 = vadd.f32 %v5859, %v5863
        %v5866 = vadd.f32 %v5860, %v5864
        %s5867 = sld [smem:[#allocation13 + $0x59]]
        %v5868 = vstv %s5867
        %v5869 = vmul.f32 %v4821, %v5868
        %v5870 = vmul.f32 %v4822, %v5868
        %v5873 = vrot.slane %v5869, 1
        %v5874 = vrot.slane %v5870, 1
        %v5877 = vadd.f32 %v5865, %v5873
        %v5878 = vadd.f32 %v5866, %v5874
        %s5879 = sld [smem:[#allocation13 + $0x5a]]
        %v5880 = vstv %s5879
        %v5881 = vmul.f32 %v4821, %v5880
        %v5882 = vmul.f32 %v4822, %v5880
        %v5885 = vrot.slane %v5881, 2
        %v5886 = vrot.slane %v5882, 2
        %v5889 = vadd.f32 %v5877, %v5885
        %v5890 = vadd.f32 %v5878, %v5886
        %s5891 = sld [smem:[#allocation13 + $0x5b]]
        %v5892 = vstv %s5891
        %v5893 = vmul.f32 %v4821, %v5892
        %v5894 = vmul.f32 %v4822, %v5892
        %v5897 = vrot.slane %v5893, 3
        %v5898 = vrot.slane %v5894, 3
        %v5901 = vadd.f32 %v5889, %v5897
        %v5902 = vadd.f32 %v5890, %v5898
        %s5903 = sld [smem:[#allocation13 + $0x5c]]
        %v5904 = vstv %s5903
        %v5905 = vmul.f32 %v4821, %v5904
        %v5906 = vmul.f32 %v4822, %v5904
        %v5909 = vrot.slane %v5905, 4
        %v5910 = vrot.slane %v5906, 4
        %v5913 = vadd.f32 %v5901, %v5909
        %v5914 = vadd.f32 %v5902, %v5910
        %s5915 = sld [smem:[#allocation13 + $0x5d]]
        %v5916 = vstv %s5915
        %v5917 = vmul.f32 %v4821, %v5916
        %v5918 = vmul.f32 %v4822, %v5916
        %v5921 = vrot.slane %v5917, 5
        %v5922 = vrot.slane %v5918, 5
        %v5925 = vadd.f32 %v5913, %v5921
        %v5926 = vadd.f32 %v5914, %v5922
        %s5927 = sld [smem:[#allocation13 + $0x5e]]
        %v5928 = vstv %s5927
        %v5929 = vmul.f32 %v4821, %v5928
        %v5930 = vmul.f32 %v4822, %v5928
        %v5933 = vrot.slane %v5929, 6
        %v5934 = vrot.slane %v5930, 6
        %v5937 = vadd.f32 %v5925, %v5933
        %v5938 = vadd.f32 %v5926, %v5934
        %s5939 = sld [smem:[#allocation13 + $0x5f]]
        %v5940 = vstv %s5939
        %v5941 = vmul.f32 %v4821, %v5940
        %v5942 = vmul.f32 %v4822, %v5940
        %v5945 = vrot.slane %v5941, 7
        %v5946 = vrot.slane %v5942, 7
        %v5949 = vadd.f32 %v5937, %v5945
        %v5950 = vadd.f32 %v5938, %v5946
        %s5951 = sld [smem:[#allocation14 + $0x5]]
        %v5952 = vstv %s5951
        %v5953 = vadd.f32 %v5949, %v5952
        %v5954 = vadd.f32 %v5950, %v5952
        %s5955 = sld [smem:[#allocation16 + $0x5]]
        %v5956 = vstv %s5955
        %v5957 = vmul.f32 %v5953, %v5956
        %v5958 = vmul.f32 %v5954, %v5956
        %s5959 = sld [smem:[#allocation17 + $0x5]]
        %v5960 = vstv %s5959
        %v5961 = vadd.f32 %v5957, %v5960
        %v5962 = vadd.f32 %v5958, %v5960
        %s5963 = sld [smem:[#allocation13 + $0x60]]
        %v5964 = vstv %s5963
        %v5965 = vmul.f32 %v4819, %v5964
        %v5966 = vmul.f32 %v4820, %v5964
        %s5967 = sld [smem:[#allocation13 + $0x61]]
        %v5968 = vstv %s5967
        %v5969 = vmul.f32 %v4819, %v5968
        %v5970 = vmul.f32 %v4820, %v5968
        %v5973 = vrot.slane %v5969, 1
        %v5974 = vrot.slane %v5970, 1
        %v5977 = vadd.f32 %v5965, %v5973
        %v5978 = vadd.f32 %v5966, %v5974
        %s5979 = sld [smem:[#allocation13 + $0x62]]
        %v5980 = vstv %s5979
        %v5981 = vmul.f32 %v4819, %v5980
        %v5982 = vmul.f32 %v4820, %v5980
        %v5985 = vrot.slane %v5981, 2
        %v5986 = vrot.slane %v5982, 2
        %v5989 = vadd.f32 %v5977, %v5985
        %v5990 = vadd.f32 %v5978, %v5986
        %s5991 = sld [smem:[#allocation13 + $0x63]]
        %v5992 = vstv %s5991
        %v5993 = vmul.f32 %v4819, %v5992
        %v5994 = vmul.f32 %v4820, %v5992
        %v5997 = vrot.slane %v5993, 3
        %v5998 = vrot.slane %v5994, 3
        %v6001 = vadd.f32 %v5989, %v5997
        %v6002 = vadd.f32 %v5990, %v5998
        %s6003 = sld [smem:[#allocation13 + $0x64]]
        %v6004 = vstv %s6003
        %v6005 = vmul.f32 %v4819, %v6004
        %v6006 = vmul.f32 %v4820, %v6004
        %v6009 = vrot.slane %v6005, 4
        %v6010 = vrot.slane %v6006, 4
        %v6013 = vadd.f32 %v6001, %v6009
        %v6014 = vadd.f32 %v6002, %v6010
        %s6015 = sld [smem:[#allocation13 + $0x65]]
        %v6016 = vstv %s6015
        %v6017 = vmul.f32 %v4819, %v6016
        %v6018 = vmul.f32 %v4820, %v6016
        %v6021 = vrot.slane %v6017, 5
        %v6022 = vrot.slane %v6018, 5
        %v6025 = vadd.f32 %v6013, %v6021
        %v6026 = vadd.f32 %v6014, %v6022
        %s6027 = sld [smem:[#allocation13 + $0x66]]
        %v6028 = vstv %s6027
        %v6029 = vmul.f32 %v4819, %v6028
        %v6030 = vmul.f32 %v4820, %v6028
        %v6033 = vrot.slane %v6029, 6
        %v6034 = vrot.slane %v6030, 6
        %v6037 = vadd.f32 %v6025, %v6033
        %v6038 = vadd.f32 %v6026, %v6034
        %s6039 = sld [smem:[#allocation13 + $0x67]]
        %v6040 = vstv %s6039
        %v6041 = vmul.f32 %v4819, %v6040
        %v6042 = vmul.f32 %v4820, %v6040
        %v6045 = vrot.slane %v6041, 7
        %v6046 = vrot.slane %v6042, 7
        %v6049 = vadd.f32 %v6037, %v6045
        %v6050 = vadd.f32 %v6038, %v6046
        %s6051 = sld [smem:[#allocation13 + $0x68]]
        %v6052 = vstv %s6051
        %v6053 = vmul.f32 %v4821, %v6052
        %v6054 = vmul.f32 %v4822, %v6052
        %v6055 = vadd.f32 %v6049, %v6053
        %v6056 = vadd.f32 %v6050, %v6054
        %s6057 = sld [smem:[#allocation13 + $0x69]]
        %v6058 = vstv %s6057
        %v6059 = vmul.f32 %v4821, %v6058
        %v6060 = vmul.f32 %v4822, %v6058
        %v6063 = vrot.slane %v6059, 1
        %v6064 = vrot.slane %v6060, 1
        %v6067 = vadd.f32 %v6055, %v6063
        %v6068 = vadd.f32 %v6056, %v6064
        %s6069 = sld [smem:[#allocation13 + $0x6a]]
        %v6070 = vstv %s6069
        %v6071 = vmul.f32 %v4821, %v6070
        %v6072 = vmul.f32 %v4822, %v6070
        %v6075 = vrot.slane %v6071, 2
        %v6076 = vrot.slane %v6072, 2
        %v6079 = vadd.f32 %v6067, %v6075
        %v6080 = vadd.f32 %v6068, %v6076
        %s6081 = sld [smem:[#allocation13 + $0x6b]]
        %v6082 = vstv %s6081
        %v6083 = vmul.f32 %v4821, %v6082
        %v6084 = vmul.f32 %v4822, %v6082
        %v6087 = vrot.slane %v6083, 3
        %v6088 = vrot.slane %v6084, 3
        %v6091 = vadd.f32 %v6079, %v6087
        %v6092 = vadd.f32 %v6080, %v6088
        %s6093 = sld [smem:[#allocation13 + $0x6c]]
        %v6094 = vstv %s6093
        %v6095 = vmul.f32 %v4821, %v6094
        %v6096 = vmul.f32 %v4822, %v6094
        %v6099 = vrot.slane %v6095, 4
        %v6100 = vrot.slane %v6096, 4
        %v6103 = vadd.f32 %v6091, %v6099
        %v6104 = vadd.f32 %v6092, %v6100
        %s6105 = sld [smem:[#allocation13 + $0x6d]]
        %v6106 = vstv %s6105
        %v6107 = vmul.f32 %v4821, %v6106
        %v6108 = vmul.f32 %v4822, %v6106
        %v6111 = vrot.slane %v6107, 5
        %v6112 = vrot.slane %v6108, 5
        %v6115 = vadd.f32 %v6103, %v6111
        %v6116 = vadd.f32 %v6104, %v6112
        %s6117 = sld [smem:[#allocation13 + $0x6e]]
        %v6118 = vstv %s6117
        %v6119 = vmul.f32 %v4821, %v6118
        %v6120 = vmul.f32 %v4822, %v6118
        %v6123 = vrot.slane %v6119, 6
        %v6124 = vrot.slane %v6120, 6
        %v6127 = vadd.f32 %v6115, %v6123
        %v6128 = vadd.f32 %v6116, %v6124
        %s6129 = sld [smem:[#allocation13 + $0x6f]]
        %v6130 = vstv %s6129
        %v6131 = vmul.f32 %v4821, %v6130
        %v6132 = vmul.f32 %v4822, %v6130
        %v6135 = vrot.slane %v6131, 7
        %v6136 = vrot.slane %v6132, 7
        %v6139 = vadd.f32 %v6127, %v6135
        %v6140 = vadd.f32 %v6128, %v6136
        %s6141 = sld [smem:[#allocation14 + $0x6]]
        %v6142 = vstv %s6141
        %v6143 = vadd.f32 %v6139, %v6142
        %v6144 = vadd.f32 %v6140, %v6142
        %s6145 = sld [smem:[#allocation16 + $0x6]]
        %v6146 = vstv %s6145
        %v6147 = vmul.f32 %v6143, %v6146
        %v6148 = vmul.f32 %v6144, %v6146
        %s6149 = sld [smem:[#allocation17 + $0x6]]
        %v6150 = vstv %s6149
        %v6151 = vadd.f32 %v6147, %v6150
        %v6152 = vadd.f32 %v6148, %v6150
        %s6153 = sld [smem:[#allocation13 + $0x70]]
        %v6154 = vstv %s6153
        %v6155 = vmul.f32 %v4819, %v6154
        %v6156 = vmul.f32 %v4820, %v6154
        %s6157 = sld [smem:[#allocation13 + $0x71]]
        %v6158 = vstv %s6157
        %v6159 = vmul.f32 %v4819, %v6158
        %v6160 = vmul.f32 %v4820, %v6158
        %v6163 = vrot.slane %v6159, 1
        %v6164 = vrot.slane %v6160, 1
        %v6167 = vadd.f32 %v6155, %v6163
        %v6168 = vadd.f32 %v6156, %v6164
        %s6169 = sld [smem:[#allocation13 + $0x72]]
        %v6170 = vstv %s6169
        %v6171 = vmul.f32 %v4819, %v6170
        %v6172 = vmul.f32 %v4820, %v6170
        %v6175 = vrot.slane %v6171, 2
        %v6176 = vrot.slane %v6172, 2
        %v6179 = vadd.f32 %v6167, %v6175
        %v6180 = vadd.f32 %v6168, %v6176
        %s6181 = sld [smem:[#allocation13 + $0x73]]
        %v6182 = vstv %s6181
        %v6183 = vmul.f32 %v4819, %v6182
        %v6184 = vmul.f32 %v4820, %v6182
        %v6187 = vrot.slane %v6183, 3
        %v6188 = vrot.slane %v6184, 3
        %v6191 = vadd.f32 %v6179, %v6187
        %v6192 = vadd.f32 %v6180, %v6188
        %s6193 = sld [smem:[#allocation13 + $0x74]]
        %v6194 = vstv %s6193
        %v6195 = vmul.f32 %v4819, %v6194
        %v6196 = vmul.f32 %v4820, %v6194
        %v6199 = vrot.slane %v6195, 4
        %v6200 = vrot.slane %v6196, 4
        %v6203 = vadd.f32 %v6191, %v6199
        %v6204 = vadd.f32 %v6192, %v6200
        %s6205 = sld [smem:[#allocation13 + $0x75]]
        %v6206 = vstv %s6205
        %v6207 = vmul.f32 %v4819, %v6206
        %v6208 = vmul.f32 %v4820, %v6206
        %v6211 = vrot.slane %v6207, 5
        %v6212 = vrot.slane %v6208, 5
        %v6215 = vadd.f32 %v6203, %v6211
        %v6216 = vadd.f32 %v6204, %v6212
        %s6217 = sld [smem:[#allocation13 + $0x76]]
        %v6218 = vstv %s6217
        %v6219 = vmul.f32 %v4819, %v6218
        %v6220 = vmul.f32 %v4820, %v6218
        %v6223 = vrot.slane %v6219, 6
        %v6224 = vrot.slane %v6220, 6
        %v6227 = vadd.f32 %v6215, %v6223
        %v6228 = vadd.f32 %v6216, %v6224
        %s6229 = sld [smem:[#allocation13 + $0x77]]
        %v6230 = vstv %s6229
        %v6231 = vmul.f32 %v4819, %v6230
        %v6232 = vmul.f32 %v4820, %v6230
        %v6235 = vrot.slane %v6231, 7
        %v6236 = vrot.slane %v6232, 7
        %v6239 = vadd.f32 %v6227, %v6235
        %v6240 = vadd.f32 %v6228, %v6236
        %s6241 = sld [smem:[#allocation13 + $0x78]]
        %v6242 = vstv %s6241
        %v6243 = vmul.f32 %v4821, %v6242
        %v6244 = vmul.f32 %v4822, %v6242
        %v6245 = vadd.f32 %v6239, %v6243
        %v6246 = vadd.f32 %v6240, %v6244
        %s6247 = sld [smem:[#allocation13 + $0x79]]
        %v6248 = vstv %s6247
        %v6249 = vmul.f32 %v4821, %v6248
        %v6250 = vmul.f32 %v4822, %v6248
        %v6253 = vrot.slane %v6249, 1
        %v6254 = vrot.slane %v6250, 1
        %v6257 = vadd.f32 %v6245, %v6253
        %v6258 = vadd.f32 %v6246, %v6254
        %s6259 = sld [smem:[#allocation13 + $0x7a]]
        %v6260 = vstv %s6259
        %v6261 = vmul.f32 %v4821, %v6260
        %v6262 = vmul.f32 %v4822, %v6260
        %v6265 = vrot.slane %v6261, 2
        %v6266 = vrot.slane %v6262, 2
        %v6269 = vadd.f32 %v6257, %v6265
        %v6270 = vadd.f32 %v6258, %v6266
        %s6271 = sld [smem:[#allocation13 + $0x7b]]
        %v6272 = vstv %s6271
        %v6273 = vmul.f32 %v4821, %v6272
        %v6274 = vmul.f32 %v4822, %v6272
        %v6277 = vrot.slane %v6273, 3
        %v6278 = vrot.slane %v6274, 3
        %v6281 = vadd.f32 %v6269, %v6277
        %v6282 = vadd.f32 %v6270, %v6278
        %s6283 = sld [smem:[#allocation13 + $0x7c]]
        %v6284 = vstv %s6283
        %v6285 = vmul.f32 %v4821, %v6284
        %v6286 = vmul.f32 %v4822, %v6284
        %v6289 = vrot.slane %v6285, 4
        %v6290 = vrot.slane %v6286, 4
        %v6293 = vadd.f32 %v6281, %v6289
        %v6294 = vadd.f32 %v6282, %v6290
        %s6295 = sld [smem:[#allocation13 + $0x7d]]
        %v6296 = vstv %s6295
        %v6297 = vmul.f32 %v4821, %v6296
        %v6298 = vmul.f32 %v4822, %v6296
        %v6301 = vrot.slane %v6297, 5
        %v6302 = vrot.slane %v6298, 5
        %v6305 = vadd.f32 %v6293, %v6301
        %v6306 = vadd.f32 %v6294, %v6302
        %s6307 = sld [smem:[#allocation13 + $0x7e]]
        %v6308 = vstv %s6307
        %v6309 = vmul.f32 %v4821, %v6308
        %v6310 = vmul.f32 %v4822, %v6308
        %v6313 = vrot.slane %v6309, 6
        %v6314 = vrot.slane %v6310, 6
        %v6317 = vadd.f32 %v6305, %v6313
        %v6318 = vadd.f32 %v6306, %v6314
        %s6319 = sld [smem:[#allocation13 + $0x7f]]
        %v6320 = vstv %s6319
        %v6321 = vmul.f32 %v4821, %v6320
        %v6322 = vmul.f32 %v4822, %v6320
        %v6325 = vrot.slane %v6321, 7
        %v6326 = vrot.slane %v6322, 7
        %v6329 = vadd.f32 %v6317, %v6325
        %v6330 = vadd.f32 %v6318, %v6326
        %s6331 = sld [smem:[#allocation14 + $0x7]]
        %v6332 = vstv %s6331
        %v6333 = vadd.f32 %v6329, %v6332
        %v6334 = vadd.f32 %v6330, %v6332
        %s6335 = sld [smem:[#allocation16 + $0x7]]
        %v6336 = vstv %s6335
        %v6337 = vmul.f32 %v6333, %v6336
        %v6338 = vmul.f32 %v6334, %v6336
        %s6339 = sld [smem:[#allocation17 + $0x7]]
        %v6340 = vstv %s6339
        %v6341 = vadd.f32 %v6337, %v6340
        %v6342 = vadd.f32 %v6338, %v6340
        %s6343 = sld [smem:[#allocation13 + $0x80]]
        %v6344 = vstv %s6343
        %v6345 = vmul.f32 %v4819, %v6344
        %v6346 = vmul.f32 %v4820, %v6344
        %s6347 = sld [smem:[#allocation13 + $0x81]]
        %v6348 = vstv %s6347
        %v6349 = vmul.f32 %v4819, %v6348
        %v6350 = vmul.f32 %v4820, %v6348
        %v6353 = vrot.slane %v6349, 1
        %v6354 = vrot.slane %v6350, 1
        %v6357 = vadd.f32 %v6345, %v6353
        %v6358 = vadd.f32 %v6346, %v6354
        %s6359 = sld [smem:[#allocation13 + $0x82]]
        %v6360 = vstv %s6359
        %v6361 = vmul.f32 %v4819, %v6360
        %v6362 = vmul.f32 %v4820, %v6360
        %v6365 = vrot.slane %v6361, 2
        %v6366 = vrot.slane %v6362, 2
        %v6369 = vadd.f32 %v6357, %v6365
        %v6370 = vadd.f32 %v6358, %v6366
        %s6371 = sld [smem:[#allocation13 + $0x83]]
        %v6372 = vstv %s6371
        %v6373 = vmul.f32 %v4819, %v6372
        %v6374 = vmul.f32 %v4820, %v6372
        %v6377 = vrot.slane %v6373, 3
        %v6378 = vrot.slane %v6374, 3
        %v6381 = vadd.f32 %v6369, %v6377
        %v6382 = vadd.f32 %v6370, %v6378
        %s6383 = sld [smem:[#allocation13 + $0x84]]
        %v6384 = vstv %s6383
        %v6385 = vmul.f32 %v4819, %v6384
        %v6386 = vmul.f32 %v4820, %v6384
        %v6389 = vrot.slane %v6385, 4
        %v6390 = vrot.slane %v6386, 4
        %v6393 = vadd.f32 %v6381, %v6389
        %v6394 = vadd.f32 %v6382, %v6390
        %s6395 = sld [smem:[#allocation13 + $0x85]]
        %v6396 = vstv %s6395
        %v6397 = vmul.f32 %v4819, %v6396
        %v6398 = vmul.f32 %v4820, %v6396
        %v6401 = vrot.slane %v6397, 5
        %v6402 = vrot.slane %v6398, 5
        %v6405 = vadd.f32 %v6393, %v6401
        %v6406 = vadd.f32 %v6394, %v6402
        %s6407 = sld [smem:[#allocation13 + $0x86]]
        %v6408 = vstv %s6407
        %v6409 = vmul.f32 %v4819, %v6408
        %v6410 = vmul.f32 %v4820, %v6408
        %v6413 = vrot.slane %v6409, 6
        %v6414 = vrot.slane %v6410, 6
        %v6417 = vadd.f32 %v6405, %v6413
        %v6418 = vadd.f32 %v6406, %v6414
        %s6419 = sld [smem:[#allocation13 + $0x87]]
        %v6420 = vstv %s6419
        %v6421 = vmul.f32 %v4819, %v6420
        %v6422 = vmul.f32 %v4820, %v6420
        %v6425 = vrot.slane %v6421, 7
        %v6426 = vrot.slane %v6422, 7
        %v6429 = vadd.f32 %v6417, %v6425
        %v6430 = vadd.f32 %v6418, %v6426
        %s6431 = sld [smem:[#allocation13 + $0x88]]
        %v6432 = vstv %s6431
        %v6433 = vmul.f32 %v4821, %v6432
        %v6434 = vmul.f32 %v4822, %v6432
        %v6435 = vadd.f32 %v6429, %v6433
        %v6436 = vadd.f32 %v6430, %v6434
        %s6437 = sld [smem:[#allocation13 + $0x89]]
        %v6438 = vstv %s6437
        %v6439 = vmul.f32 %v4821, %v6438
        %v6440 = vmul.f32 %v4822, %v6438
        %v6443 = vrot.slane %v6439, 1
        %v6444 = vrot.slane %v6440, 1
        %v6447 = vadd.f32 %v6435, %v6443
        %v6448 = vadd.f32 %v6436, %v6444
        %s6449 = sld [smem:[#allocation13 + $0x8a]]
        %v6450 = vstv %s6449
        %v6451 = vmul.f32 %v4821, %v6450
        %v6452 = vmul.f32 %v4822, %v6450
        %v6455 = vrot.slane %v6451, 2
        %v6456 = vrot.slane %v6452, 2
        %v6459 = vadd.f32 %v6447, %v6455
        %v6460 = vadd.f32 %v6448, %v6456
        %s6461 = sld [smem:[#allocation13 + $0x8b]]
        %v6462 = vstv %s6461
        %v6463 = vmul.f32 %v4821, %v6462
        %v6464 = vmul.f32 %v4822, %v6462
        %v6467 = vrot.slane %v6463, 3
        %v6468 = vrot.slane %v6464, 3
        %v6471 = vadd.f32 %v6459, %v6467
        %v6472 = vadd.f32 %v6460, %v6468
        %s6473 = sld [smem:[#allocation13 + $0x8c]]
        %v6474 = vstv %s6473
        %v6475 = vmul.f32 %v4821, %v6474
        %v6476 = vmul.f32 %v4822, %v6474
        %v6479 = vrot.slane %v6475, 4
        %v6480 = vrot.slane %v6476, 4
        %v6483 = vadd.f32 %v6471, %v6479
        %v6484 = vadd.f32 %v6472, %v6480
        %s6485 = sld [smem:[#allocation13 + $0x8d]]
        %v6486 = vstv %s6485
        %v6487 = vmul.f32 %v4821, %v6486
        %v6488 = vmul.f32 %v4822, %v6486
        %v6491 = vrot.slane %v6487, 5
        %v6492 = vrot.slane %v6488, 5
        %v6495 = vadd.f32 %v6483, %v6491
        %v6496 = vadd.f32 %v6484, %v6492
        %s6497 = sld [smem:[#allocation13 + $0x8e]]
        %v6498 = vstv %s6497
        %v6499 = vmul.f32 %v4821, %v6498
        %v6500 = vmul.f32 %v4822, %v6498
        %v6503 = vrot.slane %v6499, 6
        %v6504 = vrot.slane %v6500, 6
        %v6507 = vadd.f32 %v6495, %v6503
        %v6508 = vadd.f32 %v6496, %v6504
        %s6509 = sld [smem:[#allocation13 + $0x8f]]
        %v6510 = vstv %s6509
        %v6511 = vmul.f32 %v4821, %v6510
        %v6512 = vmul.f32 %v4822, %v6510
        %v6515 = vrot.slane %v6511, 7
        %v6516 = vrot.slane %v6512, 7
        %v6519 = vadd.f32 %v6507, %v6515
        %v6520 = vadd.f32 %v6508, %v6516
        %s6521 = sld [smem:[#allocation14 + $0x8]]
        %v6522 = vstv %s6521
        %v6523 = vadd.f32 %v6519, %v6522
        %v6524 = vadd.f32 %v6520, %v6522
        %s6525 = sld [smem:[#allocation16 + $0x8]]
        %v6526 = vstv %s6525
        %v6527 = vmul.f32 %v6523, %v6526
        %v6528 = vmul.f32 %v6524, %v6526
        %s6529 = sld [smem:[#allocation17 + $0x8]]
        %v6530 = vstv %s6529
        %v6531 = vadd.f32 %v6527, %v6530
        %v6532 = vadd.f32 %v6528, %v6530
        %s6533 = sld [smem:[#allocation13 + $0x90]]
        %v6534 = vstv %s6533
        %v6535 = vmul.f32 %v4819, %v6534
        %v6536 = vmul.f32 %v4820, %v6534
        %s6537 = sld [smem:[#allocation13 + $0x91]]
        %v6538 = vstv %s6537
        %v6539 = vmul.f32 %v4819, %v6538
        %v6540 = vmul.f32 %v4820, %v6538
        %v6543 = vrot.slane %v6539, 1
        %v6544 = vrot.slane %v6540, 1
        %v6547 = vadd.f32 %v6535, %v6543
        %v6548 = vadd.f32 %v6536, %v6544
        %s6549 = sld [smem:[#allocation13 + $0x92]]
        %v6550 = vstv %s6549
        %v6551 = vmul.f32 %v4819, %v6550
        %v6552 = vmul.f32 %v4820, %v6550
        %v6555 = vrot.slane %v6551, 2
        %v6556 = vrot.slane %v6552, 2
        %v6559 = vadd.f32 %v6547, %v6555
        %v6560 = vadd.f32 %v6548, %v6556
        %s6561 = sld [smem:[#allocation13 + $0x93]]
        %v6562 = vstv %s6561
        %v6563 = vmul.f32 %v4819, %v6562
        %v6564 = vmul.f32 %v4820, %v6562
        %v6567 = vrot.slane %v6563, 3
        %v6568 = vrot.slane %v6564, 3
        %v6571 = vadd.f32 %v6559, %v6567
        %v6572 = vadd.f32 %v6560, %v6568
        %s6573 = sld [smem:[#allocation13 + $0x94]]
        %v6574 = vstv %s6573
        %v6575 = vmul.f32 %v4819, %v6574
        %v6576 = vmul.f32 %v4820, %v6574
        %v6579 = vrot.slane %v6575, 4
        %v6580 = vrot.slane %v6576, 4
        %v6583 = vadd.f32 %v6571, %v6579
        %v6584 = vadd.f32 %v6572, %v6580
        %s6585 = sld [smem:[#allocation13 + $0x95]]
        %v6586 = vstv %s6585
        %v6587 = vmul.f32 %v4819, %v6586
        %v6588 = vmul.f32 %v4820, %v6586
        %v6591 = vrot.slane %v6587, 5
        %v6592 = vrot.slane %v6588, 5
        %v6595 = vadd.f32 %v6583, %v6591
        %v6596 = vadd.f32 %v6584, %v6592
        %s6597 = sld [smem:[#allocation13 + $0x96]]
        %v6598 = vstv %s6597
        %v6599 = vmul.f32 %v4819, %v6598
        %v6600 = vmul.f32 %v4820, %v6598
        %v6603 = vrot.slane %v6599, 6
        %v6604 = vrot.slane %v6600, 6
        %v6607 = vadd.f32 %v6595, %v6603
        %v6608 = vadd.f32 %v6596, %v6604
        %s6609 = sld [smem:[#allocation13 + $0x97]]
        %v6610 = vstv %s6609
        %v6611 = vmul.f32 %v4819, %v6610
        %v6612 = vmul.f32 %v4820, %v6610
        %v6615 = vrot.slane %v6611, 7
        %v6616 = vrot.slane %v6612, 7
        %v6619 = vadd.f32 %v6607, %v6615
        %v6620 = vadd.f32 %v6608, %v6616
        %s6621 = sld [smem:[#allocation13 + $0x98]]
        %v6622 = vstv %s6621
        %v6623 = vmul.f32 %v4821, %v6622
        %v6624 = vmul.f32 %v4822, %v6622
        %v6625 = vadd.f32 %v6619, %v6623
        %v6626 = vadd.f32 %v6620, %v6624
        %s6627 = sld [smem:[#allocation13 + $0x99]]
        %v6628 = vstv %s6627
        %v6629 = vmul.f32 %v4821, %v6628
        %v6630 = vmul.f32 %v4822, %v6628
        %v6633 = vrot.slane %v6629, 1
        %v6634 = vrot.slane %v6630, 1
        %v6637 = vadd.f32 %v6625, %v6633
        %v6638 = vadd.f32 %v6626, %v6634
        %s6639 = sld [smem:[#allocation13 + $0x9a]]
        %v6640 = vstv %s6639
        %v6641 = vmul.f32 %v4821, %v6640
        %v6642 = vmul.f32 %v4822, %v6640
        %v6645 = vrot.slane %v6641, 2
        %v6646 = vrot.slane %v6642, 2
        %v6649 = vadd.f32 %v6637, %v6645
        %v6650 = vadd.f32 %v6638, %v6646
        %s6651 = sld [smem:[#allocation13 + $0x9b]]
        %v6652 = vstv %s6651
        %v6653 = vmul.f32 %v4821, %v6652
        %v6654 = vmul.f32 %v4822, %v6652
        %v6657 = vrot.slane %v6653, 3
        %v6658 = vrot.slane %v6654, 3
        %v6661 = vadd.f32 %v6649, %v6657
        %v6662 = vadd.f32 %v6650, %v6658
        %s6663 = sld [smem:[#allocation13 + $0x9c]]
        %v6664 = vstv %s6663
        %v6665 = vmul.f32 %v4821, %v6664
        %v6666 = vmul.f32 %v4822, %v6664
        %v6669 = vrot.slane %v6665, 4
        %v6670 = vrot.slane %v6666, 4
        %v6673 = vadd.f32 %v6661, %v6669
        %v6674 = vadd.f32 %v6662, %v6670
        %s6675 = sld [smem:[#allocation13 + $0x9d]]
        %v6676 = vstv %s6675
        %v6677 = vmul.f32 %v4821, %v6676
        %v6678 = vmul.f32 %v4822, %v6676
        %v6681 = vrot.slane %v6677, 5
        %v6682 = vrot.slane %v6678, 5
        %v6685 = vadd.f32 %v6673, %v6681
        %v6686 = vadd.f32 %v6674, %v6682
        %s6687 = sld [smem:[#allocation13 + $0x9e]]
        %v6688 = vstv %s6687
        %v6689 = vmul.f32 %v4821, %v6688
        %v6690 = vmul.f32 %v4822, %v6688
        %v6693 = vrot.slane %v6689, 6
        %v6694 = vrot.slane %v6690, 6
        %v6697 = vadd.f32 %v6685, %v6693
        %v6698 = vadd.f32 %v6686, %v6694
        %s6699 = sld [smem:[#allocation13 + $0x9f]]
        %v6700 = vstv %s6699
        %v6701 = vmul.f32 %v4821, %v6700
        %v6702 = vmul.f32 %v4822, %v6700
        %v6705 = vrot.slane %v6701, 7
        %v6706 = vrot.slane %v6702, 7
        %v6709 = vadd.f32 %v6697, %v6705
        %v6710 = vadd.f32 %v6698, %v6706
        %s6711 = sld [smem:[#allocation14 + $0x9]]
        %v6712 = vstv %s6711
        %v6713 = vadd.f32 %v6709, %v6712
        %v6714 = vadd.f32 %v6710, %v6712
        %s6715 = sld [smem:[#allocation16 + $0x9]]
        %v6716 = vstv %s6715
        %v6717 = vmul.f32 %v6713, %v6716
        %v6718 = vmul.f32 %v6714, %v6716
        %s6719 = sld [smem:[#allocation17 + $0x9]]
        %v6720 = vstv %s6719
        %v6721 = vadd.f32 %v6717, %v6720
        %v6722 = vadd.f32 %v6718, %v6720
        %s6723 = sld [smem:[#allocation13 + $0xa0]]
        %v6724 = vstv %s6723
        %v6725 = vmul.f32 %v4819, %v6724
        %v6726 = vmul.f32 %v4820, %v6724
        %s6727 = sld [smem:[#allocation13 + $0xa1]]
        %v6728 = vstv %s6727
        %v6729 = vmul.f32 %v4819, %v6728
        %v6730 = vmul.f32 %v4820, %v6728
        %v6733 = vrot.slane %v6729, 1
        %v6734 = vrot.slane %v6730, 1
        %v6737 = vadd.f32 %v6725, %v6733
        %v6738 = vadd.f32 %v6726, %v6734
        %s6739 = sld [smem:[#allocation13 + $0xa2]]
        %v6740 = vstv %s6739
        %v6741 = vmul.f32 %v4819, %v6740
        %v6742 = vmul.f32 %v4820, %v6740
        %v6745 = vrot.slane %v6741, 2
        %v6746 = vrot.slane %v6742, 2
        %v6749 = vadd.f32 %v6737, %v6745
        %v6750 = vadd.f32 %v6738, %v6746
        %s6751 = sld [smem:[#allocation13 + $0xa3]]
        %v6752 = vstv %s6751
        %v6753 = vmul.f32 %v4819, %v6752
        %v6754 = vmul.f32 %v4820, %v6752
        %v6757 = vrot.slane %v6753, 3
        %v6758 = vrot.slane %v6754, 3
        %v6761 = vadd.f32 %v6749, %v6757
        %v6762 = vadd.f32 %v6750, %v6758
        %s6763 = sld [smem:[#allocation13 + $0xa4]]
        %v6764 = vstv %s6763
        %v6765 = vmul.f32 %v4819, %v6764
        %v6766 = vmul.f32 %v4820, %v6764
        %v6769 = vrot.slane %v6765, 4
        %v6770 = vrot.slane %v6766, 4
        %v6773 = vadd.f32 %v6761, %v6769
        %v6774 = vadd.f32 %v6762, %v6770
        %s6775 = sld [smem:[#allocation13 + $0xa5]]
        %v6776 = vstv %s6775
        %v6777 = vmul.f32 %v4819, %v6776
        %v6778 = vmul.f32 %v4820, %v6776
        %v6781 = vrot.slane %v6777, 5
        %v6782 = vrot.slane %v6778, 5
        %v6785 = vadd.f32 %v6773, %v6781
        %v6786 = vadd.f32 %v6774, %v6782
        %s6787 = sld [smem:[#allocation13 + $0xa6]]
        %v6788 = vstv %s6787
        %v6789 = vmul.f32 %v4819, %v6788
        %v6790 = vmul.f32 %v4820, %v6788
        %v6793 = vrot.slane %v6789, 6
        %v6794 = vrot.slane %v6790, 6
        %v6797 = vadd.f32 %v6785, %v6793
        %v6798 = vadd.f32 %v6786, %v6794
        %s6799 = sld [smem:[#allocation13 + $0xa7]]
        %v6800 = vstv %s6799
        %v6801 = vmul.f32 %v4819, %v6800
        %v6802 = vmul.f32 %v4820, %v6800
        %v6805 = vrot.slane %v6801, 7
        %v6806 = vrot.slane %v6802, 7
        %v6809 = vadd.f32 %v6797, %v6805
        %v6810 = vadd.f32 %v6798, %v6806
        %s6811 = sld [smem:[#allocation13 + $0xa8]]
        %v6812 = vstv %s6811
        %v6813 = vmul.f32 %v4821, %v6812
        %v6814 = vmul.f32 %v4822, %v6812
        %v6815 = vadd.f32 %v6809, %v6813
        %v6816 = vadd.f32 %v6810, %v6814
        %s6817 = sld [smem:[#allocation13 + $0xa9]]
        %v6818 = vstv %s6817
        %v6819 = vmul.f32 %v4821, %v6818
        %v6820 = vmul.f32 %v4822, %v6818
        %v6823 = vrot.slane %v6819, 1
        %v6824 = vrot.slane %v6820, 1
        %v6827 = vadd.f32 %v6815, %v6823
        %v6828 = vadd.f32 %v6816, %v6824
        %s6829 = sld [smem:[#allocation13 + $0xaa]]
        %v6830 = vstv %s6829
        %v6831 = vmul.f32 %v4821, %v6830
        %v6832 = vmul.f32 %v4822, %v6830
        %v6835 = vrot.slane %v6831, 2
        %v6836 = vrot.slane %v6832, 2
        %v6839 = vadd.f32 %v6827, %v6835
        %v6840 = vadd.f32 %v6828, %v6836
        %s6841 = sld [smem:[#allocation13 + $0xab]]
        %v6842 = vstv %s6841
        %v6843 = vmul.f32 %v4821, %v6842
        %v6844 = vmul.f32 %v4822, %v6842
        %v6847 = vrot.slane %v6843, 3
        %v6848 = vrot.slane %v6844, 3
        %v6851 = vadd.f32 %v6839, %v6847
        %v6852 = vadd.f32 %v6840, %v6848
        %s6853 = sld [smem:[#allocation13 + $0xac]]
        %v6854 = vstv %s6853
        %v6855 = vmul.f32 %v4821, %v6854
        %v6856 = vmul.f32 %v4822, %v6854
        %v6859 = vrot.slane %v6855, 4
        %v6860 = vrot.slane %v6856, 4
        %v6863 = vadd.f32 %v6851, %v6859
        %v6864 = vadd.f32 %v6852, %v6860
        %s6865 = sld [smem:[#allocation13 + $0xad]]
        %v6866 = vstv %s6865
        %v6867 = vmul.f32 %v4821, %v6866
        %v6868 = vmul.f32 %v4822, %v6866
        %v6871 = vrot.slane %v6867, 5
        %v6872 = vrot.slane %v6868, 5
        %v6875 = vadd.f32 %v6863, %v6871
        %v6876 = vadd.f32 %v6864, %v6872
        %s6877 = sld [smem:[#allocation13 + $0xae]]
        %v6878 = vstv %s6877
        %v6879 = vmul.f32 %v4821, %v6878
        %v6880 = vmul.f32 %v4822, %v6878
        %v6883 = vrot.slane %v6879, 6
        %v6884 = vrot.slane %v6880, 6
        %v6887 = vadd.f32 %v6875, %v6883
        %v6888 = vadd.f32 %v6876, %v6884
        %s6889 = sld [smem:[#allocation13 + $0xaf]]
        %v6890 = vstv %s6889
        %v6891 = vmul.f32 %v4821, %v6890
        %v6892 = vmul.f32 %v4822, %v6890
        %v6895 = vrot.slane %v6891, 7
        %v6896 = vrot.slane %v6892, 7
        %v6899 = vadd.f32 %v6887, %v6895
        %v6900 = vadd.f32 %v6888, %v6896
        %s6901 = sld [smem:[#allocation14 + $0xa]]
        %v6902 = vstv %s6901
        %v6903 = vadd.f32 %v6899, %v6902
        %v6904 = vadd.f32 %v6900, %v6902
        %s6905 = sld [smem:[#allocation16 + $0xa]]
        %v6906 = vstv %s6905
        %v6907 = vmul.f32 %v6903, %v6906
        %v6908 = vmul.f32 %v6904, %v6906
        %s6909 = sld [smem:[#allocation17 + $0xa]]
        %v6910 = vstv %s6909
        %v6911 = vadd.f32 %v6907, %v6910
        %v6912 = vadd.f32 %v6908, %v6910
        %s6913 = sld [smem:[#allocation13 + $0xb0]]
        %v6914 = vstv %s6913
        %v6915 = vmul.f32 %v4819, %v6914
        %v6916 = vmul.f32 %v4820, %v6914
        %s6917 = sld [smem:[#allocation13 + $0xb1]]
        %v6918 = vstv %s6917
        %v6919 = vmul.f32 %v4819, %v6918
        %v6920 = vmul.f32 %v4820, %v6918
        %v6923 = vrot.slane %v6919, 1
        %v6924 = vrot.slane %v6920, 1
        %v6927 = vadd.f32 %v6915, %v6923
        %v6928 = vadd.f32 %v6916, %v6924
        %s6929 = sld [smem:[#allocation13 + $0xb2]]
        %v6930 = vstv %s6929
        %v6931 = vmul.f32 %v4819, %v6930
        %v6932 = vmul.f32 %v4820, %v6930
        %v6935 = vrot.slane %v6931, 2
        %v6936 = vrot.slane %v6932, 2
        %v6939 = vadd.f32 %v6927, %v6935
        %v6940 = vadd.f32 %v6928, %v6936
        %s6941 = sld [smem:[#allocation13 + $0xb3]]
        %v6942 = vstv %s6941
        %v6943 = vmul.f32 %v4819, %v6942
        %v6944 = vmul.f32 %v4820, %v6942
        %v6947 = vrot.slane %v6943, 3
        %v6948 = vrot.slane %v6944, 3
        %v6951 = vadd.f32 %v6939, %v6947
        %v6952 = vadd.f32 %v6940, %v6948
        %s6953 = sld [smem:[#allocation13 + $0xb4]]
        %v6954 = vstv %s6953
        %v6955 = vmul.f32 %v4819, %v6954
        %v6956 = vmul.f32 %v4820, %v6954
        %v6959 = vrot.slane %v6955, 4
        %v6960 = vrot.slane %v6956, 4
        %v6963 = vadd.f32 %v6951, %v6959
        %v6964 = vadd.f32 %v6952, %v6960
        %s6965 = sld [smem:[#allocation13 + $0xb5]]
        %v6966 = vstv %s6965
        %v6967 = vmul.f32 %v4819, %v6966
        %v6968 = vmul.f32 %v4820, %v6966
        %v6971 = vrot.slane %v6967, 5
        %v6972 = vrot.slane %v6968, 5
        %v6975 = vadd.f32 %v6963, %v6971
        %v6976 = vadd.f32 %v6964, %v6972
        %s6977 = sld [smem:[#allocation13 + $0xb6]]
        %v6978 = vstv %s6977
        %v6979 = vmul.f32 %v4819, %v6978
        %v6980 = vmul.f32 %v4820, %v6978
        %v6983 = vrot.slane %v6979, 6
        %v6984 = vrot.slane %v6980, 6
        %v6987 = vadd.f32 %v6975, %v6983
        %v6988 = vadd.f32 %v6976, %v6984
        %s6989 = sld [smem:[#allocation13 + $0xb7]]
        %v6990 = vstv %s6989
        %v6991 = vmul.f32 %v4819, %v6990
        %v6992 = vmul.f32 %v4820, %v6990
        %v6995 = vrot.slane %v6991, 7
        %v6996 = vrot.slane %v6992, 7
        %v6999 = vadd.f32 %v6987, %v6995
        %v7000 = vadd.f32 %v6988, %v6996
        %s7001 = sld [smem:[#allocation13 + $0xb8]]
        %v7002 = vstv %s7001
        %v7003 = vmul.f32 %v4821, %v7002
        %v7004 = vmul.f32 %v4822, %v7002
        %v7005 = vadd.f32 %v6999, %v7003
        %v7006 = vadd.f32 %v7000, %v7004
        %s7007 = sld [smem:[#allocation13 + $0xb9]]
        %v7008 = vstv %s7007
        %v7009 = vmul.f32 %v4821, %v7008
        %v7010 = vmul.f32 %v4822, %v7008
        %v7013 = vrot.slane %v7009, 1
        %v7014 = vrot.slane %v7010, 1
        %v7017 = vadd.f32 %v7005, %v7013
        %v7018 = vadd.f32 %v7006, %v7014
        %s7019 = sld [smem:[#allocation13 + $0xba]]
        %v7020 = vstv %s7019
        %v7021 = vmul.f32 %v4821, %v7020
        %v7022 = vmul.f32 %v4822, %v7020
        %v7025 = vrot.slane %v7021, 2
        %v7026 = vrot.slane %v7022, 2
        %v7029 = vadd.f32 %v7017, %v7025
        %v7030 = vadd.f32 %v7018, %v7026
        %s7031 = sld [smem:[#allocation13 + $0xbb]]
        %v7032 = vstv %s7031
        %v7033 = vmul.f32 %v4821, %v7032
        %v7034 = vmul.f32 %v4822, %v7032
        %v7037 = vrot.slane %v7033, 3
        %v7038 = vrot.slane %v7034, 3
        %v7041 = vadd.f32 %v7029, %v7037
        %v7042 = vadd.f32 %v7030, %v7038
        %s7043 = sld [smem:[#allocation13 + $0xbc]]
        %v7044 = vstv %s7043
        %v7045 = vmul.f32 %v4821, %v7044
        %v7046 = vmul.f32 %v4822, %v7044
        %v7049 = vrot.slane %v7045, 4
        %v7050 = vrot.slane %v7046, 4
        %v7053 = vadd.f32 %v7041, %v7049
        %v7054 = vadd.f32 %v7042, %v7050
        %s7055 = sld [smem:[#allocation13 + $0xbd]]
        %v7056 = vstv %s7055
        %v7057 = vmul.f32 %v4821, %v7056
        %v7058 = vmul.f32 %v4822, %v7056
        %v7061 = vrot.slane %v7057, 5
        %v7062 = vrot.slane %v7058, 5
        %v7065 = vadd.f32 %v7053, %v7061
        %v7066 = vadd.f32 %v7054, %v7062
        %s7067 = sld [smem:[#allocation13 + $0xbe]]
        %v7068 = vstv %s7067
        %v7069 = vmul.f32 %v4821, %v7068
        %v7070 = vmul.f32 %v4822, %v7068
        %v7073 = vrot.slane %v7069, 6
        %v7074 = vrot.slane %v7070, 6
        %v7077 = vadd.f32 %v7065, %v7073
        %v7078 = vadd.f32 %v7066, %v7074
        %s7079 = sld [smem:[#allocation13 + $0xbf]]
        %v7080 = vstv %s7079
        %v7081 = vmul.f32 %v4821, %v7080
        %v7082 = vmul.f32 %v4822, %v7080
        %v7085 = vrot.slane %v7081, 7
        %v7086 = vrot.slane %v7082, 7
        %v7089 = vadd.f32 %v7077, %v7085
        %v7090 = vadd.f32 %v7078, %v7086
        %s7091 = sld [smem:[#allocation14 + $0xb]]
        %v7092 = vstv %s7091
        %v7093 = vadd.f32 %v7089, %v7092
        %v7094 = vadd.f32 %v7090, %v7092
        %s7095 = sld [smem:[#allocation16 + $0xb]]
        %v7096 = vstv %s7095
        %v7097 = vmul.f32 %v7093, %v7096
        %v7098 = vmul.f32 %v7094, %v7096
        %s7099 = sld [smem:[#allocation17 + $0xb]]
        %v7100 = vstv %s7099
        %v7101 = vadd.f32 %v7097, %v7100
        %v7102 = vadd.f32 %v7098, %v7100
        %s7103 = sld [smem:[#allocation13 + $0xc0]]
        %v7104 = vstv %s7103
        %v7105 = vmul.f32 %v4819, %v7104
        %v7106 = vmul.f32 %v4820, %v7104
        %s7107 = sld [smem:[#allocation13 + $0xc1]]
        %v7108 = vstv %s7107
        %v7109 = vmul.f32 %v4819, %v7108
        %v7110 = vmul.f32 %v4820, %v7108
        %v7113 = vrot.slane %v7109, 1
        %v7114 = vrot.slane %v7110, 1
        %v7117 = vadd.f32 %v7105, %v7113
        %v7118 = vadd.f32 %v7106, %v7114
        %s7119 = sld [smem:[#allocation13 + $0xc2]]
        %v7120 = vstv %s7119
        %v7121 = vmul.f32 %v4819, %v7120
        %v7122 = vmul.f32 %v4820, %v7120
        %v7125 = vrot.slane %v7121, 2
        %v7126 = vrot.slane %v7122, 2
        %v7129 = vadd.f32 %v7117, %v7125
        %v7130 = vadd.f32 %v7118, %v7126
        %s7131 = sld [smem:[#allocation13 + $0xc3]]
        %v7132 = vstv %s7131
        %v7133 = vmul.f32 %v4819, %v7132
        %v7134 = vmul.f32 %v4820, %v7132
        %v7137 = vrot.slane %v7133, 3
        %v7138 = vrot.slane %v7134, 3
        %v7141 = vadd.f32 %v7129, %v7137
        %v7142 = vadd.f32 %v7130, %v7138
        %s7143 = sld [smem:[#allocation13 + $0xc4]]
        %v7144 = vstv %s7143
        %v7145 = vmul.f32 %v4819, %v7144
        %v7146 = vmul.f32 %v4820, %v7144
        %v7149 = vrot.slane %v7145, 4
        %v7150 = vrot.slane %v7146, 4
        %v7153 = vadd.f32 %v7141, %v7149
        %v7154 = vadd.f32 %v7142, %v7150
        %s7155 = sld [smem:[#allocation13 + $0xc5]]
        %v7156 = vstv %s7155
        %v7157 = vmul.f32 %v4819, %v7156
        %v7158 = vmul.f32 %v4820, %v7156
        %v7161 = vrot.slane %v7157, 5
        %v7162 = vrot.slane %v7158, 5
        %v7165 = vadd.f32 %v7153, %v7161
        %v7166 = vadd.f32 %v7154, %v7162
        %s7167 = sld [smem:[#allocation13 + $0xc6]]
        %v7168 = vstv %s7167
        %v7169 = vmul.f32 %v4819, %v7168
        %v7170 = vmul.f32 %v4820, %v7168
        %v7173 = vrot.slane %v7169, 6
        %v7174 = vrot.slane %v7170, 6
        %v7177 = vadd.f32 %v7165, %v7173
        %v7178 = vadd.f32 %v7166, %v7174
        %s7179 = sld [smem:[#allocation13 + $0xc7]]
        %v7180 = vstv %s7179
        %v7181 = vmul.f32 %v4819, %v7180
        %v7182 = vmul.f32 %v4820, %v7180
        %v7185 = vrot.slane %v7181, 7
        %v7186 = vrot.slane %v7182, 7
        %v7189 = vadd.f32 %v7177, %v7185
        %v7190 = vadd.f32 %v7178, %v7186
        %s7191 = sld [smem:[#allocation13 + $0xc8]]
        %v7192 = vstv %s7191
        %v7193 = vmul.f32 %v4821, %v7192
        %v7194 = vmul.f32 %v4822, %v7192
        %v7195 = vadd.f32 %v7189, %v7193
        %v7196 = vadd.f32 %v7190, %v7194
        %s7197 = sld [smem:[#allocation13 + $0xc9]]
        %v7198 = vstv %s7197
        %v7199 = vmul.f32 %v4821, %v7198
        %v7200 = vmul.f32 %v4822, %v7198
        %v7203 = vrot.slane %v7199, 1
        %v7204 = vrot.slane %v7200, 1
        %v7207 = vadd.f32 %v7195, %v7203
        %v7208 = vadd.f32 %v7196, %v7204
        %s7209 = sld [smem:[#allocation13 + $0xca]]
        %v7210 = vstv %s7209
        %v7211 = vmul.f32 %v4821, %v7210
        %v7212 = vmul.f32 %v4822, %v7210
        %v7215 = vrot.slane %v7211, 2
        %v7216 = vrot.slane %v7212, 2
        %v7219 = vadd.f32 %v7207, %v7215
        %v7220 = vadd.f32 %v7208, %v7216
        %s7221 = sld [smem:[#allocation13 + $0xcb]]
        %v7222 = vstv %s7221
        %v7223 = vmul.f32 %v4821, %v7222
        %v7224 = vmul.f32 %v4822, %v7222
        %v7227 = vrot.slane %v7223, 3
        %v7228 = vrot.slane %v7224, 3
        %v7231 = vadd.f32 %v7219, %v7227
        %v7232 = vadd.f32 %v7220, %v7228
        %s7233 = sld [smem:[#allocation13 + $0xcc]]
        %v7234 = vstv %s7233
        %v7235 = vmul.f32 %v4821, %v7234
        %v7236 = vmul.f32 %v4822, %v7234
        %v7239 = vrot.slane %v7235, 4
        %v7240 = vrot.slane %v7236, 4
        %v7243 = vadd.f32 %v7231, %v7239
        %v7244 = vadd.f32 %v7232, %v7240
        %s7245 = sld [smem:[#allocation13 + $0xcd]]
        %v7246 = vstv %s7245
        %v7247 = vmul.f32 %v4821, %v7246
        %v7248 = vmul.f32 %v4822, %v7246
        %v7251 = vrot.slane %v7247, 5
        %v7252 = vrot.slane %v7248, 5
        %v7255 = vadd.f32 %v7243, %v7251
        %v7256 = vadd.f32 %v7244, %v7252
        %s7257 = sld [smem:[#allocation13 + $0xce]]
        %v7258 = vstv %s7257
        %v7259 = vmul.f32 %v4821, %v7258
        %v7260 = vmul.f32 %v4822, %v7258
        %v7263 = vrot.slane %v7259, 6
        %v7264 = vrot.slane %v7260, 6
        %v7267 = vadd.f32 %v7255, %v7263
        %v7268 = vadd.f32 %v7256, %v7264
        %s7269 = sld [smem:[#allocation13 + $0xcf]]
        %v7270 = vstv %s7269
        %v7271 = vmul.f32 %v4821, %v7270
        %v7272 = vmul.f32 %v4822, %v7270
        %v7275 = vrot.slane %v7271, 7
        %v7276 = vrot.slane %v7272, 7
        %v7279 = vadd.f32 %v7267, %v7275
        %v7280 = vadd.f32 %v7268, %v7276
        %s7281 = sld [smem:[#allocation14 + $0xc]]
        %v7282 = vstv %s7281
        %v7283 = vadd.f32 %v7279, %v7282
        %v7284 = vadd.f32 %v7280, %v7282
        %s7285 = sld [smem:[#allocation16 + $0xc]]
        %v7286 = vstv %s7285
        %v7287 = vmul.f32 %v7283, %v7286
        %v7288 = vmul.f32 %v7284, %v7286
        %s7289 = sld [smem:[#allocation17 + $0xc]]
        %v7290 = vstv %s7289
        %v7291 = vadd.f32 %v7287, %v7290
        %v7292 = vadd.f32 %v7288, %v7290
        %s7293 = sld [smem:[#allocation13 + $0xd0]]
        %v7294 = vstv %s7293
        %v7295 = vmul.f32 %v4819, %v7294
        %v7296 = vmul.f32 %v4820, %v7294
        %s7297 = sld [smem:[#allocation13 + $0xd1]]
        %v7298 = vstv %s7297
        %v7299 = vmul.f32 %v4819, %v7298
        %v7300 = vmul.f32 %v4820, %v7298
        %v7303 = vrot.slane %v7299, 1
        %v7304 = vrot.slane %v7300, 1
        %v7307 = vadd.f32 %v7295, %v7303
        %v7308 = vadd.f32 %v7296, %v7304
        %s7309 = sld [smem:[#allocation13 + $0xd2]]
        %v7310 = vstv %s7309
        %v7311 = vmul.f32 %v4819, %v7310
        %v7312 = vmul.f32 %v4820, %v7310
        %v7315 = vrot.slane %v7311, 2
        %v7316 = vrot.slane %v7312, 2
        %v7319 = vadd.f32 %v7307, %v7315
        %v7320 = vadd.f32 %v7308, %v7316
        %s7321 = sld [smem:[#allocation13 + $0xd3]]
        %v7322 = vstv %s7321
        %v7323 = vmul.f32 %v4819, %v7322
        %v7324 = vmul.f32 %v4820, %v7322
        %v7327 = vrot.slane %v7323, 3
        %v7328 = vrot.slane %v7324, 3
        %v7331 = vadd.f32 %v7319, %v7327
        %v7332 = vadd.f32 %v7320, %v7328
        %s7333 = sld [smem:[#allocation13 + $0xd4]]
        %v7334 = vstv %s7333
        %v7335 = vmul.f32 %v4819, %v7334
        %v7336 = vmul.f32 %v4820, %v7334
        %v7339 = vrot.slane %v7335, 4
        %v7340 = vrot.slane %v7336, 4
        %v7343 = vadd.f32 %v7331, %v7339
        %v7344 = vadd.f32 %v7332, %v7340
        %s7345 = sld [smem:[#allocation13 + $0xd5]]
        %v7346 = vstv %s7345
        %v7347 = vmul.f32 %v4819, %v7346
        %v7348 = vmul.f32 %v4820, %v7346
        %v7351 = vrot.slane %v7347, 5
        %v7352 = vrot.slane %v7348, 5
        %v7355 = vadd.f32 %v7343, %v7351
        %v7356 = vadd.f32 %v7344, %v7352
        %s7357 = sld [smem:[#allocation13 + $0xd6]]
        %v7358 = vstv %s7357
        %v7359 = vmul.f32 %v4819, %v7358
        %v7360 = vmul.f32 %v4820, %v7358
        %v7363 = vrot.slane %v7359, 6
        %v7364 = vrot.slane %v7360, 6
        %v7367 = vadd.f32 %v7355, %v7363
        %v7368 = vadd.f32 %v7356, %v7364
        %s7369 = sld [smem:[#allocation13 + $0xd7]]
        %v7370 = vstv %s7369
        %v7371 = vmul.f32 %v4819, %v7370
        %v7372 = vmul.f32 %v4820, %v7370
        %v7375 = vrot.slane %v7371, 7
        %v7376 = vrot.slane %v7372, 7
        %v7379 = vadd.f32 %v7367, %v7375
        %v7380 = vadd.f32 %v7368, %v7376
        %s7381 = sld [smem:[#allocation13 + $0xd8]]
        %v7382 = vstv %s7381
        %v7383 = vmul.f32 %v4821, %v7382
        %v7384 = vmul.f32 %v4822, %v7382
        %v7385 = vadd.f32 %v7379, %v7383
        %v7386 = vadd.f32 %v7380, %v7384
        %s7387 = sld [smem:[#allocation13 + $0xd9]]
        %v7388 = vstv %s7387
        %v7389 = vmul.f32 %v4821, %v7388
        %v7390 = vmul.f32 %v4822, %v7388
        %v7393 = vrot.slane %v7389, 1
        %v7394 = vrot.slane %v7390, 1
        %v7397 = vadd.f32 %v7385, %v7393
        %v7398 = vadd.f32 %v7386, %v7394
        %s7399 = sld [smem:[#allocation13 + $0xda]]
        %v7400 = vstv %s7399
        %v7401 = vmul.f32 %v4821, %v7400
        %v7402 = vmul.f32 %v4822, %v7400
        %v7405 = vrot.slane %v7401, 2
        %v7406 = vrot.slane %v7402, 2
        %v7409 = vadd.f32 %v7397, %v7405
        %v7410 = vadd.f32 %v7398, %v7406
        %s7411 = sld [smem:[#allocation13 + $0xdb]]
        %v7412 = vstv %s7411
        %v7413 = vmul.f32 %v4821, %v7412
        %v7414 = vmul.f32 %v4822, %v7412
        %v7417 = vrot.slane %v7413, 3
        %v7418 = vrot.slane %v7414, 3
        %v7421 = vadd.f32 %v7409, %v7417
        %v7422 = vadd.f32 %v7410, %v7418
        %s7423 = sld [smem:[#allocation13 + $0xdc]]
        %v7424 = vstv %s7423
        %v7425 = vmul.f32 %v4821, %v7424
        %v7426 = vmul.f32 %v4822, %v7424
        %v7429 = vrot.slane %v7425, 4
        %v7430 = vrot.slane %v7426, 4
        %v7433 = vadd.f32 %v7421, %v7429
        %v7434 = vadd.f32 %v7422, %v7430
        %s7435 = sld [smem:[#allocation13 + $0xdd]]
        %v7436 = vstv %s7435
        %v7437 = vmul.f32 %v4821, %v7436
        %v7438 = vmul.f32 %v4822, %v7436
        %v7441 = vrot.slane %v7437, 5
        %v7442 = vrot.slane %v7438, 5
        %v7445 = vadd.f32 %v7433, %v7441
        %v7446 = vadd.f32 %v7434, %v7442
        %s7447 = sld [smem:[#allocation13 + $0xde]]
        %v7448 = vstv %s7447
        %v7449 = vmul.f32 %v4821, %v7448
        %v7450 = vmul.f32 %v4822, %v7448
        %v7453 = vrot.slane %v7449, 6
        %v7454 = vrot.slane %v7450, 6
        %v7457 = vadd.f32 %v7445, %v7453
        %v7458 = vadd.f32 %v7446, %v7454
        %s7459 = sld [smem:[#allocation13 + $0xdf]]
        %v7460 = vstv %s7459
        %v7461 = vmul.f32 %v4821, %v7460
        %v7462 = vmul.f32 %v4822, %v7460
        %v7465 = vrot.slane %v7461, 7
        %v7466 = vrot.slane %v7462, 7
        %v7469 = vadd.f32 %v7457, %v7465
        %v7470 = vadd.f32 %v7458, %v7466
        %s7471 = sld [smem:[#allocation14 + $0xd]]
        %v7472 = vstv %s7471
        %v7473 = vadd.f32 %v7469, %v7472
        %v7474 = vadd.f32 %v7470, %v7472
        %s7475 = sld [smem:[#allocation16 + $0xd]]
        %v7476 = vstv %s7475
        %v7477 = vmul.f32 %v7473, %v7476
        %v7478 = vmul.f32 %v7474, %v7476
        %s7479 = sld [smem:[#allocation17 + $0xd]]
        %v7480 = vstv %s7479
        %v7481 = vadd.f32 %v7477, %v7480
        %v7482 = vadd.f32 %v7478, %v7480
        %s7483 = sld [smem:[#allocation13 + $0xe0]]
        %v7484 = vstv %s7483
        %v7485 = vmul.f32 %v4819, %v7484
        %v7486 = vmul.f32 %v4820, %v7484
        %s7487 = sld [smem:[#allocation13 + $0xe1]]
        %v7488 = vstv %s7487
        %v7489 = vmul.f32 %v4819, %v7488
        %v7490 = vmul.f32 %v4820, %v7488
        %v7493 = vrot.slane %v7489, 1
        %v7494 = vrot.slane %v7490, 1
        %v7497 = vadd.f32 %v7485, %v7493
        %v7498 = vadd.f32 %v7486, %v7494
        %s7499 = sld [smem:[#allocation13 + $0xe2]]
        %v7500 = vstv %s7499
        %v7501 = vmul.f32 %v4819, %v7500
        %v7502 = vmul.f32 %v4820, %v7500
        %v7505 = vrot.slane %v7501, 2
        %v7506 = vrot.slane %v7502, 2
        %v7509 = vadd.f32 %v7497, %v7505
        %v7510 = vadd.f32 %v7498, %v7506
        %s7511 = sld [smem:[#allocation13 + $0xe3]]
        %v7512 = vstv %s7511
        %v7513 = vmul.f32 %v4819, %v7512
        %v7514 = vmul.f32 %v4820, %v7512
        %v7517 = vrot.slane %v7513, 3
        %v7518 = vrot.slane %v7514, 3
        %v7521 = vadd.f32 %v7509, %v7517
        %v7522 = vadd.f32 %v7510, %v7518
        %s7523 = sld [smem:[#allocation13 + $0xe4]]
        %v7524 = vstv %s7523
        %v7525 = vmul.f32 %v4819, %v7524
        %v7526 = vmul.f32 %v4820, %v7524
        %v7529 = vrot.slane %v7525, 4
        %v7530 = vrot.slane %v7526, 4
        %v7533 = vadd.f32 %v7521, %v7529
        %v7534 = vadd.f32 %v7522, %v7530
        %s7535 = sld [smem:[#allocation13 + $0xe5]]
        %v7536 = vstv %s7535
        %v7537 = vmul.f32 %v4819, %v7536
        %v7538 = vmul.f32 %v4820, %v7536
        %v7541 = vrot.slane %v7537, 5
        %v7542 = vrot.slane %v7538, 5
        %v7545 = vadd.f32 %v7533, %v7541
        %v7546 = vadd.f32 %v7534, %v7542
        %s7547 = sld [smem:[#allocation13 + $0xe6]]
        %v7548 = vstv %s7547
        %v7549 = vmul.f32 %v4819, %v7548
        %v7550 = vmul.f32 %v4820, %v7548
        %v7553 = vrot.slane %v7549, 6
        %v7554 = vrot.slane %v7550, 6
        %v7557 = vadd.f32 %v7545, %v7553
        %v7558 = vadd.f32 %v7546, %v7554
        %s7559 = sld [smem:[#allocation13 + $0xe7]]
        %v7560 = vstv %s7559
        %v7561 = vmul.f32 %v4819, %v7560
        %v7562 = vmul.f32 %v4820, %v7560
        %v7565 = vrot.slane %v7561, 7
        %v7566 = vrot.slane %v7562, 7
        %v7569 = vadd.f32 %v7557, %v7565
        %v7570 = vadd.f32 %v7558, %v7566
        %s7571 = sld [smem:[#allocation13 + $0xe8]]
        %v7572 = vstv %s7571
        %v7573 = vmul.f32 %v4821, %v7572
        %v7574 = vmul.f32 %v4822, %v7572
        %v7575 = vadd.f32 %v7569, %v7573
        %v7576 = vadd.f32 %v7570, %v7574
        %s7577 = sld [smem:[#allocation13 + $0xe9]]
        %v7578 = vstv %s7577
        %v7579 = vmul.f32 %v4821, %v7578
        %v7580 = vmul.f32 %v4822, %v7578
        %v7583 = vrot.slane %v7579, 1
        %v7584 = vrot.slane %v7580, 1
        %v7587 = vadd.f32 %v7575, %v7583
        %v7588 = vadd.f32 %v7576, %v7584
        %s7589 = sld [smem:[#allocation13 + $0xea]]
        %v7590 = vstv %s7589
        %v7591 = vmul.f32 %v4821, %v7590
        %v7592 = vmul.f32 %v4822, %v7590
        %v7595 = vrot.slane %v7591, 2
        %v7596 = vrot.slane %v7592, 2
        %v7599 = vadd.f32 %v7587, %v7595
        %v7600 = vadd.f32 %v7588, %v7596
        %s7601 = sld [smem:[#allocation13 + $0xeb]]
        %v7602 = vstv %s7601
        %v7603 = vmul.f32 %v4821, %v7602
        %v7604 = vmul.f32 %v4822, %v7602
        %v7607 = vrot.slane %v7603, 3
        %v7608 = vrot.slane %v7604, 3
        %v7611 = vadd.f32 %v7599, %v7607
        %v7612 = vadd.f32 %v7600, %v7608
        %s7613 = sld [smem:[#allocation13 + $0xec]]
        %v7614 = vstv %s7613
        %v7615 = vmul.f32 %v4821, %v7614
        %v7616 = vmul.f32 %v4822, %v7614
        %v7619 = vrot.slane %v7615, 4
        %v7620 = vrot.slane %v7616, 4
        %v7623 = vadd.f32 %v7611, %v7619
        %v7624 = vadd.f32 %v7612, %v7620
        %s7625 = sld [smem:[#allocation13 + $0xed]]
        %v7626 = vstv %s7625
        %v7627 = vmul.f32 %v4821, %v7626
        %v7628 = vmul.f32 %v4822, %v7626
        %v7631 = vrot.slane %v7627, 5
        %v7632 = vrot.slane %v7628, 5
        %v7635 = vadd.f32 %v7623, %v7631
        %v7636 = vadd.f32 %v7624, %v7632
        %s7637 = sld [smem:[#allocation13 + $0xee]]
        %v7638 = vstv %s7637
        %v7639 = vmul.f32 %v4821, %v7638
        %v7640 = vmul.f32 %v4822, %v7638
        %v7643 = vrot.slane %v7639, 6
        %v7644 = vrot.slane %v7640, 6
        %v7647 = vadd.f32 %v7635, %v7643
        %v7648 = vadd.f32 %v7636, %v7644
        %s7649 = sld [smem:[#allocation13 + $0xef]]
        %v7650 = vstv %s7649
        %v7651 = vmul.f32 %v4821, %v7650
        %v7652 = vmul.f32 %v4822, %v7650
        %v7655 = vrot.slane %v7651, 7
        %v7656 = vrot.slane %v7652, 7
        %v7659 = vadd.f32 %v7647, %v7655
        %v7660 = vadd.f32 %v7648, %v7656
        %s7661 = sld [smem:[#allocation14 + $0xe]]
        %v7662 = vstv %s7661
        %v7663 = vadd.f32 %v7659, %v7662
        %v7664 = vadd.f32 %v7660, %v7662
        %s7665 = sld [smem:[#allocation16 + $0xe]]
        %v7666 = vstv %s7665
        %v7667 = vmul.f32 %v7663, %v7666
        %v7668 = vmul.f32 %v7664, %v7666
        %s7669 = sld [smem:[#allocation17 + $0xe]]
        %v7670 = vstv %s7669
        %v7671 = vadd.f32 %v7667, %v7670
        %v7672 = vadd.f32 %v7668, %v7670
        %s7673 = sld [smem:[#allocation13 + $0xf0]]
        %v7674 = vstv %s7673
        %v7675 = vmul.f32 %v4819, %v7674
        %v7676 = vmul.f32 %v4820, %v7674
        %s7677 = sld [smem:[#allocation13 + $0xf1]]
        %v7678 = vstv %s7677
        %v7679 = vmul.f32 %v4819, %v7678
        %v7680 = vmul.f32 %v4820, %v7678
        %v7683 = vrot.slane %v7679, 1
        %v7684 = vrot.slane %v7680, 1
        %v7687 = vadd.f32 %v7675, %v7683
        %v7688 = vadd.f32 %v7676, %v7684
        %s7689 = sld [smem:[#allocation13 + $0xf2]]
        %v7690 = vstv %s7689
        %v7691 = vmul.f32 %v4819, %v7690
        %v7692 = vmul.f32 %v4820, %v7690
        %v7695 = vrot.slane %v7691, 2
        %v7696 = vrot.slane %v7692, 2
        %v7699 = vadd.f32 %v7687, %v7695
        %v7700 = vadd.f32 %v7688, %v7696
        %s7701 = sld [smem:[#allocation13 + $0xf3]]
        %v7702 = vstv %s7701
        %v7703 = vmul.f32 %v4819, %v7702
        %v7704 = vmul.f32 %v4820, %v7702
        %v7707 = vrot.slane %v7703, 3
        %v7708 = vrot.slane %v7704, 3
        %v7711 = vadd.f32 %v7699, %v7707
        %v7712 = vadd.f32 %v7700, %v7708
        %s7713 = sld [smem:[#allocation13 + $0xf4]]
        %v7714 = vstv %s7713
        %v7715 = vmul.f32 %v4819, %v7714
        %v7716 = vmul.f32 %v4820, %v7714
        %v7719 = vrot.slane %v7715, 4
        %v7720 = vrot.slane %v7716, 4
        %v7723 = vadd.f32 %v7711, %v7719
        %v7724 = vadd.f32 %v7712, %v7720
        %s7725 = sld [smem:[#allocation13 + $0xf5]]
        %v7726 = vstv %s7725
        %v7727 = vmul.f32 %v4819, %v7726
        %v7728 = vmul.f32 %v4820, %v7726
        %v7731 = vrot.slane %v7727, 5
        %v7732 = vrot.slane %v7728, 5
        %v7735 = vadd.f32 %v7723, %v7731
        %v7736 = vadd.f32 %v7724, %v7732
        %s7737 = sld [smem:[#allocation13 + $0xf6]]
        %v7738 = vstv %s7737
        %v7739 = vmul.f32 %v4819, %v7738
        %v7740 = vmul.f32 %v4820, %v7738
        %v7743 = vrot.slane %v7739, 6
        %v7744 = vrot.slane %v7740, 6
        %v7747 = vadd.f32 %v7735, %v7743
        %v7748 = vadd.f32 %v7736, %v7744
        %s7749 = sld [smem:[#allocation13 + $0xf7]]
        %v7750 = vstv %s7749
        %v7751 = vmul.f32 %v4819, %v7750
        %v7752 = vmul.f32 %v4820, %v7750
        %v7755 = vrot.slane %v7751, 7
        %v7756 = vrot.slane %v7752, 7
        %v7759 = vadd.f32 %v7747, %v7755
        %v7760 = vadd.f32 %v7748, %v7756
        %s7761 = sld [smem:[#allocation13 + $0xf8]]
        %v7762 = vstv %s7761
        %v7763 = vmul.f32 %v4821, %v7762
        %v7764 = vmul.f32 %v4822, %v7762
        %v7765 = vadd.f32 %v7759, %v7763
        %v7766 = vadd.f32 %v7760, %v7764
        %s7767 = sld [smem:[#allocation13 + $0xf9]]
        %v7768 = vstv %s7767
        %v7769 = vmul.f32 %v4821, %v7768
        %v7770 = vmul.f32 %v4822, %v7768
        %v7773 = vrot.slane %v7769, 1
        %v7774 = vrot.slane %v7770, 1
        %v7777 = vadd.f32 %v7765, %v7773
        %v7778 = vadd.f32 %v7766, %v7774
        %s7779 = sld [smem:[#allocation13 + $0xfa]]
        %v7780 = vstv %s7779
        %v7781 = vmul.f32 %v4821, %v7780
        %v7782 = vmul.f32 %v4822, %v7780
        %v7785 = vrot.slane %v7781, 2
        %v7786 = vrot.slane %v7782, 2
        %v7789 = vadd.f32 %v7777, %v7785
        %v7790 = vadd.f32 %v7778, %v7786
        %s7791 = sld [smem:[#allocation13 + $0xfb]]
        %v7792 = vstv %s7791
        %v7793 = vmul.f32 %v4821, %v7792
        %v7794 = vmul.f32 %v4822, %v7792
        %v7797 = vrot.slane %v7793, 3
        %v7798 = vrot.slane %v7794, 3
        %v7801 = vadd.f32 %v7789, %v7797
        %v7802 = vadd.f32 %v7790, %v7798
        %s7803 = sld [smem:[#allocation13 + $0xfc]]
        %v7804 = vstv %s7803
        %v7805 = vmul.f32 %v4821, %v7804
        %v7806 = vmul.f32 %v4822, %v7804
        %v7809 = vrot.slane %v7805, 4
        %v7810 = vrot.slane %v7806, 4
        %v7813 = vadd.f32 %v7801, %v7809
        %v7814 = vadd.f32 %v7802, %v7810
        %s7815 = sld [smem:[#allocation13 + $0xfd]]
        %v7816 = vstv %s7815
        %v7817 = vmul.f32 %v4821, %v7816
        %v7818 = vmul.f32 %v4822, %v7816
        %v7821 = vrot.slane %v7817, 5
        %v7822 = vrot.slane %v7818, 5
        %v7825 = vadd.f32 %v7813, %v7821
        %v7826 = vadd.f32 %v7814, %v7822
        %s7827 = sld [smem:[#allocation13 + $0xfe]]
        %v7828 = vstv %s7827
        %v7829 = vmul.f32 %v4821, %v7828
        %v7830 = vmul.f32 %v4822, %v7828
        %v7833 = vrot.slane %v7829, 6
        %v7834 = vrot.slane %v7830, 6
        %v7837 = vadd.f32 %v7825, %v7833
        %v7838 = vadd.f32 %v7826, %v7834
        %s7839 = sld [smem:[#allocation13 + $0xff]]
        %v7840 = vstv %s7839
        %v7841 = vmul.f32 %v4821, %v7840
        %v7842 = vmul.f32 %v4822, %v7840
        %v7845 = vrot.slane %v7841, 7
        %v7846 = vrot.slane %v7842, 7
        %v7849 = vadd.f32 %v7837, %v7845
        %v7850 = vadd.f32 %v7838, %v7846
        %s7851 = sld [smem:[#allocation14 + $0xf]]
        %v7852 = vstv %s7851
        %v7853 = vadd.f32 %v7849, %v7852
        %v7854 = vadd.f32 %v7850, %v7852
        %s7855 = sld [smem:[#allocation16 + $0xf]]
        %v7856 = vstv %s7855
        %v7857 = vmul.f32 %v7853, %v7856
        %v7858 = vmul.f32 %v7854, %v7856
        %s7859 = sld [smem:[#allocation17 + $0xf]]
        %v7860 = vstv %s7859
        %v7861 = vadd.f32 %v7857, %v7860
        %v7862 = vadd.f32 %v7858, %v7860
        %v7865 = vrot.slane %v5201, 7
        %v7866 = vrot.slane %v5202, 7
        %v7871 = vrot.slane %v5391, 6
        %v7872 = vrot.slane %v5392, 6
        %v7877 = vrot.slane %v5581, 5
        %v7878 = vrot.slane %v5582, 5
        %v7883 = vrot.slane %v5771, 4
        %v7884 = vrot.slane %v5772, 4
        %v7889 = vrot.slane %v5961, 3
        %v7890 = vrot.slane %v5962, 3
        %v7895 = vrot.slane %v6151, 2
        %v7896 = vrot.slane %v6152, 2
        %v7901 = vrot.slane %v6341, 1
        %v7902 = vrot.slane %v6342, 1
        %v7907 = vrot.slane %v6721, 7
        %v7908 = vrot.slane %v6722, 7
        %v7913 = vrot.slane %v6911, 6
        %v7914 = vrot.slane %v6912, 6
        %v7919 = vrot.slane %v7101, 5
        %v7920 = vrot.slane %v7102, 5
        %v7925 = vrot.slane %v7291, 4
        %v7926 = vrot.slane %v7292, 4
        %v7931 = vrot.slane %v7481, 3
        %v7932 = vrot.slane %v7482, 3
        %v7937 = vrot.slane %v7671, 2
        %v7938 = vrot.slane %v7672, 2
        %v7943 = vrot.slane %v7861, 1
        %v7944 = vrot.slane %v7862, 1
        %v7947 = vsel %vm4084, %v5011, %v7865
        %v7948 = vsel %vm4084, %v5012, %v7866
        %v7949 = vsel %vm4087, %v7947, %v7871
        %v7950 = vsel %vm4087, %v7948, %v7872
        %v7951 = vsel %vm4090, %v7949, %v7877
        %v7952 = vsel %vm4090, %v7950, %v7878
        %v7953 = vsel %vm4093, %v7951, %v7883
        %v7954 = vsel %vm4093, %v7952, %v7884
        %v7955 = vsel %vm4096, %v7953, %v7889
        %v7956 = vsel %vm4096, %v7954, %v7890
        %v7957 = vsel %vm4099, %v7955, %v7895
        %v7958 = vsel %vm4099, %v7956, %v7896
        %v7959 = vsel %vm4102, %v7957, %v7901
        %v7960 = vsel %vm4102, %v7958, %v7902
        %v7961 = vsel %vm4084, %v6531, %v7907
        %v7962 = vsel %vm4084, %v6532, %v7908
        %v7963 = vsel %vm4087, %v7961, %v7913
        %v7964 = vsel %vm4087, %v7962, %v7914
        %v7965 = vsel %vm4090, %v7963, %v7919
        %v7966 = vsel %vm4090, %v7964, %v7920
        %v7967 = vsel %vm4093, %v7965, %v7925
        %v7968 = vsel %vm4093, %v7966, %v7926
        %v7969 = vsel %vm4096, %v7967, %v7931
        %v7970 = vsel %vm4096, %v7968, %v7932
        %v7971 = vsel %vm4099, %v7969, %v7937
        %v7972 = vsel %vm4099, %v7970, %v7938
        %v7973 = vsel %vm4102, %v7971, %v7943
        %v7974 = vsel %vm4102, %v7972, %v7944
        %vm7975 = vcmp.gt.f32.partialorder %v7959, 0.0
        %vm7976 = vcmp.gt.f32.partialorder %v7960, 0.0
        %vm7977 = vcmp.gt.f32.partialorder %v7973, 0.0
        %vm7978 = vcmp.gt.f32.partialorder %v7974, 0.0
        %v7979 = vmul.f32 %v7959, 1.442695
        %v7980 = vpow.pop %v7979
        %v7981 = vmul.f32 %v7960, 1.442695
        %v7982 = vpow.pop %v7981
        %v7983 = vmul.f32 %v7973, 1.442695
        %v7984 = vpow.pop %v7983
        %v7985 = vmul.f32 %v7974, 1.442695
        %v7986 = vpow.pop %v7985
        %v7987 = vsub.f32 %v7980, 1.0
        %v7988 = vsub.f32 %v7982, 1.0
        %v7989 = vsub.f32 %v7984, 1.0
        %v7990 = vsub.f32 %v7986, 1.0
        %v7991 = vsel %vm7975, %v7959, %v7987
        %v7992 = vsel %vm7976, %v7960, %v7988
        %v7993 = vsel %vm7977, %v7973, %v7989
        %v7994 = vsel %vm7978, %v7974, %v7990
        %7999 = vrot.lane.b32.xlu0 %v7991, 28
        %v8000 = vpop.permute.xlu0 %7999
        %8001 = vrot.lane.b32.xlu0 %v7992, 28
        %v8002 = vpop.permute.xlu0 %8001
        %8003 = vrot.lane.b32.xlu0 %v7993, 28
        %v8004 = vpop.permute.xlu0 %8003
        %8005 = vrot.lane.b32.xlu0 %v7994, 28
        %v8006 = vpop.permute.xlu0 %8005
        %vm8007 = vcmask 228352
        %v8008 = vsel %vm8007, %v8000, %v8002
        %v8009 = vsel %vm8007, %v8004, %v8006
        %8010 = vrot.lane.b32.xlu0 %v8008, 96
        %v8011 = vpop.permute.xlu0 %8010
        %8012 = vrot.lane.b32.xlu0 0.0, 96
        %v8013 = vpop.permute.xlu0 %8012
        %8014 = vrot.lane.b32.xlu0 %v8009, 96
        %v8015 = vpop.permute.xlu0 %8014
        %v8016 = vsel %vm4532, %v8011, %v8013
        %v8017 = vsel %vm4532, %v8015, %v8013
        %v8022 = vadd.f32 %v7991, %v8011
        %v8023 = vadd.f32 %v7992, %v8016
        %v8024 = vadd.f32 %v7993, %v8015
        %v8025 = vadd.f32 %v7994, %v8017
        %8026 = vrot.lane.b32.xlu0 %v8008, 92
        %v8027 = vpop.permute.xlu0 %8026
        %8028 = vrot.lane.b32.xlu0 0.0, 92
        %v8029 = vpop.permute.xlu0 %8028
        %8030 = vrot.lane.b32.xlu0 %v8009, 92
        %v8031 = vpop.permute.xlu0 %8030
        %v8032 = vsel %vm4572, %v8027, %v8029
        %v8033 = vsel %vm4572, %v8031, %v8029
        %v8038 = vadd.f32 %v8022, %v8027
        %v8039 = vadd.f32 %v8023, %v8032
        %v8040 = vadd.f32 %v8024, %v8031
        %v8041 = vadd.f32 %v8025, %v8033
        %8042 = vrot.lane.b32.xlu0 %v8008, 88
        %v8043 = vpop.permute.xlu0 %8042
        %8044 = vrot.lane.b32.xlu0 0.0, 88
        %v8045 = vpop.permute.xlu0 %8044
        %8046 = vrot.lane.b32.xlu0 %v8009, 88
        %v8047 = vpop.permute.xlu0 %8046
        %v8048 = vsel %vm4612, %v8043, %v8045
        %v8049 = vsel %vm4612, %v8047, %v8045
        %v8054 = vadd.f32 %v8038, %v8043
        %v8055 = vadd.f32 %v8039, %v8048
        %v8056 = vadd.f32 %v8040, %v8047
        %v8057 = vadd.f32 %v8041, %v8049
        %8058 = vrot.lane.b32.xlu0 %v8008, 84
        %v8059 = vpop.permute.xlu0 %8058
        %8060 = vrot.lane.b32.xlu0 0.0, 84
        %v8061 = vpop.permute.xlu0 %8060
        %8062 = vrot.lane.b32.xlu0 %v8009, 84
        %v8063 = vpop.permute.xlu0 %8062
        %v8064 = vsel %vm4652, %v8059, %v8061
        %v8065 = vsel %vm4652, %v8063, %v8061
        %v8070 = vadd.f32 %v8054, %v8059
        %v8071 = vadd.f32 %v8055, %v8064
        %v8072 = vadd.f32 %v8056, %v8063
        %v8073 = vadd.f32 %v8057, %v8065
        %8074 = vrot.lane.b32.xlu0 %v8008, 80
        %v8075 = vpop.permute.xlu0 %8074
        %8076 = vrot.lane.b32.xlu0 0.0, 80
        %v8077 = vpop.permute.xlu0 %8076
        %8078 = vrot.lane.b32.xlu0 %v8009, 80
        %v8079 = vpop.permute.xlu0 %8078
        %v8080 = vsel %vm4692, %v8075, %v8077
        %v8081 = vsel %vm4692, %v8079, %v8077
        %v8086 = vadd.f32 %v8070, %v8075
        %v8087 = vadd.f32 %v8071, %v8080
        %v8088 = vadd.f32 %v8072, %v8079
        %v8089 = vadd.f32 %v8073, %v8081
        %8090 = vrot.lane.b32.xlu0 %v8008, 76
        %v8091 = vpop.permute.xlu0 %8090
        %8092 = vrot.lane.b32.xlu0 0.0, 76
        %v8093 = vpop.permute.xlu0 %8092
        %8094 = vrot.lane.b32.xlu0 %v8009, 76
        %v8095 = vpop.permute.xlu0 %8094
        %v8096 = vsel %vm4732, %v8091, %v8093
        %v8097 = vsel %vm4732, %v8095, %v8093
        %v8102 = vadd.f32 %v8086, %v8091
        %v8103 = vadd.f32 %v8087, %v8096
        %v8104 = vadd.f32 %v8088, %v8095
        %v8105 = vadd.f32 %v8089, %v8097
        %8106 = vrot.lane.b32.xlu0 %v8008, 72
        %v8107 = vpop.permute.xlu0 %8106
        %8108 = vrot.lane.b32.xlu0 0.0, 72
        %v8109 = vpop.permute.xlu0 %8108
        %8110 = vrot.lane.b32.xlu0 %v8009, 72
        %v8111 = vpop.permute.xlu0 %8110
        %v8112 = vsel %vm4772, %v8107, %v8109
        %v8113 = vsel %vm4772, %v8111, %v8109
        %v8118 = vadd.f32 %v8102, %v8107
        %v8119 = vadd.f32 %v8103, %v8112
        %v8120 = vadd.f32 %v8104, %v8111
        %v8121 = vadd.f32 %v8105, %v8113
        %v8122 = vmul.f32 %v8118, 0.125
        %v8123 = vmul.f32 %v8119, 0.125
        %v8124 = vmul.f32 %v8120, 0.125
        %v8125 = vmul.f32 %v8121, 0.125
        %v8126 = vlaneseq
        %v8127 = vand.u32 %v8126, 127
        %v8128 = vld [vmem:[%s12] sm:$0xff]
        %v8129 = vld [vmem:[%s12 + $0x8] sm:$0xff]
        %8134 = vrot.lane.b32.xlu0 %v8122, 28
        %v8135 = vpop.permute.xlu0 %8134
        %8136 = vrot.lane.b32.xlu0 %v8123, 28
        %v8137 = vpop.permute.xlu0 %8136
        %8138 = vrot.lane.b32.xlu0 %v8124, 28
        %v8139 = vpop.permute.xlu0 %8138
        %8140 = vrot.lane.b32.xlu0 %v8125, 28
        %v8141 = vpop.permute.xlu0 %8140
        %v8142 = vsel %vm8007, %v8135, %v8137
        %v8143 = vsel %vm8007, %v8139, %v8141
        %v8146 = vmul.f32 %v8128, %v8142
        %v8147 = vmul.f32 %v8129, %v8143
        %8148 = vadd.xlane.f32.xlu0 %v8146
        %v8149 = vpop.xlane.xlu0 %8148
        %8150 = vadd.xlane.f32.xlu0 %v8147
        %v8151 = vpop.xlane.xlu0 %8150
        %v8152 = vadd.f32 %v8149, %v8151
        %v8153 = vrot.slane %v8152, 4
        %v8154 = vadd.f32 %v8152, %v8153
        %v8155 = vrot.slane %v8154, 2
        %v8156 = vadd.f32 %v8154, %v8155
        %v8157 = vrot.slane %v8156, 1
        %v8158 = vadd.f32 %v8156, %v8157
        %s8159 = sld [smem:[#allocation19]]
        %v8160 = vstv %s8159
        %v8161 = vadd.f32 %v8158, %v8160
        %vm8162 = vcmp.eq.s32.totalorder %v8127, 0
        %v8163 = vsel %vm8162, 1.0, 0.0
        %v8164 = vmul.f32 %v8163, %v8161
        %v8165 = vadd.f32 %v8164, 0.0
        %s8166 = scalar_lea.vmem %s12, 16
        %v8167 = vld [vmem:[%s8166] sm:$0xff]
        %v8168 = vld [vmem:[%s8166 + $0x8] sm:$0xff]
        %v8169 = vmul.f32 %v8167, %v8142
        %v8170 = vmul.f32 %v8168, %v8143
        %8171 = vadd.xlane.f32.xlu0 %v8169
        %v8172 = vpop.xlane.xlu0 %8171
        %8173 = vadd.xlane.f32.xlu0 %v8170
        %v8174 = vpop.xlane.xlu0 %8173
        %v8175 = vadd.f32 %v8172, %v8174
        %v8176 = vrot.slane %v8175, 4
        %v8177 = vadd.f32 %v8175, %v8176
        %v8178 = vrot.slane %v8177, 2
        %v8179 = vadd.f32 %v8177, %v8178
        %v8180 = vrot.slane %v8179, 1
        %v8181 = vadd.f32 %v8179, %v8180
        %s8182 = sld [smem:[#allocation19 + $0x1]]
        %v8183 = vstv %s8182
        %v8184 = vadd.f32 %v8181, %v8183
        %vm8185 = vcmp.eq.s32.totalorder %v8127, 1
        %v8186 = vsel %vm8185, 1.0, 0.0
        %v8187 = vmul.f32 %v8186, %v8184
        %v8188 = vadd.f32 %v8165, %v8187
        %s8189 = scalar_lea.vmem %s12, 32
        %v8190 = vld [vmem:[%s8189] sm:$0xff]
        %v8191 = vld [vmem:[%s8189 + $0x8] sm:$0xff]
        %v8192 = vmul.f32 %v8190, %v8142
        %v8193 = vmul.f32 %v8191, %v8143
        %8194 = vadd.xlane.f32.xlu0 %v8192
        %v8195 = vpop.xlane.xlu0 %8194
        %8196 = vadd.xlane.f32.xlu0 %v8193
        %v8197 = vpop.xlane.xlu0 %8196
        %v8198 = vadd.f32 %v8195, %v8197
        %v8199 = vrot.slane %v8198, 4
        %v8200 = vadd.f32 %v8198, %v8199
        %v8201 = vrot.slane %v8200, 2
        %v8202 = vadd.f32 %v8200, %v8201
        %v8203 = vrot.slane %v8202, 1
        %v8204 = vadd.f32 %v8202, %v8203
        %s8205 = sld [smem:[#allocation19 + $0x2]]
        %v8206 = vstv %s8205
        %v8207 = vadd.f32 %v8204, %v8206
        %vm8208 = vcmp.eq.s32.totalorder %v8127, 2
        %v8209 = vsel %vm8208, 1.0, 0.0
        %v8210 = vmul.f32 %v8209, %v8207
        %v8211 = vadd.f32 %v8188, %v8210
        %s8212 = scalar_lea.vmem %s12, 48
        %v8213 = vld [vmem:[%s8212] sm:$0xff]
        %v8214 = vld [vmem:[%s8212 + $0x8] sm:$0xff]
        %v8215 = vmul.f32 %v8213, %v8142
        %v8216 = vmul.f32 %v8214, %v8143
        %8217 = vadd.xlane.f32.xlu0 %v8215
        %v8218 = vpop.xlane.xlu0 %8217
        %8219 = vadd.xlane.f32.xlu0 %v8216
        %v8220 = vpop.xlane.xlu0 %8219
        %v8221 = vadd.f32 %v8218, %v8220
        %v8222 = vrot.slane %v8221, 4
        %v8223 = vadd.f32 %v8221, %v8222
        %v8224 = vrot.slane %v8223, 2
        %v8225 = vadd.f32 %v8223, %v8224
        %v8226 = vrot.slane %v8225, 1
        %v8227 = vadd.f32 %v8225, %v8226
        %s8228 = sld [smem:[#allocation19 + $0x3]]
        %v8229 = vstv %s8228
        %v8230 = vadd.f32 %v8227, %v8229
        %vm8231 = vcmp.eq.s32.totalorder %v8127, 3
        %v8232 = vsel %vm8231, 1.0, 0.0
        %v8233 = vmul.f32 %v8232, %v8230
        %v8234 = vadd.f32 %v8211, %v8233
        %8235 = vst [vmem:[%s596] sm:$0x1] %v8234
        %s8236 = sand.u32 %s341, 1
        %s8237 = scalar_lea.sflag [#allocation3], %s8236
        %s8238 = sand.u32 %s341, 1
        %s8239 = scalar_lea.vmem [#allocation20], %s8238
        // Predicated region
        $region121: #{tpu_custom_call.1} parent=75 // pred_check
          %p8240 = pneg %p351
        $region122: #{tpu_custom_call.1} parent=75 // pred_check_branch
          %8242 = sbr.rel (%p8240) target = $region124
        $region123: #{tpu_custom_call.1} parent=75 // pred_region
          %s8244 = ssub.s32 16, 16
          %8245 = vsyncadd %s8237, %s8244
          %s8246 = smul.addr %s34, 16
          %s8247 = scalar_lea.hbm %s14, %s8246
          %s8249 = sshll.u32 %s8239, 4
          %s8250 = int_to_ptr.vmem [resolvable:$true] %s8249
          %8252 = dma.vmem_to_hbm [thread:$0]  %s8250, 16, %s8247, %s8237
        $region124: #{tpu_custom_call.1} parent=75 // pred_fallthru
          _
      $region76: #{tpu_custom_call.1} parent=5 // pred_fallthru
        _
      %p8253 = scmp.le.s32.totalorder 2, %s29
      // Predicated region
      $region125: #{tpu_custom_call.1} parent=5 // pred_check
        %p8254 = pneg %p8253
      $region126: #{tpu_custom_call.1} parent=5 // pred_check_branch
        %8256 = sbr.rel (%p8254) target = $region128
      $region127: #{tpu_custom_call.1} parent=5 // pred_region
        %s8257 = ssub.s32 %s29, 2
        // Predicated region
        $region129: #{tpu_custom_call.1} parent=127 // pred_check
          %p8258 = pneg %p357
        $region130: #{tpu_custom_call.1} parent=127 // pred_check_branch
          %8260 = sbr.rel (%p8258) target = $region132
        $region131: #{tpu_custom_call.1} parent=127 // pred_region
          %s8261 = sand.u32 %s342, 1
          %s8262 = scalar_lea.sflag [#allocation3], %s8261
          %s8263 = sand.u32 %s342, 1
          %s8264 = scalar_lea.vmem [#allocation20], %s8263
          %8265 = dma.done %s8262, 16
        $region132: #{tpu_custom_call.1} parent=127 // pred_fallthru
          _
      $region128: #{tpu_custom_call.1} parent=5 // pred_fallthru
        _
    $region6: #{tpu_custom_call.1} parent=1 // loop_footer
      %s33 = sadd.s32 1, %s29
    $region7: #{tpu_custom_call.1} parent=1 // loop_footer_branch
      %28 = sbr.rel target = $region3
    $region8: #{tpu_custom_call.1} parent=1 // loop_exit
      _
    %8266 = vsyncpa [#allocation3], 1
    %s8267 = scalar_lea.sflag [#allocation3], 1
    %8268 = vsyncpa %s8267, 1
    %8269 = vsyncpa [#allocation4], 1
    %s8270 = scalar_lea.sflag [#allocation4], 1
    %8271 = vsyncpa %s8270, 1
    %8272 = vsyncpa [#allocation6], 1
    %8273 = vsyncpa [#allocation9], 1
    %8274 = vsyncpa [#allocation12], 1
    %8275 = vsyncpa [#allocation15], 1
    %8276 = vsyncpa [#allocation18], 1

</llo_original>
